<compile_context>
chip_gen: v5e
topology: v5e:2x2
jax: 0.10.0
libtpu: 0.0.40
codegen_flags: <defaults>
</compile_context>

<pallas_src>
import functools

import jax
import jax.numpy as jnp
from jax.experimental import pallas as pl
from jax.experimental.pallas import tpu as pltpu

EPS = 1e-5


# ----------------------------------------------------------------------------
# Pallas kernels
# ----------------------------------------------------------------------------
def _mm_bn_relu_kernel(x_ref, w_ref, scale_ref, shift_ref, o_ref):
    """1x1 conv as matmul: (TM, Cin)bf16 @ (Cin, Cout)bf16, fused BN + ReLU."""
    acc = jnp.dot(x_ref[...], w_ref[...], preferred_element_type=jnp.float32)
    y = acc * scale_ref[...] + shift_ref[...]
    o_ref[...] = jnp.maximum(y, 0.0).astype(o_ref.dtype)


def _mm_bn_add_relu_kernel(x_ref, w_ref, scale_ref, shift_ref, res_ref, o_ref):
    """1x1 conv as matmul, fused BN + residual add (f32) + ReLU."""
    acc = jnp.dot(x_ref[...], w_ref[...], preferred_element_type=jnp.float32)
    y = acc * scale_ref[...] + shift_ref[...] + res_ref[...].astype(jnp.float32)
    o_ref[...] = jnp.maximum(y, 0.0).astype(o_ref.dtype)


def _conv3x3_bn_relu_kernel(x_ref, w_ref, scale_ref, shift_ref, row_ref,
                            col_ref, o_ref, *, H, W):
    """3x3 conv (stride=1, pad=1) + BN + ReLU on one image.

    x_ref:            (H*W, Cin)  bf16 flat NHWC rows of one image
    w_ref:            (3, 3, Cin, Cout) bf16
    row_ref/col_ref:  (H*W, 1) int32 spatial coordinates of each flat row
    o_ref:            (H*W, Cout) bf16
    """
    hw, _ = x_ref.shape
    cout = o_ref.shape[-1]

    x_bf = x_ref[...]
    # Roll in f32: sublane rotations on packed bf16 rows are awkward; the
    # single upcast is VPU-cheap relative to the 9 MXU matmuls, and the rolls
    # land on the XLU slot so they overlap with MXU work.
    x32 = x_bf.astype(jnp.float32)
    row = row_ref[...]
    col = col_ref[...]

    acc = jnp.zeros((hw, cout), jnp.float32)
    for kh in range(3):
        for kw in range(3):
            dh, dw = kh - 1, kw - 1
            if dh == 0 and dw == 0:
                tap = x_bf                                   # centre: no shift
            else:
                shift = (-(dh * W + dw)) % hw                # static int
                xr = pltpu.roll(x32, shift, axis=0)          # XLU sublane rot
                valid = ((row + dh >= 0) & (row + dh < H) &
                         (col + dw >= 0) & (col + dw < W))
                tap = jnp.where(valid, xr, 0.0).astype(jnp.bfloat16)
            acc = acc + jnp.dot(tap, w_ref[kh, kw],
                                preferred_element_type=jnp.float32)

    y = acc * scale_ref[...] + shift_ref[...]
    o_ref[...] = jnp.maximum(y, 0.0).astype(o_ref.dtype)


# ----------------------------------------------------------------------------
# pallas_call wrappers
# ----------------------------------------------------------------------------
def _mm_bn_relu(x2d, w, scale, shift, *, block_m=256):
    # block_m: 256 here for the small test; use 512-1024 rows for real ResNet
    # shapes (and re-derive against v7x's tighter 64 MiB VMEM).
    m, k = x2d.shape
    n = w.shape[1]
    tm = min(block_m, m)
    return pl.pallas_call(
        _mm_bn_relu_kernel,
        out_shape=jax.ShapeDtypeStruct((m, n), jnp.bfloat16),
        grid=(pl.cdiv(m, tm),),
        in_specs=[
            pl.BlockSpec((tm, k), lambda i: (i, 0)),      # streamed rows
            pl.BlockSpec((k, n), lambda i: (0, 0)),       # resident weight
            pl.BlockSpec((1, n), lambda i: (0, 0)),       # resident BN scale
            pl.BlockSpec((1, n), lambda i: (0, 0)),       # resident BN shift
        ],
        out_specs=pl.BlockSpec((tm, n), lambda i: (i, 0)),
        compiler_params=pltpu.CompilerParams(
            dimension_semantics=("parallel",)),
    )(x2d, w, scale, shift)


def _mm_bn_add_relu(x2d, w, scale, shift, res2d, *, block_m=256):
    m, k = x2d.shape
    n = w.shape[1]
    tm = min(block_m, m)
    return pl.pallas_call(
        _mm_bn_add_relu_kernel,
        out_shape=jax.ShapeDtypeStruct((m, n), jnp.float32),
        grid=(pl.cdiv(m, tm),),
        in_specs=[
            pl.BlockSpec((tm, k), lambda i: (i, 0)),      # streamed rows
            pl.BlockSpec((k, n), lambda i: (0, 0)),       # resident weight
            pl.BlockSpec((1, n), lambda i: (0, 0)),
            pl.BlockSpec((1, n), lambda i: (0, 0)),
            pl.BlockSpec((tm, n), lambda i: (i, 0)),      # streamed residual
        ],
        out_specs=pl.BlockSpec((tm, n), lambda i: (i, 0)),
        compiler_params=pltpu.CompilerParams(
            dimension_semantics=("parallel",)),
    )(x2d, w, scale, shift, res2d)


def _conv3x3_bn_relu(x_flat, w_hwio, scale, shift, *, n, h, w):
    """x_flat: (N*H*W, Cin) bf16 flat NHWC rows.  Returns (N*H*W, Cout) bf16."""
    hw = h * w
    cin = x_flat.shape[-1]
    cout = w_hwio.shape[-1]
    pos = jnp.arange(hw, dtype=jnp.int32)
    row_idx = (pos // w).reshape(hw, 1)
    col_idx = (pos % w).reshape(hw, 1)
    kernel = functools.partial(_conv3x3_bn_relu_kernel, H=h, W=w)
    return pl.pallas_call(
        kernel,
        out_shape=jax.ShapeDtypeStruct((n * hw, cout), jnp.bfloat16),
        grid=(n,),
        in_specs=[
            pl.BlockSpec((hw, cin), lambda b: (b, 0)),          # one image/step
            pl.BlockSpec((3, 3, cin, cout), lambda b: (0, 0, 0, 0)),  # resident
            pl.BlockSpec((1, cout), lambda b: (0, 0)),
            pl.BlockSpec((1, cout), lambda b: (0, 0)),
            pl.BlockSpec((hw, 1), lambda b: (0, 0)),            # resident idx
            pl.BlockSpec((hw, 1), lambda b: (0, 0)),
        ],
        out_specs=pl.BlockSpec((hw, cout), lambda b: (b, 0)),
        compiler_params=pltpu.CompilerParams(
            dimension_semantics=("parallel",)),
    )(x_flat, w_hwio, scale, shift, row_idx, col_idx)


# ----------------------------------------------------------------------------
# Bottleneck module (parameters + forward)
# ----------------------------------------------------------------------------
def _fold_bn(gamma, beta, mean, var):
    scale = gamma * jax.lax.rsqrt(var + EPS)
    shift = beta - mean * scale
    return scale.reshape(1, -1), shift.reshape(1, -1)


def init_bottleneck_params(key, inplanes, planes, base_width=64, groups=1):
    width = int(planes * (base_width / 64.0)) * groups
    cout = planes * 4  # expansion
    ks = jax.random.split(key, 6)

    def bn_params(k, c):
        k1, k2, k3, k4 = jax.random.split(k, 4)
        gamma = jax.random.normal(k1, (c,), jnp.float32) * 0.1 + 1.0
        beta = jax.random.normal(k2, (c,), jnp.float32) * 0.1
        mean = jax.random.normal(k3, (c,), jnp.float32) * 0.1
        var = jnp.abs(jax.random.normal(k4, (c,), jnp.float32)) * 0.1 + 0.5
        return gamma, beta, mean, var

    params = dict(
        w1=jax.random.normal(ks[0], (inplanes, width), jnp.float32) * 0.1,
        bn1=bn_params(ks[1], width),
        w2=jax.random.normal(ks[2], (3, 3, width, width), jnp.float32) * 0.1,
        bn2=bn_params(ks[3], width),
        w3=jax.random.normal(ks[4], (width, cout), jnp.float32) * 0.1,
        bn3=bn_params(ks[5], cout),
    )
    return params, width, cout


def bottleneck_forward(x_nchw, params):
    """Bottleneck forward (stride=1, downsample=None).  Input/output NCHW f32."""
    n, cin, h, w = x_nchw.shape
    cout = params["w3"].shape[1]
    if cin != cout:
        raise NotImplementedError(
            "downsample branch not implemented: requires inplanes == planes*4")

    # TODO(synk): accept NHWC input to avoid this transpose pass.
    x_nhwc = jnp.transpose(x_nchw, (0, 2, 3, 1))
    x_flat = x_nhwc.reshape(n * h * w, cin)          # f32 residual path
    x_bf = x_flat.astype(jnp.bfloat16)               # bf16 MXU operand

    w1 = params["w1"].astype(jnp.bfloat16)
    w2 = params["w2"].astype(jnp.bfloat16)
    w3 = params["w3"].astype(jnp.bfloat16)
    s1, b1 = _fold_bn(*params["bn1"])
    s2, b2 = _fold_bn(*params["bn2"])
    s3, b3 = _fold_bn(*params["bn3"])

    # conv1 (1x1) + bn1 + relu                          -> (M, width) bf16
    out = _mm_bn_relu(x_bf, w1, s1, b1)
    # conv2 (3x3, pad=1, stride=1) + bn2 + relu         -> (M, width) bf16
    out = _conv3x3_bn_relu(out, w2, s2, b2, n=n, h=h, w=w)
    # conv3 (1x1) + bn3 + identity add + relu           -> (M, cout) f32
    out = _mm_bn_add_relu(out, w3, s3, b3, x_flat)

    out = out.reshape(n, h, w, cout)
    return jnp.transpose(out, (0, 3, 1, 2))           # -> NCHW


# ----------------------------------------------------------------------------
# Pure-JAX reference (same dtype pipeline, for validation)
# ----------------------------------------------------------------------------
def _bn_apply(y, scale, shift):
    return y * scale.reshape(1, 1, 1, -1) + shift.reshape(1, 1, 1, -1)


def bottleneck_ref(x_nchw, params):
    x = jnp.transpose(x_nchw, (0, 2, 3, 1))
    dn = ("NHWC", "HWIO", "NHWC")
    s1, b1 = _fold_bn(*params["bn1"])
    s2, b2 = _fold_bn(*params["bn2"])
    s3, b3 = _fold_bn(*params["bn3"])
    w1 = params["w1"].astype(jnp.bfloat16)[None, None]   # (1,1,Cin,width)
    w2 = params["w2"].astype(jnp.bfloat16)
    w3 = params["w3"].astype(jnp.bfloat16)[None, None]   # (1,1,width,Cout)

    y = jax.lax.conv_general_dilated(
        x.astype(jnp.bfloat16), w1, (1, 1), "VALID", dimension_numbers=dn,
        preferred_element_type=jnp.float32)
    y = jnp.maximum(_bn_apply(y, s1, b1), 0.0).astype(jnp.bfloat16)
    y = jax.lax.conv_general_dilated(
        y, w2, (1, 1), "SAME", dimension_numbers=dn,
        preferred_element_type=jnp.float32)
    y = jnp.maximum(_bn_apply(y, s2, b2), 0.0).astype(jnp.bfloat16)
    y = jax.lax.conv_general_dilated(
        y, w3, (1, 1), "VALID", dimension_numbers=dn,
        preferred_element_type=jnp.float32)
    y = jnp.maximum(_bn_apply(y, s3, b3) + x, 0.0)
    return jnp.transpose(y, (0, 3, 1, 2))


# ----------------------------------------------------------------------------
if __name__ == "__main__":
    # Canonical Bottleneck(inplanes=256, planes=64): identity residual works
    # without a downsample branch.  Small 16x16 spatial, batch 2.
    N, planes, H, W = 2, 64, 16, 16
    inplanes = planes * 4  # 256

    key = jax.random.PRNGKey(0)
    kx, kp = jax.random.split(key)
    x = jax.random.normal(kx, (N, inplanes, H, W), jnp.float32)

    params, width, cout = init_bottleneck_params(kp, inplanes, planes)

    out = jax.jit(bottleneck_forward)(x, params)
    out = jax.block_until_ready(out)

    ref = bottleneck_ref(x, params)
    assert out.shape == (N, cout, H, W), out.shape
    max_err = float(jnp.max(jnp.abs(out - ref)))
    assert jnp.allclose(out, ref, atol=5e-2, rtol=5e-2), max_err

    print("KERNEL_OK")
</pallas_src>

<mosaic_0001>
module attributes {stable_mosaic.version = 11 : i64} {
  func.func @_mm_bn_relu_kernel(%arg0: i32, %arg1: memref<256x256xbf16, #tpu.memory_space<vmem>>, %arg2: memref<256x64xbf16, #tpu.memory_space<vmem>>, %arg3: memref<1x64xf32, #tpu.memory_space<vmem>>, %arg4: memref<1x64xf32, #tpu.memory_space<vmem>>, %arg5: memref<256x64xbf16, #tpu.memory_space<vmem>>) attributes {dimension_semantics = [#tpu.dimension_semantics<parallel>], iteration_bounds = array<i64: 2>, scalar_prefetch = 0 : i64, scratch_operands = 0 : i64, tpu.core_type = #tpu.core_type<tc>, window_params = [{transform_indices = @transform_0, window_bounds = array<i64: 256, 256>}, {pipeline_mode = #tpu.pipeline_mode<synchronous>, transform_indices = @transform_1, window_bounds = array<i64: 256, 64>}, {pipeline_mode = #tpu.pipeline_mode<synchronous>, transform_indices = @transform_2, window_bounds = array<i64: 1, 64>}, {pipeline_mode = #tpu.pipeline_mode<synchronous>, transform_indices = @transform_3, window_bounds = array<i64: 1, 64>}, {transform_indices = @transform_4, window_bounds = array<i64: 256, 64>}]} {
    %c0 = arith.constant 0 : index
    %c0_0 = arith.constant 0 : index
    %0 = vector.load %arg1[%c0, %c0_0] : memref<256x256xbf16, #tpu.memory_space<vmem>>, vector<256x256xbf16>
    %c0_1 = arith.constant 0 : index
    %c0_2 = arith.constant 0 : index
    %1 = vector.load %arg2[%c0_1, %c0_2] : memref<256x64xbf16, #tpu.memory_space<vmem>>, vector<256x64xbf16>
    %cst = arith.constant dense<0.000000e+00> : vector<256x64xf32>
    %2 = tpu.matmul %0, %1, %cst {dimension_numbers = #tpu.dot_dimension_numbers<[1], [0], [0], [1], [0, 0, 1, 1], [], []>} : vector<256x256xbf16>, vector<256x64xbf16>, vector<256x64xf32> -> vector<256x64xf32>
    %c0_3 = arith.constant 0 : index
    %c0_4 = arith.constant 0 : index
    %3 = vector.load %arg3[%c0_3, %c0_4] : memref<1x64xf32, #tpu.memory_space<vmem>>, vector<1x64xf32>
    %4 = vector.broadcast %3 : vector<1x64xf32> to vector<256x64xf32>
    %5 = arith.mulf %2, %4 : vector<256x64xf32>
    %c0_5 = arith.constant 0 : index
    %c0_6 = arith.constant 0 : index
    %6 = vector.load %arg4[%c0_5, %c0_6] : memref<1x64xf32, #tpu.memory_space<vmem>>, vector<1x64xf32>
    %7 = vector.broadcast %6 : vector<1x64xf32> to vector<256x64xf32>
    %8 = arith.addf %5, %7 : vector<256x64xf32>
    %cst_7 = arith.constant 0.000000e+00 : f32
    %9 = vector.broadcast %cst_7 : f32 to vector<256x64xf32>
    %10 = arith.maximumf %8, %9 : vector<256x64xf32>
    %11 = arith.truncf %10 : vector<256x64xf32> to vector<256x64xbf16>
    %c0_8 = arith.constant 0 : index
    %c0_9 = arith.constant 0 : index
    %12 = vector.load %arg5[%c0_8, %c0_9] : memref<256x64xbf16, #tpu.memory_space<vmem>>, vector<256x64xbf16>
    tpu.vector_store %arg5[%c0_8, %c0_9], %11 {strides = array<i32>} : memref<256x64xbf16, #tpu.memory_space<vmem>>, vector<256x64xbf16>,
    return
  }
  func.func @transform_0(%arg0: i32) -> (i32, i32) {
    %c0_i32 = arith.constant 0 : i32
    %c0_i32_0 = arith.constant 0 : i32
    return %arg0, %c0_i32 : i32, i32
  }
  func.func @transform_1(%arg0: i32) -> (i32, i32) {
    %c0_i32 = arith.constant 0 : i32
    %c0_i32_0 = arith.constant 0 : i32
    %c0_i32_1 = arith.constant 0 : i32
    return %c0_i32, %c0_i32_0 : i32, i32
  }
  func.func @transform_2(%arg0: i32) -> (i32, i32) {
    %c0_i32 = arith.constant 0 : i32
    %c0_i32_0 = arith.constant 0 : i32
    %c0_i32_1 = arith.constant 0 : i32
    return %c0_i32, %c0_i32_0 : i32, i32
  }
  func.func @transform_3(%arg0: i32) -> (i32, i32) {
    %c0_i32 = arith.constant 0 : i32
    %c0_i32_0 = arith.constant 0 : i32
    %c0_i32_1 = arith.constant 0 : i32
    return %c0_i32, %c0_i32_0 : i32, i32
  }
  func.func @transform_4(%arg0: i32) -> (i32, i32) {
    %c0_i32 = arith.constant 0 : i32
    %c0_i32_0 = arith.constant 0 : i32
    return %arg0, %c0_i32 : i32, i32
  }
}

module attributes {stable_mosaic.version = 11 : i64} {
  func.func @_conv3x3_bn_relu_kernel(%arg0: i32, %arg1: memref<256x64xbf16, #tpu.memory_space<vmem>>, %arg2: memref<3x3x64x64xbf16, #tpu.memory_space<vmem>>, %arg3: memref<1x64xf32, #tpu.memory_space<vmem>>, %arg4: memref<1x64xf32, #tpu.memory_space<vmem>>, %arg5: memref<256x1xi32, #tpu.memory_space<vmem>>, %arg6: memref<256x1xi32, #tpu.memory_space<vmem>>, %arg7: memref<256x64xbf16, #tpu.memory_space<vmem>>) attributes {dimension_semantics = [#tpu.dimension_semantics<parallel>], iteration_bounds = array<i64: 2>, scalar_prefetch = 0 : i64, scratch_operands = 0 : i64, tpu.core_type = #tpu.core_type<tc>, window_params = [{transform_indices = @transform_0, window_bounds = array<i64: 256, 64>}, {pipeline_mode = #tpu.pipeline_mode<synchronous>, transform_indices = @transform_1, window_bounds = array<i64: 3, 3, 64, 64>}, {pipeline_mode = #tpu.pipeline_mode<synchronous>, transform_indices = @transform_2, window_bounds = array<i64: 1, 64>}, {pipeline_mode = #tpu.pipeline_mode<synchronous>, transform_indices = @transform_3, window_bounds = array<i64: 1, 64>}, {pipeline_mode = #tpu.pipeline_mode<synchronous>, transform_indices = @transform_4, window_bounds = array<i64: 256, 1>}, {pipeline_mode = #tpu.pipeline_mode<synchronous>, transform_indices = @transform_5, window_bounds = array<i64: 256, 1>}, {transform_indices = @transform_6, window_bounds = array<i64: 256, 64>}]} {
    %c0 = arith.constant 0 : index
    %c0_0 = arith.constant 0 : index
    %0 = vector.load %arg1[%c0, %c0_0] : memref<256x64xbf16, #tpu.memory_space<vmem>>, vector<256x64xbf16>
    %1 = arith.extf %0 : vector<256x64xbf16> to vector<256x64xf32>
    %c0_1 = arith.constant 0 : index
    %c0_2 = arith.constant 0 : index
    %2 = vector.load %arg5[%c0_1, %c0_2] : memref<256x1xi32, #tpu.memory_space<vmem>>, vector<256x1xi32>
    %c0_3 = arith.constant 0 : index
    %c0_4 = arith.constant 0 : index
    %3 = vector.load %arg6[%c0_3, %c0_4] : memref<256x1xi32, #tpu.memory_space<vmem>>, vector<256x1xi32>
    %cst = arith.constant 0.000000e+00 : f32
    %4 = vector.broadcast %cst : f32 to vector<256x64xf32>
    %c17_i32 = arith.constant 17 : i32
    %5 = tpu.dynamic_rotate %1 by %c17_i32 dim 0 : vector<256x64xf32>, i32 -> vector<256x64xf32>
    %c-1_i32 = arith.constant -1 : i32
    %6 = vector.broadcast %c-1_i32 : i32 to vector<256x1xi32>
    %7 = arith.addi %2, %6 : vector<256x1xi32>
    %c0_i32 = arith.constant 0 : i32
    %8 = vector.broadcast %c0_i32 : i32 to vector<256x1xi32>
    %9 = arith.cmpi sge, %7, %8 : vector<256x1xi32>
    %c-1_i32_5 = arith.constant -1 : i32
    %10 = vector.broadcast %c-1_i32_5 : i32 to vector<256x1xi32>
    %11 = arith.addi %2, %10 : vector<256x1xi32>
    %c16_i32 = arith.constant 16 : i32
    %12 = vector.broadcast %c16_i32 : i32 to vector<256x1xi32>
    %13 = arith.cmpi slt, %11, %12 : vector<256x1xi32>
    %14 = arith.andi %9, %13 : vector<256x1xi1>
    %c-1_i32_6 = arith.constant -1 : i32
    %15 = vector.broadcast %c-1_i32_6 : i32 to vector<256x1xi32>
    %16 = arith.addi %3, %15 : vector<256x1xi32>
    %c0_i32_7 = arith.constant 0 : i32
    %17 = vector.broadcast %c0_i32_7 : i32 to vector<256x1xi32>
    %18 = arith.cmpi sge, %16, %17 : vector<256x1xi32>
    %19 = arith.andi %14, %18 : vector<256x1xi1>
    %c-1_i32_8 = arith.constant -1 : i32
    %20 = vector.broadcast %c-1_i32_8 : i32 to vector<256x1xi32>
    %21 = arith.addi %3, %20 : vector<256x1xi32>
    %c16_i32_9 = arith.constant 16 : i32
    %22 = vector.broadcast %c16_i32_9 : i32 to vector<256x1xi32>
    %23 = arith.cmpi slt, %21, %22 : vector<256x1xi32>
    %24 = arith.andi %19, %23 : vector<256x1xi1>
    %cst_10 = arith.constant 0.000000e+00 : f32
    %25 = vector.shape_cast %24 : vector<256x1xi1> to vector<256x1xi1>
    %26 = vector.broadcast %25 : vector<256x1xi1> to vector<256x64xi1>
    %27 = vector.broadcast %cst_10 : f32 to vector<256x64xf32>
    %28 = arith.select %26, %5, %27 : vector<256x64xi1>, vector<256x64xf32>
    %29 = arith.truncf %28 : vector<256x64xf32> to vector<256x64xbf16>
    %c0_11 = arith.constant 0 : index
    %c0_12 = arith.constant 0 : index
    %c0_13 = arith.constant 0 : index
    %c0_14 = arith.constant 0 : index
    %30 = vector.load %arg2[%c0_11, %c0_12, %c0_13, %c0_14] : memref<3x3x64x64xbf16, #tpu.memory_space<vmem>>, vector<1x1x64x64xbf16>
    %31 = vector.shape_cast %30 : vector<1x1x64x64xbf16> to vector<64x64xbf16>
    %cst_15 = arith.constant dense<0.000000e+00> : vector<256x64xf32>
    %32 = tpu.matmul %29, %31, %cst_15 {dimension_numbers = #tpu.dot_dimension_numbers<[1], [0], [0], [1], [0, 0, 1, 1], [], []>} : vector<256x64xbf16>, vector<64x64xbf16>, vector<256x64xf32> -> vector<256x64xf32>
    %33 = arith.addf %4, %32 : vector<256x64xf32>
    %c16_i32_16 = arith.constant 16 : i32
    %34 = tpu.dynamic_rotate %1 by %c16_i32_16 dim 0 : vector<256x64xf32>, i32 -> vector<256x64xf32>
    %c-1_i32_17 = arith.constant -1 : i32
    %35 = vector.broadcast %c-1_i32_17 : i32 to vector<256x1xi32>
    %36 = arith.addi %2, %35 : vector<256x1xi32>
    %c0_i32_18 = arith.constant 0 : i32
    %37 = vector.broadcast %c0_i32_18 : i32 to vector<256x1xi32>
    %38 = arith.cmpi sge, %36, %37 : vector<256x1xi32>
    %c-1_i32_19 = arith.constant -1 : i32
    %39 = vector.broadcast %c-1_i32_19 : i32 to vector<256x1xi32>
    %40 = arith.addi %2, %39 : vector<256x1xi32>
    %c16_i32_20 = arith.constant 16 : i32
    %41 = vector.broadcast %c16_i32_20 : i32 to vector<256x1xi32>
    %42 = arith.cmpi slt, %40, %41 : vector<256x1xi32>
    %43 = arith.andi %38, %42 : vector<256x1xi1>
    %c0_i32_21 = arith.constant 0 : i32
    %44 = vector.broadcast %c0_i32_21 : i32 to vector<256x1xi32>
    %45 = arith.addi %3, %44 : vector<256x1xi32>
    %c0_i32_22 = arith.constant 0 : i32
    %46 = vector.broadcast %c0_i32_22 : i32 to vector<256x1xi32>
    %47 = arith.cmpi sge, %45, %46 : vector<256x1xi32>
    %48 = arith.andi %43, %47 : vector<256x1xi1>
    %c0_i32_23 = arith.constant 0 : i32
    %49 = vector.broadcast %c0_i32_23 : i32 to vector<256x1xi32>
    %50 = arith.addi %3, %49 : vector<256x1xi32>
    %c16_i32_24 = arith.constant 16 : i32
    %51 = vector.broadcast %c16_i32_24 : i32 to vector<256x1xi32>
    %52 = arith.cmpi slt, %50, %51 : vector<256x1xi32>
    %53 = arith.andi %48, %52 : vector<256x1xi1>
    %cst_25 = arith.constant 0.000000e+00 : f32
    %54 = vector.shape_cast %53 : vector<256x1xi1> to vector<256x1xi1>
    %55 = vector.broadcast %54 : vector<256x1xi1> to vector<256x64xi1>
    %56 = vector.broadcast %cst_25 : f32 to vector<256x64xf32>
    %57 = arith.select %55, %34, %56 : vector<256x64xi1>, vector<256x64xf32>
    %58 = arith.truncf %57 : vector<256x64xf32> to vector<256x64xbf16>
    %c0_26 = arith.constant 0 : index
    %c1 = arith.constant 1 : index
    %c0_27 = arith.constant 0 : index
    %c0_28 = arith.constant 0 : index
    %59 = vector.load %arg2[%c0_26, %c1, %c0_27, %c0_28] : memref<3x3x64x64xbf16, #tpu.memory_space<vmem>>, vector<1x1x64x64xbf16>
    %60 = vector.shape_cast %59 : vector<1x1x64x64xbf16> to vector<64x64xbf16>
    %cst_29 = arith.constant dense<0.000000e+00> : vector<256x64xf32>
    %61 = tpu.matmul %58, %60, %cst_29 {dimension_numbers = #tpu.dot_dimension_numbers<[1], [0], [0], [1], [0, 0, 1, 1], [], []>} : vector<256x64xbf16>, vector<64x64xbf16>, vector<256x64xf32> -> vector<256x64xf32>
    %62 = arith.addf %33, %61 : vector<256x64xf32>
    %c15_i32 = arith.constant 15 : i32
    %63 = tpu.dynamic_rotate %1 by %c15_i32 dim 0 : vector<256x64xf32>, i32 -> vector<256x64xf32>
    %c-1_i32_30 = arith.constant -1 : i32
    %64 = vector.broadcast %c-1_i32_30 : i32 to vector<256x1xi32>
    %65 = arith.addi %2, %64 : vector<256x1xi32>
    %c0_i32_31 = arith.constant 0 : i32
    %66 = vector.broadcast %c0_i32_31 : i32 to vector<256x1xi32>
    %67 = arith.cmpi sge, %65, %66 : vector<256x1xi32>
    %c-1_i32_32 = arith.constant -1 : i32
    %68 = vector.broadcast %c-1_i32_32 : i32 to vector<256x1xi32>
    %69 = arith.addi %2, %68 : vector<256x1xi32>
    %c16_i32_33 = arith.constant 16 : i32
    %70 = vector.broadcast %c16_i32_33 : i32 to vector<256x1xi32>
    %71 = arith.cmpi slt, %69, %70 : vector<256x1xi32>
    %72 = arith.andi %67, %71 : vector<256x1xi1>
    %c1_i32 = arith.constant 1 : i32
    %73 = vector.broadcast %c1_i32 : i32 to vector<256x1xi32>
    %74 = arith.addi %3, %73 : vector<256x1xi32>
    %c0_i32_34 = arith.constant 0 : i32
    %75 = vector.broadcast %c0_i32_34 : i32 to vector<256x1xi32>
    %76 = arith.cmpi sge, %74, %75 : vector<256x1xi32>
    %77 = arith.andi %72, %76 : vector<256x1xi1>
    %c1_i32_35 = arith.constant 1 : i32
    %78 = vector.broadcast %c1_i32_35 : i32 to vector<256x1xi32>
    %79 = arith.addi %3, %78 : vector<256x1xi32>
    %c16_i32_36 = arith.constant 16 : i32
    %80 = vector.broadcast %c16_i32_36 : i32 to vector<256x1xi32>
    %81 = arith.cmpi slt, %79, %80 : vector<256x1xi32>
    %82 = arith.andi %77, %81 : vector<256x1xi1>
    %cst_37 = arith.constant 0.000000e+00 : f32
    %83 = vector.shape_cast %82 : vector<256x1xi1> to vector<256x1xi1>
    %84 = vector.broadcast %83 : vector<256x1xi1> to vector<256x64xi1>
    %85 = vector.broadcast %cst_37 : f32 to vector<256x64xf32>
    %86 = arith.select %84, %63, %85 : vector<256x64xi1>, vector<256x64xf32>
    %87 = arith.truncf %86 : vector<256x64xf32> to vector<256x64xbf16>
    %c0_38 = arith.constant 0 : index
    %c2 = arith.constant 2 : index
    %c0_39 = arith.constant 0 : index
    %c0_40 = arith.constant 0 : index
    %88 = vector.load %arg2[%c0_38, %c2, %c0_39, %c0_40] : memref<3x3x64x64xbf16, #tpu.memory_space<vmem>>, vector<1x1x64x64xbf16>
    %89 = vector.shape_cast %88 : vector<1x1x64x64xbf16> to vector<64x64xbf16>
    %cst_41 = arith.constant dense<0.000000e+00> : vector<256x64xf32>
    %90 = tpu.matmul %87, %89, %cst_41 {dimension_numbers = #tpu.dot_dimension_numbers<[1], [0], [0], [1], [0, 0, 1, 1], [], []>} : vector<256x64xbf16>, vector<64x64xbf16>, vector<256x64xf32> -> vector<256x64xf32>
    %91 = arith.addf %62, %90 : vector<256x64xf32>
    %c1_i32_42 = arith.constant 1 : i32
    %92 = tpu.dynamic_rotate %1 by %c1_i32_42 dim 0 : vector<256x64xf32>, i32 -> vector<256x64xf32>
    %c0_i32_43 = arith.constant 0 : i32
    %93 = vector.broadcast %c0_i32_43 : i32 to vector<256x1xi32>
    %94 = arith.addi %2, %93 : vector<256x1xi32>
    %c0_i32_44 = arith.constant 0 : i32
    %95 = vector.broadcast %c0_i32_44 : i32 to vector<256x1xi32>
    %96 = arith.cmpi sge, %94, %95 : vector<256x1xi32>
    %c0_i32_45 = arith.constant 0 : i32
    %97 = vector.broadcast %c0_i32_45 : i32 to vector<256x1xi32>
    %98 = arith.addi %2, %97 : vector<256x1xi32>
    %c16_i32_46 = arith.constant 16 : i32
    %99 = vector.broadcast %c16_i32_46 : i32 to vector<256x1xi32>
    %100 = arith.cmpi slt, %98, %99 : vector<256x1xi32>
    %101 = arith.andi %96, %100 : vector<256x1xi1>
    %c-1_i32_47 = arith.constant -1 : i32
    %102 = vector.broadcast %c-1_i32_47 : i32 to vector<256x1xi32>
    %103 = arith.addi %3, %102 : vector<256x1xi32>
    %c0_i32_48 = arith.constant 0 : i32
    %104 = vector.broadcast %c0_i32_48 : i32 to vector<256x1xi32>
    %105 = arith.cmpi sge, %103, %104 : vector<256x1xi32>
    %106 = arith.andi %101, %105 : vector<256x1xi1>
    %c-1_i32_49 = arith.constant -1 : i32
    %107 = vector.broadcast %c-1_i32_49 : i32 to vector<256x1xi32>
    %108 = arith.addi %3, %107 : vector<256x1xi32>
    %c16_i32_50 = arith.constant 16 : i32
    %109 = vector.broadcast %c16_i32_50 : i32 to vector<256x1xi32>
    %110 = arith.cmpi slt, %108, %109 : vector<256x1xi32>
    %111 = arith.andi %106, %110 : vector<256x1xi1>
    %cst_51 = arith.constant 0.000000e+00 : f32
    %112 = vector.shape_cast %111 : vector<256x1xi1> to vector<256x1xi1>
    %113 = vector.broadcast %112 : vector<256x1xi1> to vector<256x64xi1>
    %114 = vector.broadcast %cst_51 : f32 to vector<256x64xf32>
    %115 = arith.select %113, %92, %114 : vector<256x64xi1>, vector<256x64xf32>
    %116 = arith.truncf %115 : vector<256x64xf32> to vector<256x64xbf16>
    %c1_52 = arith.constant 1 : index
    %c0_53 = arith.constant 0 : index
    %c0_54 = arith.constant 0 : index
    %c0_55 = arith.constant 0 : index
    %117 = vector.load %arg2[%c1_52, %c0_53, %c0_54, %c0_55] : memref<3x3x64x64xbf16, #tpu.memory_space<vmem>>, vector<1x1x64x64xbf16>
    %118 = vector.shape_cast %117 : vector<1x1x64x64xbf16> to vector<64x64xbf16>
    %cst_56 = arith.constant dense<0.000000e+00> : vector<256x64xf32>
    %119 = tpu.matmul %116, %118, %cst_56 {dimension_numbers = #tpu.dot_dimension_numbers<[1], [0], [0], [1], [0, 0, 1, 1], [], []>} : vector<256x64xbf16>, vector<64x64xbf16>, vector<256x64xf32> -> vector<256x64xf32>
    %120 = arith.addf %91, %119 : vector<256x64xf32>
    %c1_57 = arith.constant 1 : index
    %c1_58 = arith.constant 1 : index
    %c0_59 = arith.constant 0 : index
    %c0_60 = arith.constant 0 : index
    %121 = vector.load %arg2[%c1_57, %c1_58, %c0_59, %c0_60] : memref<3x3x64x64xbf16, #tpu.memory_space<vmem>>, vector<1x1x64x64xbf16>
    %122 = vector.shape_cast %121 : vector<1x1x64x64xbf16> to vector<64x64xbf16>
    %cst_61 = arith.constant dense<0.000000e+00> : vector<256x64xf32>
    %123 = tpu.matmul %0, %122, %cst_61 {dimension_numbers = #tpu.dot_dimension_numbers<[1], [0], [0], [1], [0, 0, 1, 1], [], []>} : vector<256x64xbf16>, vector<64x64xbf16>, vector<256x64xf32> -> vector<256x64xf32>
    %124 = arith.addf %120, %123 : vector<256x64xf32>
    %c255_i32 = arith.constant 255 : i32
    %125 = tpu.dynamic_rotate %1 by %c255_i32 dim 0 : vector<256x64xf32>, i32 -> vector<256x64xf32>
    %c0_i32_62 = arith.constant 0 : i32
    %126 = vector.broadcast %c0_i32_62 : i32 to vector<256x1xi32>
    %127 = arith.addi %2, %126 : vector<256x1xi32>
    %c0_i32_63 = arith.constant 0 : i32
    %128 = vector.broadcast %c0_i32_63 : i32 to vector<256x1xi32>
    %129 = arith.cmpi sge, %127, %128 : vector<256x1xi32>
    %c0_i32_64 = arith.constant 0 : i32
    %130 = vector.broadcast %c0_i32_64 : i32 to vector<256x1xi32>
    %131 = arith.addi %2, %130 : vector<256x1xi32>
    %c16_i32_65 = arith.constant 16 : i32
    %132 = vector.broadcast %c16_i32_65 : i32 to vector<256x1xi32>
    %133 = arith.cmpi slt, %131, %132 : vector<256x1xi32>
    %134 = arith.andi %129, %133 : vector<256x1xi1>
    %c1_i32_66 = arith.constant 1 : i32
    %135 = vector.broadcast %c1_i32_66 : i32 to vector<256x1xi32>
    %136 = arith.addi %3, %135 : vector<256x1xi32>
    %c0_i32_67 = arith.constant 0 : i32
    %137 = vector.broadcast %c0_i32_67 : i32 to vector<256x1xi32>
    %138 = arith.cmpi sge, %136, %137 : vector<256x1xi32>
    %139 = arith.andi %134, %138 : vector<256x1xi1>
    %c1_i32_68 = arith.constant 1 : i32
    %140 = vector.broadcast %c1_i32_68 : i32 to vector<256x1xi32>
    %141 = arith.addi %3, %140 : vector<256x1xi32>
    %c16_i32_69 = arith.constant 16 : i32
    %142 = vector.broadcast %c16_i32_69 : i32 to vector<256x1xi32>
    %143 = arith.cmpi slt, %141, %142 : vector<256x1xi32>
    %144 = arith.andi %139, %143 : vector<256x1xi1>
    %cst_70 = arith.constant 0.000000e+00 : f32
    %145 = vector.shape_cast %144 : vector<256x1xi1> to vector<256x1xi1>
    %146 = vector.broadcast %145 : vector<256x1xi1> to vector<256x64xi1>
    %147 = vector.broadcast %cst_70 : f32 to vector<256x64xf32>
    %148 = arith.select %146, %125, %147 : vector<256x64xi1>, vector<256x64xf32>
    %149 = arith.truncf %148 : vector<256x64xf32> to vector<256x64xbf16>
    %c1_71 = arith.constant 1 : index
    %c2_72 = arith.constant 2 : index
    %c0_73 = arith.constant 0 : index
    %c0_74 = arith.constant 0 : index
    %150 = vector.load %arg2[%c1_71, %c2_72, %c0_73, %c0_74] : memref<3x3x64x64xbf16, #tpu.memory_space<vmem>>, vector<1x1x64x64xbf16>
    %151 = vector.shape_cast %150 : vector<1x1x64x64xbf16> to vector<64x64xbf16>
    %cst_75 = arith.constant dense<0.000000e+00> : vector<256x64xf32>
    %152 = tpu.matmul %149, %151, %cst_75 {dimension_numbers = #tpu.dot_dimension_numbers<[1], [0], [0], [1], [0, 0, 1, 1], [], []>} : vector<256x64xbf16>, vector<64x64xbf16>, vector<256x64xf32> -> vector<256x64xf32>
    %153 = arith.addf %124, %152 : vector<256x64xf32>
    %c241_i32 = arith.constant 241 : i32
    %154 = tpu.dynamic_rotate %1 by %c241_i32 dim 0 : vector<256x64xf32>, i32 -> vector<256x64xf32>
    %c1_i32_76 = arith.constant 1 : i32
    %155 = vector.broadcast %c1_i32_76 : i32 to vector<256x1xi32>
    %156 = arith.addi %2, %155 : vector<256x1xi32>
    %c0_i32_77 = arith.constant 0 : i32
    %157 = vector.broadcast %c0_i32_77 : i32 to vector<256x1xi32>
    %158 = arith.cmpi sge, %156, %157 : vector<256x1xi32>
    %c1_i32_78 = arith.constant 1 : i32
    %159 = vector.broadcast %c1_i32_78 : i32 to vector<256x1xi32>
    %160 = arith.addi %2, %159 : vector<256x1xi32>
    %c16_i32_79 = arith.constant 16 : i32
    %161 = vector.broadcast %c16_i32_79 : i32 to vector<256x1xi32>
    %162 = arith.cmpi slt, %160, %161 : vector<256x1xi32>
    %163 = arith.andi %158, %162 : vector<256x1xi1>
    %c-1_i32_80 = arith.constant -1 : i32
    %164 = vector.broadcast %c-1_i32_80 : i32 to vector<256x1xi32>
    %165 = arith.addi %3, %164 : vector<256x1xi32>
    %c0_i32_81 = arith.constant 0 : i32
    %166 = vector.broadcast %c0_i32_81 : i32 to vector<256x1xi32>
    %167 = arith.cmpi sge, %165, %166 : vector<256x1xi32>
    %168 = arith.andi %163, %167 : vector<256x1xi1>
    %c-1_i32_82 = arith.constant -1 : i32
    %169 = vector.broadcast %c-1_i32_82 : i32 to vector<256x1xi32>
    %170 = arith.addi %3, %169 : vector<256x1xi32>
    %c16_i32_83 = arith.constant 16 : i32
    %171 = vector.broadcast %c16_i32_83 : i32 to vector<256x1xi32>
    %172 = arith.cmpi slt, %170, %171 : vector<256x1xi32>
    %173 = arith.andi %168, %172 : vector<256x1xi1>
    %cst_84 = arith.constant 0.000000e+00 : f32
    %174 = vector.shape_cast %173 : vector<256x1xi1> to vector<256x1xi1>
    %175 = vector.broadcast %174 : vector<256x1xi1> to vector<256x64xi1>
    %176 = vector.broadcast %cst_84 : f32 to vector<256x64xf32>
    %177 = arith.select %175, %154, %176 : vector<256x64xi1>, vector<256x64xf32>
    %178 = arith.truncf %177 : vector<256x64xf32> to vector<256x64xbf16>
    %c2_85 = arith.constant 2 : index
    %c0_86 = arith.constant 0 : index
    %c0_87 = arith.constant 0 : index
    %c0_88 = arith.constant 0 : index
    %179 = vector.load %arg2[%c2_85, %c0_86, %c0_87, %c0_88] : memref<3x3x64x64xbf16, #tpu.memory_space<vmem>>, vector<1x1x64x64xbf16>
    %180 = vector.shape_cast %179 : vector<1x1x64x64xbf16> to vector<64x64xbf16>
    %cst_89 = arith.constant dense<0.000000e+00> : vector<256x64xf32>
    %181 = tpu.matmul %178, %180, %cst_89 {dimension_numbers = #tpu.dot_dimension_numbers<[1], [0], [0], [1], [0, 0, 1, 1], [], []>} : vector<256x64xbf16>, vector<64x64xbf16>, vector<256x64xf32> -> vector<256x64xf32>
    %182 = arith.addf %153, %181 : vector<256x64xf32>
    %c240_i32 = arith.constant 240 : i32
    %183 = tpu.dynamic_rotate %1 by %c240_i32 dim 0 : vector<256x64xf32>, i32 -> vector<256x64xf32>
    %c1_i32_90 = arith.constant 1 : i32
    %184 = vector.broadcast %c1_i32_90 : i32 to vector<256x1xi32>
    %185 = arith.addi %2, %184 : vector<256x1xi32>
    %c0_i32_91 = arith.constant 0 : i32
    %186 = vector.broadcast %c0_i32_91 : i32 to vector<256x1xi32>
    %187 = arith.cmpi sge, %185, %186 : vector<256x1xi32>
    %c1_i32_92 = arith.constant 1 : i32
    %188 = vector.broadcast %c1_i32_92 : i32 to vector<256x1xi32>
    %189 = arith.addi %2, %188 : vector<256x1xi32>
    %c16_i32_93 = arith.constant 16 : i32
    %190 = vector.broadcast %c16_i32_93 : i32 to vector<256x1xi32>
    %191 = arith.cmpi slt, %189, %190 : vector<256x1xi32>
    %192 = arith.andi %187, %191 : vector<256x1xi1>
    %c0_i32_94 = arith.constant 0 : i32
    %193 = vector.broadcast %c0_i32_94 : i32 to vector<256x1xi32>
    %194 = arith.addi %3, %193 : vector<256x1xi32>
    %c0_i32_95 = arith.constant 0 : i32
    %195 = vector.broadcast %c0_i32_95 : i32 to vector<256x1xi32>
    %196 = arith.cmpi sge, %194, %195 : vector<256x1xi32>
    %197 = arith.andi %192, %196 : vector<256x1xi1>
    %c0_i32_96 = arith.constant 0 : i32
    %198 = vector.broadcast %c0_i32_96 : i32 to vector<256x1xi32>
    %199 = arith.addi %3, %198 : vector<256x1xi32>
    %c16_i32_97 = arith.constant 16 : i32
    %200 = vector.broadcast %c16_i32_97 : i32 to vector<256x1xi32>
    %201 = arith.cmpi slt, %199, %200 : vector<256x1xi32>
    %202 = arith.andi %197, %201 : vector<256x1xi1>
    %cst_98 = arith.constant 0.000000e+00 : f32
    %203 = vector.shape_cast %202 : vector<256x1xi1> to vector<256x1xi1>
    %204 = vector.broadcast %203 : vector<256x1xi1> to vector<256x64xi1>
    %205 = vector.broadcast %cst_98 : f32 to vector<256x64xf32>
    %206 = arith.select %204, %183, %205 : vector<256x64xi1>, vector<256x64xf32>
    %207 = arith.truncf %206 : vector<256x64xf32> to vector<256x64xbf16>
    %c2_99 = arith.constant 2 : index
    %c1_100 = arith.constant 1 : index
    %c0_101 = arith.constant 0 : index
    %c0_102 = arith.constant 0 : index
    %208 = vector.load %arg2[%c2_99, %c1_100, %c0_101, %c0_102] : memref<3x3x64x64xbf16, #tpu.memory_space<vmem>>, vector<1x1x64x64xbf16>
    %209 = vector.shape_cast %208 : vector<1x1x64x64xbf16> to vector<64x64xbf16>
    %cst_103 = arith.constant dense<0.000000e+00> : vector<256x64xf32>
    %210 = tpu.matmul %207, %209, %cst_103 {dimension_numbers = #tpu.dot_dimension_numbers<[1], [0], [0], [1], [0, 0, 1, 1], [], []>} : vector<256x64xbf16>, vector<64x64xbf16>, vector<256x64xf32> -> vector<256x64xf32>
    %211 = arith.addf %182, %210 : vector<256x64xf32>
    %c239_i32 = arith.constant 239 : i32
    %212 = tpu.dynamic_rotate %1 by %c239_i32 dim 0 : vector<256x64xf32>, i32 -> vector<256x64xf32>
    %c1_i32_104 = arith.constant 1 : i32
    %213 = vector.broadcast %c1_i32_104 : i32 to vector<256x1xi32>
    %214 = arith.addi %2, %213 : vector<256x1xi32>
    %c0_i32_105 = arith.constant 0 : i32
    %215 = vector.broadcast %c0_i32_105 : i32 to vector<256x1xi32>
    %216 = arith.cmpi sge, %214, %215 : vector<256x1xi32>
    %c1_i32_106 = arith.constant 1 : i32
    %217 = vector.broadcast %c1_i32_106 : i32 to vector<256x1xi32>
    %218 = arith.addi %2, %217 : vector<256x1xi32>
    %c16_i32_107 = arith.constant 16 : i32
    %219 = vector.broadcast %c16_i32_107 : i32 to vector<256x1xi32>
    %220 = arith.cmpi slt, %218, %219 : vector<256x1xi32>
    %221 = arith.andi %216, %220 : vector<256x1xi1>
    %c1_i32_108 = arith.constant 1 : i32
    %222 = vector.broadcast %c1_i32_108 : i32 to vector<256x1xi32>
    %223 = arith.addi %3, %222 : vector<256x1xi32>
    %c0_i32_109 = arith.constant 0 : i32
    %224 = vector.broadcast %c0_i32_109 : i32 to vector<256x1xi32>
    %225 = arith.cmpi sge, %223, %224 : vector<256x1xi32>
    %226 = arith.andi %221, %225 : vector<256x1xi1>
    %c1_i32_110 = arith.constant 1 : i32
    %227 = vector.broadcast %c1_i32_110 : i32 to vector<256x1xi32>
    %228 = arith.addi %3, %227 : vector<256x1xi32>
    %c16_i32_111 = arith.constant 16 : i32
    %229 = vector.broadcast %c16_i32_111 : i32 to vector<256x1xi32>
    %230 = arith.cmpi slt, %228, %229 : vector<256x1xi32>
    %231 = arith.andi %226, %230 : vector<256x1xi1>
    %cst_112 = arith.constant 0.000000e+00 : f32
    %232 = vector.shape_cast %231 : vector<256x1xi1> to vector<256x1xi1>
    %233 = vector.broadcast %232 : vector<256x1xi1> to vector<256x64xi1>
    %234 = vector.broadcast %cst_112 : f32 to vector<256x64xf32>
    %235 = arith.select %233, %212, %234 : vector<256x64xi1>, vector<256x64xf32>
    %236 = arith.truncf %235 : vector<256x64xf32> to vector<256x64xbf16>
    %c2_113 = arith.constant 2 : index
    %c2_114 = arith.constant 2 : index
    %c0_115 = arith.constant 0 : index
    %c0_116 = arith.constant 0 : index
    %237 = vector.load %arg2[%c2_113, %c2_114, %c0_115, %c0_116] : memref<3x3x64x64xbf16, #tpu.memory_space<vmem>>, vector<1x1x64x64xbf16>
    %238 = vector.shape_cast %237 : vector<1x1x64x64xbf16> to vector<64x64xbf16>
    %cst_117 = arith.constant dense<0.000000e+00> : vector<256x64xf32>
    %239 = tpu.matmul %236, %238, %cst_117 {dimension_numbers = #tpu.dot_dimension_numbers<[1], [0], [0], [1], [0, 0, 1, 1], [], []>} : vector<256x64xbf16>, vector<64x64xbf16>, vector<256x64xf32> -> vector<256x64xf32>
    %240 = arith.addf %211, %239 : vector<256x64xf32>
    %c0_118 = arith.constant 0 : index
    %c0_119 = arith.constant 0 : index
    %241 = vector.load %arg3[%c0_118, %c0_119] : memref<1x64xf32, #tpu.memory_space<vmem>>, vector<1x64xf32>
    %242 = vector.broadcast %241 : vector<1x64xf32> to vector<256x64xf32>
    %243 = arith.mulf %240, %242 : vector<256x64xf32>
    %c0_120 = arith.constant 0 : index
    %c0_121 = arith.constant 0 : index
    %244 = vector.load %arg4[%c0_120, %c0_121] : memref<1x64xf32, #tpu.memory_space<vmem>>, vector<1x64xf32>
    %245 = vector.broadcast %244 : vector<1x64xf32> to vector<256x64xf32>
    %246 = arith.addf %243, %245 : vector<256x64xf32>
    %cst_122 = arith.constant 0.000000e+00 : f32
    %247 = vector.broadcast %cst_122 : f32 to vector<256x64xf32>
    %248 = arith.maximumf %246, %247 : vector<256x64xf32>
    %249 = arith.truncf %248 : vector<256x64xf32> to vector<256x64xbf16>
    %c0_123 = arith.constant 0 : index
    %c0_124 = arith.constant 0 : index
    %250 = vector.load %arg7[%c0_123, %c0_124] : memref<256x64xbf16, #tpu.memory_space<vmem>>, vector<256x64xbf16>
    tpu.vector_store %arg7[%c0_123, %c0_124], %249 {strides = array<i32>} : memref<256x64xbf16, #tpu.memory_space<vmem>>, vector<256x64xbf16>,
    return
  }
  func.func @transform_0(%arg0: i32) -> (i32, i32) {
    %c0_i32 = arith.constant 0 : i32
    %c0_i32_0 = arith.constant 0 : i32
    return %arg0, %c0_i32 : i32, i32
  }
  func.func @transform_1(%arg0: i32) -> (i32, i32, i32, i32) {
    %c0_i32 = arith.constant 0 : i32
    %c0_i32_0 = arith.constant 0 : i32
    %c0_i32_1 = arith.constant 0 : i32
    %c0_i32_2 = arith.constant 0 : i32
    %c0_i32_3 = arith.constant 0 : i32
    return %c0_i32, %c0_i32_0, %c0_i32_1, %c0_i32_2 : i32, i32, i32, i32
  }
  func.func @transform_2(%arg0: i32) -> (i32, i32) {
    %c0_i32 = arith.constant 0 : i32
    %c0_i32_0 = arith.constant 0 : i32
    %c0_i32_1 = arith.constant 0 : i32
    return %c0_i32, %c0_i32_0 : i32, i32
  }
  func.func @transform_3(%arg0: i32) -> (i32, i32) {
    %c0_i32 = arith.constant 0 : i32
    %c0_i32_0 = arith.constant 0 : i32
    %c0_i32_1 = arith.constant 0 : i32
    return %c0_i32, %c0_i32_0 : i32, i32
  }
  func.func @transform_4(%arg0: i32) -> (i32, i32) {
    %c0_i32 = arith.constant 0 : i32
    %c0_i32_0 = arith.constant 0 : i32
    %c0_i32_1 = arith.constant 0 : i32
    return %c0_i32, %c0_i32_0 : i32, i32
  }
  func.func @transform_5(%arg0: i32) -> (i32, i32) {
    %c0_i32 = arith.constant 0 : i32
    %c0_i32_0 = arith.constant 0 : i32
    %c0_i32_1 = arith.constant 0 : i32
    return %c0_i32, %c0_i32_0 : i32, i32
  }
  func.func @transform_6(%arg0: i32) -> (i32, i32) {
    %c0_i32 = arith.constant 0 : i32
    %c0_i32_0 = arith.constant 0 : i32
    return %arg0, %c0_i32 : i32, i32
  }
}

module attributes {stable_mosaic.version = 11 : i64} {
  func.func @_mm_bn_add_relu_kernel(%arg0: i32, %arg1: memref<256x64xbf16, #tpu.memory_space<vmem>>, %arg2: memref<64x256xbf16, #tpu.memory_space<vmem>>, %arg3: memref<1x256xf32, #tpu.memory_space<vmem>>, %arg4: memref<1x256xf32, #tpu.memory_space<vmem>>, %arg5: memref<256x256xf32, #tpu.memory_space<vmem>>, %arg6: memref<256x256xf32, #tpu.memory_space<vmem>>) attributes {dimension_semantics = [#tpu.dimension_semantics<parallel>], iteration_bounds = array<i64: 2>, scalar_prefetch = 0 : i64, scratch_operands = 0 : i64, tpu.core_type = #tpu.core_type<tc>, window_params = [{transform_indices = @transform_0, window_bounds = array<i64: 256, 64>}, {pipeline_mode = #tpu.pipeline_mode<synchronous>, transform_indices = @transform_1, window_bounds = array<i64: 64, 256>}, {pipeline_mode = #tpu.pipeline_mode<synchronous>, transform_indices = @transform_2, window_bounds = array<i64: 1, 256>}, {pipeline_mode = #tpu.pipeline_mode<synchronous>, transform_indices = @transform_3, window_bounds = array<i64: 1, 256>}, {transform_indices = @transform_4, window_bounds = array<i64: 256, 256>}, {transform_indices = @transform_5, window_bounds = array<i64: 256, 256>}]} {
    %c0 = arith.constant 0 : index
    %c0_0 = arith.constant 0 : index
    %0 = vector.load %arg1[%c0, %c0_0] : memref<256x64xbf16, #tpu.memory_space<vmem>>, vector<256x64xbf16>
    %c0_1 = arith.constant 0 : index
    %c0_2 = arith.constant 0 : index
    %1 = vector.load %arg2[%c0_1, %c0_2] : memref<64x256xbf16, #tpu.memory_space<vmem>>, vector<64x256xbf16>
    %cst = arith.constant dense<0.000000e+00> : vector<256x256xf32>
    %2 = tpu.matmul %0, %1, %cst {dimension_numbers = #tpu.dot_dimension_numbers<[1], [0], [0], [1], [0, 0, 1, 1], [], []>} : vector<256x64xbf16>, vector<64x256xbf16>, vector<256x256xf32> -> vector<256x256xf32>
    %c0_3 = arith.constant 0 : index
    %c0_4 = arith.constant 0 : index
    %3 = vector.load %arg3[%c0_3, %c0_4] : memref<1x256xf32, #tpu.memory_space<vmem>>, vector<1x256xf32>
    %4 = vector.broadcast %3 : vector<1x256xf32> to vector<256x256xf32>
    %5 = arith.mulf %2, %4 : vector<256x256xf32>
    %c0_5 = arith.constant 0 : index
    %c0_6 = arith.constant 0 : index
    %6 = vector.load %arg4[%c0_5, %c0_6] : memref<1x256xf32, #tpu.memory_space<vmem>>, vector<1x256xf32>
    %7 = vector.broadcast %6 : vector<1x256xf32> to vector<256x256xf32>
    %8 = arith.addf %5, %7 : vector<256x256xf32>
    %c0_7 = arith.constant 0 : index
    %c0_8 = arith.constant 0 : index
    %9 = vector.load %arg5[%c0_7, %c0_8] : memref<256x256xf32, #tpu.memory_space<vmem>>, vector<256x256xf32>
    %10 = arith.addf %8, %9 : vector<256x256xf32>
    %cst_9 = arith.constant 0.000000e+00 : f32
    %11 = vector.broadcast %cst_9 : f32 to vector<256x256xf32>
    %12 = arith.maximumf %10, %11 : vector<256x256xf32>
    %c0_10 = arith.constant 0 : index
    %c0_11 = arith.constant 0 : index
    %13 = vector.load %arg6[%c0_10, %c0_11] : memref<256x256xf32, #tpu.memory_space<vmem>>, vector<256x256xf32>
    tpu.vector_store %arg6[%c0_10, %c0_11], %12 {strides = array<i32>} : memref<256x256xf32, #tpu.memory_space<vmem>>, vector<256x256xf32>,
    return
  }
  func.func @transform_0(%arg0: i32) -> (i32, i32) {
    %c0_i32 = arith.constant 0 : i32
    %c0_i32_0 = arith.constant 0 : i32
    return %arg0, %c0_i32 : i32, i32
  }
  func.func @transform_1(%arg0: i32) -> (i32, i32) {
    %c0_i32 = arith.constant 0 : i32
    %c0_i32_0 = arith.constant 0 : i32
    %c0_i32_1 = arith.constant 0 : i32
    return %c0_i32, %c0_i32_0 : i32, i32
  }
  func.func @transform_2(%arg0: i32) -> (i32, i32) {
    %c0_i32 = arith.constant 0 : i32
    %c0_i32_0 = arith.constant 0 : i32
    %c0_i32_1 = arith.constant 0 : i32
    return %c0_i32, %c0_i32_0 : i32, i32
  }
  func.func @transform_3(%arg0: i32) -> (i32, i32) {
    %c0_i32 = arith.constant 0 : i32
    %c0_i32_0 = arith.constant 0 : i32
    %c0_i32_1 = arith.constant 0 : i32
    return %c0_i32, %c0_i32_0 : i32, i32
  }
  func.func @transform_4(%arg0: i32) -> (i32, i32) {
    %c0_i32 = arith.constant 0 : i32
    %c0_i32_0 = arith.constant 0 : i32
    return %arg0, %c0_i32 : i32, i32
  }
  func.func @transform_5(%arg0: i32) -> (i32, i32) {
    %c0_i32 = arith.constant 0 : i32
    %c0_i32_0 = arith.constant 0 : i32
    return %arg0, %c0_i32 : i32, i32
  }
}

</mosaic_0001>

<llo_original>
// kernel: bottleneck_forward.3
$region0: #{bottleneck_forward.3}
  #allocation0 [shape = 'u32[]', space=smem, size = 0x4, offset = 0x4, fixed_abs, tag = 'smem constant byte address 0x4 - core index']
  #allocation1 [shape = 'u32[72,128]{1,0:T(1,128)}', space=vmem, size = 0x9000, scoped, tag = 'internal scratch']
  %s0 = inlined_call_operand.vmem [shape: bf16[512,256], index: 0, kind: input, shape index: {}]
  %s1 = inlined_call_operand.vmem [shape: bf16[256,64], index: 1, kind: input, shape index: {}]
  %s2 = inlined_call_operand.vmem [shape: f32[1,64], index: 2, kind: input, shape index: {}]
  %s3 = inlined_call_operand.vmem [shape: f32[1,64], index: 3, kind: input, shape index: {}]
  %s4 = inlined_call_operand.vmem [shape: bf16[512,64], index: 4, kind: output, shape index: {}]
  %s5 = sld [smem:[#allocation0]]
  $region49: #{bottleneck_forward.3} parent=0
    _
  %s7 = ssub.s32 1, %s5
  %s8 = scalar_select 0, %s7, %s5
  loop: start=0, step=1, limit=4
  $region2: #{bottleneck_forward.3} parent=0 // loop_pre_header
    _
  $region3: #{bottleneck_forward.3} parent=0 // loop_header
    %s10 = sphi 0, %s14
    %p11 = scmp.ge.s32.totalorder %s10, 4
    %s20 = sphi 0, %s22
    %s23 = sphi 0, %s20
    %s24 = sphi 0, %s23
    %s40 = sphi 0, %s24
    %s44 = sphi 0, %s44
    %s46 = sphi 0, %s44
    %s47 = sphi 0, %s46
    %s61 = sphi 0, %s47
    %s65 = sphi 0, %s65
    %s67 = sphi 0, %s65
    %s68 = sphi 0, %s67
    %s82 = sphi 0, %s68
    %s86 = sphi 0, %s86
    %s88 = sphi 0, %s86
    %s89 = sphi 0, %s88
    %s103 = sphi 0, %s89
    %s109 = sphi 0, %s111
    %s112 = sphi 0, %s109
    %s113 = sphi 0, %s112
    %s129 = sphi 0, %s113
  $region4: #{bottleneck_forward.3} parent=0 // loop_header_branch
    %13 = sbr.rel (%p11) target = $region8
  $region5: #{bottleneck_forward.3} parent=0 // loop_body
    %s15 = ssub.s32 %s10, 1
    %s16 = ssub.s32 %s10, 2
    %s17 = sadd.s32 %s10, 1
    %s18 = ssub.s32 %s10, %s17
    %p19 = scmp.eq.s32.totalorder %s18, 0
    %s21 = sadd.s32 %s20, 1
    %s22 = scalar_select %p19, %s20, %s21
    %p25 = pneg %p19
    %p26 = scmp.eq.s32.totalorder %s10, 1
    %p27 = por %p25, %p26
    %p28 = scmp.ne.s32.totalorder %s20, %s23
    %p29 = scmp.eq.s32.totalorder %s10, 0
    %p30 = por %p28, %p29
    %p31 = scmp.ne.s32.totalorder %s20, %s23
    %p32 = scmp.eq.s32.totalorder %s15, 1
    %p33 = por %p31, %p32
    %p34 = scmp.ne.s32.totalorder %s23, %s24
    %p35 = scmp.eq.s32.totalorder %s15, 0
    %p36 = por %p34, %p35
    %p37 = scmp.ne.s32.totalorder %s23, %s24
    %p38 = scmp.eq.s32.totalorder %s16, 1
    %p39 = por %p37, %p38
    %p41 = scmp.ne.s32.totalorder %s24, %s40
    %p42 = scmp.eq.s32.totalorder %s16, 0
    %p43 = por %p41, %p42
    %s45 = sadd.s32 %s44, 1
    %p48 = scmp.eq.s32.totalorder %s10, 1
    %p49 = scmp.ne.s32.totalorder %s44, %s46
    %p50 = scmp.eq.s32.totalorder %s10, 0
    %p51 = por %p49, %p50
    %p52 = scmp.ne.s32.totalorder %s44, %s46
    %p53 = scmp.eq.s32.totalorder %s15, 1
    %p54 = por %p52, %p53
    %p55 = scmp.ne.s32.totalorder %s46, %s47
    %p56 = scmp.eq.s32.totalorder %s15, 0
    %p57 = por %p55, %p56
    %p58 = scmp.ne.s32.totalorder %s46, %s47
    %p59 = scmp.eq.s32.totalorder %s16, 1
    %p60 = por %p58, %p59
    %p62 = scmp.ne.s32.totalorder %s47, %s61
    %p63 = scmp.eq.s32.totalorder %s16, 0
    %p64 = por %p62, %p63
    %s66 = sadd.s32 %s65, 1
    %p69 = scmp.eq.s32.totalorder %s10, 1
    %p70 = scmp.ne.s32.totalorder %s65, %s67
    %p71 = scmp.eq.s32.totalorder %s10, 0
    %p72 = por %p70, %p71
    %p73 = scmp.ne.s32.totalorder %s65, %s67
    %p74 = scmp.eq.s32.totalorder %s15, 1
    %p75 = por %p73, %p74
    %p76 = scmp.ne.s32.totalorder %s67, %s68
    %p77 = scmp.eq.s32.totalorder %s15, 0
    %p78 = por %p76, %p77
    %p79 = scmp.ne.s32.totalorder %s67, %s68
    %p80 = scmp.eq.s32.totalorder %s16, 1
    %p81 = por %p79, %p80
    %p83 = scmp.ne.s32.totalorder %s68, %s82
    %p84 = scmp.eq.s32.totalorder %s16, 0
    %p85 = por %p83, %p84
    %s87 = sadd.s32 %s86, 1
    %p90 = scmp.eq.s32.totalorder %s10, 1
    %p91 = scmp.ne.s32.totalorder %s86, %s88
    %p92 = scmp.eq.s32.totalorder %s10, 0
    %p93 = por %p91, %p92
    %p94 = scmp.ne.s32.totalorder %s86, %s88
    %p95 = scmp.eq.s32.totalorder %s15, 1
    %p96 = por %p94, %p95
    %p97 = scmp.ne.s32.totalorder %s88, %s89
    %p98 = scmp.eq.s32.totalorder %s15, 0
    %p99 = por %p97, %p98
    %p100 = scmp.ne.s32.totalorder %s88, %s89
    %p101 = scmp.eq.s32.totalorder %s16, 1
    %p102 = por %p100, %p101
    %p104 = scmp.ne.s32.totalorder %s89, %s103
    %p105 = scmp.eq.s32.totalorder %s16, 0
    %p106 = por %p104, %p105
    %s107 = ssub.s32 %s10, %s17
    %p108 = scmp.eq.s32.totalorder %s107, 0
    %s110 = sadd.s32 %s109, 1
    %s111 = scalar_select %p108, %s109, %s110
    %p114 = pneg %p108
    %p115 = scmp.eq.s32.totalorder %s10, 1
    %p116 = por %p114, %p115
    %p117 = scmp.ne.s32.totalorder %s109, %s112
    %p118 = scmp.eq.s32.totalorder %s10, 0
    %p119 = por %p117, %p118
    %p120 = scmp.ne.s32.totalorder %s109, %s112
    %p121 = scmp.eq.s32.totalorder %s15, 1
    %p122 = por %p120, %p121
    %p123 = scmp.ne.s32.totalorder %s112, %s113
    %p124 = scmp.eq.s32.totalorder %s15, 0
    %p125 = por %p123, %p124
    %p126 = scmp.ne.s32.totalorder %s112, %s113
    %p127 = scmp.eq.s32.totalorder %s16, 1
    %p128 = por %p126, %p127
    %p130 = scmp.ne.s32.totalorder %s113, %s129
    %p131 = scmp.eq.s32.totalorder %s16, 0
    %p132 = por %p130, %p131
    %p133 = scmp.le.s32.totalorder 1, %s10
    %p134 = scmp.lt.s32.totalorder %s10, 3
    %p135 = pnand %p133, %p134
    %p136 = pneg %p135
    // Predicated region
    $region9: #{bottleneck_forward.3} parent=5 // pred_check
      _
    $region10: #{bottleneck_forward.3} parent=5 // pred_check_branch
      %138 = sbr.rel (%p135) target = $region12
    $region11: #{bottleneck_forward.3} parent=5 // pred_region
      %s139 = ssub.s32 %s10, 1
      // Predicated region
      $region13: #{bottleneck_forward.3} parent=11 // pred_check
        %p140 = pneg %p57
      $region14: #{bottleneck_forward.3} parent=11 // pred_check_branch
        %142 = sbr.rel (%p140) target = $region16
      $region15: #{bottleneck_forward.3} parent=11 // pred_region
        _
      $region16: #{bottleneck_forward.3} parent=11 // pred_fallthru
        _
      // Predicated region
      $region17: #{bottleneck_forward.3} parent=11 // pred_check
        %p143 = pneg %p78
      $region18: #{bottleneck_forward.3} parent=11 // pred_check_branch
        %145 = sbr.rel (%p143) target = $region20
      $region19: #{bottleneck_forward.3} parent=11 // pred_region
        _
      $region20: #{bottleneck_forward.3} parent=11 // pred_fallthru
        _
      // Predicated region
      $region21: #{bottleneck_forward.3} parent=11 // pred_check
        %p146 = pneg %p99
      $region22: #{bottleneck_forward.3} parent=11 // pred_check_branch
        %148 = sbr.rel (%p146) target = $region24
      $region23: #{bottleneck_forward.3} parent=11 // pred_region
        _
      $region24: #{bottleneck_forward.3} parent=11 // pred_fallthru
        _
    $region12: #{bottleneck_forward.3} parent=5 // pred_fallthru
      _
    %p149 = scmp.lt.s32.totalorder %s10, 2
    // Predicated region
    $region25: #{bottleneck_forward.3} parent=5 // pred_check
      %p150 = pneg %p149
    $region26: #{bottleneck_forward.3} parent=5 // pred_check_branch
      %152 = sbr.rel (%p150) target = $region28
    $region27: #{bottleneck_forward.3} parent=5 // pred_region
      // Predicated region
      $region29: #{bottleneck_forward.3} parent=27 // pred_check
        %p153 = pneg %p30
      $region30: #{bottleneck_forward.3} parent=27 // pred_check_branch
        %155 = sbr.rel (%p153) target = $region32
      $region31: #{bottleneck_forward.3} parent=27 // pred_region
        %s156 = smul.u32 32, %s10
        %p157 = scmp.lt.s32.totalorder %s156, 63
        %s158 = scalar_select %p157, %s156, 63
        %s159 = smul.addr %s158, 2
        %s160 = smul.addr %s159, 4
        %s161 = scalar_lea.vmem %s0, %s160
        %s162 = smul.u32 32, %s10
      $region32: #{bottleneck_forward.3} parent=27 // pred_fallthru
        _
    $region28: #{bottleneck_forward.3} parent=5 // pred_fallthru
      _
    %p163 = scmp.le.s32.totalorder 1, %s10
    %p164 = scmp.lt.s32.totalorder %s10, 3
    %p165 = pnand %p163, %p164
    %p166 = pneg %p165
    // Predicated region
    $region33: #{bottleneck_forward.3} parent=5 // pred_check
      _
    $region34: #{bottleneck_forward.3} parent=5 // pred_check_branch
      %168 = sbr.rel (%p165) target = $region36
    $region35: #{bottleneck_forward.3} parent=5 // pred_region
      %s169 = ssub.s32 %s10, 1
      %s170 = smul.u32 32, %s15
      %p171 = scmp.lt.s32.totalorder %s170, 63
      %s172 = scalar_select %p171, %s170, 63
      %s173 = smul.addr %s172, 2
      %s174 = smul.addr %s173, 4
      %s175 = scalar_lea.vmem %s0, %s174
      %p176 = pneg %p36
      %p177 = pneg %p33
      %p178 = pneg %p57
      %p179 = pneg %p54
      %p180 = pneg %p78
      %p181 = pneg %p75
      %p182 = pneg %p99
      %p183 = pneg %p96
      %p184 = pneg %p125
      %p185 = pneg %p122
      %s186 = smul.u32 32, %s15
      %p187 = scmp.lt.s32.totalorder %s186, 63
      %s188 = scalar_select %p187, %s186, 63
      %s189 = smul.addr %s188, 4
      %s190 = scalar_lea.vmem %s4, %s189
      %s191 = smul.u32 32, %s15
      %p192 = scmp.lt.s32.totalorder %s191, 63
      %s193 = scalar_select %p192, %s191, 63
      %s194 = smul.addr %s193, 2
      %s195 = smul.addr %s194, 4
      %s196 = scalar_lea.vmem %s0, %s195
      %s197 = smul.u32 32, %s15
      %s198 = smul.u32 32, %s15
      %p199 = scmp.lt.s32.totalorder %s198, 63
      %s200 = scalar_select %p199, %s198, 63
      %s201 = smul.addr %s200, 4
      %s202 = scalar_lea.vmem %s4, %s201
      %s203 = smul.u32 32, %s15
      %v204 = vld [vmem:[%s196] sm:$0xff]
      %v205 = vld [vmem:[%s196 + $0x8] sm:$0xff]
      %v206 = vld [vmem:[%s196 + $0x10] sm:$0xff]
      %v207 = vld [vmem:[%s196 + $0x18] sm:$0xff]
      %v208 = vld [vmem:[%s196 + $0x20] sm:$0xff]
      %v209 = vld [vmem:[%s196 + $0x28] sm:$0xff]
      %v210 = vld [vmem:[%s196 + $0x30] sm:$0xff]
      %v211 = vld [vmem:[%s196 + $0x38] sm:$0xff]
      %v212 = vld [vmem:[%s196 + $0x40] sm:$0xff]
      %v213 = vld [vmem:[%s196 + $0x48] sm:$0xff]
      %v214 = vld [vmem:[%s196 + $0x50] sm:$0xff]
      %v215 = vld [vmem:[%s196 + $0x58] sm:$0xff]
      %v216 = vld [vmem:[%s196 + $0x60] sm:$0xff]
      %v217 = vld [vmem:[%s196 + $0x68] sm:$0xff]
      %v218 = vld [vmem:[%s196 + $0x70] sm:$0xff]
      %v219 = vld [vmem:[%s196 + $0x78] sm:$0xff]
      %v220 = vld [vmem:[%s196 + $0x80] sm:$0xff]
      %v221 = vld [vmem:[%s196 + $0x88] sm:$0xff]
      %v222 = vld [vmem:[%s196 + $0x90] sm:$0xff]
      %v223 = vld [vmem:[%s196 + $0x98] sm:$0xff]
      %v224 = vld [vmem:[%s196 + $0xa0] sm:$0xff]
      %v225 = vld [vmem:[%s196 + $0xa8] sm:$0xff]
      %v226 = vld [vmem:[%s196 + $0xb0] sm:$0xff]
      %v227 = vld [vmem:[%s196 + $0xb8] sm:$0xff]
      %v228 = vld [vmem:[%s196 + $0xc0] sm:$0xff]
      %v229 = vld [vmem:[%s196 + $0xc8] sm:$0xff]
      %v230 = vld [vmem:[%s196 + $0xd0] sm:$0xff]
      %v231 = vld [vmem:[%s196 + $0xd8] sm:$0xff]
      %v232 = vld [vmem:[%s196 + $0xe0] sm:$0xff]
      %v233 = vld [vmem:[%s196 + $0xe8] sm:$0xff]
      %v234 = vld [vmem:[%s196 + $0xf0] sm:$0xff]
      %v235 = vld [vmem:[%s196 + $0xf8] sm:$0xff]
      %v236 = vld [vmem:[%s1] sm:$0xf]
      %v237 = vld [vmem:[%s1 + $0x4] sm:$0xf]
      %v238 = vld [vmem:[%s1 + $0x8] sm:$0xf]
      %v239 = vld [vmem:[%s1 + $0xc] sm:$0xf]
      %v240 = vld [vmem:[%s1 + $0x10] sm:$0xf]
      %v241 = vld [vmem:[%s1 + $0x14] sm:$0xf]
      %v242 = vld [vmem:[%s1 + $0x18] sm:$0xf]
      %v243 = vld [vmem:[%s1 + $0x1c] sm:$0xf]
      %v244 = vld [vmem:[%s1 + $0x20] sm:$0xf]
      %v245 = vld [vmem:[%s1 + $0x24] sm:$0xf]
      %v246 = vld [vmem:[%s1 + $0x28] sm:$0xf]
      %v247 = vld [vmem:[%s1 + $0x2c] sm:$0xf]
      %v248 = vld [vmem:[%s1 + $0x30] sm:$0xf]
      %v249 = vld [vmem:[%s1 + $0x34] sm:$0xf]
      %v250 = vld [vmem:[%s1 + $0x38] sm:$0xf]
      %v251 = vld [vmem:[%s1 + $0x3c] sm:$0xf]
      %v252 = vld [vmem:[%s1 + $0x40] sm:$0xf]
      %v253 = vld [vmem:[%s1 + $0x44] sm:$0xf]
      %v254 = vld [vmem:[%s1 + $0x48] sm:$0xf]
      %v255 = vld [vmem:[%s1 + $0x4c] sm:$0xf]
      %v256 = vld [vmem:[%s1 + $0x50] sm:$0xf]
      %v257 = vld [vmem:[%s1 + $0x54] sm:$0xf]
      %v258 = vld [vmem:[%s1 + $0x58] sm:$0xf]
      %v259 = vld [vmem:[%s1 + $0x5c] sm:$0xf]
      %v260 = vld [vmem:[%s1 + $0x60] sm:$0xf]
      %v261 = vld [vmem:[%s1 + $0x64] sm:$0xf]
      %v262 = vld [vmem:[%s1 + $0x68] sm:$0xf]
      %v263 = vld [vmem:[%s1 + $0x6c] sm:$0xf]
      %v264 = vld [vmem:[%s1 + $0x70] sm:$0xf]
      %v265 = vld [vmem:[%s1 + $0x74] sm:$0xf]
      %v266 = vld [vmem:[%s1 + $0x78] sm:$0xf]
      %v267 = vld [vmem:[%s1 + $0x7c] sm:$0xf]
      %v300 = vunpack.c.l.b16 %v204
      %v301 = vunpack.c.h.b16 %v204
      %v302 = vunpack.c.l.b16 %v205
      %v303 = vunpack.c.h.b16 %v205
      %v304 = vunpack.c.l.b16 %v206
      %v305 = vunpack.c.h.b16 %v206
      %v306 = vunpack.c.l.b16 %v207
      %v307 = vunpack.c.h.b16 %v207
      %v308 = vunpack.c.l.b16 %v208
      %v309 = vunpack.c.h.b16 %v208
      %v310 = vunpack.c.l.b16 %v209
      %v311 = vunpack.c.h.b16 %v209
      %v312 = vunpack.c.l.b16 %v210
      %v313 = vunpack.c.h.b16 %v210
      %v314 = vunpack.c.l.b16 %v211
      %v315 = vunpack.c.h.b16 %v211
      %v316 = vunpack.c.l.b16 %v212
      %v317 = vunpack.c.h.b16 %v212
      %v318 = vunpack.c.l.b16 %v213
      %v319 = vunpack.c.h.b16 %v213
      %v320 = vunpack.c.l.b16 %v214
      %v321 = vunpack.c.h.b16 %v214
      %v322 = vunpack.c.l.b16 %v215
      %v323 = vunpack.c.h.b16 %v215
      %v324 = vunpack.c.l.b16 %v216
      %v325 = vunpack.c.h.b16 %v216
      %v326 = vunpack.c.l.b16 %v217
      %v327 = vunpack.c.h.b16 %v217
      %v328 = vunpack.c.l.b16 %v218
      %v329 = vunpack.c.h.b16 %v218
      %v330 = vunpack.c.l.b16 %v219
      %v331 = vunpack.c.h.b16 %v219
      %v332 = vunpack.c.l.b16 %v220
      %v333 = vunpack.c.h.b16 %v220
      %v334 = vunpack.c.l.b16 %v221
      %v335 = vunpack.c.h.b16 %v221
      %v336 = vunpack.c.l.b16 %v222
      %v337 = vunpack.c.h.b16 %v222
      %v338 = vunpack.c.l.b16 %v223
      %v339 = vunpack.c.h.b16 %v223
      %v340 = vunpack.c.l.b16 %v224
      %v341 = vunpack.c.h.b16 %v224
      %v342 = vunpack.c.l.b16 %v225
      %v343 = vunpack.c.h.b16 %v225
      %v344 = vunpack.c.l.b16 %v226
      %v345 = vunpack.c.h.b16 %v226
      %v346 = vunpack.c.l.b16 %v227
      %v347 = vunpack.c.h.b16 %v227
      %v348 = vunpack.c.l.b16 %v228
      %v349 = vunpack.c.h.b16 %v228
      %v350 = vunpack.c.l.b16 %v229
      %v351 = vunpack.c.h.b16 %v229
      %v352 = vunpack.c.l.b16 %v230
      %v353 = vunpack.c.h.b16 %v230
      %v354 = vunpack.c.l.b16 %v231
      %v355 = vunpack.c.h.b16 %v231
      %v356 = vunpack.c.l.b16 %v232
      %v357 = vunpack.c.h.b16 %v232
      %v358 = vunpack.c.l.b16 %v233
      %v359 = vunpack.c.h.b16 %v233
      %v360 = vunpack.c.l.b16 %v234
      %v361 = vunpack.c.h.b16 %v234
      %v362 = vunpack.c.l.b16 %v235
      %v363 = vunpack.c.h.b16 %v235
      %v364 = vpack.c.b16 %v302, %v300
      %v365 = vpack.c.b16 %v303, %v301
      %v366 = vpack.c.b16 %v306, %v304
      %v367 = vpack.c.b16 %v307, %v305
      %v368 = vpack.c.b16 %v310, %v308
      %v369 = vpack.c.b16 %v311, %v309
      %v370 = vpack.c.b16 %v314, %v312
      %v371 = vpack.c.b16 %v315, %v313
      %v372 = vpack.c.b16 %v318, %v316
      %v373 = vpack.c.b16 %v319, %v317
      %v374 = vpack.c.b16 %v322, %v320
      %v375 = vpack.c.b16 %v323, %v321
      %v376 = vpack.c.b16 %v326, %v324
      %v377 = vpack.c.b16 %v327, %v325
      %v378 = vpack.c.b16 %v330, %v328
      %v379 = vpack.c.b16 %v331, %v329
      %v380 = vpack.c.b16 %v334, %v332
      %v381 = vpack.c.b16 %v335, %v333
      %v382 = vpack.c.b16 %v338, %v336
      %v383 = vpack.c.b16 %v339, %v337
      %v384 = vpack.c.b16 %v342, %v340
      %v385 = vpack.c.b16 %v343, %v341
      %v386 = vpack.c.b16 %v346, %v344
      %v387 = vpack.c.b16 %v347, %v345
      %v388 = vpack.c.b16 %v350, %v348
      %v389 = vpack.c.b16 %v351, %v349
      %v390 = vpack.c.b16 %v354, %v352
      %v391 = vpack.c.b16 %v355, %v353
      %v392 = vpack.c.b16 %v358, %v356
      %v393 = vpack.c.b16 %v359, %v357
      %v394 = vpack.c.b16 %v362, %v360
      %v395 = vpack.c.b16 %v363, %v361
      %v460 = vunpack.c.l.b16 %v236
      %v461 = vunpack.c.l.b16 %v237
      %v462 = vunpack.c.l.b16 %v238
      %v463 = vunpack.c.l.b16 %v239
      %v464 = vunpack.c.l.b16 %v240
      %v465 = vunpack.c.l.b16 %v241
      %v466 = vunpack.c.l.b16 %v242
      %v467 = vunpack.c.l.b16 %v243
      %v468 = vunpack.c.l.b16 %v244
      %v469 = vunpack.c.l.b16 %v245
      %v470 = vunpack.c.l.b16 %v246
      %v471 = vunpack.c.l.b16 %v247
      %v472 = vunpack.c.l.b16 %v248
      %v473 = vunpack.c.l.b16 %v249
      %v474 = vunpack.c.l.b16 %v250
      %v475 = vunpack.c.l.b16 %v251
      %v476 = vunpack.c.l.b16 %v252
      %v477 = vunpack.c.l.b16 %v253
      %v478 = vunpack.c.l.b16 %v254
      %v479 = vunpack.c.l.b16 %v255
      %v480 = vunpack.c.l.b16 %v256
      %v481 = vunpack.c.l.b16 %v257
      %v482 = vunpack.c.l.b16 %v258
      %v483 = vunpack.c.l.b16 %v259
      %v484 = vunpack.c.l.b16 %v260
      %v485 = vunpack.c.l.b16 %v261
      %v486 = vunpack.c.l.b16 %v262
      %v487 = vunpack.c.l.b16 %v263
      %v488 = vunpack.c.l.b16 %v264
      %v489 = vunpack.c.l.b16 %v265
      %v490 = vunpack.c.l.b16 %v266
      %v491 = vunpack.c.l.b16 %v267
      %v492 = vpack.c.b16 %v461, %v460
      %v493 = vpack.c.b16 %v463, %v462
      %v494 = vpack.c.b16 %v465, %v464
      %v495 = vpack.c.b16 %v467, %v466
      %v496 = vpack.c.b16 %v469, %v468
      %v497 = vpack.c.b16 %v471, %v470
      %v498 = vpack.c.b16 %v473, %v472
      %v499 = vpack.c.b16 %v475, %v474
      %v500 = vpack.c.b16 %v477, %v476
      %v501 = vpack.c.b16 %v479, %v478
      %v502 = vpack.c.b16 %v481, %v480
      %v503 = vpack.c.b16 %v483, %v482
      %v504 = vpack.c.b16 %v485, %v484
      %v505 = vpack.c.b16 %v487, %v486
      %v506 = vpack.c.b16 %v489, %v488
      %v507 = vpack.c.b16 %v491, %v490
      %524 = vmatpush.bf16.msra.mxu0 %v499
      %525 = vmatpush.bf16.msra.mxu0 %v498
      %526 = vmatpush.bf16.msra.mxu0 %v497
      %527 = vmatpush.bf16.msra.mxu0 %v496
      %528 = vmatpush.bf16.msra.mxu0 %v495
      %529 = vmatpush.bf16.msra.mxu0 %v494
      %530 = vmatpush.bf16.msra.mxu0 %v493
      %531 = vmatpush.bf16.msra.mxu0 %v492
      %532 = vmatmul.bf16.gmra.mxu0 %v364
      %v533 = vpop.f32.mrf.mxu0
      %v534 = vadd.f32 0.0, %v533
      %v535 = vpop.f32.mrf.mxu0
      %v536 = vadd.f32 0.0, %v535
      %537 = vmatmul.bf16.gmra.mxu0 %v366
      %v538 = vpop.f32.mrf.mxu0
      %v539 = vadd.f32 0.0, %v538
      %v540 = vpop.f32.mrf.mxu0
      %v541 = vadd.f32 0.0, %v540
      %542 = vmatmul.bf16.gmra.mxu0 %v368
      %v543 = vpop.f32.mrf.mxu0
      %v544 = vadd.f32 0.0, %v543
      %v545 = vpop.f32.mrf.mxu0
      %v546 = vadd.f32 0.0, %v545
      %547 = vmatmul.bf16.gmra.mxu0 %v370
      %v548 = vpop.f32.mrf.mxu0
      %v549 = vadd.f32 0.0, %v548
      %v550 = vpop.f32.mrf.mxu0
      %v551 = vadd.f32 0.0, %v550
      %552 = vmatmul.bf16.gmra.mxu0 %v372
      %v553 = vpop.f32.mrf.mxu0
      %v554 = vadd.f32 0.0, %v553
      %v555 = vpop.f32.mrf.mxu0
      %v556 = vadd.f32 0.0, %v555
      %557 = vmatmul.bf16.gmra.mxu0 %v374
      %v558 = vpop.f32.mrf.mxu0
      %v559 = vadd.f32 0.0, %v558
      %v560 = vpop.f32.mrf.mxu0
      %v561 = vadd.f32 0.0, %v560
      %562 = vmatmul.bf16.gmra.mxu0 %v376
      %v563 = vpop.f32.mrf.mxu0
      %v564 = vadd.f32 0.0, %v563
      %v565 = vpop.f32.mrf.mxu0
      %v566 = vadd.f32 0.0, %v565
      %567 = vmatmul.bf16.gmra.mxu0 %v378
      %v568 = vpop.f32.mrf.mxu0
      %v569 = vadd.f32 0.0, %v568
      %v570 = vpop.f32.mrf.mxu0
      %v571 = vadd.f32 0.0, %v570
      %572 = vmatmul.bf16.gmra.mxu0 %v380
      %v573 = vpop.f32.mrf.mxu0
      %v574 = vadd.f32 0.0, %v573
      %v575 = vpop.f32.mrf.mxu0
      %v576 = vadd.f32 0.0, %v575
      %577 = vmatmul.bf16.gmra.mxu0 %v382
      %v578 = vpop.f32.mrf.mxu0
      %v579 = vadd.f32 0.0, %v578
      %v580 = vpop.f32.mrf.mxu0
      %v581 = vadd.f32 0.0, %v580
      %582 = vmatmul.bf16.gmra.mxu0 %v384
      %v583 = vpop.f32.mrf.mxu0
      %v584 = vadd.f32 0.0, %v583
      %v585 = vpop.f32.mrf.mxu0
      %v586 = vadd.f32 0.0, %v585
      %587 = vmatmul.bf16.gmra.mxu0 %v386
      %v588 = vpop.f32.mrf.mxu0
      %v589 = vadd.f32 0.0, %v588
      %v590 = vpop.f32.mrf.mxu0
      %v591 = vadd.f32 0.0, %v590
      %592 = vmatmul.bf16.gmra.mxu0 %v388
      %v593 = vpop.f32.mrf.mxu0
      %v594 = vadd.f32 0.0, %v593
      %v595 = vpop.f32.mrf.mxu0
      %v596 = vadd.f32 0.0, %v595
      %597 = vmatmul.bf16.gmra.mxu0 %v390
      %v598 = vpop.f32.mrf.mxu0
      %v599 = vadd.f32 0.0, %v598
      %v600 = vpop.f32.mrf.mxu0
      %v601 = vadd.f32 0.0, %v600
      %602 = vmatmul.bf16.gmra.mxu0 %v392
      %v603 = vpop.f32.mrf.mxu0
      %v604 = vadd.f32 0.0, %v603
      %v605 = vpop.f32.mrf.mxu0
      %v606 = vadd.f32 0.0, %v605
      %607 = vmatmul.bf16.gmra.mxu0 %v394
      %v608 = vpop.f32.mrf.mxu0
      %v609 = vadd.f32 0.0, %v608
      %v610 = vpop.f32.mrf.mxu0
      %v611 = vadd.f32 0.0, %v610
      %612 = vdwg.mxu0
      %613 = vmatpush.bf16.msra.mxu0 %v507
      %614 = vmatpush.bf16.msra.mxu0 %v506
      %615 = vmatpush.bf16.msra.mxu0 %v505
      %616 = vmatpush.bf16.msra.mxu0 %v504
      %617 = vmatpush.bf16.msra.mxu0 %v503
      %618 = vmatpush.bf16.msra.mxu0 %v502
      %619 = vmatpush.bf16.msra.mxu0 %v501
      %620 = vmatpush.bf16.msra.mxu0 %v500
      %621 = vmatmul.bf16.gmra.mxu0 %v365
      %v622 = vpop.f32.mrf.mxu0
      %v623 = vadd.f32 %v534, %v622
      %v624 = vpop.f32.mrf.mxu0
      %v625 = vadd.f32 %v536, %v624
      %626 = vmatmul.bf16.gmra.mxu0 %v367
      %v627 = vpop.f32.mrf.mxu0
      %v628 = vadd.f32 %v539, %v627
      %v629 = vpop.f32.mrf.mxu0
      %v630 = vadd.f32 %v541, %v629
      %631 = vmatmul.bf16.gmra.mxu0 %v369
      %v632 = vpop.f32.mrf.mxu0
      %v633 = vadd.f32 %v544, %v632
      %v634 = vpop.f32.mrf.mxu0
      %v635 = vadd.f32 %v546, %v634
      %636 = vmatmul.bf16.gmra.mxu0 %v371
      %v637 = vpop.f32.mrf.mxu0
      %v638 = vadd.f32 %v549, %v637
      %v639 = vpop.f32.mrf.mxu0
      %v640 = vadd.f32 %v551, %v639
      %641 = vmatmul.bf16.gmra.mxu0 %v373
      %v642 = vpop.f32.mrf.mxu0
      %v643 = vadd.f32 %v554, %v642
      %v644 = vpop.f32.mrf.mxu0
      %v645 = vadd.f32 %v556, %v644
      %646 = vmatmul.bf16.gmra.mxu0 %v375
      %v647 = vpop.f32.mrf.mxu0
      %v648 = vadd.f32 %v559, %v647
      %v649 = vpop.f32.mrf.mxu0
      %v650 = vadd.f32 %v561, %v649
      %651 = vmatmul.bf16.gmra.mxu0 %v377
      %v652 = vpop.f32.mrf.mxu0
      %v653 = vadd.f32 %v564, %v652
      %v654 = vpop.f32.mrf.mxu0
      %v655 = vadd.f32 %v566, %v654
      %656 = vmatmul.bf16.gmra.mxu0 %v379
      %v657 = vpop.f32.mrf.mxu0
      %v658 = vadd.f32 %v569, %v657
      %v659 = vpop.f32.mrf.mxu0
      %v660 = vadd.f32 %v571, %v659
      %661 = vmatmul.bf16.gmra.mxu0 %v381
      %v662 = vpop.f32.mrf.mxu0
      %v663 = vadd.f32 %v574, %v662
      %v664 = vpop.f32.mrf.mxu0
      %v665 = vadd.f32 %v576, %v664
      %666 = vmatmul.bf16.gmra.mxu0 %v383
      %v667 = vpop.f32.mrf.mxu0
      %v668 = vadd.f32 %v579, %v667
      %v669 = vpop.f32.mrf.mxu0
      %v670 = vadd.f32 %v581, %v669
      %671 = vmatmul.bf16.gmra.mxu0 %v385
      %v672 = vpop.f32.mrf.mxu0
      %v673 = vadd.f32 %v584, %v672
      %v674 = vpop.f32.mrf.mxu0
      %v675 = vadd.f32 %v586, %v674
      %676 = vmatmul.bf16.gmra.mxu0 %v387
      %v677 = vpop.f32.mrf.mxu0
      %v678 = vadd.f32 %v589, %v677
      %v679 = vpop.f32.mrf.mxu0
      %v680 = vadd.f32 %v591, %v679
      %681 = vmatmul.bf16.gmra.mxu0 %v389
      %v682 = vpop.f32.mrf.mxu0
      %v683 = vadd.f32 %v594, %v682
      %v684 = vpop.f32.mrf.mxu0
      %v685 = vadd.f32 %v596, %v684
      %686 = vmatmul.bf16.gmra.mxu0 %v391
      %v687 = vpop.f32.mrf.mxu0
      %v688 = vadd.f32 %v599, %v687
      %v689 = vpop.f32.mrf.mxu0
      %v690 = vadd.f32 %v601, %v689
      %691 = vmatmul.bf16.gmra.mxu0 %v393
      %v692 = vpop.f32.mrf.mxu0
      %v693 = vadd.f32 %v604, %v692
      %v694 = vpop.f32.mrf.mxu0
      %v695 = vadd.f32 %v606, %v694
      %696 = vmatmul.bf16.gmra.mxu0 %v395
      %v697 = vpop.f32.mrf.mxu0
      %v698 = vadd.f32 %v609, %v697
      %v699 = vpop.f32.mrf.mxu0
      %v700 = vadd.f32 %v611, %v699
      %701 = vdwg.mxu0
      %v702 = vld [vmem:[%s2] sm:$0x1]
      %v704 = vperm.slane %v702, 0
      %v706 = vmul.f32 %v623, %v704
      %v707 = vmul.f32 %v625, %v704
      %v708 = vmul.f32 %v628, %v704
      %v709 = vmul.f32 %v630, %v704
      %v710 = vmul.f32 %v633, %v704
      %v711 = vmul.f32 %v635, %v704
      %v712 = vmul.f32 %v638, %v704
      %v713 = vmul.f32 %v640, %v704
      %v714 = vmul.f32 %v643, %v704
      %v715 = vmul.f32 %v645, %v704
      %v716 = vmul.f32 %v648, %v704
      %v717 = vmul.f32 %v650, %v704
      %v718 = vmul.f32 %v653, %v704
      %v719 = vmul.f32 %v655, %v704
      %v720 = vmul.f32 %v658, %v704
      %v721 = vmul.f32 %v660, %v704
      %v722 = vmul.f32 %v663, %v704
      %v723 = vmul.f32 %v665, %v704
      %v724 = vmul.f32 %v668, %v704
      %v725 = vmul.f32 %v670, %v704
      %v726 = vmul.f32 %v673, %v704
      %v727 = vmul.f32 %v675, %v704
      %v728 = vmul.f32 %v678, %v704
      %v729 = vmul.f32 %v680, %v704
      %v730 = vmul.f32 %v683, %v704
      %v731 = vmul.f32 %v685, %v704
      %v732 = vmul.f32 %v688, %v704
      %v733 = vmul.f32 %v690, %v704
      %v734 = vmul.f32 %v693, %v704
      %v735 = vmul.f32 %v695, %v704
      %v736 = vmul.f32 %v698, %v704
      %v737 = vmul.f32 %v700, %v704
      %v738 = vld [vmem:[%s3] sm:$0x1]
      %v740 = vperm.slane %v738, 0
      %v742 = vadd.f32 %v706, %v740
      %v743 = vadd.f32 %v707, %v740
      %v744 = vadd.f32 %v708, %v740
      %v745 = vadd.f32 %v709, %v740
      %v746 = vadd.f32 %v710, %v740
      %v747 = vadd.f32 %v711, %v740
      %v748 = vadd.f32 %v712, %v740
      %v749 = vadd.f32 %v713, %v740
      %v750 = vadd.f32 %v714, %v740
      %v751 = vadd.f32 %v715, %v740
      %v752 = vadd.f32 %v716, %v740
      %v753 = vadd.f32 %v717, %v740
      %v754 = vadd.f32 %v718, %v740
      %v755 = vadd.f32 %v719, %v740
      %v756 = vadd.f32 %v720, %v740
      %v757 = vadd.f32 %v721, %v740
      %v758 = vadd.f32 %v722, %v740
      %v759 = vadd.f32 %v723, %v740
      %v760 = vadd.f32 %v724, %v740
      %v761 = vadd.f32 %v725, %v740
      %v762 = vadd.f32 %v726, %v740
      %v763 = vadd.f32 %v727, %v740
      %v764 = vadd.f32 %v728, %v740
      %v765 = vadd.f32 %v729, %v740
      %v766 = vadd.f32 %v730, %v740
      %v767 = vadd.f32 %v731, %v740
      %v768 = vadd.f32 %v732, %v740
      %v769 = vadd.f32 %v733, %v740
      %v770 = vadd.f32 %v734, %v740
      %v771 = vadd.f32 %v735, %v740
      %v772 = vadd.f32 %v736, %v740
      %v773 = vadd.f32 %v737, %v740
      %v774 = vmax.f32 %v742, 0.0
      %v775 = vmax.f32 %v743, 0.0
      %v776 = vmax.f32 %v744, 0.0
      %v777 = vmax.f32 %v745, 0.0
      %v778 = vmax.f32 %v746, 0.0
      %v779 = vmax.f32 %v747, 0.0
      %v780 = vmax.f32 %v748, 0.0
      %v781 = vmax.f32 %v749, 0.0
      %v782 = vmax.f32 %v750, 0.0
      %v783 = vmax.f32 %v751, 0.0
      %v784 = vmax.f32 %v752, 0.0
      %v785 = vmax.f32 %v753, 0.0
      %v786 = vmax.f32 %v754, 0.0
      %v787 = vmax.f32 %v755, 0.0
      %v788 = vmax.f32 %v756, 0.0
      %v789 = vmax.f32 %v757, 0.0
      %v790 = vmax.f32 %v758, 0.0
      %v791 = vmax.f32 %v759, 0.0
      %v792 = vmax.f32 %v760, 0.0
      %v793 = vmax.f32 %v761, 0.0
      %v794 = vmax.f32 %v762, 0.0
      %v795 = vmax.f32 %v763, 0.0
      %v796 = vmax.f32 %v764, 0.0
      %v797 = vmax.f32 %v765, 0.0
      %v798 = vmax.f32 %v766, 0.0
      %v799 = vmax.f32 %v767, 0.0
      %v800 = vmax.f32 %v768, 0.0
      %v801 = vmax.f32 %v769, 0.0
      %v802 = vmax.f32 %v770, 0.0
      %v803 = vmax.f32 %v771, 0.0
      %v804 = vmax.f32 %v772, 0.0
      %v805 = vmax.f32 %v773, 0.0
      %v806 = vpack.c.bf16 %v774, %v774
      %v807 = vpack.c.bf16 %v775, %v775
      %v808 = vpack.c.bf16 %v776, %v776
      %v809 = vpack.c.bf16 %v777, %v777
      %v810 = vpack.c.bf16 %v778, %v778
      %v811 = vpack.c.bf16 %v779, %v779
      %v812 = vpack.c.bf16 %v780, %v780
      %v813 = vpack.c.bf16 %v781, %v781
      %v814 = vpack.c.bf16 %v782, %v782
      %v815 = vpack.c.bf16 %v783, %v783
      %v816 = vpack.c.bf16 %v784, %v784
      %v817 = vpack.c.bf16 %v785, %v785
      %v818 = vpack.c.bf16 %v786, %v786
      %v819 = vpack.c.bf16 %v787, %v787
      %v820 = vpack.c.bf16 %v788, %v788
      %v821 = vpack.c.bf16 %v789, %v789
      %v822 = vpack.c.bf16 %v790, %v790
      %v823 = vpack.c.bf16 %v791, %v791
      %v824 = vpack.c.bf16 %v792, %v792
      %v825 = vpack.c.bf16 %v793, %v793
      %v826 = vpack.c.bf16 %v794, %v794
      %v827 = vpack.c.bf16 %v795, %v795
      %v828 = vpack.c.bf16 %v796, %v796
      %v829 = vpack.c.bf16 %v797, %v797
      %v830 = vpack.c.bf16 %v798, %v798
      %v831 = vpack.c.bf16 %v799, %v799
      %v832 = vpack.c.bf16 %v800, %v800
      %v833 = vpack.c.bf16 %v801, %v801
      %v834 = vpack.c.bf16 %v802, %v802
      %v835 = vpack.c.bf16 %v803, %v803
      %v836 = vpack.c.bf16 %v804, %v804
      %v837 = vpack.c.bf16 %v805, %v805
      %vm838 = vcmask 519168
      %839 = vst.msk [vmem:[%s202] sm:$0xf] %vm838, %v806
      %840 = vst.msk [vmem:[%s202 + $0x4] sm:$0xf] %vm838, %v807
      %841 = vst.msk [vmem:[%s202 + $0x8] sm:$0xf] %vm838, %v808
      %842 = vst.msk [vmem:[%s202 + $0xc] sm:$0xf] %vm838, %v809
      %843 = vst.msk [vmem:[%s202 + $0x10] sm:$0xf] %vm838, %v810
      %844 = vst.msk [vmem:[%s202 + $0x14] sm:$0xf] %vm838, %v811
      %845 = vst.msk [vmem:[%s202 + $0x18] sm:$0xf] %vm838, %v812
      %846 = vst.msk [vmem:[%s202 + $0x1c] sm:$0xf] %vm838, %v813
      %847 = vst.msk [vmem:[%s202 + $0x20] sm:$0xf] %vm838, %v814
      %848 = vst.msk [vmem:[%s202 + $0x24] sm:$0xf] %vm838, %v815
      %849 = vst.msk [vmem:[%s202 + $0x28] sm:$0xf] %vm838, %v816
      %850 = vst.msk [vmem:[%s202 + $0x2c] sm:$0xf] %vm838, %v817
      %851 = vst.msk [vmem:[%s202 + $0x30] sm:$0xf] %vm838, %v818
      %852 = vst.msk [vmem:[%s202 + $0x34] sm:$0xf] %vm838, %v819
      %853 = vst.msk [vmem:[%s202 + $0x38] sm:$0xf] %vm838, %v820
      %854 = vst.msk [vmem:[%s202 + $0x3c] sm:$0xf] %vm838, %v821
      %855 = vst.msk [vmem:[%s202 + $0x40] sm:$0xf] %vm838, %v822
      %856 = vst.msk [vmem:[%s202 + $0x44] sm:$0xf] %vm838, %v823
      %857 = vst.msk [vmem:[%s202 + $0x48] sm:$0xf] %vm838, %v824
      %858 = vst.msk [vmem:[%s202 + $0x4c] sm:$0xf] %vm838, %v825
      %859 = vst.msk [vmem:[%s202 + $0x50] sm:$0xf] %vm838, %v826
      %860 = vst.msk [vmem:[%s202 + $0x54] sm:$0xf] %vm838, %v827
      %861 = vst.msk [vmem:[%s202 + $0x58] sm:$0xf] %vm838, %v828
      %862 = vst.msk [vmem:[%s202 + $0x5c] sm:$0xf] %vm838, %v829
      %863 = vst.msk [vmem:[%s202 + $0x60] sm:$0xf] %vm838, %v830
      %864 = vst.msk [vmem:[%s202 + $0x64] sm:$0xf] %vm838, %v831
      %865 = vst.msk [vmem:[%s202 + $0x68] sm:$0xf] %vm838, %v832
      %866 = vst.msk [vmem:[%s202 + $0x6c] sm:$0xf] %vm838, %v833
      %867 = vst.msk [vmem:[%s202 + $0x70] sm:$0xf] %vm838, %v834
      %868 = vst.msk [vmem:[%s202 + $0x74] sm:$0xf] %vm838, %v835
      %869 = vst.msk [vmem:[%s202 + $0x78] sm:$0xf] %vm838, %v836
      %870 = vst.msk [vmem:[%s202 + $0x7c] sm:$0xf] %vm838, %v837
      %s871 = smul.u32 32, %s15
      %p872 = scmp.lt.s32.totalorder %s871, 63
      %s873 = scalar_select %p872, %s871, 63
      %s874 = smul.addr %s873, 4
      %s875 = scalar_lea.vmem %s4, %s874
      // Predicated region
      $region37: #{bottleneck_forward.3} parent=35 // pred_check
        %p876 = pneg %p122
      $region38: #{bottleneck_forward.3} parent=35 // pred_check_branch
        %878 = sbr.rel (%p876) target = $region40
      $region39: #{bottleneck_forward.3} parent=35 // pred_region
        %s879 = smul.u32 32, %s15
      $region40: #{bottleneck_forward.3} parent=35 // pred_fallthru
        _
    $region36: #{bottleneck_forward.3} parent=5 // pred_fallthru
      _
    %p880 = scmp.le.s32.totalorder 2, %s10
    // Predicated region
    $region41: #{bottleneck_forward.3} parent=5 // pred_check
      %p881 = pneg %p880
    $region42: #{bottleneck_forward.3} parent=5 // pred_check_branch
      %883 = sbr.rel (%p881) target = $region44
    $region43: #{bottleneck_forward.3} parent=5 // pred_region
      %s884 = ssub.s32 %s10, 2
      // Predicated region
      $region45: #{bottleneck_forward.3} parent=43 // pred_check
        %p885 = pneg %p128
      $region46: #{bottleneck_forward.3} parent=43 // pred_check_branch
        %887 = sbr.rel (%p885) target = $region48
      $region47: #{bottleneck_forward.3} parent=43 // pred_region
        %s888 = smul.u32 32, %s16
        %p889 = scmp.lt.s32.totalorder %s888, 63
        %s890 = scalar_select %p889, %s888, 63
        %s891 = smul.addr %s890, 4
        %s892 = scalar_lea.vmem %s4, %s891
      $region48: #{bottleneck_forward.3} parent=43 // pred_fallthru
        _
    $region44: #{bottleneck_forward.3} parent=5 // pred_fallthru
      _
  $region6: #{bottleneck_forward.3} parent=0 // loop_footer
    %s14 = sadd.s32 1, %s10
  $region7: #{bottleneck_forward.3} parent=0 // loop_footer_branch
    %9 = sbr.rel target = $region3
  $region8: #{bottleneck_forward.3} parent=0 // loop_exit
    _

// kernel: bottleneck_forward.5
$region0: #{bottleneck_forward.5}
  #allocation0 [shape = 'u32[]', space=smem, size = 0x4, offset = 0x4, fixed_abs, tag = 'smem constant byte address 0x4 - core index']
  #allocation1 [shape = 'u32[72,128]{1,0:T(1,128)}', space=vmem, size = 0x9000, scoped, tag = 'internal scratch']
  %s0 = inlined_call_operand.vmem [shape: bf16[512,64], index: 0, kind: input, shape index: {}]
  %s1 = inlined_call_operand.vmem [shape: bf16[64,256], index: 1, kind: input, shape index: {}]
  %s2 = inlined_call_operand.vmem [shape: f32[1,256], index: 2, kind: input, shape index: {}]
  %s3 = inlined_call_operand.vmem [shape: f32[1,256], index: 3, kind: input, shape index: {}]
  %s4 = inlined_call_operand.vmem [shape: f32[512,256], index: 4, kind: input, shape index: {}]
  %s5 = inlined_call_operand.hbm [shape: f32[512,256], index: 5, kind: output, shape index: {}]
  %s6 = sld [smem:[#allocation0]]
  $region53: #{bottleneck_forward.5} parent=0
    _
  %s8 = ssub.s32 1, %s6
  %s9 = scalar_select 0, %s8, %s6
  $region1: #{bottleneck_forward.5} parent=0
    #allocation2 [shape = 'u8[524288]{0}', space=vmem, size = 0x80000, scoped, tag = 'output window, operand 0']
    #allocation3 [shape = 's32[2]{0}', space=sflag, size = 0x8, scoped, tag = 'scoped memory for bottleneck_forward.5']
    %10 = vsyncpa [#allocation3], 0
    %s11 = scalar_lea.sflag [#allocation3], 1
    %12 = vsyncpa %s11, 0
    loop: start=0, step=1, limit=4
    $region2: #{bottleneck_forward.5} parent=1 // loop_pre_header
      _
    $region3: #{bottleneck_forward.5} parent=1 // loop_header
      %s14 = sphi 0, %s18
      %p15 = scmp.ge.s32.totalorder %s14, 4
      %s24 = sphi 0, %s26
      %s27 = sphi 0, %s24
      %s28 = sphi 0, %s27
      %s44 = sphi 0, %s28
      %s48 = sphi 0, %s48
      %s50 = sphi 0, %s48
      %s51 = sphi 0, %s50
      %s65 = sphi 0, %s51
      %s69 = sphi 0, %s69
      %s71 = sphi 0, %s69
      %s72 = sphi 0, %s71
      %s86 = sphi 0, %s72
      %s90 = sphi 0, %s90
      %s92 = sphi 0, %s90
      %s93 = sphi 0, %s92
      %s107 = sphi 0, %s93
      %s113 = sphi 0, %s115
      %s116 = sphi 0, %s113
      %s117 = sphi 0, %s116
      %s133 = sphi 0, %s117
      %s139 = sphi 0, %s141
      %s142 = sphi 0, %s139
      %s143 = sphi 0, %s142
      %s159 = sphi 0, %s143
    $region4: #{bottleneck_forward.5} parent=1 // loop_header_branch
      %17 = sbr.rel (%p15) target = $region8
    $region5: #{bottleneck_forward.5} parent=1 // loop_body
      %s19 = ssub.s32 %s14, 1
      %s20 = ssub.s32 %s14, 2
      %s21 = sadd.s32 %s14, 1
      %s22 = ssub.s32 %s14, %s21
      %p23 = scmp.eq.s32.totalorder %s22, 0
      %s25 = sadd.s32 %s24, 1
      %s26 = scalar_select %p23, %s24, %s25
      %p29 = pneg %p23
      %p30 = scmp.eq.s32.totalorder %s14, 1
      %p31 = por %p29, %p30
      %p32 = scmp.ne.s32.totalorder %s24, %s27
      %p33 = scmp.eq.s32.totalorder %s14, 0
      %p34 = por %p32, %p33
      %p35 = scmp.ne.s32.totalorder %s24, %s27
      %p36 = scmp.eq.s32.totalorder %s19, 1
      %p37 = por %p35, %p36
      %p38 = scmp.ne.s32.totalorder %s27, %s28
      %p39 = scmp.eq.s32.totalorder %s19, 0
      %p40 = por %p38, %p39
      %p41 = scmp.ne.s32.totalorder %s27, %s28
      %p42 = scmp.eq.s32.totalorder %s20, 1
      %p43 = por %p41, %p42
      %p45 = scmp.ne.s32.totalorder %s28, %s44
      %p46 = scmp.eq.s32.totalorder %s20, 0
      %p47 = por %p45, %p46
      %s49 = sadd.s32 %s48, 1
      %p52 = scmp.eq.s32.totalorder %s14, 1
      %p53 = scmp.ne.s32.totalorder %s48, %s50
      %p54 = scmp.eq.s32.totalorder %s14, 0
      %p55 = por %p53, %p54
      %p56 = scmp.ne.s32.totalorder %s48, %s50
      %p57 = scmp.eq.s32.totalorder %s19, 1
      %p58 = por %p56, %p57
      %p59 = scmp.ne.s32.totalorder %s50, %s51
      %p60 = scmp.eq.s32.totalorder %s19, 0
      %p61 = por %p59, %p60
      %p62 = scmp.ne.s32.totalorder %s50, %s51
      %p63 = scmp.eq.s32.totalorder %s20, 1
      %p64 = por %p62, %p63
      %p66 = scmp.ne.s32.totalorder %s51, %s65
      %p67 = scmp.eq.s32.totalorder %s20, 0
      %p68 = por %p66, %p67
      %s70 = sadd.s32 %s69, 1
      %p73 = scmp.eq.s32.totalorder %s14, 1
      %p74 = scmp.ne.s32.totalorder %s69, %s71
      %p75 = scmp.eq.s32.totalorder %s14, 0
      %p76 = por %p74, %p75
      %p77 = scmp.ne.s32.totalorder %s69, %s71
      %p78 = scmp.eq.s32.totalorder %s19, 1
      %p79 = por %p77, %p78
      %p80 = scmp.ne.s32.totalorder %s71, %s72
      %p81 = scmp.eq.s32.totalorder %s19, 0
      %p82 = por %p80, %p81
      %p83 = scmp.ne.s32.totalorder %s71, %s72
      %p84 = scmp.eq.s32.totalorder %s20, 1
      %p85 = por %p83, %p84
      %p87 = scmp.ne.s32.totalorder %s72, %s86
      %p88 = scmp.eq.s32.totalorder %s20, 0
      %p89 = por %p87, %p88
      %s91 = sadd.s32 %s90, 1
      %p94 = scmp.eq.s32.totalorder %s14, 1
      %p95 = scmp.ne.s32.totalorder %s90, %s92
      %p96 = scmp.eq.s32.totalorder %s14, 0
      %p97 = por %p95, %p96
      %p98 = scmp.ne.s32.totalorder %s90, %s92
      %p99 = scmp.eq.s32.totalorder %s19, 1
      %p100 = por %p98, %p99
      %p101 = scmp.ne.s32.totalorder %s92, %s93
      %p102 = scmp.eq.s32.totalorder %s19, 0
      %p103 = por %p101, %p102
      %p104 = scmp.ne.s32.totalorder %s92, %s93
      %p105 = scmp.eq.s32.totalorder %s20, 1
      %p106 = por %p104, %p105
      %p108 = scmp.ne.s32.totalorder %s93, %s107
      %p109 = scmp.eq.s32.totalorder %s20, 0
      %p110 = por %p108, %p109
      %s111 = ssub.s32 %s14, %s21
      %p112 = scmp.eq.s32.totalorder %s111, 0
      %s114 = sadd.s32 %s113, 1
      %s115 = scalar_select %p112, %s113, %s114
      %p118 = pneg %p112
      %p119 = scmp.eq.s32.totalorder %s14, 1
      %p120 = por %p118, %p119
      %p121 = scmp.ne.s32.totalorder %s113, %s116
      %p122 = scmp.eq.s32.totalorder %s14, 0
      %p123 = por %p121, %p122
      %p124 = scmp.ne.s32.totalorder %s113, %s116
      %p125 = scmp.eq.s32.totalorder %s19, 1
      %p126 = por %p124, %p125
      %p127 = scmp.ne.s32.totalorder %s116, %s117
      %p128 = scmp.eq.s32.totalorder %s19, 0
      %p129 = por %p127, %p128
      %p130 = scmp.ne.s32.totalorder %s116, %s117
      %p131 = scmp.eq.s32.totalorder %s20, 1
      %p132 = por %p130, %p131
      %p134 = scmp.ne.s32.totalorder %s117, %s133
      %p135 = scmp.eq.s32.totalorder %s20, 0
      %p136 = por %p134, %p135
      %s137 = ssub.s32 %s14, %s21
      %p138 = scmp.eq.s32.totalorder %s137, 0
      %s140 = sadd.s32 %s139, 1
      %s141 = scalar_select %p138, %s139, %s140
      %p144 = pneg %p138
      %p145 = scmp.eq.s32.totalorder %s14, 1
      %p146 = por %p144, %p145
      %p147 = scmp.ne.s32.totalorder %s139, %s142
      %p148 = scmp.eq.s32.totalorder %s14, 0
      %p149 = por %p147, %p148
      %p150 = scmp.ne.s32.totalorder %s139, %s142
      %p151 = scmp.eq.s32.totalorder %s19, 1
      %p152 = por %p150, %p151
      %p153 = scmp.ne.s32.totalorder %s142, %s143
      %p154 = scmp.eq.s32.totalorder %s19, 0
      %p155 = por %p153, %p154
      %p156 = scmp.ne.s32.totalorder %s142, %s143
      %p157 = scmp.eq.s32.totalorder %s20, 1
      %p158 = por %p156, %p157
      %p160 = scmp.ne.s32.totalorder %s143, %s159
      %p161 = scmp.eq.s32.totalorder %s20, 0
      %p162 = por %p160, %p161
      %p163 = scmp.le.s32.totalorder 1, %s14
      %p164 = scmp.lt.s32.totalorder %s14, 3
      %p165 = pnand %p163, %p164
      %p166 = pneg %p165
      // Predicated region
      $region9: #{bottleneck_forward.5} parent=5 // pred_check
        _
      $region10: #{bottleneck_forward.5} parent=5 // pred_check_branch
        %168 = sbr.rel (%p165) target = $region12
      $region11: #{bottleneck_forward.5} parent=5 // pred_region
        %s169 = ssub.s32 %s14, 1
        // Predicated region
        $region13: #{bottleneck_forward.5} parent=11 // pred_check
          %p170 = pneg %p61
        $region14: #{bottleneck_forward.5} parent=11 // pred_check_branch
          %172 = sbr.rel (%p170) target = $region16
        $region15: #{bottleneck_forward.5} parent=11 // pred_region
          _
        $region16: #{bottleneck_forward.5} parent=11 // pred_fallthru
          _
        // Predicated region
        $region17: #{bottleneck_forward.5} parent=11 // pred_check
          %p173 = pneg %p82
        $region18: #{bottleneck_forward.5} parent=11 // pred_check_branch
          %175 = sbr.rel (%p173) target = $region20
        $region19: #{bottleneck_forward.5} parent=11 // pred_region
          _
        $region20: #{bottleneck_forward.5} parent=11 // pred_fallthru
          _
        // Predicated region
        $region21: #{bottleneck_forward.5} parent=11 // pred_check
          %p176 = pneg %p103
        $region22: #{bottleneck_forward.5} parent=11 // pred_check_branch
          %178 = sbr.rel (%p176) target = $region24
        $region23: #{bottleneck_forward.5} parent=11 // pred_region
          _
        $region24: #{bottleneck_forward.5} parent=11 // pred_fallthru
          _
      $region12: #{bottleneck_forward.5} parent=5 // pred_fallthru
        _
      %p179 = scmp.lt.s32.totalorder %s14, 2
      // Predicated region
      $region25: #{bottleneck_forward.5} parent=5 // pred_check
        %p180 = pneg %p179
      $region26: #{bottleneck_forward.5} parent=5 // pred_check_branch
        %182 = sbr.rel (%p180) target = $region28
      $region27: #{bottleneck_forward.5} parent=5 // pred_region
        // Predicated region
        $region29: #{bottleneck_forward.5} parent=27 // pred_check
          %p183 = pneg %p34
        $region30: #{bottleneck_forward.5} parent=27 // pred_check_branch
          %185 = sbr.rel (%p183) target = $region32
        $region31: #{bottleneck_forward.5} parent=27 // pred_region
          %s186 = smul.u32 32, %s14
          %p187 = scmp.lt.s32.totalorder %s186, 63
          %s188 = scalar_select %p187, %s186, 63
          %s189 = smul.addr %s188, 4
          %s190 = scalar_lea.vmem %s0, %s189
          %s191 = smul.u32 32, %s14
        $region32: #{bottleneck_forward.5} parent=27 // pred_fallthru
          _
        // Predicated region
        $region33: #{bottleneck_forward.5} parent=27 // pred_check
          %p192 = pneg %p123
        $region34: #{bottleneck_forward.5} parent=27 // pred_check_branch
          %194 = sbr.rel (%p192) target = $region36
        $region35: #{bottleneck_forward.5} parent=27 // pred_region
          %s195 = smul.u32 32, %s14
          %p196 = scmp.lt.s32.totalorder %s195, 63
          %s197 = scalar_select %p196, %s195, 63
          %s198 = smul.addr %s197, 2
          %s199 = smul.addr %s198, 8
          %s200 = scalar_lea.vmem %s4, %s199
          %s201 = smul.u32 32, %s14
        $region36: #{bottleneck_forward.5} parent=27 // pred_fallthru
          _
      $region28: #{bottleneck_forward.5} parent=5 // pred_fallthru
        _
      %p202 = scmp.le.s32.totalorder 1, %s14
      %p203 = scmp.lt.s32.totalorder %s14, 3
      %p204 = pnand %p202, %p203
      %p205 = pneg %p204
      // Predicated region
      $region37: #{bottleneck_forward.5} parent=5 // pred_check
        _
      $region38: #{bottleneck_forward.5} parent=5 // pred_check_branch
        %207 = sbr.rel (%p204) target = $region40
      $region39: #{bottleneck_forward.5} parent=5 // pred_region
        %s208 = ssub.s32 %s14, 1
        %s209 = smul.u32 32, %s19
        %p210 = scmp.lt.s32.totalorder %s209, 63
        %s211 = scalar_select %p210, %s209, 63
        %s212 = smul.addr %s211, 4
        %s213 = scalar_lea.vmem %s0, %s212
        %p214 = pneg %p40
        %p215 = pneg %p37
        %p216 = pneg %p61
        %p217 = pneg %p58
        %p218 = pneg %p82
        %p219 = pneg %p79
        %p220 = pneg %p103
        %p221 = pneg %p100
        %s222 = smul.u32 32, %s19
        %p223 = scmp.lt.s32.totalorder %s222, 63
        %s224 = scalar_select %p223, %s222, 63
        %s225 = smul.addr %s224, 2
        %s226 = smul.addr %s225, 8
        %s227 = scalar_lea.vmem %s4, %s226
        %p228 = pneg %p129
        %p229 = pneg %p126
        %p230 = pneg %p155
        %p231 = pneg %p152
        %s232 = sand.u32 %s142, 1
        %s233 = scalar_lea.sflag [#allocation3], %s232
        %s234 = sand.u32 %s142, 1
        %s235 = smul.addr %s234, 512
        %s236 = scalar_lea.vmem [#allocation2], %s235
        %s237 = smul.u32 32, %s19
        %p238 = scmp.lt.s32.totalorder %s237, 63
        %s239 = scalar_select %p238, %s237, 63
        %s240 = smul.addr %s239, 4
        %s241 = scalar_lea.vmem %s0, %s240
        %s242 = smul.u32 32, %s19
        %s243 = smul.u32 32, %s19
        %p244 = scmp.lt.s32.totalorder %s243, 63
        %s245 = scalar_select %p244, %s243, 63
        %s246 = smul.addr %s245, 2
        %s247 = smul.addr %s246, 8
        %s248 = scalar_lea.vmem %s4, %s247
        %s249 = smul.u32 32, %s19
        %s250 = smul.u32 32, %s19
        %v252 = vld [vmem:[%s241] sm:$0xf]
        %v253 = vld [vmem:[%s241 + $0x4] sm:$0xf]
        %v254 = vld [vmem:[%s241 + $0x8] sm:$0xf]
        %v255 = vld [vmem:[%s241 + $0xc] sm:$0xf]
        %v256 = vld [vmem:[%s241 + $0x10] sm:$0xf]
        %v257 = vld [vmem:[%s241 + $0x14] sm:$0xf]
        %v258 = vld [vmem:[%s241 + $0x18] sm:$0xf]
        %v259 = vld [vmem:[%s241 + $0x1c] sm:$0xf]
        %v260 = vld [vmem:[%s241 + $0x20] sm:$0xf]
        %v261 = vld [vmem:[%s241 + $0x24] sm:$0xf]
        %v262 = vld [vmem:[%s241 + $0x28] sm:$0xf]
        %v263 = vld [vmem:[%s241 + $0x2c] sm:$0xf]
        %v264 = vld [vmem:[%s241 + $0x30] sm:$0xf]
        %v265 = vld [vmem:[%s241 + $0x34] sm:$0xf]
        %v266 = vld [vmem:[%s241 + $0x38] sm:$0xf]
        %v267 = vld [vmem:[%s241 + $0x3c] sm:$0xf]
        %v268 = vld [vmem:[%s241 + $0x40] sm:$0xf]
        %v269 = vld [vmem:[%s241 + $0x44] sm:$0xf]
        %v270 = vld [vmem:[%s241 + $0x48] sm:$0xf]
        %v271 = vld [vmem:[%s241 + $0x4c] sm:$0xf]
        %v272 = vld [vmem:[%s241 + $0x50] sm:$0xf]
        %v273 = vld [vmem:[%s241 + $0x54] sm:$0xf]
        %v274 = vld [vmem:[%s241 + $0x58] sm:$0xf]
        %v275 = vld [vmem:[%s241 + $0x5c] sm:$0xf]
        %v276 = vld [vmem:[%s241 + $0x60] sm:$0xf]
        %v277 = vld [vmem:[%s241 + $0x64] sm:$0xf]
        %v278 = vld [vmem:[%s241 + $0x68] sm:$0xf]
        %v279 = vld [vmem:[%s241 + $0x6c] sm:$0xf]
        %v280 = vld [vmem:[%s241 + $0x70] sm:$0xf]
        %v281 = vld [vmem:[%s241 + $0x74] sm:$0xf]
        %v282 = vld [vmem:[%s241 + $0x78] sm:$0xf]
        %v283 = vld [vmem:[%s241 + $0x7c] sm:$0xf]
        %v284 = vld [vmem:[%s1] sm:$0xff]
        %v285 = vld [vmem:[%s1 + $0x8] sm:$0xff]
        %v286 = vld [vmem:[%s1 + $0x10] sm:$0xff]
        %v287 = vld [vmem:[%s1 + $0x18] sm:$0xff]
        %v288 = vld [vmem:[%s1 + $0x20] sm:$0xff]
        %v289 = vld [vmem:[%s1 + $0x28] sm:$0xff]
        %v290 = vld [vmem:[%s1 + $0x30] sm:$0xff]
        %v291 = vld [vmem:[%s1 + $0x38] sm:$0xff]
        %v324 = vunpack.c.l.b16 %v252
        %v325 = vunpack.c.l.b16 %v253
        %v326 = vunpack.c.l.b16 %v254
        %v327 = vunpack.c.l.b16 %v255
        %v328 = vunpack.c.l.b16 %v256
        %v329 = vunpack.c.l.b16 %v257
        %v330 = vunpack.c.l.b16 %v258
        %v331 = vunpack.c.l.b16 %v259
        %v332 = vunpack.c.l.b16 %v260
        %v333 = vunpack.c.l.b16 %v261
        %v334 = vunpack.c.l.b16 %v262
        %v335 = vunpack.c.l.b16 %v263
        %v336 = vunpack.c.l.b16 %v264
        %v337 = vunpack.c.l.b16 %v265
        %v338 = vunpack.c.l.b16 %v266
        %v339 = vunpack.c.l.b16 %v267
        %v340 = vunpack.c.l.b16 %v268
        %v341 = vunpack.c.l.b16 %v269
        %v342 = vunpack.c.l.b16 %v270
        %v343 = vunpack.c.l.b16 %v271
        %v344 = vunpack.c.l.b16 %v272
        %v345 = vunpack.c.l.b16 %v273
        %v346 = vunpack.c.l.b16 %v274
        %v347 = vunpack.c.l.b16 %v275
        %v348 = vunpack.c.l.b16 %v276
        %v349 = vunpack.c.l.b16 %v277
        %v350 = vunpack.c.l.b16 %v278
        %v351 = vunpack.c.l.b16 %v279
        %v352 = vunpack.c.l.b16 %v280
        %v353 = vunpack.c.l.b16 %v281
        %v354 = vunpack.c.l.b16 %v282
        %v355 = vunpack.c.l.b16 %v283
        %v356 = vpack.c.b16 %v325, %v324
        %v357 = vpack.c.b16 %v327, %v326
        %v358 = vpack.c.b16 %v329, %v328
        %v359 = vpack.c.b16 %v331, %v330
        %v360 = vpack.c.b16 %v333, %v332
        %v361 = vpack.c.b16 %v335, %v334
        %v362 = vpack.c.b16 %v337, %v336
        %v363 = vpack.c.b16 %v339, %v338
        %v364 = vpack.c.b16 %v341, %v340
        %v365 = vpack.c.b16 %v343, %v342
        %v366 = vpack.c.b16 %v345, %v344
        %v367 = vpack.c.b16 %v347, %v346
        %v368 = vpack.c.b16 %v349, %v348
        %v369 = vpack.c.b16 %v351, %v350
        %v370 = vpack.c.b16 %v353, %v352
        %v371 = vpack.c.b16 %v355, %v354
        %v380 = vunpack.c.l.b16 %v284
        %v381 = vunpack.c.h.b16 %v284
        %v382 = vunpack.c.l.b16 %v285
        %v383 = vunpack.c.h.b16 %v285
        %v384 = vunpack.c.l.b16 %v286
        %v385 = vunpack.c.h.b16 %v286
        %v386 = vunpack.c.l.b16 %v287
        %v387 = vunpack.c.h.b16 %v287
        %v388 = vunpack.c.l.b16 %v288
        %v389 = vunpack.c.h.b16 %v288
        %v390 = vunpack.c.l.b16 %v289
        %v391 = vunpack.c.h.b16 %v289
        %v392 = vunpack.c.l.b16 %v290
        %v393 = vunpack.c.h.b16 %v290
        %v394 = vunpack.c.l.b16 %v291
        %v395 = vunpack.c.h.b16 %v291
        %v396 = vpack.c.b16 %v382, %v380
        %v397 = vpack.c.b16 %v383, %v381
        %v398 = vpack.c.b16 %v386, %v384
        %v399 = vpack.c.b16 %v387, %v385
        %v400 = vpack.c.b16 %v390, %v388
        %v401 = vpack.c.b16 %v391, %v389
        %v402 = vpack.c.b16 %v394, %v392
        %v403 = vpack.c.b16 %v395, %v393
        %vm412 = vcmask 523264
        %v414 = vsel %vm412, %v356, 0
        %v417 = vsel %vm412, %v357, 0
        %v420 = vsel %vm412, %v358, 0
        %v423 = vsel %vm412, %v359, 0
        %v426 = vsel %vm412, %v360, 0
        %v429 = vsel %vm412, %v361, 0
        %v432 = vsel %vm412, %v362, 0
        %v435 = vsel %vm412, %v363, 0
        %v438 = vsel %vm412, %v364, 0
        %v441 = vsel %vm412, %v365, 0
        %v444 = vsel %vm412, %v366, 0
        %v447 = vsel %vm412, %v367, 0
        %v450 = vsel %vm412, %v368, 0
        %v453 = vsel %vm412, %v369, 0
        %v456 = vsel %vm412, %v370, 0
        %v459 = vsel %vm412, %v371, 0
        %461 = vmatpush.bf16.msra.mxu0 0
        %462 = vmatpush.bf16.msra.mxu0 0
        %463 = vmatpush.bf16.msra.mxu0 0
        %464 = vmatpush.bf16.msra.mxu0 0
        %465 = vmatpush.bf16.msra.mxu0 %v402
        %466 = vmatpush.bf16.msra.mxu0 %v400
        %467 = vmatpush.bf16.msra.mxu0 %v398
        %468 = vmatpush.bf16.msra.mxu0 %v396
        %469 = vmatmul.bf16.gmra.mxu0 %v414
        %v470 = vpop.f32.mrf.mxu0
        %v471 = vadd.f32 0.0, %v470
        %v472 = vpop.f32.mrf.mxu0
        %v473 = vadd.f32 0.0, %v472
        %474 = vmatmul.bf16.gmra.mxu0 %v417
        %v475 = vpop.f32.mrf.mxu0
        %v476 = vadd.f32 0.0, %v475
        %v477 = vpop.f32.mrf.mxu0
        %v478 = vadd.f32 0.0, %v477
        %479 = vmatmul.bf16.gmra.mxu0 %v420
        %v480 = vpop.f32.mrf.mxu0
        %v481 = vadd.f32 0.0, %v480
        %v482 = vpop.f32.mrf.mxu0
        %v483 = vadd.f32 0.0, %v482
        %484 = vmatmul.bf16.gmra.mxu0 %v423
        %v485 = vpop.f32.mrf.mxu0
        %v486 = vadd.f32 0.0, %v485
        %v487 = vpop.f32.mrf.mxu0
        %v488 = vadd.f32 0.0, %v487
        %489 = vmatmul.bf16.gmra.mxu0 %v426
        %v490 = vpop.f32.mrf.mxu0
        %v491 = vadd.f32 0.0, %v490
        %v492 = vpop.f32.mrf.mxu0
        %v493 = vadd.f32 0.0, %v492
        %494 = vmatmul.bf16.gmra.mxu0 %v429
        %v495 = vpop.f32.mrf.mxu0
        %v496 = vadd.f32 0.0, %v495
        %v497 = vpop.f32.mrf.mxu0
        %v498 = vadd.f32 0.0, %v497
        %499 = vmatmul.bf16.gmra.mxu0 %v432
        %v500 = vpop.f32.mrf.mxu0
        %v501 = vadd.f32 0.0, %v500
        %v502 = vpop.f32.mrf.mxu0
        %v503 = vadd.f32 0.0, %v502
        %504 = vmatmul.bf16.gmra.mxu0 %v435
        %v505 = vpop.f32.mrf.mxu0
        %v506 = vadd.f32 0.0, %v505
        %v507 = vpop.f32.mrf.mxu0
        %v508 = vadd.f32 0.0, %v507
        %509 = vmatmul.bf16.gmra.mxu0 %v438
        %v510 = vpop.f32.mrf.mxu0
        %v511 = vadd.f32 0.0, %v510
        %v512 = vpop.f32.mrf.mxu0
        %v513 = vadd.f32 0.0, %v512
        %514 = vmatmul.bf16.gmra.mxu0 %v441
        %v515 = vpop.f32.mrf.mxu0
        %v516 = vadd.f32 0.0, %v515
        %v517 = vpop.f32.mrf.mxu0
        %v518 = vadd.f32 0.0, %v517
        %519 = vmatmul.bf16.gmra.mxu0 %v444
        %v520 = vpop.f32.mrf.mxu0
        %v521 = vadd.f32 0.0, %v520
        %v522 = vpop.f32.mrf.mxu0
        %v523 = vadd.f32 0.0, %v522
        %524 = vmatmul.bf16.gmra.mxu0 %v447
        %v525 = vpop.f32.mrf.mxu0
        %v526 = vadd.f32 0.0, %v525
        %v527 = vpop.f32.mrf.mxu0
        %v528 = vadd.f32 0.0, %v527
        %529 = vmatmul.bf16.gmra.mxu0 %v450
        %v530 = vpop.f32.mrf.mxu0
        %v531 = vadd.f32 0.0, %v530
        %v532 = vpop.f32.mrf.mxu0
        %v533 = vadd.f32 0.0, %v532
        %534 = vmatmul.bf16.gmra.mxu0 %v453
        %v535 = vpop.f32.mrf.mxu0
        %v536 = vadd.f32 0.0, %v535
        %v537 = vpop.f32.mrf.mxu0
        %v538 = vadd.f32 0.0, %v537
        %539 = vmatmul.bf16.gmra.mxu0 %v456
        %v540 = vpop.f32.mrf.mxu0
        %v541 = vadd.f32 0.0, %v540
        %v542 = vpop.f32.mrf.mxu0
        %v543 = vadd.f32 0.0, %v542
        %544 = vmatmul.bf16.gmra.mxu0 %v459
        %v545 = vpop.f32.mrf.mxu0
        %v546 = vadd.f32 0.0, %v545
        %v547 = vpop.f32.mrf.mxu0
        %v548 = vadd.f32 0.0, %v547
        %549 = vdwg.mxu0
        %550 = vmatpush.bf16.msra.mxu0 0
        %551 = vmatpush.bf16.msra.mxu0 0
        %552 = vmatpush.bf16.msra.mxu0 0
        %553 = vmatpush.bf16.msra.mxu0 0
        %554 = vmatpush.bf16.msra.mxu0 %v403
        %555 = vmatpush.bf16.msra.mxu0 %v401
        %556 = vmatpush.bf16.msra.mxu0 %v399
        %557 = vmatpush.bf16.msra.mxu0 %v397
        %558 = vmatmul.bf16.gmra.mxu0 %v414
        %v559 = vpop.f32.mrf.mxu0
        %v560 = vadd.f32 0.0, %v559
        %v561 = vpop.f32.mrf.mxu0
        %v562 = vadd.f32 0.0, %v561
        %563 = vmatmul.bf16.gmra.mxu0 %v417
        %v564 = vpop.f32.mrf.mxu0
        %v565 = vadd.f32 0.0, %v564
        %v566 = vpop.f32.mrf.mxu0
        %v567 = vadd.f32 0.0, %v566
        %568 = vmatmul.bf16.gmra.mxu0 %v420
        %v569 = vpop.f32.mrf.mxu0
        %v570 = vadd.f32 0.0, %v569
        %v571 = vpop.f32.mrf.mxu0
        %v572 = vadd.f32 0.0, %v571
        %573 = vmatmul.bf16.gmra.mxu0 %v423
        %v574 = vpop.f32.mrf.mxu0
        %v575 = vadd.f32 0.0, %v574
        %v576 = vpop.f32.mrf.mxu0
        %v577 = vadd.f32 0.0, %v576
        %578 = vmatmul.bf16.gmra.mxu0 %v426
        %v579 = vpop.f32.mrf.mxu0
        %v580 = vadd.f32 0.0, %v579
        %v581 = vpop.f32.mrf.mxu0
        %v582 = vadd.f32 0.0, %v581
        %583 = vmatmul.bf16.gmra.mxu0 %v429
        %v584 = vpop.f32.mrf.mxu0
        %v585 = vadd.f32 0.0, %v584
        %v586 = vpop.f32.mrf.mxu0
        %v587 = vadd.f32 0.0, %v586
        %588 = vmatmul.bf16.gmra.mxu0 %v432
        %v589 = vpop.f32.mrf.mxu0
        %v590 = vadd.f32 0.0, %v589
        %v591 = vpop.f32.mrf.mxu0
        %v592 = vadd.f32 0.0, %v591
        %593 = vmatmul.bf16.gmra.mxu0 %v435
        %v594 = vpop.f32.mrf.mxu0
        %v595 = vadd.f32 0.0, %v594
        %v596 = vpop.f32.mrf.mxu0
        %v597 = vadd.f32 0.0, %v596
        %598 = vmatmul.bf16.gmra.mxu0 %v438
        %v599 = vpop.f32.mrf.mxu0
        %v600 = vadd.f32 0.0, %v599
        %v601 = vpop.f32.mrf.mxu0
        %v602 = vadd.f32 0.0, %v601
        %603 = vmatmul.bf16.gmra.mxu0 %v441
        %v604 = vpop.f32.mrf.mxu0
        %v605 = vadd.f32 0.0, %v604
        %v606 = vpop.f32.mrf.mxu0
        %v607 = vadd.f32 0.0, %v606
        %608 = vmatmul.bf16.gmra.mxu0 %v444
        %v609 = vpop.f32.mrf.mxu0
        %v610 = vadd.f32 0.0, %v609
        %v611 = vpop.f32.mrf.mxu0
        %v612 = vadd.f32 0.0, %v611
        %613 = vmatmul.bf16.gmra.mxu0 %v447
        %v614 = vpop.f32.mrf.mxu0
        %v615 = vadd.f32 0.0, %v614
        %v616 = vpop.f32.mrf.mxu0
        %v617 = vadd.f32 0.0, %v616
        %618 = vmatmul.bf16.gmra.mxu0 %v450
        %v619 = vpop.f32.mrf.mxu0
        %v620 = vadd.f32 0.0, %v619
        %v621 = vpop.f32.mrf.mxu0
        %v622 = vadd.f32 0.0, %v621
        %623 = vmatmul.bf16.gmra.mxu0 %v453
        %v624 = vpop.f32.mrf.mxu0
        %v625 = vadd.f32 0.0, %v624
        %v626 = vpop.f32.mrf.mxu0
        %v627 = vadd.f32 0.0, %v626
        %628 = vmatmul.bf16.gmra.mxu0 %v456
        %v629 = vpop.f32.mrf.mxu0
        %v630 = vadd.f32 0.0, %v629
        %v631 = vpop.f32.mrf.mxu0
        %v632 = vadd.f32 0.0, %v631
        %633 = vmatmul.bf16.gmra.mxu0 %v459
        %v634 = vpop.f32.mrf.mxu0
        %v635 = vadd.f32 0.0, %v634
        %v636 = vpop.f32.mrf.mxu0
        %v637 = vadd.f32 0.0, %v636
        %638 = vdwg.mxu0
        %v639 = vld [vmem:[%s2] sm:$0x3]
        %v641 = vperm.slane %v639, 0
        %v642 = vperm.slane %v639, 1
        %v645 = vmul.f32 %v471, %v641
        %v646 = vmul.f32 %v560, %v642
        %v647 = vmul.f32 %v473, %v641
        %v648 = vmul.f32 %v562, %v642
        %v649 = vmul.f32 %v476, %v641
        %v650 = vmul.f32 %v565, %v642
        %v651 = vmul.f32 %v478, %v641
        %v652 = vmul.f32 %v567, %v642
        %v653 = vmul.f32 %v481, %v641
        %v654 = vmul.f32 %v570, %v642
        %v655 = vmul.f32 %v483, %v641
        %v656 = vmul.f32 %v572, %v642
        %v657 = vmul.f32 %v486, %v641
        %v658 = vmul.f32 %v575, %v642
        %v659 = vmul.f32 %v488, %v641
        %v660 = vmul.f32 %v577, %v642
        %v661 = vmul.f32 %v491, %v641
        %v662 = vmul.f32 %v580, %v642
        %v663 = vmul.f32 %v493, %v641
        %v664 = vmul.f32 %v582, %v642
        %v665 = vmul.f32 %v496, %v641
        %v666 = vmul.f32 %v585, %v642
        %v667 = vmul.f32 %v498, %v641
        %v668 = vmul.f32 %v587, %v642
        %v669 = vmul.f32 %v501, %v641
        %v670 = vmul.f32 %v590, %v642
        %v671 = vmul.f32 %v503, %v641
        %v672 = vmul.f32 %v592, %v642
        %v673 = vmul.f32 %v506, %v641
        %v674 = vmul.f32 %v595, %v642
        %v675 = vmul.f32 %v508, %v641
        %v676 = vmul.f32 %v597, %v642
        %v677 = vmul.f32 %v511, %v641
        %v678 = vmul.f32 %v600, %v642
        %v679 = vmul.f32 %v513, %v641
        %v680 = vmul.f32 %v602, %v642
        %v681 = vmul.f32 %v516, %v641
        %v682 = vmul.f32 %v605, %v642
        %v683 = vmul.f32 %v518, %v641
        %v684 = vmul.f32 %v607, %v642
        %v685 = vmul.f32 %v521, %v641
        %v686 = vmul.f32 %v610, %v642
        %v687 = vmul.f32 %v523, %v641
        %v688 = vmul.f32 %v612, %v642
        %v689 = vmul.f32 %v526, %v641
        %v690 = vmul.f32 %v615, %v642
        %v691 = vmul.f32 %v528, %v641
        %v692 = vmul.f32 %v617, %v642
        %v693 = vmul.f32 %v531, %v641
        %v694 = vmul.f32 %v620, %v642
        %v695 = vmul.f32 %v533, %v641
        %v696 = vmul.f32 %v622, %v642
        %v697 = vmul.f32 %v536, %v641
        %v698 = vmul.f32 %v625, %v642
        %v699 = vmul.f32 %v538, %v641
        %v700 = vmul.f32 %v627, %v642
        %v701 = vmul.f32 %v541, %v641
        %v702 = vmul.f32 %v630, %v642
        %v703 = vmul.f32 %v543, %v641
        %v704 = vmul.f32 %v632, %v642
        %v705 = vmul.f32 %v546, %v641
        %v706 = vmul.f32 %v635, %v642
        %v707 = vmul.f32 %v548, %v641
        %v708 = vmul.f32 %v637, %v642
        %v709 = vld [vmem:[%s3] sm:$0x3]
        %v711 = vperm.slane %v709, 0
        %v712 = vperm.slane %v709, 1
        %v715 = vadd.f32 %v645, %v711
        %v716 = vadd.f32 %v646, %v712
        %v717 = vadd.f32 %v647, %v711
        %v718 = vadd.f32 %v648, %v712
        %v719 = vadd.f32 %v649, %v711
        %v720 = vadd.f32 %v650, %v712
        %v721 = vadd.f32 %v651, %v711
        %v722 = vadd.f32 %v652, %v712
        %v723 = vadd.f32 %v653, %v711
        %v724 = vadd.f32 %v654, %v712
        %v725 = vadd.f32 %v655, %v711
        %v726 = vadd.f32 %v656, %v712
        %v727 = vadd.f32 %v657, %v711
        %v728 = vadd.f32 %v658, %v712
        %v729 = vadd.f32 %v659, %v711
        %v730 = vadd.f32 %v660, %v712
        %v731 = vadd.f32 %v661, %v711
        %v732 = vadd.f32 %v662, %v712
        %v733 = vadd.f32 %v663, %v711
        %v734 = vadd.f32 %v664, %v712
        %v735 = vadd.f32 %v665, %v711
        %v736 = vadd.f32 %v666, %v712
        %v737 = vadd.f32 %v667, %v711
        %v738 = vadd.f32 %v668, %v712
        %v739 = vadd.f32 %v669, %v711
        %v740 = vadd.f32 %v670, %v712
        %v741 = vadd.f32 %v671, %v711
        %v742 = vadd.f32 %v672, %v712
        %v743 = vadd.f32 %v673, %v711
        %v744 = vadd.f32 %v674, %v712
        %v745 = vadd.f32 %v675, %v711
        %v746 = vadd.f32 %v676, %v712
        %v747 = vadd.f32 %v677, %v711
        %v748 = vadd.f32 %v678, %v712
        %v749 = vadd.f32 %v679, %v711
        %v750 = vadd.f32 %v680, %v712
        %v751 = vadd.f32 %v681, %v711
        %v752 = vadd.f32 %v682, %v712
        %v753 = vadd.f32 %v683, %v711
        %v754 = vadd.f32 %v684, %v712
        %v755 = vadd.f32 %v685, %v711
        %v756 = vadd.f32 %v686, %v712
        %v757 = vadd.f32 %v687, %v711
        %v758 = vadd.f32 %v688, %v712
        %v759 = vadd.f32 %v689, %v711
        %v760 = vadd.f32 %v690, %v712
        %v761 = vadd.f32 %v691, %v711
        %v762 = vadd.f32 %v692, %v712
        %v763 = vadd.f32 %v693, %v711
        %v764 = vadd.f32 %v694, %v712
        %v765 = vadd.f32 %v695, %v711
        %v766 = vadd.f32 %v696, %v712
        %v767 = vadd.f32 %v697, %v711
        %v768 = vadd.f32 %v698, %v712
        %v769 = vadd.f32 %v699, %v711
        %v770 = vadd.f32 %v700, %v712
        %v771 = vadd.f32 %v701, %v711
        %v772 = vadd.f32 %v702, %v712
        %v773 = vadd.f32 %v703, %v711
        %v774 = vadd.f32 %v704, %v712
        %v775 = vadd.f32 %v705, %v711
        %v776 = vadd.f32 %v706, %v712
        %v777 = vadd.f32 %v707, %v711
        %v778 = vadd.f32 %v708, %v712
        %v779 = vld [vmem:[%s248] sm:$0xff]
        %v780 = vld [vmem:[%s248 + $0x8] sm:$0xff]
        %v781 = vld [vmem:[%s248 + $0x10] sm:$0xff]
        %v782 = vld [vmem:[%s248 + $0x18] sm:$0xff]
        %v783 = vld [vmem:[%s248 + $0x20] sm:$0xff]
        %v784 = vld [vmem:[%s248 + $0x28] sm:$0xff]
        %v785 = vld [vmem:[%s248 + $0x30] sm:$0xff]
        %v786 = vld [vmem:[%s248 + $0x38] sm:$0xff]
        %v787 = vld [vmem:[%s248 + $0x40] sm:$0xff]
        %v788 = vld [vmem:[%s248 + $0x48] sm:$0xff]
        %v789 = vld [vmem:[%s248 + $0x50] sm:$0xff]
        %v790 = vld [vmem:[%s248 + $0x58] sm:$0xff]
        %v791 = vld [vmem:[%s248 + $0x60] sm:$0xff]
        %v792 = vld [vmem:[%s248 + $0x68] sm:$0xff]
        %v793 = vld [vmem:[%s248 + $0x70] sm:$0xff]
        %v794 = vld [vmem:[%s248 + $0x78] sm:$0xff]
        %v795 = vld [vmem:[%s248 + $0x80] sm:$0xff]
        %v796 = vld [vmem:[%s248 + $0x88] sm:$0xff]
        %v797 = vld [vmem:[%s248 + $0x90] sm:$0xff]
        %v798 = vld [vmem:[%s248 + $0x98] sm:$0xff]
        %v799 = vld [vmem:[%s248 + $0xa0] sm:$0xff]
        %v800 = vld [vmem:[%s248 + $0xa8] sm:$0xff]
        %v801 = vld [vmem:[%s248 + $0xb0] sm:$0xff]
        %v802 = vld [vmem:[%s248 + $0xb8] sm:$0xff]
        %v803 = vld [vmem:[%s248 + $0xc0] sm:$0xff]
        %v804 = vld [vmem:[%s248 + $0xc8] sm:$0xff]
        %v805 = vld [vmem:[%s248 + $0xd0] sm:$0xff]
        %v806 = vld [vmem:[%s248 + $0xd8] sm:$0xff]
        %v807 = vld [vmem:[%s248 + $0xe0] sm:$0xff]
        %v808 = vld [vmem:[%s248 + $0xe8] sm:$0xff]
        %v809 = vld [vmem:[%s248 + $0xf0] sm:$0xff]
        %v810 = vld [vmem:[%s248 + $0xf8] sm:$0xff]
        %v811 = vld [vmem:[%s248 + $0x100] sm:$0xff]
        %v812 = vld [vmem:[%s248 + $0x108] sm:$0xff]
        %v813 = vld [vmem:[%s248 + $0x110] sm:$0xff]
        %v814 = vld [vmem:[%s248 + $0x118] sm:$0xff]
        %v815 = vld [vmem:[%s248 + $0x120] sm:$0xff]
        %v816 = vld [vmem:[%s248 + $0x128] sm:$0xff]
        %v817 = vld [vmem:[%s248 + $0x130] sm:$0xff]
        %v818 = vld [vmem:[%s248 + $0x138] sm:$0xff]
        %v819 = vld [vmem:[%s248 + $0x140] sm:$0xff]
        %v820 = vld [vmem:[%s248 + $0x148] sm:$0xff]
        %v821 = vld [vmem:[%s248 + $0x150] sm:$0xff]
        %v822 = vld [vmem:[%s248 + $0x158] sm:$0xff]
        %v823 = vld [vmem:[%s248 + $0x160] sm:$0xff]
        %v824 = vld [vmem:[%s248 + $0x168] sm:$0xff]
        %v825 = vld [vmem:[%s248 + $0x170] sm:$0xff]
        %v826 = vld [vmem:[%s248 + $0x178] sm:$0xff]
        %v827 = vld [vmem:[%s248 + $0x180] sm:$0xff]
        %v828 = vld [vmem:[%s248 + $0x188] sm:$0xff]
        %v829 = vld [vmem:[%s248 + $0x190] sm:$0xff]
        %v830 = vld [vmem:[%s248 + $0x198] sm:$0xff]
        %v831 = vld [vmem:[%s248 + $0x1a0] sm:$0xff]
        %v832 = vld [vmem:[%s248 + $0x1a8] sm:$0xff]
        %v833 = vld [vmem:[%s248 + $0x1b0] sm:$0xff]
        %v834 = vld [vmem:[%s248 + $0x1b8] sm:$0xff]
        %v835 = vld [vmem:[%s248 + $0x1c0] sm:$0xff]
        %v836 = vld [vmem:[%s248 + $0x1c8] sm:$0xff]
        %v837 = vld [vmem:[%s248 + $0x1d0] sm:$0xff]
        %v838 = vld [vmem:[%s248 + $0x1d8] sm:$0xff]
        %v839 = vld [vmem:[%s248 + $0x1e0] sm:$0xff]
        %v840 = vld [vmem:[%s248 + $0x1e8] sm:$0xff]
        %v841 = vld [vmem:[%s248 + $0x1f0] sm:$0xff]
        %v842 = vld [vmem:[%s248 + $0x1f8] sm:$0xff]
        %v843 = vadd.f32 %v715, %v779
        %v844 = vadd.f32 %v716, %v780
        %v845 = vadd.f32 %v717, %v781
        %v846 = vadd.f32 %v718, %v782
        %v847 = vadd.f32 %v719, %v783
        %v848 = vadd.f32 %v720, %v784
        %v849 = vadd.f32 %v721, %v785
        %v850 = vadd.f32 %v722, %v786
        %v851 = vadd.f32 %v723, %v787
        %v852 = vadd.f32 %v724, %v788
        %v853 = vadd.f32 %v725, %v789
        %v854 = vadd.f32 %v726, %v790
        %v855 = vadd.f32 %v727, %v791
        %v856 = vadd.f32 %v728, %v792
        %v857 = vadd.f32 %v729, %v793
        %v858 = vadd.f32 %v730, %v794
        %v859 = vadd.f32 %v731, %v795
        %v860 = vadd.f32 %v732, %v796
        %v861 = vadd.f32 %v733, %v797
        %v862 = vadd.f32 %v734, %v798
        %v863 = vadd.f32 %v735, %v799
        %v864 = vadd.f32 %v736, %v800
        %v865 = vadd.f32 %v737, %v801
        %v866 = vadd.f32 %v738, %v802
        %v867 = vadd.f32 %v739, %v803
        %v868 = vadd.f32 %v740, %v804
        %v869 = vadd.f32 %v741, %v805
        %v870 = vadd.f32 %v742, %v806
        %v871 = vadd.f32 %v743, %v807
        %v872 = vadd.f32 %v744, %v808
        %v873 = vadd.f32 %v745, %v809
        %v874 = vadd.f32 %v746, %v810
        %v875 = vadd.f32 %v747, %v811
        %v876 = vadd.f32 %v748, %v812
        %v877 = vadd.f32 %v749, %v813
        %v878 = vadd.f32 %v750, %v814
        %v879 = vadd.f32 %v751, %v815
        %v880 = vadd.f32 %v752, %v816
        %v881 = vadd.f32 %v753, %v817
        %v882 = vadd.f32 %v754, %v818
        %v883 = vadd.f32 %v755, %v819
        %v884 = vadd.f32 %v756, %v820
        %v885 = vadd.f32 %v757, %v821
        %v886 = vadd.f32 %v758, %v822
        %v887 = vadd.f32 %v759, %v823
        %v888 = vadd.f32 %v760, %v824
        %v889 = vadd.f32 %v761, %v825
        %v890 = vadd.f32 %v762, %v826
        %v891 = vadd.f32 %v763, %v827
        %v892 = vadd.f32 %v764, %v828
        %v893 = vadd.f32 %v765, %v829
        %v894 = vadd.f32 %v766, %v830
        %v895 = vadd.f32 %v767, %v831
        %v896 = vadd.f32 %v768, %v832
        %v897 = vadd.f32 %v769, %v833
        %v898 = vadd.f32 %v770, %v834
        %v899 = vadd.f32 %v771, %v835
        %v900 = vadd.f32 %v772, %v836
        %v901 = vadd.f32 %v773, %v837
        %v902 = vadd.f32 %v774, %v838
        %v903 = vadd.f32 %v775, %v839
        %v904 = vadd.f32 %v776, %v840
        %v905 = vadd.f32 %v777, %v841
        %v906 = vadd.f32 %v778, %v842
        %v907 = vmax.f32 %v843, 0.0
        %v908 = vmax.f32 %v844, 0.0
        %v909 = vmax.f32 %v845, 0.0
        %v910 = vmax.f32 %v846, 0.0
        %v911 = vmax.f32 %v847, 0.0
        %v912 = vmax.f32 %v848, 0.0
        %v913 = vmax.f32 %v849, 0.0
        %v914 = vmax.f32 %v850, 0.0
        %v915 = vmax.f32 %v851, 0.0
        %v916 = vmax.f32 %v852, 0.0
        %v917 = vmax.f32 %v853, 0.0
        %v918 = vmax.f32 %v854, 0.0
        %v919 = vmax.f32 %v855, 0.0
        %v920 = vmax.f32 %v856, 0.0
        %v921 = vmax.f32 %v857, 0.0
        %v922 = vmax.f32 %v858, 0.0
        %v923 = vmax.f32 %v859, 0.0
        %v924 = vmax.f32 %v860, 0.0
        %v925 = vmax.f32 %v861, 0.0
        %v926 = vmax.f32 %v862, 0.0
        %v927 = vmax.f32 %v863, 0.0
        %v928 = vmax.f32 %v864, 0.0
        %v929 = vmax.f32 %v865, 0.0
        %v930 = vmax.f32 %v866, 0.0
        %v931 = vmax.f32 %v867, 0.0
        %v932 = vmax.f32 %v868, 0.0
        %v933 = vmax.f32 %v869, 0.0
        %v934 = vmax.f32 %v870, 0.0
        %v935 = vmax.f32 %v871, 0.0
        %v936 = vmax.f32 %v872, 0.0
        %v937 = vmax.f32 %v873, 0.0
        %v938 = vmax.f32 %v874, 0.0
        %v939 = vmax.f32 %v875, 0.0
        %v940 = vmax.f32 %v876, 0.0
        %v941 = vmax.f32 %v877, 0.0
        %v942 = vmax.f32 %v878, 0.0
        %v943 = vmax.f32 %v879, 0.0
        %v944 = vmax.f32 %v880, 0.0
        %v945 = vmax.f32 %v881, 0.0
        %v946 = vmax.f32 %v882, 0.0
        %v947 = vmax.f32 %v883, 0.0
        %v948 = vmax.f32 %v884, 0.0
        %v949 = vmax.f32 %v885, 0.0
        %v950 = vmax.f32 %v886, 0.0
        %v951 = vmax.f32 %v887, 0.0
        %v952 = vmax.f32 %v888, 0.0
        %v953 = vmax.f32 %v889, 0.0
        %v954 = vmax.f32 %v890, 0.0
        %v955 = vmax.f32 %v891, 0.0
        %v956 = vmax.f32 %v892, 0.0
        %v957 = vmax.f32 %v893, 0.0
        %v958 = vmax.f32 %v894, 0.0
        %v959 = vmax.f32 %v895, 0.0
        %v960 = vmax.f32 %v896, 0.0
        %v961 = vmax.f32 %v897, 0.0
        %v962 = vmax.f32 %v898, 0.0
        %v963 = vmax.f32 %v899, 0.0
        %v964 = vmax.f32 %v900, 0.0
        %v965 = vmax.f32 %v901, 0.0
        %v966 = vmax.f32 %v902, 0.0
        %v967 = vmax.f32 %v903, 0.0
        %v968 = vmax.f32 %v904, 0.0
        %v969 = vmax.f32 %v905, 0.0
        %v970 = vmax.f32 %v906, 0.0
        %971 = vst [vmem:[%s236] sm:$0xff] %v907
        %972 = vst [vmem:[%s236 + $0x8] sm:$0xff] %v908
        %973 = vst [vmem:[%s236 + $0x10] sm:$0xff] %v909
        %974 = vst [vmem:[%s236 + $0x18] sm:$0xff] %v910
        %975 = vst [vmem:[%s236 + $0x20] sm:$0xff] %v911
        %976 = vst [vmem:[%s236 + $0x28] sm:$0xff] %v912
        %977 = vst [vmem:[%s236 + $0x30] sm:$0xff] %v913
        %978 = vst [vmem:[%s236 + $0x38] sm:$0xff] %v914
        %979 = vst [vmem:[%s236 + $0x40] sm:$0xff] %v915
        %980 = vst [vmem:[%s236 + $0x48] sm:$0xff] %v916
        %981 = vst [vmem:[%s236 + $0x50] sm:$0xff] %v917
        %982 = vst [vmem:[%s236 + $0x58] sm:$0xff] %v918
        %983 = vst [vmem:[%s236 + $0x60] sm:$0xff] %v919
        %984 = vst [vmem:[%s236 + $0x68] sm:$0xff] %v920
        %985 = vst [vmem:[%s236 + $0x70] sm:$0xff] %v921
        %986 = vst [vmem:[%s236 + $0x78] sm:$0xff] %v922
        %987 = vst [vmem:[%s236 + $0x80] sm:$0xff] %v923
        %988 = vst [vmem:[%s236 + $0x88] sm:$0xff] %v924
        %989 = vst [vmem:[%s236 + $0x90] sm:$0xff] %v925
        %990 = vst [vmem:[%s236 + $0x98] sm:$0xff] %v926
        %991 = vst [vmem:[%s236 + $0xa0] sm:$0xff] %v927
        %992 = vst [vmem:[%s236 + $0xa8] sm:$0xff] %v928
        %993 = vst [vmem:[%s236 + $0xb0] sm:$0xff] %v929
        %994 = vst [vmem:[%s236 + $0xb8] sm:$0xff] %v930
        %995 = vst [vmem:[%s236 + $0xc0] sm:$0xff] %v931
        %996 = vst [vmem:[%s236 + $0xc8] sm:$0xff] %v932
        %997 = vst [vmem:[%s236 + $0xd0] sm:$0xff] %v933
        %998 = vst [vmem:[%s236 + $0xd8] sm:$0xff] %v934
        %999 = vst [vmem:[%s236 + $0xe0] sm:$0xff] %v935
        %1000 = vst [vmem:[%s236 + $0xe8] sm:$0xff] %v936
        %1001 = vst [vmem:[%s236 + $0xf0] sm:$0xff] %v937
        %1002 = vst [vmem:[%s236 + $0xf8] sm:$0xff] %v938
        %1003 = vst [vmem:[%s236 + $0x100] sm:$0xff] %v939
        %1004 = vst [vmem:[%s236 + $0x108] sm:$0xff] %v940
        %1005 = vst [vmem:[%s236 + $0x110] sm:$0xff] %v941
        %1006 = vst [vmem:[%s236 + $0x118] sm:$0xff] %v942
        %1007 = vst [vmem:[%s236 + $0x120] sm:$0xff] %v943
        %1008 = vst [vmem:[%s236 + $0x128] sm:$0xff] %v944
        %1009 = vst [vmem:[%s236 + $0x130] sm:$0xff] %v945
        %1010 = vst [vmem:[%s236 + $0x138] sm:$0xff] %v946
        %1011 = vst [vmem:[%s236 + $0x140] sm:$0xff] %v947
        %1012 = vst [vmem:[%s236 + $0x148] sm:$0xff] %v948
        %1013 = vst [vmem:[%s236 + $0x150] sm:$0xff] %v949
        %1014 = vst [vmem:[%s236 + $0x158] sm:$0xff] %v950
        %1015 = vst [vmem:[%s236 + $0x160] sm:$0xff] %v951
        %1016 = vst [vmem:[%s236 + $0x168] sm:$0xff] %v952
        %1017 = vst [vmem:[%s236 + $0x170] sm:$0xff] %v953
        %1018 = vst [vmem:[%s236 + $0x178] sm:$0xff] %v954
        %1019 = vst [vmem:[%s236 + $0x180] sm:$0xff] %v955
        %1020 = vst [vmem:[%s236 + $0x188] sm:$0xff] %v956
        %1021 = vst [vmem:[%s236 + $0x190] sm:$0xff] %v957
        %1022 = vst [vmem:[%s236 + $0x198] sm:$0xff] %v958
        %1023 = vst [vmem:[%s236 + $0x1a0] sm:$0xff] %v959
        %1024 = vst [vmem:[%s236 + $0x1a8] sm:$0xff] %v960
        %1025 = vst [vmem:[%s236 + $0x1b0] sm:$0xff] %v961
        %1026 = vst [vmem:[%s236 + $0x1b8] sm:$0xff] %v962
        %1027 = vst [vmem:[%s236 + $0x1c0] sm:$0xff] %v963
        %1028 = vst [vmem:[%s236 + $0x1c8] sm:$0xff] %v964
        %1029 = vst [vmem:[%s236 + $0x1d0] sm:$0xff] %v965
        %1030 = vst [vmem:[%s236 + $0x1d8] sm:$0xff] %v966
        %1031 = vst [vmem:[%s236 + $0x1e0] sm:$0xff] %v967
        %1032 = vst [vmem:[%s236 + $0x1e8] sm:$0xff] %v968
        %1033 = vst [vmem:[%s236 + $0x1f0] sm:$0xff] %v969
        %1034 = vst [vmem:[%s236 + $0x1f8] sm:$0xff] %v970
        %s1035 = sand.u32 %s142, 1
        %s1036 = scalar_lea.sflag [#allocation3], %s1035
        %s1037 = sand.u32 %s142, 1
        %s1038 = smul.addr %s1037, 512
        %s1039 = scalar_lea.vmem [#allocation2], %s1038
        // Predicated region
        $region41: #{bottleneck_forward.5} parent=39 // pred_check
          %p1040 = pneg %p152
        $region42: #{bottleneck_forward.5} parent=39 // pred_check_branch
          %1042 = sbr.rel (%p1040) target = $region44
        $region43: #{bottleneck_forward.5} parent=39 // pred_region
          %s1043 = smul.u32 32, %s19
          %1045 = vsyncadd %s1036, 0
          %s1046 = smul.addr %s1043, 2
          %s1047 = smul.addr %s1046, 8
          %s1048 = scalar_lea.hbm %s5, %s1047
          %s1049 = sshll.u32 %s1039, 4
          %s1050 = int_to_ptr.vmem [resolvable:$true] %s1049
          %s1051 = sshll.u32 %s1048, 4
          %s1052 = int_to_ptr.hbm [resolvable:$true] %s1051
          %1057 = dma.vmem_to_hbm [thread:$0]  %s1050, 8192, %s1052, %s1036, 256, 256, 16
        $region44: #{bottleneck_forward.5} parent=39 // pred_fallthru
          _
      $region40: #{bottleneck_forward.5} parent=5 // pred_fallthru
        _
      %p1058 = scmp.le.s32.totalorder 2, %s14
      // Predicated region
      $region45: #{bottleneck_forward.5} parent=5 // pred_check
        %p1059 = pneg %p1058
      $region46: #{bottleneck_forward.5} parent=5 // pred_check_branch
        %1061 = sbr.rel (%p1059) target = $region48
      $region47: #{bottleneck_forward.5} parent=5 // pred_region
        %s1062 = ssub.s32 %s14, 2
        // Predicated region
        $region49: #{bottleneck_forward.5} parent=47 // pred_check
          %p1063 = pneg %p158
        $region50: #{bottleneck_forward.5} parent=47 // pred_check_branch
          %1065 = sbr.rel (%p1063) target = $region52
        $region51: #{bottleneck_forward.5} parent=47 // pred_region
          %s1066 = sand.u32 %s143, 1
          %s1067 = scalar_lea.sflag [#allocation3], %s1066
          %s1068 = sand.u32 %s143, 1
          %s1069 = smul.addr %s1068, 512
          %s1070 = scalar_lea.vmem [#allocation2], %s1069
          %1072 = dma.done %s1067, 8192
        $region52: #{bottleneck_forward.5} parent=47 // pred_fallthru
          _
      $region48: #{bottleneck_forward.5} parent=5 // pred_fallthru
        _
    $region6: #{bottleneck_forward.5} parent=1 // loop_footer
      %s18 = sadd.s32 1, %s14
    $region7: #{bottleneck_forward.5} parent=1 // loop_footer_branch
      %13 = sbr.rel target = $region3
    $region8: #{bottleneck_forward.5} parent=1 // loop_exit
      _
    %1073 = vsyncpa [#allocation3], 1
    %s1074 = scalar_lea.sflag [#allocation3], 1
    %1075 = vsyncpa %s1074, 1

// kernel: bottleneck_forward.4
$region0: #{bottleneck_forward.4}
  #allocation0 [shape = 'u32[]', space=smem, size = 0x4, offset = 0x4, fixed_abs, tag = 'smem constant byte address 0x4 - core index']
  #allocation1 [shape = 'u32[72,128]{1,0:T(1,128)}', space=vmem, size = 0x9000, scoped, tag = 'internal scratch']
  %s0 = inlined_call_operand.vmem [shape: bf16[512,64], index: 0, kind: input, shape index: {}]
  %s1 = inlined_call_operand.vmem [shape: bf16[3,3,64,64], index: 1, kind: input, shape index: {}]
  %s2 = inlined_call_operand.vmem [shape: f32[1,64], index: 2, kind: input, shape index: {}]
  %s3 = inlined_call_operand.vmem [shape: f32[1,64], index: 3, kind: input, shape index: {}]
  %s4 = inlined_call_operand.vmem [shape: s32[256,1], index: 4, kind: input, shape index: {}]
  %s5 = inlined_call_operand.vmem [shape: s32[256,1], index: 5, kind: input, shape index: {}]
  %s6 = inlined_call_operand.vmem [shape: bf16[512,64], index: 6, kind: output, shape index: {}]
  %s7 = sld [smem:[#allocation0]]
  $region57: #{bottleneck_forward.4} parent=0
    _
  %s9 = ssub.s32 1, %s7
  %s10 = scalar_select 0, %s9, %s7
  loop: start=0, step=1, limit=4
  $region2: #{bottleneck_forward.4} parent=0 // loop_pre_header
    _
  $region3: #{bottleneck_forward.4} parent=0 // loop_header
    %s12 = sphi 0, %s16
    %p13 = scmp.ge.s32.totalorder %s12, 4
    %s22 = sphi 0, %s24
    %s25 = sphi 0, %s22
    %s26 = sphi 0, %s25
    %s42 = sphi 0, %s26
    %s46 = sphi 0, %s46
    %s48 = sphi 0, %s46
    %s49 = sphi 0, %s48
    %s63 = sphi 0, %s49
    %s67 = sphi 0, %s67
    %s69 = sphi 0, %s67
    %s70 = sphi 0, %s69
    %s84 = sphi 0, %s70
    %s88 = sphi 0, %s88
    %s90 = sphi 0, %s88
    %s91 = sphi 0, %s90
    %s105 = sphi 0, %s91
    %s109 = sphi 0, %s109
    %s111 = sphi 0, %s109
    %s112 = sphi 0, %s111
    %s126 = sphi 0, %s112
    %s130 = sphi 0, %s130
    %s132 = sphi 0, %s130
    %s133 = sphi 0, %s132
    %s147 = sphi 0, %s133
    %s153 = sphi 0, %s155
    %s156 = sphi 0, %s153
    %s157 = sphi 0, %s156
    %s173 = sphi 0, %s157
  $region4: #{bottleneck_forward.4} parent=0 // loop_header_branch
    %15 = sbr.rel (%p13) target = $region8
  $region5: #{bottleneck_forward.4} parent=0 // loop_body
    %s17 = ssub.s32 %s12, 1
    %s18 = ssub.s32 %s12, 2
    %s19 = sadd.s32 %s12, 1
    %s20 = ssub.s32 %s12, %s19
    %p21 = scmp.eq.s32.totalorder %s20, 0
    %s23 = sadd.s32 %s22, 1
    %s24 = scalar_select %p21, %s22, %s23
    %p27 = pneg %p21
    %p28 = scmp.eq.s32.totalorder %s12, 1
    %p29 = por %p27, %p28
    %p30 = scmp.ne.s32.totalorder %s22, %s25
    %p31 = scmp.eq.s32.totalorder %s12, 0
    %p32 = por %p30, %p31
    %p33 = scmp.ne.s32.totalorder %s22, %s25
    %p34 = scmp.eq.s32.totalorder %s17, 1
    %p35 = por %p33, %p34
    %p36 = scmp.ne.s32.totalorder %s25, %s26
    %p37 = scmp.eq.s32.totalorder %s17, 0
    %p38 = por %p36, %p37
    %p39 = scmp.ne.s32.totalorder %s25, %s26
    %p40 = scmp.eq.s32.totalorder %s18, 1
    %p41 = por %p39, %p40
    %p43 = scmp.ne.s32.totalorder %s26, %s42
    %p44 = scmp.eq.s32.totalorder %s18, 0
    %p45 = por %p43, %p44
    %s47 = sadd.s32 %s46, 1
    %p50 = scmp.eq.s32.totalorder %s12, 1
    %p51 = scmp.ne.s32.totalorder %s46, %s48
    %p52 = scmp.eq.s32.totalorder %s12, 0
    %p53 = por %p51, %p52
    %p54 = scmp.ne.s32.totalorder %s46, %s48
    %p55 = scmp.eq.s32.totalorder %s17, 1
    %p56 = por %p54, %p55
    %p57 = scmp.ne.s32.totalorder %s48, %s49
    %p58 = scmp.eq.s32.totalorder %s17, 0
    %p59 = por %p57, %p58
    %p60 = scmp.ne.s32.totalorder %s48, %s49
    %p61 = scmp.eq.s32.totalorder %s18, 1
    %p62 = por %p60, %p61
    %p64 = scmp.ne.s32.totalorder %s49, %s63
    %p65 = scmp.eq.s32.totalorder %s18, 0
    %p66 = por %p64, %p65
    %s68 = sadd.s32 %s67, 1
    %p71 = scmp.eq.s32.totalorder %s12, 1
    %p72 = scmp.ne.s32.totalorder %s67, %s69
    %p73 = scmp.eq.s32.totalorder %s12, 0
    %p74 = por %p72, %p73
    %p75 = scmp.ne.s32.totalorder %s67, %s69
    %p76 = scmp.eq.s32.totalorder %s17, 1
    %p77 = por %p75, %p76
    %p78 = scmp.ne.s32.totalorder %s69, %s70
    %p79 = scmp.eq.s32.totalorder %s17, 0
    %p80 = por %p78, %p79
    %p81 = scmp.ne.s32.totalorder %s69, %s70
    %p82 = scmp.eq.s32.totalorder %s18, 1
    %p83 = por %p81, %p82
    %p85 = scmp.ne.s32.totalorder %s70, %s84
    %p86 = scmp.eq.s32.totalorder %s18, 0
    %p87 = por %p85, %p86
    %s89 = sadd.s32 %s88, 1
    %p92 = scmp.eq.s32.totalorder %s12, 1
    %p93 = scmp.ne.s32.totalorder %s88, %s90
    %p94 = scmp.eq.s32.totalorder %s12, 0
    %p95 = por %p93, %p94
    %p96 = scmp.ne.s32.totalorder %s88, %s90
    %p97 = scmp.eq.s32.totalorder %s17, 1
    %p98 = por %p96, %p97
    %p99 = scmp.ne.s32.totalorder %s90, %s91
    %p100 = scmp.eq.s32.totalorder %s17, 0
    %p101 = por %p99, %p100
    %p102 = scmp.ne.s32.totalorder %s90, %s91
    %p103 = scmp.eq.s32.totalorder %s18, 1
    %p104 = por %p102, %p103
    %p106 = scmp.ne.s32.totalorder %s91, %s105
    %p107 = scmp.eq.s32.totalorder %s18, 0
    %p108 = por %p106, %p107
    %s110 = sadd.s32 %s109, 1
    %p113 = scmp.eq.s32.totalorder %s12, 1
    %p114 = scmp.ne.s32.totalorder %s109, %s111
    %p115 = scmp.eq.s32.totalorder %s12, 0
    %p116 = por %p114, %p115
    %p117 = scmp.ne.s32.totalorder %s109, %s111
    %p118 = scmp.eq.s32.totalorder %s17, 1
    %p119 = por %p117, %p118
    %p120 = scmp.ne.s32.totalorder %s111, %s112
    %p121 = scmp.eq.s32.totalorder %s17, 0
    %p122 = por %p120, %p121
    %p123 = scmp.ne.s32.totalorder %s111, %s112
    %p124 = scmp.eq.s32.totalorder %s18, 1
    %p125 = por %p123, %p124
    %p127 = scmp.ne.s32.totalorder %s112, %s126
    %p128 = scmp.eq.s32.totalorder %s18, 0
    %p129 = por %p127, %p128
    %s131 = sadd.s32 %s130, 1
    %p134 = scmp.eq.s32.totalorder %s12, 1
    %p135 = scmp.ne.s32.totalorder %s130, %s132
    %p136 = scmp.eq.s32.totalorder %s12, 0
    %p137 = por %p135, %p136
    %p138 = scmp.ne.s32.totalorder %s130, %s132
    %p139 = scmp.eq.s32.totalorder %s17, 1
    %p140 = por %p138, %p139
    %p141 = scmp.ne.s32.totalorder %s132, %s133
    %p142 = scmp.eq.s32.totalorder %s17, 0
    %p143 = por %p141, %p142
    %p144 = scmp.ne.s32.totalorder %s132, %s133
    %p145 = scmp.eq.s32.totalorder %s18, 1
    %p146 = por %p144, %p145
    %p148 = scmp.ne.s32.totalorder %s133, %s147
    %p149 = scmp.eq.s32.totalorder %s18, 0
    %p150 = por %p148, %p149
    %s151 = ssub.s32 %s12, %s19
    %p152 = scmp.eq.s32.totalorder %s151, 0
    %s154 = sadd.s32 %s153, 1
    %s155 = scalar_select %p152, %s153, %s154
    %p158 = pneg %p152
    %p159 = scmp.eq.s32.totalorder %s12, 1
    %p160 = por %p158, %p159
    %p161 = scmp.ne.s32.totalorder %s153, %s156
    %p162 = scmp.eq.s32.totalorder %s12, 0
    %p163 = por %p161, %p162
    %p164 = scmp.ne.s32.totalorder %s153, %s156
    %p165 = scmp.eq.s32.totalorder %s17, 1
    %p166 = por %p164, %p165
    %p167 = scmp.ne.s32.totalorder %s156, %s157
    %p168 = scmp.eq.s32.totalorder %s17, 0
    %p169 = por %p167, %p168
    %p170 = scmp.ne.s32.totalorder %s156, %s157
    %p171 = scmp.eq.s32.totalorder %s18, 1
    %p172 = por %p170, %p171
    %p174 = scmp.ne.s32.totalorder %s157, %s173
    %p175 = scmp.eq.s32.totalorder %s18, 0
    %p176 = por %p174, %p175
    %p177 = scmp.le.s32.totalorder 1, %s12
    %p178 = scmp.lt.s32.totalorder %s12, 3
    %p179 = pnand %p177, %p178
    %p180 = pneg %p179
    // Predicated region
    $region9: #{bottleneck_forward.4} parent=5 // pred_check
      _
    $region10: #{bottleneck_forward.4} parent=5 // pred_check_branch
      %182 = sbr.rel (%p179) target = $region12
    $region11: #{bottleneck_forward.4} parent=5 // pred_region
      %s183 = ssub.s32 %s12, 1
      // Predicated region
      $region13: #{bottleneck_forward.4} parent=11 // pred_check
        %p184 = pneg %p59
      $region14: #{bottleneck_forward.4} parent=11 // pred_check_branch
        %186 = sbr.rel (%p184) target = $region16
      $region15: #{bottleneck_forward.4} parent=11 // pred_region
        _
      $region16: #{bottleneck_forward.4} parent=11 // pred_fallthru
        _
      // Predicated region
      $region17: #{bottleneck_forward.4} parent=11 // pred_check
        %p187 = pneg %p80
      $region18: #{bottleneck_forward.4} parent=11 // pred_check_branch
        %189 = sbr.rel (%p187) target = $region20
      $region19: #{bottleneck_forward.4} parent=11 // pred_region
        _
      $region20: #{bottleneck_forward.4} parent=11 // pred_fallthru
        _
      // Predicated region
      $region21: #{bottleneck_forward.4} parent=11 // pred_check
        %p190 = pneg %p101
      $region22: #{bottleneck_forward.4} parent=11 // pred_check_branch
        %192 = sbr.rel (%p190) target = $region24
      $region23: #{bottleneck_forward.4} parent=11 // pred_region
        _
      $region24: #{bottleneck_forward.4} parent=11 // pred_fallthru
        _
      // Predicated region
      $region25: #{bottleneck_forward.4} parent=11 // pred_check
        %p193 = pneg %p122
      $region26: #{bottleneck_forward.4} parent=11 // pred_check_branch
        %195 = sbr.rel (%p193) target = $region28
      $region27: #{bottleneck_forward.4} parent=11 // pred_region
        _
      $region28: #{bottleneck_forward.4} parent=11 // pred_fallthru
        _
      // Predicated region
      $region29: #{bottleneck_forward.4} parent=11 // pred_check
        %p196 = pneg %p143
      $region30: #{bottleneck_forward.4} parent=11 // pred_check_branch
        %198 = sbr.rel (%p196) target = $region32
      $region31: #{bottleneck_forward.4} parent=11 // pred_region
        _
      $region32: #{bottleneck_forward.4} parent=11 // pred_fallthru
        _
    $region12: #{bottleneck_forward.4} parent=5 // pred_fallthru
      _
    %p199 = scmp.lt.s32.totalorder %s12, 2
    // Predicated region
    $region33: #{bottleneck_forward.4} parent=5 // pred_check
      %p200 = pneg %p199
    $region34: #{bottleneck_forward.4} parent=5 // pred_check_branch
      %202 = sbr.rel (%p200) target = $region36
    $region35: #{bottleneck_forward.4} parent=5 // pred_region
      // Predicated region
      $region37: #{bottleneck_forward.4} parent=35 // pred_check
        %p203 = pneg %p32
      $region38: #{bottleneck_forward.4} parent=35 // pred_check_branch
        %205 = sbr.rel (%p203) target = $region40
      $region39: #{bottleneck_forward.4} parent=35 // pred_region
        %s206 = smul.u32 32, %s12
        %p207 = scmp.lt.s32.totalorder %s206, 63
        %s208 = scalar_select %p207, %s206, 63
        %s209 = smul.addr %s208, 4
        %s210 = scalar_lea.vmem %s0, %s209
        %s211 = smul.u32 32, %s12
      $region40: #{bottleneck_forward.4} parent=35 // pred_fallthru
        _
    $region36: #{bottleneck_forward.4} parent=5 // pred_fallthru
      _
    %p212 = scmp.le.s32.totalorder 1, %s12
    %p213 = scmp.lt.s32.totalorder %s12, 3
    %p214 = pnand %p212, %p213
    %p215 = pneg %p214
    // Predicated region
    $region41: #{bottleneck_forward.4} parent=5 // pred_check
      _
    $region42: #{bottleneck_forward.4} parent=5 // pred_check_branch
      %217 = sbr.rel (%p214) target = $region44
    $region43: #{bottleneck_forward.4} parent=5 // pred_region
      %s218 = ssub.s32 %s12, 1
      %s219 = smul.u32 32, %s17
      %p220 = scmp.lt.s32.totalorder %s219, 63
      %s221 = scalar_select %p220, %s219, 63
      %s222 = smul.addr %s221, 4
      %s223 = scalar_lea.vmem %s0, %s222
      %p224 = pneg %p38
      %p225 = pneg %p35
      %p226 = pneg %p59
      %p227 = pneg %p56
      %p228 = pneg %p80
      %p229 = pneg %p77
      %p230 = pneg %p101
      %p231 = pneg %p98
      %p232 = pneg %p122
      %p233 = pneg %p119
      %p234 = pneg %p143
      %p235 = pneg %p140
      %p236 = pneg %p169
      %p237 = pneg %p166
      %s238 = smul.u32 32, %s17
      %p239 = scmp.lt.s32.totalorder %s238, 63
      %s240 = scalar_select %p239, %s238, 63
      %s241 = smul.addr %s240, 4
      %s242 = scalar_lea.vmem %s6, %s241
      %s243 = smul.u32 32, %s17
      %p244 = scmp.lt.s32.totalorder %s243, 63
      %s245 = scalar_select %p244, %s243, 63
      %s246 = smul.addr %s245, 4
      %s247 = scalar_lea.vmem %s0, %s246
      %s248 = smul.u32 32, %s17
      %s249 = smul.u32 32, %s17
      %p250 = scmp.lt.s32.totalorder %s249, 63
      %s251 = scalar_select %p250, %s249, 63
      %s252 = smul.addr %s251, 4
      %s253 = scalar_lea.vmem %s6, %s252
      %s254 = smul.u32 32, %s17
      %v256 = vld [vmem:[%s247] sm:$0xf]
      %v257 = vld [vmem:[%s247 + $0x4] sm:$0xf]
      %v258 = vld [vmem:[%s247 + $0x8] sm:$0xf]
      %v259 = vld [vmem:[%s247 + $0xc] sm:$0xf]
      %v260 = vld [vmem:[%s247 + $0x10] sm:$0xf]
      %v261 = vld [vmem:[%s247 + $0x14] sm:$0xf]
      %v262 = vld [vmem:[%s247 + $0x18] sm:$0xf]
      %v263 = vld [vmem:[%s247 + $0x1c] sm:$0xf]
      %v264 = vld [vmem:[%s247 + $0x20] sm:$0xf]
      %v265 = vld [vmem:[%s247 + $0x24] sm:$0xf]
      %v266 = vld [vmem:[%s247 + $0x28] sm:$0xf]
      %v267 = vld [vmem:[%s247 + $0x2c] sm:$0xf]
      %v268 = vld [vmem:[%s247 + $0x30] sm:$0xf]
      %v269 = vld [vmem:[%s247 + $0x34] sm:$0xf]
      %v270 = vld [vmem:[%s247 + $0x38] sm:$0xf]
      %v271 = vld [vmem:[%s247 + $0x3c] sm:$0xf]
      %v272 = vld [vmem:[%s247 + $0x40] sm:$0xf]
      %v273 = vld [vmem:[%s247 + $0x44] sm:$0xf]
      %v274 = vld [vmem:[%s247 + $0x48] sm:$0xf]
      %v275 = vld [vmem:[%s247 + $0x4c] sm:$0xf]
      %v276 = vld [vmem:[%s247 + $0x50] sm:$0xf]
      %v277 = vld [vmem:[%s247 + $0x54] sm:$0xf]
      %v278 = vld [vmem:[%s247 + $0x58] sm:$0xf]
      %v279 = vld [vmem:[%s247 + $0x5c] sm:$0xf]
      %v280 = vld [vmem:[%s247 + $0x60] sm:$0xf]
      %v281 = vld [vmem:[%s247 + $0x64] sm:$0xf]
      %v282 = vld [vmem:[%s247 + $0x68] sm:$0xf]
      %v283 = vld [vmem:[%s247 + $0x6c] sm:$0xf]
      %v284 = vld [vmem:[%s247 + $0x70] sm:$0xf]
      %v285 = vld [vmem:[%s247 + $0x74] sm:$0xf]
      %v286 = vld [vmem:[%s247 + $0x78] sm:$0xf]
      %v287 = vld [vmem:[%s247 + $0x7c] sm:$0xf]
      %v288 = vunpack.c.l.bf16 %v256
      %v289 = vunpack.c.l.bf16 %v257
      %v290 = vunpack.c.l.bf16 %v258
      %v291 = vunpack.c.l.bf16 %v259
      %v292 = vunpack.c.l.bf16 %v260
      %v293 = vunpack.c.l.bf16 %v261
      %v294 = vunpack.c.l.bf16 %v262
      %v295 = vunpack.c.l.bf16 %v263
      %v296 = vunpack.c.l.bf16 %v264
      %v297 = vunpack.c.l.bf16 %v265
      %v298 = vunpack.c.l.bf16 %v266
      %v299 = vunpack.c.l.bf16 %v267
      %v300 = vunpack.c.l.bf16 %v268
      %v301 = vunpack.c.l.bf16 %v269
      %v302 = vunpack.c.l.bf16 %v270
      %v303 = vunpack.c.l.bf16 %v271
      %v304 = vunpack.c.l.bf16 %v272
      %v305 = vunpack.c.l.bf16 %v273
      %v306 = vunpack.c.l.bf16 %v274
      %v307 = vunpack.c.l.bf16 %v275
      %v308 = vunpack.c.l.bf16 %v276
      %v309 = vunpack.c.l.bf16 %v277
      %v310 = vunpack.c.l.bf16 %v278
      %v311 = vunpack.c.l.bf16 %v279
      %v312 = vunpack.c.l.bf16 %v280
      %v313 = vunpack.c.l.bf16 %v281
      %v314 = vunpack.c.l.bf16 %v282
      %v315 = vunpack.c.l.bf16 %v283
      %v316 = vunpack.c.l.bf16 %v284
      %v317 = vunpack.c.l.bf16 %v285
      %v318 = vunpack.c.l.bf16 %v286
      %v319 = vunpack.c.l.bf16 %v287
      %v320 = vld [vmem:[%s4] sm:$0xff]
      %v321 = vld [vmem:[%s4 + $0x8] sm:$0xff]
      %v322 = vld [vmem:[%s4 + $0x10] sm:$0xff]
      %v323 = vld [vmem:[%s4 + $0x18] sm:$0xff]
      %v324 = vld [vmem:[%s4 + $0x20] sm:$0xff]
      %v325 = vld [vmem:[%s4 + $0x28] sm:$0xff]
      %v326 = vld [vmem:[%s4 + $0x30] sm:$0xff]
      %v327 = vld [vmem:[%s4 + $0x38] sm:$0xff]
      %v328 = vld [vmem:[%s4 + $0x40] sm:$0xff]
      %v329 = vld [vmem:[%s4 + $0x48] sm:$0xff]
      %v330 = vld [vmem:[%s4 + $0x50] sm:$0xff]
      %v331 = vld [vmem:[%s4 + $0x58] sm:$0xff]
      %v332 = vld [vmem:[%s4 + $0x60] sm:$0xff]
      %v333 = vld [vmem:[%s4 + $0x68] sm:$0xff]
      %v334 = vld [vmem:[%s4 + $0x70] sm:$0xff]
      %v335 = vld [vmem:[%s4 + $0x78] sm:$0xff]
      %v336 = vld [vmem:[%s4 + $0x80] sm:$0xff]
      %v337 = vld [vmem:[%s4 + $0x88] sm:$0xff]
      %v338 = vld [vmem:[%s4 + $0x90] sm:$0xff]
      %v339 = vld [vmem:[%s4 + $0x98] sm:$0xff]
      %v340 = vld [vmem:[%s4 + $0xa0] sm:$0xff]
      %v341 = vld [vmem:[%s4 + $0xa8] sm:$0xff]
      %v342 = vld [vmem:[%s4 + $0xb0] sm:$0xff]
      %v343 = vld [vmem:[%s4 + $0xb8] sm:$0xff]
      %v344 = vld [vmem:[%s4 + $0xc0] sm:$0xff]
      %v345 = vld [vmem:[%s4 + $0xc8] sm:$0xff]
      %v346 = vld [vmem:[%s4 + $0xd0] sm:$0xff]
      %v347 = vld [vmem:[%s4 + $0xd8] sm:$0xff]
      %v348 = vld [vmem:[%s4 + $0xe0] sm:$0xff]
      %v349 = vld [vmem:[%s4 + $0xe8] sm:$0xff]
      %v350 = vld [vmem:[%s4 + $0xf0] sm:$0xff]
      %v351 = vld [vmem:[%s4 + $0xf8] sm:$0xff]
      %v352 = vld [vmem:[%s5] sm:$0xff]
      %v353 = vld [vmem:[%s5 + $0x8] sm:$0xff]
      %v354 = vld [vmem:[%s5 + $0x10] sm:$0xff]
      %v355 = vld [vmem:[%s5 + $0x18] sm:$0xff]
      %v356 = vld [vmem:[%s5 + $0x20] sm:$0xff]
      %v357 = vld [vmem:[%s5 + $0x28] sm:$0xff]
      %v358 = vld [vmem:[%s5 + $0x30] sm:$0xff]
      %v359 = vld [vmem:[%s5 + $0x38] sm:$0xff]
      %v360 = vld [vmem:[%s5 + $0x40] sm:$0xff]
      %v361 = vld [vmem:[%s5 + $0x48] sm:$0xff]
      %v362 = vld [vmem:[%s5 + $0x50] sm:$0xff]
      %v363 = vld [vmem:[%s5 + $0x58] sm:$0xff]
      %v364 = vld [vmem:[%s5 + $0x60] sm:$0xff]
      %v365 = vld [vmem:[%s5 + $0x68] sm:$0xff]
      %v366 = vld [vmem:[%s5 + $0x70] sm:$0xff]
      %v367 = vld [vmem:[%s5 + $0x78] sm:$0xff]
      %v368 = vld [vmem:[%s5 + $0x80] sm:$0xff]
      %v369 = vld [vmem:[%s5 + $0x88] sm:$0xff]
      %v370 = vld [vmem:[%s5 + $0x90] sm:$0xff]
      %v371 = vld [vmem:[%s5 + $0x98] sm:$0xff]
      %v372 = vld [vmem:[%s5 + $0xa0] sm:$0xff]
      %v373 = vld [vmem:[%s5 + $0xa8] sm:$0xff]
      %v374 = vld [vmem:[%s5 + $0xb0] sm:$0xff]
      %v375 = vld [vmem:[%s5 + $0xb8] sm:$0xff]
      %v376 = vld [vmem:[%s5 + $0xc0] sm:$0xff]
      %v377 = vld [vmem:[%s5 + $0xc8] sm:$0xff]
      %v378 = vld [vmem:[%s5 + $0xd0] sm:$0xff]
      %v379 = vld [vmem:[%s5 + $0xd8] sm:$0xff]
      %v380 = vld [vmem:[%s5 + $0xe0] sm:$0xff]
      %v381 = vld [vmem:[%s5 + $0xe8] sm:$0xff]
      %v382 = vld [vmem:[%s5 + $0xf0] sm:$0xff]
      %v383 = vld [vmem:[%s5 + $0xf8] sm:$0xff]
      %v384 = vrot.slane %v288, 7
      %v385 = vrot.slane %v289, 7
      %v386 = vrot.slane %v290, 7
      %v387 = vrot.slane %v291, 7
      %v388 = vrot.slane %v292, 7
      %v389 = vrot.slane %v293, 7
      %v390 = vrot.slane %v294, 7
      %v391 = vrot.slane %v295, 7
      %v392 = vrot.slane %v296, 7
      %v393 = vrot.slane %v297, 7
      %v394 = vrot.slane %v298, 7
      %v395 = vrot.slane %v299, 7
      %v396 = vrot.slane %v300, 7
      %v397 = vrot.slane %v301, 7
      %v398 = vrot.slane %v302, 7
      %v399 = vrot.slane %v303, 7
      %v400 = vrot.slane %v304, 7
      %v401 = vrot.slane %v305, 7
      %v402 = vrot.slane %v306, 7
      %v403 = vrot.slane %v307, 7
      %v404 = vrot.slane %v308, 7
      %v405 = vrot.slane %v309, 7
      %v406 = vrot.slane %v310, 7
      %v407 = vrot.slane %v311, 7
      %v408 = vrot.slane %v312, 7
      %v409 = vrot.slane %v313, 7
      %v410 = vrot.slane %v314, 7
      %v411 = vrot.slane %v315, 7
      %v412 = vrot.slane %v316, 7
      %v413 = vrot.slane %v317, 7
      %v414 = vrot.slane %v318, 7
      %v415 = vrot.slane %v319, 7
      %v416 = vlaneseq
      %v417 = vshrl.u32 %v416, 7
      %vm418 = vcmp.lt.s32.totalorder %v417, 1
      %v419 = vsel %vm418, %v414, %v415
      %v420 = vsel %vm418, %v413, %v414
      %v421 = vsel %vm418, %v412, %v413
      %v422 = vsel %vm418, %v411, %v412
      %v423 = vsel %vm418, %v410, %v411
      %v424 = vsel %vm418, %v409, %v410
      %v425 = vsel %vm418, %v408, %v409
      %v426 = vsel %vm418, %v407, %v408
      %v427 = vsel %vm418, %v406, %v407
      %v428 = vsel %vm418, %v405, %v406
      %v429 = vsel %vm418, %v404, %v405
      %v430 = vsel %vm418, %v403, %v404
      %v431 = vsel %vm418, %v402, %v403
      %v432 = vsel %vm418, %v401, %v402
      %v433 = vsel %vm418, %v400, %v401
      %v434 = vsel %vm418, %v399, %v400
      %v435 = vsel %vm418, %v398, %v399
      %v436 = vsel %vm418, %v397, %v398
      %v437 = vsel %vm418, %v396, %v397
      %v438 = vsel %vm418, %v395, %v396
      %v439 = vsel %vm418, %v394, %v395
      %v440 = vsel %vm418, %v393, %v394
      %v441 = vsel %vm418, %v392, %v393
      %v442 = vsel %vm418, %v391, %v392
      %v443 = vsel %vm418, %v390, %v391
      %v444 = vsel %vm418, %v389, %v390
      %v445 = vsel %vm418, %v388, %v389
      %v446 = vsel %vm418, %v387, %v388
      %v447 = vsel %vm418, %v386, %v387
      %v448 = vsel %vm418, %v385, %v386
      %v449 = vsel %vm418, %v384, %v385
      %v450 = vsel %vm418, %v415, %v384
      %v451 = vadd.s32 %v320, 4294967295
      %v452 = vadd.s32 %v321, 4294967295
      %v453 = vadd.s32 %v322, 4294967295
      %v454 = vadd.s32 %v323, 4294967295
      %v455 = vadd.s32 %v324, 4294967295
      %v456 = vadd.s32 %v325, 4294967295
      %v457 = vadd.s32 %v326, 4294967295
      %v458 = vadd.s32 %v327, 4294967295
      %v459 = vadd.s32 %v328, 4294967295
      %v460 = vadd.s32 %v329, 4294967295
      %v461 = vadd.s32 %v330, 4294967295
      %v462 = vadd.s32 %v331, 4294967295
      %v463 = vadd.s32 %v332, 4294967295
      %v464 = vadd.s32 %v333, 4294967295
      %v465 = vadd.s32 %v334, 4294967295
      %v466 = vadd.s32 %v335, 4294967295
      %v467 = vadd.s32 %v336, 4294967295
      %v468 = vadd.s32 %v337, 4294967295
      %v469 = vadd.s32 %v338, 4294967295
      %v470 = vadd.s32 %v339, 4294967295
      %v471 = vadd.s32 %v340, 4294967295
      %v472 = vadd.s32 %v341, 4294967295
      %v473 = vadd.s32 %v342, 4294967295
      %v474 = vadd.s32 %v343, 4294967295
      %v475 = vadd.s32 %v344, 4294967295
      %v476 = vadd.s32 %v345, 4294967295
      %v477 = vadd.s32 %v346, 4294967295
      %v478 = vadd.s32 %v347, 4294967295
      %v479 = vadd.s32 %v348, 4294967295
      %v480 = vadd.s32 %v349, 4294967295
      %v481 = vadd.s32 %v350, 4294967295
      %v482 = vadd.s32 %v351, 4294967295
      %vm483 = vcmp.ge.s32.totalorder %v451, 0
      %vm484 = vcmp.ge.s32.totalorder %v452, 0
      %vm485 = vcmp.ge.s32.totalorder %v453, 0
      %vm486 = vcmp.ge.s32.totalorder %v454, 0
      %vm487 = vcmp.ge.s32.totalorder %v455, 0
      %vm488 = vcmp.ge.s32.totalorder %v456, 0
      %vm489 = vcmp.ge.s32.totalorder %v457, 0
      %vm490 = vcmp.ge.s32.totalorder %v458, 0
      %vm491 = vcmp.ge.s32.totalorder %v459, 0
      %vm492 = vcmp.ge.s32.totalorder %v460, 0
      %vm493 = vcmp.ge.s32.totalorder %v461, 0
      %vm494 = vcmp.ge.s32.totalorder %v462, 0
      %vm495 = vcmp.ge.s32.totalorder %v463, 0
      %vm496 = vcmp.ge.s32.totalorder %v464, 0
      %vm497 = vcmp.ge.s32.totalorder %v465, 0
      %vm498 = vcmp.ge.s32.totalorder %v466, 0
      %vm499 = vcmp.ge.s32.totalorder %v467, 0
      %vm500 = vcmp.ge.s32.totalorder %v468, 0
      %vm501 = vcmp.ge.s32.totalorder %v469, 0
      %vm502 = vcmp.ge.s32.totalorder %v470, 0
      %vm503 = vcmp.ge.s32.totalorder %v471, 0
      %vm504 = vcmp.ge.s32.totalorder %v472, 0
      %vm505 = vcmp.ge.s32.totalorder %v473, 0
      %vm506 = vcmp.ge.s32.totalorder %v474, 0
      %vm507 = vcmp.ge.s32.totalorder %v475, 0
      %vm508 = vcmp.ge.s32.totalorder %v476, 0
      %vm509 = vcmp.ge.s32.totalorder %v477, 0
      %vm510 = vcmp.ge.s32.totalorder %v478, 0
      %vm511 = vcmp.ge.s32.totalorder %v479, 0
      %vm512 = vcmp.ge.s32.totalorder %v480, 0
      %vm513 = vcmp.ge.s32.totalorder %v481, 0
      %vm514 = vcmp.ge.s32.totalorder %v482, 0
      %vm515 = vcmp.lt.s32.totalorder %v451, 16
      %vm516 = vcmp.lt.s32.totalorder %v452, 16
      %vm517 = vcmp.lt.s32.totalorder %v453, 16
      %vm518 = vcmp.lt.s32.totalorder %v454, 16
      %vm519 = vcmp.lt.s32.totalorder %v455, 16
      %vm520 = vcmp.lt.s32.totalorder %v456, 16
      %vm521 = vcmp.lt.s32.totalorder %v457, 16
      %vm522 = vcmp.lt.s32.totalorder %v458, 16
      %vm523 = vcmp.lt.s32.totalorder %v459, 16
      %vm524 = vcmp.lt.s32.totalorder %v460, 16
      %vm525 = vcmp.lt.s32.totalorder %v461, 16
      %vm526 = vcmp.lt.s32.totalorder %v462, 16
      %vm527 = vcmp.lt.s32.totalorder %v463, 16
      %vm528 = vcmp.lt.s32.totalorder %v464, 16
      %vm529 = vcmp.lt.s32.totalorder %v465, 16
      %vm530 = vcmp.lt.s32.totalorder %v466, 16
      %vm531 = vcmp.lt.s32.totalorder %v467, 16
      %vm532 = vcmp.lt.s32.totalorder %v468, 16
      %vm533 = vcmp.lt.s32.totalorder %v469, 16
      %vm534 = vcmp.lt.s32.totalorder %v470, 16
      %vm535 = vcmp.lt.s32.totalorder %v471, 16
      %vm536 = vcmp.lt.s32.totalorder %v472, 16
      %vm537 = vcmp.lt.s32.totalorder %v473, 16
      %vm538 = vcmp.lt.s32.totalorder %v474, 16
      %vm539 = vcmp.lt.s32.totalorder %v475, 16
      %vm540 = vcmp.lt.s32.totalorder %v476, 16
      %vm541 = vcmp.lt.s32.totalorder %v477, 16
      %vm542 = vcmp.lt.s32.totalorder %v478, 16
      %vm543 = vcmp.lt.s32.totalorder %v479, 16
      %vm544 = vcmp.lt.s32.totalorder %v480, 16
      %vm545 = vcmp.lt.s32.totalorder %v481, 16
      %vm546 = vcmp.lt.s32.totalorder %v482, 16
      %vm547 = vmand %vm483, %vm515
      %vm548 = vmand %vm484, %vm516
      %vm549 = vmand %vm485, %vm517
      %vm550 = vmand %vm486, %vm518
      %vm551 = vmand %vm487, %vm519
      %vm552 = vmand %vm488, %vm520
      %vm553 = vmand %vm489, %vm521
      %vm554 = vmand %vm490, %vm522
      %vm555 = vmand %vm491, %vm523
      %vm556 = vmand %vm492, %vm524
      %vm557 = vmand %vm493, %vm525
      %vm558 = vmand %vm494, %vm526
      %vm559 = vmand %vm495, %vm527
      %vm560 = vmand %vm496, %vm528
      %vm561 = vmand %vm497, %vm529
      %vm562 = vmand %vm498, %vm530
      %vm563 = vmand %vm499, %vm531
      %vm564 = vmand %vm500, %vm532
      %vm565 = vmand %vm501, %vm533
      %vm566 = vmand %vm502, %vm534
      %vm567 = vmand %vm503, %vm535
      %vm568 = vmand %vm504, %vm536
      %vm569 = vmand %vm505, %vm537
      %vm570 = vmand %vm506, %vm538
      %vm571 = vmand %vm507, %vm539
      %vm572 = vmand %vm508, %vm540
      %vm573 = vmand %vm509, %vm541
      %vm574 = vmand %vm510, %vm542
      %vm575 = vmand %vm511, %vm543
      %vm576 = vmand %vm512, %vm544
      %vm577 = vmand %vm513, %vm545
      %vm578 = vmand %vm514, %vm546
      %v579 = vadd.s32 %v352, 4294967295
      %v580 = vadd.s32 %v353, 4294967295
      %v581 = vadd.s32 %v354, 4294967295
      %v582 = vadd.s32 %v355, 4294967295
      %v583 = vadd.s32 %v356, 4294967295
      %v584 = vadd.s32 %v357, 4294967295
      %v585 = vadd.s32 %v358, 4294967295
      %v586 = vadd.s32 %v359, 4294967295
      %v587 = vadd.s32 %v360, 4294967295
      %v588 = vadd.s32 %v361, 4294967295
      %v589 = vadd.s32 %v362, 4294967295
      %v590 = vadd.s32 %v363, 4294967295
      %v591 = vadd.s32 %v364, 4294967295
      %v592 = vadd.s32 %v365, 4294967295
      %v593 = vadd.s32 %v366, 4294967295
      %v594 = vadd.s32 %v367, 4294967295
      %v595 = vadd.s32 %v368, 4294967295
      %v596 = vadd.s32 %v369, 4294967295
      %v597 = vadd.s32 %v370, 4294967295
      %v598 = vadd.s32 %v371, 4294967295
      %v599 = vadd.s32 %v372, 4294967295
      %v600 = vadd.s32 %v373, 4294967295
      %v601 = vadd.s32 %v374, 4294967295
      %v602 = vadd.s32 %v375, 4294967295
      %v603 = vadd.s32 %v376, 4294967295
      %v604 = vadd.s32 %v377, 4294967295
      %v605 = vadd.s32 %v378, 4294967295
      %v606 = vadd.s32 %v379, 4294967295
      %v607 = vadd.s32 %v380, 4294967295
      %v608 = vadd.s32 %v381, 4294967295
      %v609 = vadd.s32 %v382, 4294967295
      %v610 = vadd.s32 %v383, 4294967295
      %vm611 = vcmp.ge.s32.totalorder %v579, 0
      %vm612 = vcmp.ge.s32.totalorder %v580, 0
      %vm613 = vcmp.ge.s32.totalorder %v581, 0
      %vm614 = vcmp.ge.s32.totalorder %v582, 0
      %vm615 = vcmp.ge.s32.totalorder %v583, 0
      %vm616 = vcmp.ge.s32.totalorder %v584, 0
      %vm617 = vcmp.ge.s32.totalorder %v585, 0
      %vm618 = vcmp.ge.s32.totalorder %v586, 0
      %vm619 = vcmp.ge.s32.totalorder %v587, 0
      %vm620 = vcmp.ge.s32.totalorder %v588, 0
      %vm621 = vcmp.ge.s32.totalorder %v589, 0
      %vm622 = vcmp.ge.s32.totalorder %v590, 0
      %vm623 = vcmp.ge.s32.totalorder %v591, 0
      %vm624 = vcmp.ge.s32.totalorder %v592, 0
      %vm625 = vcmp.ge.s32.totalorder %v593, 0
      %vm626 = vcmp.ge.s32.totalorder %v594, 0
      %vm627 = vcmp.ge.s32.totalorder %v595, 0
      %vm628 = vcmp.ge.s32.totalorder %v596, 0
      %vm629 = vcmp.ge.s32.totalorder %v597, 0
      %vm630 = vcmp.ge.s32.totalorder %v598, 0
      %vm631 = vcmp.ge.s32.totalorder %v599, 0
      %vm632 = vcmp.ge.s32.totalorder %v600, 0
      %vm633 = vcmp.ge.s32.totalorder %v601, 0
      %vm634 = vcmp.ge.s32.totalorder %v602, 0
      %vm635 = vcmp.ge.s32.totalorder %v603, 0
      %vm636 = vcmp.ge.s32.totalorder %v604, 0
      %vm637 = vcmp.ge.s32.totalorder %v605, 0
      %vm638 = vcmp.ge.s32.totalorder %v606, 0
      %vm639 = vcmp.ge.s32.totalorder %v607, 0
      %vm640 = vcmp.ge.s32.totalorder %v608, 0
      %vm641 = vcmp.ge.s32.totalorder %v609, 0
      %vm642 = vcmp.ge.s32.totalorder %v610, 0
      %vm643 = vmand %vm547, %vm611
      %vm644 = vmand %vm548, %vm612
      %vm645 = vmand %vm549, %vm613
      %vm646 = vmand %vm550, %vm614
      %vm647 = vmand %vm551, %vm615
      %vm648 = vmand %vm552, %vm616
      %vm649 = vmand %vm553, %vm617
      %vm650 = vmand %vm554, %vm618
      %vm651 = vmand %vm555, %vm619
      %vm652 = vmand %vm556, %vm620
      %vm653 = vmand %vm557, %vm621
      %vm654 = vmand %vm558, %vm622
      %vm655 = vmand %vm559, %vm623
      %vm656 = vmand %vm560, %vm624
      %vm657 = vmand %vm561, %vm625
      %vm658 = vmand %vm562, %vm626
      %vm659 = vmand %vm563, %vm627
      %vm660 = vmand %vm564, %vm628
      %vm661 = vmand %vm565, %vm629
      %vm662 = vmand %vm566, %vm630
      %vm663 = vmand %vm567, %vm631
      %vm664 = vmand %vm568, %vm632
      %vm665 = vmand %vm569, %vm633
      %vm666 = vmand %vm570, %vm634
      %vm667 = vmand %vm571, %vm635
      %vm668 = vmand %vm572, %vm636
      %vm669 = vmand %vm573, %vm637
      %vm670 = vmand %vm574, %vm638
      %vm671 = vmand %vm575, %vm639
      %vm672 = vmand %vm576, %vm640
      %vm673 = vmand %vm577, %vm641
      %vm674 = vmand %vm578, %vm642
      %vm675 = vcmp.lt.s32.totalorder %v579, 16
      %vm676 = vcmp.lt.s32.totalorder %v580, 16
      %vm677 = vcmp.lt.s32.totalorder %v581, 16
      %vm678 = vcmp.lt.s32.totalorder %v582, 16
      %vm679 = vcmp.lt.s32.totalorder %v583, 16
      %vm680 = vcmp.lt.s32.totalorder %v584, 16
      %vm681 = vcmp.lt.s32.totalorder %v585, 16
      %vm682 = vcmp.lt.s32.totalorder %v586, 16
      %vm683 = vcmp.lt.s32.totalorder %v587, 16
      %vm684 = vcmp.lt.s32.totalorder %v588, 16
      %vm685 = vcmp.lt.s32.totalorder %v589, 16
      %vm686 = vcmp.lt.s32.totalorder %v590, 16
      %vm687 = vcmp.lt.s32.totalorder %v591, 16
      %vm688 = vcmp.lt.s32.totalorder %v592, 16
      %vm689 = vcmp.lt.s32.totalorder %v593, 16
      %vm690 = vcmp.lt.s32.totalorder %v594, 16
      %vm691 = vcmp.lt.s32.totalorder %v595, 16
      %vm692 = vcmp.lt.s32.totalorder %v596, 16
      %vm693 = vcmp.lt.s32.totalorder %v597, 16
      %vm694 = vcmp.lt.s32.totalorder %v598, 16
      %vm695 = vcmp.lt.s32.totalorder %v599, 16
      %vm696 = vcmp.lt.s32.totalorder %v600, 16
      %vm697 = vcmp.lt.s32.totalorder %v601, 16
      %vm698 = vcmp.lt.s32.totalorder %v602, 16
      %vm699 = vcmp.lt.s32.totalorder %v603, 16
      %vm700 = vcmp.lt.s32.totalorder %v604, 16
      %vm701 = vcmp.lt.s32.totalorder %v605, 16
      %vm702 = vcmp.lt.s32.totalorder %v606, 16
      %vm703 = vcmp.lt.s32.totalorder %v607, 16
      %vm704 = vcmp.lt.s32.totalorder %v608, 16
      %vm705 = vcmp.lt.s32.totalorder %v609, 16
      %vm706 = vcmp.lt.s32.totalorder %v610, 16
      %vm707 = vmand %vm643, %vm675
      %vm708 = vmand %vm644, %vm676
      %vm709 = vmand %vm645, %vm677
      %vm710 = vmand %vm646, %vm678
      %vm711 = vmand %vm647, %vm679
      %vm712 = vmand %vm648, %vm680
      %vm713 = vmand %vm649, %vm681
      %vm714 = vmand %vm650, %vm682
      %vm715 = vmand %vm651, %vm683
      %vm716 = vmand %vm652, %vm684
      %vm717 = vmand %vm653, %vm685
      %vm718 = vmand %vm654, %vm686
      %vm719 = vmand %vm655, %vm687
      %vm720 = vmand %vm656, %vm688
      %vm721 = vmand %vm657, %vm689
      %vm722 = vmand %vm658, %vm690
      %vm723 = vmand %vm659, %vm691
      %vm724 = vmand %vm660, %vm692
      %vm725 = vmand %vm661, %vm693
      %vm726 = vmand %vm662, %vm694
      %vm727 = vmand %vm663, %vm695
      %vm728 = vmand %vm664, %vm696
      %vm729 = vmand %vm665, %vm697
      %vm730 = vmand %vm666, %vm698
      %vm731 = vmand %vm667, %vm699
      %vm732 = vmand %vm668, %vm700
      %vm733 = vmand %vm669, %vm701
      %vm734 = vmand %vm670, %vm702
      %vm735 = vmand %vm671, %vm703
      %vm736 = vmand %vm672, %vm704
      %vm737 = vmand %vm673, %vm705
      %vm738 = vmand %vm674, %vm706
      %v739 = vsel %vm707, 1, 0
      %v740 = vsel %vm708, 1, 0
      %v741 = vsel %vm709, 1, 0
      %v742 = vsel %vm710, 1, 0
      %v743 = vsel %vm711, 1, 0
      %v744 = vsel %vm712, 1, 0
      %v745 = vsel %vm713, 1, 0
      %v746 = vsel %vm714, 1, 0
      %v747 = vsel %vm715, 1, 0
      %v748 = vsel %vm716, 1, 0
      %v749 = vsel %vm717, 1, 0
      %v750 = vsel %vm718, 1, 0
      %v751 = vsel %vm719, 1, 0
      %v752 = vsel %vm720, 1, 0
      %v753 = vsel %vm721, 1, 0
      %v754 = vsel %vm722, 1, 0
      %v755 = vsel %vm723, 1, 0
      %v756 = vsel %vm724, 1, 0
      %v757 = vsel %vm725, 1, 0
      %v758 = vsel %vm726, 1, 0
      %v759 = vsel %vm727, 1, 0
      %v760 = vsel %vm728, 1, 0
      %v761 = vsel %vm729, 1, 0
      %v762 = vsel %vm730, 1, 0
      %v763 = vsel %vm731, 1, 0
      %v764 = vsel %vm732, 1, 0
      %v765 = vsel %vm733, 1, 0
      %v766 = vsel %vm734, 1, 0
      %v767 = vsel %vm735, 1, 0
      %v768 = vsel %vm736, 1, 0
      %v769 = vsel %vm737, 1, 0
      %v770 = vsel %vm738, 1, 0
      %771 = vset.pattern.permute.xlu0 0
      %772 = vperm.xlu0 %771, %v739
      %v773 = vpop.permute.xlu0 %772
      %774 = vset.pattern.permute.xlu0 0
      %775 = vperm.xlu0 %774, %v740
      %v776 = vpop.permute.xlu0 %775
      %777 = vset.pattern.permute.xlu0 0
      %778 = vperm.xlu0 %777, %v741
      %v779 = vpop.permute.xlu0 %778
      %780 = vset.pattern.permute.xlu0 0
      %781 = vperm.xlu0 %780, %v742
      %v782 = vpop.permute.xlu0 %781
      %783 = vset.pattern.permute.xlu0 0
      %784 = vperm.xlu0 %783, %v743
      %v785 = vpop.permute.xlu0 %784
      %786 = vset.pattern.permute.xlu0 0
      %787 = vperm.xlu0 %786, %v744
      %v788 = vpop.permute.xlu0 %787
      %789 = vset.pattern.permute.xlu0 0
      %790 = vperm.xlu0 %789, %v745
      %v791 = vpop.permute.xlu0 %790
      %792 = vset.pattern.permute.xlu0 0
      %793 = vperm.xlu0 %792, %v746
      %v794 = vpop.permute.xlu0 %793
      %795 = vset.pattern.permute.xlu0 0
      %796 = vperm.xlu0 %795, %v747
      %v797 = vpop.permute.xlu0 %796
      %798 = vset.pattern.permute.xlu0 0
      %799 = vperm.xlu0 %798, %v748
      %v800 = vpop.permute.xlu0 %799
      %801 = vset.pattern.permute.xlu0 0
      %802 = vperm.xlu0 %801, %v749
      %v803 = vpop.permute.xlu0 %802
      %804 = vset.pattern.permute.xlu0 0
      %805 = vperm.xlu0 %804, %v750
      %v806 = vpop.permute.xlu0 %805
      %807 = vset.pattern.permute.xlu0 0
      %808 = vperm.xlu0 %807, %v751
      %v809 = vpop.permute.xlu0 %808
      %810 = vset.pattern.permute.xlu0 0
      %811 = vperm.xlu0 %810, %v752
      %v812 = vpop.permute.xlu0 %811
      %813 = vset.pattern.permute.xlu0 0
      %814 = vperm.xlu0 %813, %v753
      %v815 = vpop.permute.xlu0 %814
      %816 = vset.pattern.permute.xlu0 0
      %817 = vperm.xlu0 %816, %v754
      %v818 = vpop.permute.xlu0 %817
      %819 = vset.pattern.permute.xlu0 0
      %820 = vperm.xlu0 %819, %v755
      %v821 = vpop.permute.xlu0 %820
      %822 = vset.pattern.permute.xlu0 0
      %823 = vperm.xlu0 %822, %v756
      %v824 = vpop.permute.xlu0 %823
      %825 = vset.pattern.permute.xlu0 0
      %826 = vperm.xlu0 %825, %v757
      %v827 = vpop.permute.xlu0 %826
      %828 = vset.pattern.permute.xlu0 0
      %829 = vperm.xlu0 %828, %v758
      %v830 = vpop.permute.xlu0 %829
      %831 = vset.pattern.permute.xlu0 0
      %832 = vperm.xlu0 %831, %v759
      %v833 = vpop.permute.xlu0 %832
      %834 = vset.pattern.permute.xlu0 0
      %835 = vperm.xlu0 %834, %v760
      %v836 = vpop.permute.xlu0 %835
      %837 = vset.pattern.permute.xlu0 0
      %838 = vperm.xlu0 %837, %v761
      %v839 = vpop.permute.xlu0 %838
      %840 = vset.pattern.permute.xlu0 0
      %841 = vperm.xlu0 %840, %v762
      %v842 = vpop.permute.xlu0 %841
      %843 = vset.pattern.permute.xlu0 0
      %844 = vperm.xlu0 %843, %v763
      %v845 = vpop.permute.xlu0 %844
      %846 = vset.pattern.permute.xlu0 0
      %847 = vperm.xlu0 %846, %v764
      %v848 = vpop.permute.xlu0 %847
      %849 = vset.pattern.permute.xlu0 0
      %850 = vperm.xlu0 %849, %v765
      %v851 = vpop.permute.xlu0 %850
      %852 = vset.pattern.permute.xlu0 0
      %853 = vperm.xlu0 %852, %v766
      %v854 = vpop.permute.xlu0 %853
      %855 = vset.pattern.permute.xlu0 0
      %856 = vperm.xlu0 %855, %v767
      %v857 = vpop.permute.xlu0 %856
      %858 = vset.pattern.permute.xlu0 0
      %859 = vperm.xlu0 %858, %v768
      %v860 = vpop.permute.xlu0 %859
      %861 = vset.pattern.permute.xlu0 0
      %862 = vperm.xlu0 %861, %v769
      %v863 = vpop.permute.xlu0 %862
      %864 = vset.pattern.permute.xlu0 0
      %865 = vperm.xlu0 %864, %v770
      %v866 = vpop.permute.xlu0 %865
      %vm867 = vcmp.eq.s32.totalorder %v773, 1
      %vm868 = vcmp.eq.s32.totalorder %v776, 1
      %vm869 = vcmp.eq.s32.totalorder %v779, 1
      %vm870 = vcmp.eq.s32.totalorder %v782, 1
      %vm871 = vcmp.eq.s32.totalorder %v785, 1
      %vm872 = vcmp.eq.s32.totalorder %v788, 1
      %vm873 = vcmp.eq.s32.totalorder %v791, 1
      %vm874 = vcmp.eq.s32.totalorder %v794, 1
      %vm875 = vcmp.eq.s32.totalorder %v797, 1
      %vm876 = vcmp.eq.s32.totalorder %v800, 1
      %vm877 = vcmp.eq.s32.totalorder %v803, 1
      %vm878 = vcmp.eq.s32.totalorder %v806, 1
      %vm879 = vcmp.eq.s32.totalorder %v809, 1
      %vm880 = vcmp.eq.s32.totalorder %v812, 1
      %vm881 = vcmp.eq.s32.totalorder %v815, 1
      %vm882 = vcmp.eq.s32.totalorder %v818, 1
      %vm883 = vcmp.eq.s32.totalorder %v821, 1
      %vm884 = vcmp.eq.s32.totalorder %v824, 1
      %vm885 = vcmp.eq.s32.totalorder %v827, 1
      %vm886 = vcmp.eq.s32.totalorder %v830, 1
      %vm887 = vcmp.eq.s32.totalorder %v833, 1
      %vm888 = vcmp.eq.s32.totalorder %v836, 1
      %vm889 = vcmp.eq.s32.totalorder %v839, 1
      %vm890 = vcmp.eq.s32.totalorder %v842, 1
      %vm891 = vcmp.eq.s32.totalorder %v845, 1
      %vm892 = vcmp.eq.s32.totalorder %v848, 1
      %vm893 = vcmp.eq.s32.totalorder %v851, 1
      %vm894 = vcmp.eq.s32.totalorder %v854, 1
      %vm895 = vcmp.eq.s32.totalorder %v857, 1
      %vm896 = vcmp.eq.s32.totalorder %v860, 1
      %vm897 = vcmp.eq.s32.totalorder %v863, 1
      %vm898 = vcmp.eq.s32.totalorder %v866, 1
      %v899 = vsel %vm867, %v420, 0.0
      %v900 = vsel %vm868, %v419, 0.0
      %v901 = vsel %vm869, %v450, 0.0
      %v902 = vsel %vm870, %v449, 0.0
      %v903 = vsel %vm871, %v448, 0.0
      %v904 = vsel %vm872, %v447, 0.0
      %v905 = vsel %vm873, %v446, 0.0
      %v906 = vsel %vm874, %v445, 0.0
      %v907 = vsel %vm875, %v444, 0.0
      %v908 = vsel %vm876, %v443, 0.0
      %v909 = vsel %vm877, %v442, 0.0
      %v910 = vsel %vm878, %v441, 0.0
      %v911 = vsel %vm879, %v440, 0.0
      %v912 = vsel %vm880, %v439, 0.0
      %v913 = vsel %vm881, %v438, 0.0
      %v914 = vsel %vm882, %v437, 0.0
      %v915 = vsel %vm883, %v436, 0.0
      %v916 = vsel %vm884, %v435, 0.0
      %v917 = vsel %vm885, %v434, 0.0
      %v918 = vsel %vm886, %v433, 0.0
      %v919 = vsel %vm887, %v432, 0.0
      %v920 = vsel %vm888, %v431, 0.0
      %v921 = vsel %vm889, %v430, 0.0
      %v922 = vsel %vm890, %v429, 0.0
      %v923 = vsel %vm891, %v428, 0.0
      %v924 = vsel %vm892, %v427, 0.0
      %v925 = vsel %vm893, %v426, 0.0
      %v926 = vsel %vm894, %v425, 0.0
      %v927 = vsel %vm895, %v424, 0.0
      %v928 = vsel %vm896, %v423, 0.0
      %v929 = vsel %vm897, %v422, 0.0
      %v930 = vsel %vm898, %v421, 0.0
      %v931 = vpack.c.bf16 %v900, %v899
      %v932 = vpack.c.bf16 %v902, %v901
      %v933 = vpack.c.bf16 %v904, %v903
      %v934 = vpack.c.bf16 %v906, %v905
      %v935 = vpack.c.bf16 %v908, %v907
      %v936 = vpack.c.bf16 %v910, %v909
      %v937 = vpack.c.bf16 %v912, %v911
      %v938 = vpack.c.bf16 %v914, %v913
      %v939 = vpack.c.bf16 %v916, %v915
      %v940 = vpack.c.bf16 %v918, %v917
      %v941 = vpack.c.bf16 %v920, %v919
      %v942 = vpack.c.bf16 %v922, %v921
      %v943 = vpack.c.bf16 %v924, %v923
      %v944 = vpack.c.bf16 %v926, %v925
      %v945 = vpack.c.bf16 %v928, %v927
      %v946 = vpack.c.bf16 %v930, %v929
      %v947 = vld [vmem:[%s1] sm:$0xf]
      %v948 = vld [vmem:[%s1 + $0x4] sm:$0xf]
      %v949 = vld [vmem:[%s1 + $0x8] sm:$0xf]
      %v950 = vld [vmem:[%s1 + $0xc] sm:$0xf]
      %v951 = vld [vmem:[%s1 + $0x10] sm:$0xf]
      %v952 = vld [vmem:[%s1 + $0x14] sm:$0xf]
      %v953 = vld [vmem:[%s1 + $0x18] sm:$0xf]
      %v954 = vld [vmem:[%s1 + $0x1c] sm:$0xf]
      %vm955 = vcmp.ge.s32.totalorder %v352, 0
      %vm956 = vcmp.ge.s32.totalorder %v353, 0
      %vm957 = vcmp.ge.s32.totalorder %v354, 0
      %vm958 = vcmp.ge.s32.totalorder %v355, 0
      %vm959 = vcmp.ge.s32.totalorder %v356, 0
      %vm960 = vcmp.ge.s32.totalorder %v357, 0
      %vm961 = vcmp.ge.s32.totalorder %v358, 0
      %vm962 = vcmp.ge.s32.totalorder %v359, 0
      %vm963 = vcmp.ge.s32.totalorder %v360, 0
      %vm964 = vcmp.ge.s32.totalorder %v361, 0
      %vm965 = vcmp.ge.s32.totalorder %v362, 0
      %vm966 = vcmp.ge.s32.totalorder %v363, 0
      %vm967 = vcmp.ge.s32.totalorder %v364, 0
      %vm968 = vcmp.ge.s32.totalorder %v365, 0
      %vm969 = vcmp.ge.s32.totalorder %v366, 0
      %vm970 = vcmp.ge.s32.totalorder %v367, 0
      %vm971 = vcmp.ge.s32.totalorder %v368, 0
      %vm972 = vcmp.ge.s32.totalorder %v369, 0
      %vm973 = vcmp.ge.s32.totalorder %v370, 0
      %vm974 = vcmp.ge.s32.totalorder %v371, 0
      %vm975 = vcmp.ge.s32.totalorder %v372, 0
      %vm976 = vcmp.ge.s32.totalorder %v373, 0
      %vm977 = vcmp.ge.s32.totalorder %v374, 0
      %vm978 = vcmp.ge.s32.totalorder %v375, 0
      %vm979 = vcmp.ge.s32.totalorder %v376, 0
      %vm980 = vcmp.ge.s32.totalorder %v377, 0
      %vm981 = vcmp.ge.s32.totalorder %v378, 0
      %vm982 = vcmp.ge.s32.totalorder %v379, 0
      %vm983 = vcmp.ge.s32.totalorder %v380, 0
      %vm984 = vcmp.ge.s32.totalorder %v381, 0
      %vm985 = vcmp.ge.s32.totalorder %v382, 0
      %vm986 = vcmp.ge.s32.totalorder %v383, 0
      %vm987 = vmand %vm547, %vm955
      %vm988 = vmand %vm548, %vm956
      %vm989 = vmand %vm549, %vm957
      %vm990 = vmand %vm550, %vm958
      %vm991 = vmand %vm551, %vm959
      %vm992 = vmand %vm552, %vm960
      %vm993 = vmand %vm553, %vm961
      %vm994 = vmand %vm554, %vm962
      %vm995 = vmand %vm555, %vm963
      %vm996 = vmand %vm556, %vm964
      %vm997 = vmand %vm557, %vm965
      %vm998 = vmand %vm558, %vm966
      %vm999 = vmand %vm559, %vm967
      %vm1000 = vmand %vm560, %vm968
      %vm1001 = vmand %vm561, %vm969
      %vm1002 = vmand %vm562, %vm970
      %vm1003 = vmand %vm563, %vm971
      %vm1004 = vmand %vm564, %vm972
      %vm1005 = vmand %vm565, %vm973
      %vm1006 = vmand %vm566, %vm974
      %vm1007 = vmand %vm567, %vm975
      %vm1008 = vmand %vm568, %vm976
      %vm1009 = vmand %vm569, %vm977
      %vm1010 = vmand %vm570, %vm978
      %vm1011 = vmand %vm571, %vm979
      %vm1012 = vmand %vm572, %vm980
      %vm1013 = vmand %vm573, %vm981
      %vm1014 = vmand %vm574, %vm982
      %vm1015 = vmand %vm575, %vm983
      %vm1016 = vmand %vm576, %vm984
      %vm1017 = vmand %vm577, %vm985
      %vm1018 = vmand %vm578, %vm986
      %vm1019 = vcmp.lt.s32.totalorder %v352, 16
      %vm1020 = vcmp.lt.s32.totalorder %v353, 16
      %vm1021 = vcmp.lt.s32.totalorder %v354, 16
      %vm1022 = vcmp.lt.s32.totalorder %v355, 16
      %vm1023 = vcmp.lt.s32.totalorder %v356, 16
      %vm1024 = vcmp.lt.s32.totalorder %v357, 16
      %vm1025 = vcmp.lt.s32.totalorder %v358, 16
      %vm1026 = vcmp.lt.s32.totalorder %v359, 16
      %vm1027 = vcmp.lt.s32.totalorder %v360, 16
      %vm1028 = vcmp.lt.s32.totalorder %v361, 16
      %vm1029 = vcmp.lt.s32.totalorder %v362, 16
      %vm1030 = vcmp.lt.s32.totalorder %v363, 16
      %vm1031 = vcmp.lt.s32.totalorder %v364, 16
      %vm1032 = vcmp.lt.s32.totalorder %v365, 16
      %vm1033 = vcmp.lt.s32.totalorder %v366, 16
      %vm1034 = vcmp.lt.s32.totalorder %v367, 16
      %vm1035 = vcmp.lt.s32.totalorder %v368, 16
      %vm1036 = vcmp.lt.s32.totalorder %v369, 16
      %vm1037 = vcmp.lt.s32.totalorder %v370, 16
      %vm1038 = vcmp.lt.s32.totalorder %v371, 16
      %vm1039 = vcmp.lt.s32.totalorder %v372, 16
      %vm1040 = vcmp.lt.s32.totalorder %v373, 16
      %vm1041 = vcmp.lt.s32.totalorder %v374, 16
      %vm1042 = vcmp.lt.s32.totalorder %v375, 16
      %vm1043 = vcmp.lt.s32.totalorder %v376, 16
      %vm1044 = vcmp.lt.s32.totalorder %v377, 16
      %vm1045 = vcmp.lt.s32.totalorder %v378, 16
      %vm1046 = vcmp.lt.s32.totalorder %v379, 16
      %vm1047 = vcmp.lt.s32.totalorder %v380, 16
      %vm1048 = vcmp.lt.s32.totalorder %v381, 16
      %vm1049 = vcmp.lt.s32.totalorder %v382, 16
      %vm1050 = vcmp.lt.s32.totalorder %v383, 16
      %vm1051 = vmand %vm987, %vm1019
      %vm1052 = vmand %vm988, %vm1020
      %vm1053 = vmand %vm989, %vm1021
      %vm1054 = vmand %vm990, %vm1022
      %vm1055 = vmand %vm991, %vm1023
      %vm1056 = vmand %vm992, %vm1024
      %vm1057 = vmand %vm993, %vm1025
      %vm1058 = vmand %vm994, %vm1026
      %vm1059 = vmand %vm995, %vm1027
      %vm1060 = vmand %vm996, %vm1028
      %vm1061 = vmand %vm997, %vm1029
      %vm1062 = vmand %vm998, %vm1030
      %vm1063 = vmand %vm999, %vm1031
      %vm1064 = vmand %vm1000, %vm1032
      %vm1065 = vmand %vm1001, %vm1033
      %vm1066 = vmand %vm1002, %vm1034
      %vm1067 = vmand %vm1003, %vm1035
      %vm1068 = vmand %vm1004, %vm1036
      %vm1069 = vmand %vm1005, %vm1037
      %vm1070 = vmand %vm1006, %vm1038
      %vm1071 = vmand %vm1007, %vm1039
      %vm1072 = vmand %vm1008, %vm1040
      %vm1073 = vmand %vm1009, %vm1041
      %vm1074 = vmand %vm1010, %vm1042
      %vm1075 = vmand %vm1011, %vm1043
      %vm1076 = vmand %vm1012, %vm1044
      %vm1077 = vmand %vm1013, %vm1045
      %vm1078 = vmand %vm1014, %vm1046
      %vm1079 = vmand %vm1015, %vm1047
      %vm1080 = vmand %vm1016, %vm1048
      %vm1081 = vmand %vm1017, %vm1049
      %vm1082 = vmand %vm1018, %vm1050
      %v1083 = vsel %vm1051, 1, 0
      %v1084 = vsel %vm1052, 1, 0
      %v1085 = vsel %vm1053, 1, 0
      %v1086 = vsel %vm1054, 1, 0
      %v1087 = vsel %vm1055, 1, 0
      %v1088 = vsel %vm1056, 1, 0
      %v1089 = vsel %vm1057, 1, 0
      %v1090 = vsel %vm1058, 1, 0
      %v1091 = vsel %vm1059, 1, 0
      %v1092 = vsel %vm1060, 1, 0
      %v1093 = vsel %vm1061, 1, 0
      %v1094 = vsel %vm1062, 1, 0
      %v1095 = vsel %vm1063, 1, 0
      %v1096 = vsel %vm1064, 1, 0
      %v1097 = vsel %vm1065, 1, 0
      %v1098 = vsel %vm1066, 1, 0
      %v1099 = vsel %vm1067, 1, 0
      %v1100 = vsel %vm1068, 1, 0
      %v1101 = vsel %vm1069, 1, 0
      %v1102 = vsel %vm1070, 1, 0
      %v1103 = vsel %vm1071, 1, 0
      %v1104 = vsel %vm1072, 1, 0
      %v1105 = vsel %vm1073, 1, 0
      %v1106 = vsel %vm1074, 1, 0
      %v1107 = vsel %vm1075, 1, 0
      %v1108 = vsel %vm1076, 1, 0
      %v1109 = vsel %vm1077, 1, 0
      %v1110 = vsel %vm1078, 1, 0
      %v1111 = vsel %vm1079, 1, 0
      %v1112 = vsel %vm1080, 1, 0
      %v1113 = vsel %vm1081, 1, 0
      %v1114 = vsel %vm1082, 1, 0
      %1115 = vset.pattern.permute.xlu0 0
      %1116 = vperm.xlu0 %1115, %v1083
      %v1117 = vpop.permute.xlu0 %1116
      %1118 = vset.pattern.permute.xlu0 0
      %1119 = vperm.xlu0 %1118, %v1084
      %v1120 = vpop.permute.xlu0 %1119
      %1121 = vset.pattern.permute.xlu0 0
      %1122 = vperm.xlu0 %1121, %v1085
      %v1123 = vpop.permute.xlu0 %1122
      %1124 = vset.pattern.permute.xlu0 0
      %1125 = vperm.xlu0 %1124, %v1086
      %v1126 = vpop.permute.xlu0 %1125
      %1127 = vset.pattern.permute.xlu0 0
      %1128 = vperm.xlu0 %1127, %v1087
      %v1129 = vpop.permute.xlu0 %1128
      %1130 = vset.pattern.permute.xlu0 0
      %1131 = vperm.xlu0 %1130, %v1088
      %v1132 = vpop.permute.xlu0 %1131
      %1133 = vset.pattern.permute.xlu0 0
      %1134 = vperm.xlu0 %1133, %v1089
      %v1135 = vpop.permute.xlu0 %1134
      %1136 = vset.pattern.permute.xlu0 0
      %1137 = vperm.xlu0 %1136, %v1090
      %v1138 = vpop.permute.xlu0 %1137
      %1139 = vset.pattern.permute.xlu0 0
      %1140 = vperm.xlu0 %1139, %v1091
      %v1141 = vpop.permute.xlu0 %1140
      %1142 = vset.pattern.permute.xlu0 0
      %1143 = vperm.xlu0 %1142, %v1092
      %v1144 = vpop.permute.xlu0 %1143
      %1145 = vset.pattern.permute.xlu0 0
      %1146 = vperm.xlu0 %1145, %v1093
      %v1147 = vpop.permute.xlu0 %1146
      %1148 = vset.pattern.permute.xlu0 0
      %1149 = vperm.xlu0 %1148, %v1094
      %v1150 = vpop.permute.xlu0 %1149
      %1151 = vset.pattern.permute.xlu0 0
      %1152 = vperm.xlu0 %1151, %v1095
      %v1153 = vpop.permute.xlu0 %1152
      %1154 = vset.pattern.permute.xlu0 0
      %1155 = vperm.xlu0 %1154, %v1096
      %v1156 = vpop.permute.xlu0 %1155
      %1157 = vset.pattern.permute.xlu0 0
      %1158 = vperm.xlu0 %1157, %v1097
      %v1159 = vpop.permute.xlu0 %1158
      %1160 = vset.pattern.permute.xlu0 0
      %1161 = vperm.xlu0 %1160, %v1098
      %v1162 = vpop.permute.xlu0 %1161
      %1163 = vset.pattern.permute.xlu0 0
      %1164 = vperm.xlu0 %1163, %v1099
      %v1165 = vpop.permute.xlu0 %1164
      %1166 = vset.pattern.permute.xlu0 0
      %1167 = vperm.xlu0 %1166, %v1100
      %v1168 = vpop.permute.xlu0 %1167
      %1169 = vset.pattern.permute.xlu0 0
      %1170 = vperm.xlu0 %1169, %v1101
      %v1171 = vpop.permute.xlu0 %1170
      %1172 = vset.pattern.permute.xlu0 0
      %1173 = vperm.xlu0 %1172, %v1102
      %v1174 = vpop.permute.xlu0 %1173
      %1175 = vset.pattern.permute.xlu0 0
      %1176 = vperm.xlu0 %1175, %v1103
      %v1177 = vpop.permute.xlu0 %1176
      %1178 = vset.pattern.permute.xlu0 0
      %1179 = vperm.xlu0 %1178, %v1104
      %v1180 = vpop.permute.xlu0 %1179
      %1181 = vset.pattern.permute.xlu0 0
      %1182 = vperm.xlu0 %1181, %v1105
      %v1183 = vpop.permute.xlu0 %1182
      %1184 = vset.pattern.permute.xlu0 0
      %1185 = vperm.xlu0 %1184, %v1106
      %v1186 = vpop.permute.xlu0 %1185
      %1187 = vset.pattern.permute.xlu0 0
      %1188 = vperm.xlu0 %1187, %v1107
      %v1189 = vpop.permute.xlu0 %1188
      %1190 = vset.pattern.permute.xlu0 0
      %1191 = vperm.xlu0 %1190, %v1108
      %v1192 = vpop.permute.xlu0 %1191
      %1193 = vset.pattern.permute.xlu0 0
      %1194 = vperm.xlu0 %1193, %v1109
      %v1195 = vpop.permute.xlu0 %1194
      %1196 = vset.pattern.permute.xlu0 0
      %1197 = vperm.xlu0 %1196, %v1110
      %v1198 = vpop.permute.xlu0 %1197
      %1199 = vset.pattern.permute.xlu0 0
      %1200 = vperm.xlu0 %1199, %v1111
      %v1201 = vpop.permute.xlu0 %1200
      %1202 = vset.pattern.permute.xlu0 0
      %1203 = vperm.xlu0 %1202, %v1112
      %v1204 = vpop.permute.xlu0 %1203
      %1205 = vset.pattern.permute.xlu0 0
      %1206 = vperm.xlu0 %1205, %v1113
      %v1207 = vpop.permute.xlu0 %1206
      %1208 = vset.pattern.permute.xlu0 0
      %1209 = vperm.xlu0 %1208, %v1114
      %v1210 = vpop.permute.xlu0 %1209
      %vm1211 = vcmp.eq.s32.totalorder %v1117, 1
      %vm1212 = vcmp.eq.s32.totalorder %v1120, 1
      %vm1213 = vcmp.eq.s32.totalorder %v1123, 1
      %vm1214 = vcmp.eq.s32.totalorder %v1126, 1
      %vm1215 = vcmp.eq.s32.totalorder %v1129, 1
      %vm1216 = vcmp.eq.s32.totalorder %v1132, 1
      %vm1217 = vcmp.eq.s32.totalorder %v1135, 1
      %vm1218 = vcmp.eq.s32.totalorder %v1138, 1
      %vm1219 = vcmp.eq.s32.totalorder %v1141, 1
      %vm1220 = vcmp.eq.s32.totalorder %v1144, 1
      %vm1221 = vcmp.eq.s32.totalorder %v1147, 1
      %vm1222 = vcmp.eq.s32.totalorder %v1150, 1
      %vm1223 = vcmp.eq.s32.totalorder %v1153, 1
      %vm1224 = vcmp.eq.s32.totalorder %v1156, 1
      %vm1225 = vcmp.eq.s32.totalorder %v1159, 1
      %vm1226 = vcmp.eq.s32.totalorder %v1162, 1
      %vm1227 = vcmp.eq.s32.totalorder %v1165, 1
      %vm1228 = vcmp.eq.s32.totalorder %v1168, 1
      %vm1229 = vcmp.eq.s32.totalorder %v1171, 1
      %vm1230 = vcmp.eq.s32.totalorder %v1174, 1
      %vm1231 = vcmp.eq.s32.totalorder %v1177, 1
      %vm1232 = vcmp.eq.s32.totalorder %v1180, 1
      %vm1233 = vcmp.eq.s32.totalorder %v1183, 1
      %vm1234 = vcmp.eq.s32.totalorder %v1186, 1
      %vm1235 = vcmp.eq.s32.totalorder %v1189, 1
      %vm1236 = vcmp.eq.s32.totalorder %v1192, 1
      %vm1237 = vcmp.eq.s32.totalorder %v1195, 1
      %vm1238 = vcmp.eq.s32.totalorder %v1198, 1
      %vm1239 = vcmp.eq.s32.totalorder %v1201, 1
      %vm1240 = vcmp.eq.s32.totalorder %v1204, 1
      %vm1241 = vcmp.eq.s32.totalorder %v1207, 1
      %vm1242 = vcmp.eq.s32.totalorder %v1210, 1
      %v1243 = vsel %vm1211, %v318, 0.0
      %v1244 = vsel %vm1212, %v319, 0.0
      %v1245 = vsel %vm1213, %v288, 0.0
      %v1246 = vsel %vm1214, %v289, 0.0
      %v1247 = vsel %vm1215, %v290, 0.0
      %v1248 = vsel %vm1216, %v291, 0.0
      %v1249 = vsel %vm1217, %v292, 0.0
      %v1250 = vsel %vm1218, %v293, 0.0
      %v1251 = vsel %vm1219, %v294, 0.0
      %v1252 = vsel %vm1220, %v295, 0.0
      %v1253 = vsel %vm1221, %v296, 0.0
      %v1254 = vsel %vm1222, %v297, 0.0
      %v1255 = vsel %vm1223, %v298, 0.0
      %v1256 = vsel %vm1224, %v299, 0.0
      %v1257 = vsel %vm1225, %v300, 0.0
      %v1258 = vsel %vm1226, %v301, 0.0
      %v1259 = vsel %vm1227, %v302, 0.0
      %v1260 = vsel %vm1228, %v303, 0.0
      %v1261 = vsel %vm1229, %v304, 0.0
      %v1262 = vsel %vm1230, %v305, 0.0
      %v1263 = vsel %vm1231, %v306, 0.0
      %v1264 = vsel %vm1232, %v307, 0.0
      %v1265 = vsel %vm1233, %v308, 0.0
      %v1266 = vsel %vm1234, %v309, 0.0
      %v1267 = vsel %vm1235, %v310, 0.0
      %v1268 = vsel %vm1236, %v311, 0.0
      %v1269 = vsel %vm1237, %v312, 0.0
      %v1270 = vsel %vm1238, %v313, 0.0
      %v1271 = vsel %vm1239, %v314, 0.0
      %v1272 = vsel %vm1240, %v315, 0.0
      %v1273 = vsel %vm1241, %v316, 0.0
      %v1274 = vsel %vm1242, %v317, 0.0
      %v1275 = vpack.c.bf16 %v1244, %v1243
      %v1276 = vpack.c.bf16 %v1246, %v1245
      %v1277 = vpack.c.bf16 %v1248, %v1247
      %v1278 = vpack.c.bf16 %v1250, %v1249
      %v1279 = vpack.c.bf16 %v1252, %v1251
      %v1280 = vpack.c.bf16 %v1254, %v1253
      %v1281 = vpack.c.bf16 %v1256, %v1255
      %v1282 = vpack.c.bf16 %v1258, %v1257
      %v1283 = vpack.c.bf16 %v1260, %v1259
      %v1284 = vpack.c.bf16 %v1262, %v1261
      %v1285 = vpack.c.bf16 %v1264, %v1263
      %v1286 = vpack.c.bf16 %v1266, %v1265
      %v1287 = vpack.c.bf16 %v1268, %v1267
      %v1288 = vpack.c.bf16 %v1270, %v1269
      %v1289 = vpack.c.bf16 %v1272, %v1271
      %v1290 = vpack.c.bf16 %v1274, %v1273
      %s1291 = scalar_lea.vmem %s1, 32
      %v1292 = vld [vmem:[%s1291] sm:$0xf]
      %v1293 = vld [vmem:[%s1291 + $0x4] sm:$0xf]
      %v1294 = vld [vmem:[%s1291 + $0x8] sm:$0xf]
      %v1295 = vld [vmem:[%s1291 + $0xc] sm:$0xf]
      %v1296 = vld [vmem:[%s1291 + $0x10] sm:$0xf]
      %v1297 = vld [vmem:[%s1291 + $0x14] sm:$0xf]
      %v1298 = vld [vmem:[%s1291 + $0x18] sm:$0xf]
      %v1299 = vld [vmem:[%s1291 + $0x1c] sm:$0xf]
      %v1308 = vunpack.c.l.b16 %v1292
      %v1309 = vunpack.c.l.b16 %v1293
      %v1310 = vunpack.c.l.b16 %v1294
      %v1311 = vunpack.c.l.b16 %v1295
      %v1312 = vunpack.c.l.b16 %v1296
      %v1313 = vunpack.c.l.b16 %v1297
      %v1314 = vunpack.c.l.b16 %v1298
      %v1315 = vunpack.c.l.b16 %v1299
      %v1316 = vpack.c.b16 %v1309, %v1308
      %v1317 = vpack.c.b16 %v1311, %v1310
      %v1318 = vpack.c.b16 %v1313, %v1312
      %v1319 = vpack.c.b16 %v1315, %v1314
      %vm1324 = vcmask 523264
      %v1326 = vsel %vm1324, %v1275, 0
      %v1329 = vsel %vm1324, %v1276, 0
      %v1332 = vsel %vm1324, %v1277, 0
      %v1335 = vsel %vm1324, %v1278, 0
      %v1338 = vsel %vm1324, %v1279, 0
      %v1341 = vsel %vm1324, %v1280, 0
      %v1344 = vsel %vm1324, %v1281, 0
      %v1347 = vsel %vm1324, %v1282, 0
      %v1350 = vsel %vm1324, %v1283, 0
      %v1353 = vsel %vm1324, %v1284, 0
      %v1356 = vsel %vm1324, %v1285, 0
      %v1359 = vsel %vm1324, %v1286, 0
      %v1362 = vsel %vm1324, %v1287, 0
      %v1365 = vsel %vm1324, %v1288, 0
      %v1368 = vsel %vm1324, %v1289, 0
      %v1371 = vsel %vm1324, %v1290, 0
      %1373 = vmatpush.bf16.msra.mxu0 0
      %1374 = vmatpush.bf16.msra.mxu0 0
      %1375 = vmatpush.bf16.msra.mxu0 0
      %1376 = vmatpush.bf16.msra.mxu0 0
      %1377 = vmatpush.bf16.msra.mxu0 %v1319
      %1378 = vmatpush.bf16.msra.mxu0 %v1318
      %1379 = vmatpush.bf16.msra.mxu0 %v1317
      %1380 = vmatpush.bf16.msra.mxu0 %v1316
      %1381 = vmatmul.bf16.gmra.mxu0 %v1326
      %v1382 = vpop.f32.mrf.mxu0
      %v1383 = vadd.f32 0.0, %v1382
      %v1384 = vpop.f32.mrf.mxu0
      %v1385 = vadd.f32 0.0, %v1384
      %1386 = vmatmul.bf16.gmra.mxu0 %v1329
      %v1387 = vpop.f32.mrf.mxu0
      %v1388 = vadd.f32 0.0, %v1387
      %v1389 = vpop.f32.mrf.mxu0
      %v1390 = vadd.f32 0.0, %v1389
      %1391 = vmatmul.bf16.gmra.mxu0 %v1332
      %v1392 = vpop.f32.mrf.mxu0
      %v1393 = vadd.f32 0.0, %v1392
      %v1394 = vpop.f32.mrf.mxu0
      %v1395 = vadd.f32 0.0, %v1394
      %1396 = vmatmul.bf16.gmra.mxu0 %v1335
      %v1397 = vpop.f32.mrf.mxu0
      %v1398 = vadd.f32 0.0, %v1397
      %v1399 = vpop.f32.mrf.mxu0
      %v1400 = vadd.f32 0.0, %v1399
      %1401 = vmatmul.bf16.gmra.mxu0 %v1338
      %v1402 = vpop.f32.mrf.mxu0
      %v1403 = vadd.f32 0.0, %v1402
      %v1404 = vpop.f32.mrf.mxu0
      %v1405 = vadd.f32 0.0, %v1404
      %1406 = vmatmul.bf16.gmra.mxu0 %v1341
      %v1407 = vpop.f32.mrf.mxu0
      %v1408 = vadd.f32 0.0, %v1407
      %v1409 = vpop.f32.mrf.mxu0
      %v1410 = vadd.f32 0.0, %v1409
      %1411 = vmatmul.bf16.gmra.mxu0 %v1344
      %v1412 = vpop.f32.mrf.mxu0
      %v1413 = vadd.f32 0.0, %v1412
      %v1414 = vpop.f32.mrf.mxu0
      %v1415 = vadd.f32 0.0, %v1414
      %1416 = vmatmul.bf16.gmra.mxu0 %v1347
      %v1417 = vpop.f32.mrf.mxu0
      %v1418 = vadd.f32 0.0, %v1417
      %v1419 = vpop.f32.mrf.mxu0
      %v1420 = vadd.f32 0.0, %v1419
      %1421 = vmatmul.bf16.gmra.mxu0 %v1350
      %v1422 = vpop.f32.mrf.mxu0
      %v1423 = vadd.f32 0.0, %v1422
      %v1424 = vpop.f32.mrf.mxu0
      %v1425 = vadd.f32 0.0, %v1424
      %1426 = vmatmul.bf16.gmra.mxu0 %v1353
      %v1427 = vpop.f32.mrf.mxu0
      %v1428 = vadd.f32 0.0, %v1427
      %v1429 = vpop.f32.mrf.mxu0
      %v1430 = vadd.f32 0.0, %v1429
      %1431 = vmatmul.bf16.gmra.mxu0 %v1356
      %v1432 = vpop.f32.mrf.mxu0
      %v1433 = vadd.f32 0.0, %v1432
      %v1434 = vpop.f32.mrf.mxu0
      %v1435 = vadd.f32 0.0, %v1434
      %1436 = vmatmul.bf16.gmra.mxu0 %v1359
      %v1437 = vpop.f32.mrf.mxu0
      %v1438 = vadd.f32 0.0, %v1437
      %v1439 = vpop.f32.mrf.mxu0
      %v1440 = vadd.f32 0.0, %v1439
      %1441 = vmatmul.bf16.gmra.mxu0 %v1362
      %v1442 = vpop.f32.mrf.mxu0
      %v1443 = vadd.f32 0.0, %v1442
      %v1444 = vpop.f32.mrf.mxu0
      %v1445 = vadd.f32 0.0, %v1444
      %1446 = vmatmul.bf16.gmra.mxu0 %v1365
      %v1447 = vpop.f32.mrf.mxu0
      %v1448 = vadd.f32 0.0, %v1447
      %v1449 = vpop.f32.mrf.mxu0
      %v1450 = vadd.f32 0.0, %v1449
      %1451 = vmatmul.bf16.gmra.mxu0 %v1368
      %v1452 = vpop.f32.mrf.mxu0
      %v1453 = vadd.f32 0.0, %v1452
      %v1454 = vpop.f32.mrf.mxu0
      %v1455 = vadd.f32 0.0, %v1454
      %1456 = vmatmul.bf16.gmra.mxu0 %v1371
      %v1457 = vpop.f32.mrf.mxu0
      %v1458 = vadd.f32 0.0, %v1457
      %v1459 = vpop.f32.mrf.mxu0
      %v1460 = vadd.f32 0.0, %v1459
      %1461 = vdwg.mxu0
      %v1470 = vunpack.c.l.b16 %v947
      %v1471 = vunpack.c.l.b16 %v948
      %v1472 = vunpack.c.l.b16 %v949
      %v1473 = vunpack.c.l.b16 %v950
      %v1474 = vunpack.c.l.b16 %v951
      %v1475 = vunpack.c.l.b16 %v952
      %v1476 = vunpack.c.l.b16 %v953
      %v1477 = vunpack.c.l.b16 %v954
      %v1478 = vpack.c.b16 %v1471, %v1470
      %v1479 = vpack.c.b16 %v1473, %v1472
      %v1480 = vpack.c.b16 %v1475, %v1474
      %v1481 = vpack.c.b16 %v1477, %v1476
      %v1487 = vsel %vm1324, %v931, 0
      %v1490 = vsel %vm1324, %v932, 0
      %v1493 = vsel %vm1324, %v933, 0
      %v1496 = vsel %vm1324, %v934, 0
      %v1499 = vsel %vm1324, %v935, 0
      %v1502 = vsel %vm1324, %v936, 0
      %v1505 = vsel %vm1324, %v937, 0
      %v1508 = vsel %vm1324, %v938, 0
      %v1511 = vsel %vm1324, %v939, 0
      %v1514 = vsel %vm1324, %v940, 0
      %v1517 = vsel %vm1324, %v941, 0
      %v1520 = vsel %vm1324, %v942, 0
      %v1523 = vsel %vm1324, %v943, 0
      %v1526 = vsel %vm1324, %v944, 0
      %v1529 = vsel %vm1324, %v945, 0
      %v1532 = vsel %vm1324, %v946, 0
      %1534 = vmatpush.bf16.msra.mxu0 0
      %1535 = vmatpush.bf16.msra.mxu0 0
      %1536 = vmatpush.bf16.msra.mxu0 0
      %1537 = vmatpush.bf16.msra.mxu0 0
      %1538 = vmatpush.bf16.msra.mxu0 %v1481
      %1539 = vmatpush.bf16.msra.mxu0 %v1480
      %1540 = vmatpush.bf16.msra.mxu0 %v1479
      %1541 = vmatpush.bf16.msra.mxu0 %v1478
      %1542 = vmatmul.bf16.gmra.mxu0 %v1487
      %v1543 = vpop.f32.mrf.mxu0
      %v1544 = vadd.f32 %v1383, %v1543
      %v1545 = vpop.f32.mrf.mxu0
      %v1546 = vadd.f32 %v1385, %v1545
      %1547 = vmatmul.bf16.gmra.mxu0 %v1490
      %v1548 = vpop.f32.mrf.mxu0
      %v1549 = vadd.f32 %v1388, %v1548
      %v1550 = vpop.f32.mrf.mxu0
      %v1551 = vadd.f32 %v1390, %v1550
      %1552 = vmatmul.bf16.gmra.mxu0 %v1493
      %v1553 = vpop.f32.mrf.mxu0
      %v1554 = vadd.f32 %v1393, %v1553
      %v1555 = vpop.f32.mrf.mxu0
      %v1556 = vadd.f32 %v1395, %v1555
      %1557 = vmatmul.bf16.gmra.mxu0 %v1496
      %v1558 = vpop.f32.mrf.mxu0
      %v1559 = vadd.f32 %v1398, %v1558
      %v1560 = vpop.f32.mrf.mxu0
      %v1561 = vadd.f32 %v1400, %v1560
      %1562 = vmatmul.bf16.gmra.mxu0 %v1499
      %v1563 = vpop.f32.mrf.mxu0
      %v1564 = vadd.f32 %v1403, %v1563
      %v1565 = vpop.f32.mrf.mxu0
      %v1566 = vadd.f32 %v1405, %v1565
      %1567 = vmatmul.bf16.gmra.mxu0 %v1502
      %v1568 = vpop.f32.mrf.mxu0
      %v1569 = vadd.f32 %v1408, %v1568
      %v1570 = vpop.f32.mrf.mxu0
      %v1571 = vadd.f32 %v1410, %v1570
      %1572 = vmatmul.bf16.gmra.mxu0 %v1505
      %v1573 = vpop.f32.mrf.mxu0
      %v1574 = vadd.f32 %v1413, %v1573
      %v1575 = vpop.f32.mrf.mxu0
      %v1576 = vadd.f32 %v1415, %v1575
      %1577 = vmatmul.bf16.gmra.mxu0 %v1508
      %v1578 = vpop.f32.mrf.mxu0
      %v1579 = vadd.f32 %v1418, %v1578
      %v1580 = vpop.f32.mrf.mxu0
      %v1581 = vadd.f32 %v1420, %v1580
      %1582 = vmatmul.bf16.gmra.mxu0 %v1511
      %v1583 = vpop.f32.mrf.mxu0
      %v1584 = vadd.f32 %v1423, %v1583
      %v1585 = vpop.f32.mrf.mxu0
      %v1586 = vadd.f32 %v1425, %v1585
      %1587 = vmatmul.bf16.gmra.mxu0 %v1514
      %v1588 = vpop.f32.mrf.mxu0
      %v1589 = vadd.f32 %v1428, %v1588
      %v1590 = vpop.f32.mrf.mxu0
      %v1591 = vadd.f32 %v1430, %v1590
      %1592 = vmatmul.bf16.gmra.mxu0 %v1517
      %v1593 = vpop.f32.mrf.mxu0
      %v1594 = vadd.f32 %v1433, %v1593
      %v1595 = vpop.f32.mrf.mxu0
      %v1596 = vadd.f32 %v1435, %v1595
      %1597 = vmatmul.bf16.gmra.mxu0 %v1520
      %v1598 = vpop.f32.mrf.mxu0
      %v1599 = vadd.f32 %v1438, %v1598
      %v1600 = vpop.f32.mrf.mxu0
      %v1601 = vadd.f32 %v1440, %v1600
      %1602 = vmatmul.bf16.gmra.mxu0 %v1523
      %v1603 = vpop.f32.mrf.mxu0
      %v1604 = vadd.f32 %v1443, %v1603
      %v1605 = vpop.f32.mrf.mxu0
      %v1606 = vadd.f32 %v1445, %v1605
      %1607 = vmatmul.bf16.gmra.mxu0 %v1526
      %v1608 = vpop.f32.mrf.mxu0
      %v1609 = vadd.f32 %v1448, %v1608
      %v1610 = vpop.f32.mrf.mxu0
      %v1611 = vadd.f32 %v1450, %v1610
      %1612 = vmatmul.bf16.gmra.mxu0 %v1529
      %v1613 = vpop.f32.mrf.mxu0
      %v1614 = vadd.f32 %v1453, %v1613
      %v1615 = vpop.f32.mrf.mxu0
      %v1616 = vadd.f32 %v1455, %v1615
      %1617 = vmatmul.bf16.gmra.mxu0 %v1532
      %v1618 = vpop.f32.mrf.mxu0
      %v1619 = vadd.f32 %v1458, %v1618
      %v1620 = vpop.f32.mrf.mxu0
      %v1621 = vadd.f32 %v1460, %v1620
      %1622 = vdwg.mxu0
      %v1623 = vrot.slane %v288, 1
      %v1624 = vrot.slane %v289, 1
      %v1625 = vrot.slane %v290, 1
      %v1626 = vrot.slane %v291, 1
      %v1627 = vrot.slane %v292, 1
      %v1628 = vrot.slane %v293, 1
      %v1629 = vrot.slane %v294, 1
      %v1630 = vrot.slane %v295, 1
      %v1631 = vrot.slane %v296, 1
      %v1632 = vrot.slane %v297, 1
      %v1633 = vrot.slane %v298, 1
      %v1634 = vrot.slane %v299, 1
      %v1635 = vrot.slane %v300, 1
      %v1636 = vrot.slane %v301, 1
      %v1637 = vrot.slane %v302, 1
      %v1638 = vrot.slane %v303, 1
      %v1639 = vrot.slane %v304, 1
      %v1640 = vrot.slane %v305, 1
      %v1641 = vrot.slane %v306, 1
      %v1642 = vrot.slane %v307, 1
      %v1643 = vrot.slane %v308, 1
      %v1644 = vrot.slane %v309, 1
      %v1645 = vrot.slane %v310, 1
      %v1646 = vrot.slane %v311, 1
      %v1647 = vrot.slane %v312, 1
      %v1648 = vrot.slane %v313, 1
      %v1649 = vrot.slane %v314, 1
      %v1650 = vrot.slane %v315, 1
      %v1651 = vrot.slane %v316, 1
      %v1652 = vrot.slane %v317, 1
      %v1653 = vrot.slane %v318, 1
      %v1654 = vrot.slane %v319, 1
      %vm1655 = vcmp.lt.s32.totalorder %v417, 7
      %v1656 = vsel %vm1655, %v1653, %v1654
      %v1657 = vsel %vm1655, %v1652, %v1653
      %v1658 = vsel %vm1655, %v1651, %v1652
      %v1659 = vsel %vm1655, %v1650, %v1651
      %v1660 = vsel %vm1655, %v1649, %v1650
      %v1661 = vsel %vm1655, %v1648, %v1649
      %v1662 = vsel %vm1655, %v1647, %v1648
      %v1663 = vsel %vm1655, %v1646, %v1647
      %v1664 = vsel %vm1655, %v1645, %v1646
      %v1665 = vsel %vm1655, %v1644, %v1645
      %v1666 = vsel %vm1655, %v1643, %v1644
      %v1667 = vsel %vm1655, %v1642, %v1643
      %v1668 = vsel %vm1655, %v1641, %v1642
      %v1669 = vsel %vm1655, %v1640, %v1641
      %v1670 = vsel %vm1655, %v1639, %v1640
      %v1671 = vsel %vm1655, %v1638, %v1639
      %v1672 = vsel %vm1655, %v1637, %v1638
      %v1673 = vsel %vm1655, %v1636, %v1637
      %v1674 = vsel %vm1655, %v1635, %v1636
      %v1675 = vsel %vm1655, %v1634, %v1635
      %v1676 = vsel %vm1655, %v1633, %v1634
      %v1677 = vsel %vm1655, %v1632, %v1633
      %v1678 = vsel %vm1655, %v1631, %v1632
      %v1679 = vsel %vm1655, %v1630, %v1631
      %v1680 = vsel %vm1655, %v1629, %v1630
      %v1681 = vsel %vm1655, %v1628, %v1629
      %v1682 = vsel %vm1655, %v1627, %v1628
      %v1683 = vsel %vm1655, %v1626, %v1627
      %v1684 = vsel %vm1655, %v1625, %v1626
      %v1685 = vsel %vm1655, %v1624, %v1625
      %v1686 = vsel %vm1655, %v1623, %v1624
      %v1687 = vsel %vm1655, %v1654, %v1623
      %v1688 = vadd.s32 %v352, 1
      %v1689 = vadd.s32 %v353, 1
      %v1690 = vadd.s32 %v354, 1
      %v1691 = vadd.s32 %v355, 1
      %v1692 = vadd.s32 %v356, 1
      %v1693 = vadd.s32 %v357, 1
      %v1694 = vadd.s32 %v358, 1
      %v1695 = vadd.s32 %v359, 1
      %v1696 = vadd.s32 %v360, 1
      %v1697 = vadd.s32 %v361, 1
      %v1698 = vadd.s32 %v362, 1
      %v1699 = vadd.s32 %v363, 1
      %v1700 = vadd.s32 %v364, 1
      %v1701 = vadd.s32 %v365, 1
      %v1702 = vadd.s32 %v366, 1
      %v1703 = vadd.s32 %v367, 1
      %v1704 = vadd.s32 %v368, 1
      %v1705 = vadd.s32 %v369, 1
      %v1706 = vadd.s32 %v370, 1
      %v1707 = vadd.s32 %v371, 1
      %v1708 = vadd.s32 %v372, 1
      %v1709 = vadd.s32 %v373, 1
      %v1710 = vadd.s32 %v374, 1
      %v1711 = vadd.s32 %v375, 1
      %v1712 = vadd.s32 %v376, 1
      %v1713 = vadd.s32 %v377, 1
      %v1714 = vadd.s32 %v378, 1
      %v1715 = vadd.s32 %v379, 1
      %v1716 = vadd.s32 %v380, 1
      %v1717 = vadd.s32 %v381, 1
      %v1718 = vadd.s32 %v382, 1
      %v1719 = vadd.s32 %v383, 1
      %vm1720 = vcmp.ge.s32.totalorder %v1688, 0
      %vm1721 = vcmp.ge.s32.totalorder %v1689, 0
      %vm1722 = vcmp.ge.s32.totalorder %v1690, 0
      %vm1723 = vcmp.ge.s32.totalorder %v1691, 0
      %vm1724 = vcmp.ge.s32.totalorder %v1692, 0
      %vm1725 = vcmp.ge.s32.totalorder %v1693, 0
      %vm1726 = vcmp.ge.s32.totalorder %v1694, 0
      %vm1727 = vcmp.ge.s32.totalorder %v1695, 0
      %vm1728 = vcmp.ge.s32.totalorder %v1696, 0
      %vm1729 = vcmp.ge.s32.totalorder %v1697, 0
      %vm1730 = vcmp.ge.s32.totalorder %v1698, 0
      %vm1731 = vcmp.ge.s32.totalorder %v1699, 0
      %vm1732 = vcmp.ge.s32.totalorder %v1700, 0
      %vm1733 = vcmp.ge.s32.totalorder %v1701, 0
      %vm1734 = vcmp.ge.s32.totalorder %v1702, 0
      %vm1735 = vcmp.ge.s32.totalorder %v1703, 0
      %vm1736 = vcmp.ge.s32.totalorder %v1704, 0
      %vm1737 = vcmp.ge.s32.totalorder %v1705, 0
      %vm1738 = vcmp.ge.s32.totalorder %v1706, 0
      %vm1739 = vcmp.ge.s32.totalorder %v1707, 0
      %vm1740 = vcmp.ge.s32.totalorder %v1708, 0
      %vm1741 = vcmp.ge.s32.totalorder %v1709, 0
      %vm1742 = vcmp.ge.s32.totalorder %v1710, 0
      %vm1743 = vcmp.ge.s32.totalorder %v1711, 0
      %vm1744 = vcmp.ge.s32.totalorder %v1712, 0
      %vm1745 = vcmp.ge.s32.totalorder %v1713, 0
      %vm1746 = vcmp.ge.s32.totalorder %v1714, 0
      %vm1747 = vcmp.ge.s32.totalorder %v1715, 0
      %vm1748 = vcmp.ge.s32.totalorder %v1716, 0
      %vm1749 = vcmp.ge.s32.totalorder %v1717, 0
      %vm1750 = vcmp.ge.s32.totalorder %v1718, 0
      %vm1751 = vcmp.ge.s32.totalorder %v1719, 0
      %vm1752 = vmand %vm547, %vm1720
      %vm1753 = vmand %vm548, %vm1721
      %vm1754 = vmand %vm549, %vm1722
      %vm1755 = vmand %vm550, %vm1723
      %vm1756 = vmand %vm551, %vm1724
      %vm1757 = vmand %vm552, %vm1725
      %vm1758 = vmand %vm553, %vm1726
      %vm1759 = vmand %vm554, %vm1727
      %vm1760 = vmand %vm555, %vm1728
      %vm1761 = vmand %vm556, %vm1729
      %vm1762 = vmand %vm557, %vm1730
      %vm1763 = vmand %vm558, %vm1731
      %vm1764 = vmand %vm559, %vm1732
      %vm1765 = vmand %vm560, %vm1733
      %vm1766 = vmand %vm561, %vm1734
      %vm1767 = vmand %vm562, %vm1735
      %vm1768 = vmand %vm563, %vm1736
      %vm1769 = vmand %vm564, %vm1737
      %vm1770 = vmand %vm565, %vm1738
      %vm1771 = vmand %vm566, %vm1739
      %vm1772 = vmand %vm567, %vm1740
      %vm1773 = vmand %vm568, %vm1741
      %vm1774 = vmand %vm569, %vm1742
      %vm1775 = vmand %vm570, %vm1743
      %vm1776 = vmand %vm571, %vm1744
      %vm1777 = vmand %vm572, %vm1745
      %vm1778 = vmand %vm573, %vm1746
      %vm1779 = vmand %vm574, %vm1747
      %vm1780 = vmand %vm575, %vm1748
      %vm1781 = vmand %vm576, %vm1749
      %vm1782 = vmand %vm577, %vm1750
      %vm1783 = vmand %vm578, %vm1751
      %vm1784 = vcmp.lt.s32.totalorder %v1688, 16
      %vm1785 = vcmp.lt.s32.totalorder %v1689, 16
      %vm1786 = vcmp.lt.s32.totalorder %v1690, 16
      %vm1787 = vcmp.lt.s32.totalorder %v1691, 16
      %vm1788 = vcmp.lt.s32.totalorder %v1692, 16
      %vm1789 = vcmp.lt.s32.totalorder %v1693, 16
      %vm1790 = vcmp.lt.s32.totalorder %v1694, 16
      %vm1791 = vcmp.lt.s32.totalorder %v1695, 16
      %vm1792 = vcmp.lt.s32.totalorder %v1696, 16
      %vm1793 = vcmp.lt.s32.totalorder %v1697, 16
      %vm1794 = vcmp.lt.s32.totalorder %v1698, 16
      %vm1795 = vcmp.lt.s32.totalorder %v1699, 16
      %vm1796 = vcmp.lt.s32.totalorder %v1700, 16
      %vm1797 = vcmp.lt.s32.totalorder %v1701, 16
      %vm1798 = vcmp.lt.s32.totalorder %v1702, 16
      %vm1799 = vcmp.lt.s32.totalorder %v1703, 16
      %vm1800 = vcmp.lt.s32.totalorder %v1704, 16
      %vm1801 = vcmp.lt.s32.totalorder %v1705, 16
      %vm1802 = vcmp.lt.s32.totalorder %v1706, 16
      %vm1803 = vcmp.lt.s32.totalorder %v1707, 16
      %vm1804 = vcmp.lt.s32.totalorder %v1708, 16
      %vm1805 = vcmp.lt.s32.totalorder %v1709, 16
      %vm1806 = vcmp.lt.s32.totalorder %v1710, 16
      %vm1807 = vcmp.lt.s32.totalorder %v1711, 16
      %vm1808 = vcmp.lt.s32.totalorder %v1712, 16
      %vm1809 = vcmp.lt.s32.totalorder %v1713, 16
      %vm1810 = vcmp.lt.s32.totalorder %v1714, 16
      %vm1811 = vcmp.lt.s32.totalorder %v1715, 16
      %vm1812 = vcmp.lt.s32.totalorder %v1716, 16
      %vm1813 = vcmp.lt.s32.totalorder %v1717, 16
      %vm1814 = vcmp.lt.s32.totalorder %v1718, 16
      %vm1815 = vcmp.lt.s32.totalorder %v1719, 16
      %vm1816 = vmand %vm1752, %vm1784
      %vm1817 = vmand %vm1753, %vm1785
      %vm1818 = vmand %vm1754, %vm1786
      %vm1819 = vmand %vm1755, %vm1787
      %vm1820 = vmand %vm1756, %vm1788
      %vm1821 = vmand %vm1757, %vm1789
      %vm1822 = vmand %vm1758, %vm1790
      %vm1823 = vmand %vm1759, %vm1791
      %vm1824 = vmand %vm1760, %vm1792
      %vm1825 = vmand %vm1761, %vm1793
      %vm1826 = vmand %vm1762, %vm1794
      %vm1827 = vmand %vm1763, %vm1795
      %vm1828 = vmand %vm1764, %vm1796
      %vm1829 = vmand %vm1765, %vm1797
      %vm1830 = vmand %vm1766, %vm1798
      %vm1831 = vmand %vm1767, %vm1799
      %vm1832 = vmand %vm1768, %vm1800
      %vm1833 = vmand %vm1769, %vm1801
      %vm1834 = vmand %vm1770, %vm1802
      %vm1835 = vmand %vm1771, %vm1803
      %vm1836 = vmand %vm1772, %vm1804
      %vm1837 = vmand %vm1773, %vm1805
      %vm1838 = vmand %vm1774, %vm1806
      %vm1839 = vmand %vm1775, %vm1807
      %vm1840 = vmand %vm1776, %vm1808
      %vm1841 = vmand %vm1777, %vm1809
      %vm1842 = vmand %vm1778, %vm1810
      %vm1843 = vmand %vm1779, %vm1811
      %vm1844 = vmand %vm1780, %vm1812
      %vm1845 = vmand %vm1781, %vm1813
      %vm1846 = vmand %vm1782, %vm1814
      %vm1847 = vmand %vm1783, %vm1815
      %v1848 = vsel %vm1816, 1, 0
      %v1849 = vsel %vm1817, 1, 0
      %v1850 = vsel %vm1818, 1, 0
      %v1851 = vsel %vm1819, 1, 0
      %v1852 = vsel %vm1820, 1, 0
      %v1853 = vsel %vm1821, 1, 0
      %v1854 = vsel %vm1822, 1, 0
      %v1855 = vsel %vm1823, 1, 0
      %v1856 = vsel %vm1824, 1, 0
      %v1857 = vsel %vm1825, 1, 0
      %v1858 = vsel %vm1826, 1, 0
      %v1859 = vsel %vm1827, 1, 0
      %v1860 = vsel %vm1828, 1, 0
      %v1861 = vsel %vm1829, 1, 0
      %v1862 = vsel %vm1830, 1, 0
      %v1863 = vsel %vm1831, 1, 0
      %v1864 = vsel %vm1832, 1, 0
      %v1865 = vsel %vm1833, 1, 0
      %v1866 = vsel %vm1834, 1, 0
      %v1867 = vsel %vm1835, 1, 0
      %v1868 = vsel %vm1836, 1, 0
      %v1869 = vsel %vm1837, 1, 0
      %v1870 = vsel %vm1838, 1, 0
      %v1871 = vsel %vm1839, 1, 0
      %v1872 = vsel %vm1840, 1, 0
      %v1873 = vsel %vm1841, 1, 0
      %v1874 = vsel %vm1842, 1, 0
      %v1875 = vsel %vm1843, 1, 0
      %v1876 = vsel %vm1844, 1, 0
      %v1877 = vsel %vm1845, 1, 0
      %v1878 = vsel %vm1846, 1, 0
      %v1879 = vsel %vm1847, 1, 0
      %1880 = vset.pattern.permute.xlu0 0
      %1881 = vperm.xlu0 %1880, %v1848
      %v1882 = vpop.permute.xlu0 %1881
      %1883 = vset.pattern.permute.xlu0 0
      %1884 = vperm.xlu0 %1883, %v1849
      %v1885 = vpop.permute.xlu0 %1884
      %1886 = vset.pattern.permute.xlu0 0
      %1887 = vperm.xlu0 %1886, %v1850
      %v1888 = vpop.permute.xlu0 %1887
      %1889 = vset.pattern.permute.xlu0 0
      %1890 = vperm.xlu0 %1889, %v1851
      %v1891 = vpop.permute.xlu0 %1890
      %1892 = vset.pattern.permute.xlu0 0
      %1893 = vperm.xlu0 %1892, %v1852
      %v1894 = vpop.permute.xlu0 %1893
      %1895 = vset.pattern.permute.xlu0 0
      %1896 = vperm.xlu0 %1895, %v1853
      %v1897 = vpop.permute.xlu0 %1896
      %1898 = vset.pattern.permute.xlu0 0
      %1899 = vperm.xlu0 %1898, %v1854
      %v1900 = vpop.permute.xlu0 %1899
      %1901 = vset.pattern.permute.xlu0 0
      %1902 = vperm.xlu0 %1901, %v1855
      %v1903 = vpop.permute.xlu0 %1902
      %1904 = vset.pattern.permute.xlu0 0
      %1905 = vperm.xlu0 %1904, %v1856
      %v1906 = vpop.permute.xlu0 %1905
      %1907 = vset.pattern.permute.xlu0 0
      %1908 = vperm.xlu0 %1907, %v1857
      %v1909 = vpop.permute.xlu0 %1908
      %1910 = vset.pattern.permute.xlu0 0
      %1911 = vperm.xlu0 %1910, %v1858
      %v1912 = vpop.permute.xlu0 %1911
      %1913 = vset.pattern.permute.xlu0 0
      %1914 = vperm.xlu0 %1913, %v1859
      %v1915 = vpop.permute.xlu0 %1914
      %1916 = vset.pattern.permute.xlu0 0
      %1917 = vperm.xlu0 %1916, %v1860
      %v1918 = vpop.permute.xlu0 %1917
      %1919 = vset.pattern.permute.xlu0 0
      %1920 = vperm.xlu0 %1919, %v1861
      %v1921 = vpop.permute.xlu0 %1920
      %1922 = vset.pattern.permute.xlu0 0
      %1923 = vperm.xlu0 %1922, %v1862
      %v1924 = vpop.permute.xlu0 %1923
      %1925 = vset.pattern.permute.xlu0 0
      %1926 = vperm.xlu0 %1925, %v1863
      %v1927 = vpop.permute.xlu0 %1926
      %1928 = vset.pattern.permute.xlu0 0
      %1929 = vperm.xlu0 %1928, %v1864
      %v1930 = vpop.permute.xlu0 %1929
      %1931 = vset.pattern.permute.xlu0 0
      %1932 = vperm.xlu0 %1931, %v1865
      %v1933 = vpop.permute.xlu0 %1932
      %1934 = vset.pattern.permute.xlu0 0
      %1935 = vperm.xlu0 %1934, %v1866
      %v1936 = vpop.permute.xlu0 %1935
      %1937 = vset.pattern.permute.xlu0 0
      %1938 = vperm.xlu0 %1937, %v1867
      %v1939 = vpop.permute.xlu0 %1938
      %1940 = vset.pattern.permute.xlu0 0
      %1941 = vperm.xlu0 %1940, %v1868
      %v1942 = vpop.permute.xlu0 %1941
      %1943 = vset.pattern.permute.xlu0 0
      %1944 = vperm.xlu0 %1943, %v1869
      %v1945 = vpop.permute.xlu0 %1944
      %1946 = vset.pattern.permute.xlu0 0
      %1947 = vperm.xlu0 %1946, %v1870
      %v1948 = vpop.permute.xlu0 %1947
      %1949 = vset.pattern.permute.xlu0 0
      %1950 = vperm.xlu0 %1949, %v1871
      %v1951 = vpop.permute.xlu0 %1950
      %1952 = vset.pattern.permute.xlu0 0
      %1953 = vperm.xlu0 %1952, %v1872
      %v1954 = vpop.permute.xlu0 %1953
      %1955 = vset.pattern.permute.xlu0 0
      %1956 = vperm.xlu0 %1955, %v1873
      %v1957 = vpop.permute.xlu0 %1956
      %1958 = vset.pattern.permute.xlu0 0
      %1959 = vperm.xlu0 %1958, %v1874
      %v1960 = vpop.permute.xlu0 %1959
      %1961 = vset.pattern.permute.xlu0 0
      %1962 = vperm.xlu0 %1961, %v1875
      %v1963 = vpop.permute.xlu0 %1962
      %1964 = vset.pattern.permute.xlu0 0
      %1965 = vperm.xlu0 %1964, %v1876
      %v1966 = vpop.permute.xlu0 %1965
      %1967 = vset.pattern.permute.xlu0 0
      %1968 = vperm.xlu0 %1967, %v1877
      %v1969 = vpop.permute.xlu0 %1968
      %1970 = vset.pattern.permute.xlu0 0
      %1971 = vperm.xlu0 %1970, %v1878
      %v1972 = vpop.permute.xlu0 %1971
      %1973 = vset.pattern.permute.xlu0 0
      %1974 = vperm.xlu0 %1973, %v1879
      %v1975 = vpop.permute.xlu0 %1974
      %vm1976 = vcmp.eq.s32.totalorder %v1882, 1
      %vm1977 = vcmp.eq.s32.totalorder %v1885, 1
      %vm1978 = vcmp.eq.s32.totalorder %v1888, 1
      %vm1979 = vcmp.eq.s32.totalorder %v1891, 1
      %vm1980 = vcmp.eq.s32.totalorder %v1894, 1
      %vm1981 = vcmp.eq.s32.totalorder %v1897, 1
      %vm1982 = vcmp.eq.s32.totalorder %v1900, 1
      %vm1983 = vcmp.eq.s32.totalorder %v1903, 1
      %vm1984 = vcmp.eq.s32.totalorder %v1906, 1
      %vm1985 = vcmp.eq.s32.totalorder %v1909, 1
      %vm1986 = vcmp.eq.s32.totalorder %v1912, 1
      %vm1987 = vcmp.eq.s32.totalorder %v1915, 1
      %vm1988 = vcmp.eq.s32.totalorder %v1918, 1
      %vm1989 = vcmp.eq.s32.totalorder %v1921, 1
      %vm1990 = vcmp.eq.s32.totalorder %v1924, 1
      %vm1991 = vcmp.eq.s32.totalorder %v1927, 1
      %vm1992 = vcmp.eq.s32.totalorder %v1930, 1
      %vm1993 = vcmp.eq.s32.totalorder %v1933, 1
      %vm1994 = vcmp.eq.s32.totalorder %v1936, 1
      %vm1995 = vcmp.eq.s32.totalorder %v1939, 1
      %vm1996 = vcmp.eq.s32.totalorder %v1942, 1
      %vm1997 = vcmp.eq.s32.totalorder %v1945, 1
      %vm1998 = vcmp.eq.s32.totalorder %v1948, 1
      %vm1999 = vcmp.eq.s32.totalorder %v1951, 1
      %vm2000 = vcmp.eq.s32.totalorder %v1954, 1
      %vm2001 = vcmp.eq.s32.totalorder %v1957, 1
      %vm2002 = vcmp.eq.s32.totalorder %v1960, 1
      %vm2003 = vcmp.eq.s32.totalorder %v1963, 1
      %vm2004 = vcmp.eq.s32.totalorder %v1966, 1
      %vm2005 = vcmp.eq.s32.totalorder %v1969, 1
      %vm2006 = vcmp.eq.s32.totalorder %v1972, 1
      %vm2007 = vcmp.eq.s32.totalorder %v1975, 1
      %v2008 = vsel %vm1976, %v1656, 0.0
      %v2009 = vsel %vm1977, %v1687, 0.0
      %v2010 = vsel %vm1978, %v1686, 0.0
      %v2011 = vsel %vm1979, %v1685, 0.0
      %v2012 = vsel %vm1980, %v1684, 0.0
      %v2013 = vsel %vm1981, %v1683, 0.0
      %v2014 = vsel %vm1982, %v1682, 0.0
      %v2015 = vsel %vm1983, %v1681, 0.0
      %v2016 = vsel %vm1984, %v1680, 0.0
      %v2017 = vsel %vm1985, %v1679, 0.0
      %v2018 = vsel %vm1986, %v1678, 0.0
      %v2019 = vsel %vm1987, %v1677, 0.0
      %v2020 = vsel %vm1988, %v1676, 0.0
      %v2021 = vsel %vm1989, %v1675, 0.0
      %v2022 = vsel %vm1990, %v1674, 0.0
      %v2023 = vsel %vm1991, %v1673, 0.0
      %v2024 = vsel %vm1992, %v1672, 0.0
      %v2025 = vsel %vm1993, %v1671, 0.0
      %v2026 = vsel %vm1994, %v1670, 0.0
      %v2027 = vsel %vm1995, %v1669, 0.0
      %v2028 = vsel %vm1996, %v1668, 0.0
      %v2029 = vsel %vm1997, %v1667, 0.0
      %v2030 = vsel %vm1998, %v1666, 0.0
      %v2031 = vsel %vm1999, %v1665, 0.0
      %v2032 = vsel %vm2000, %v1664, 0.0
      %v2033 = vsel %vm2001, %v1663, 0.0
      %v2034 = vsel %vm2002, %v1662, 0.0
      %v2035 = vsel %vm2003, %v1661, 0.0
      %v2036 = vsel %vm2004, %v1660, 0.0
      %v2037 = vsel %vm2005, %v1659, 0.0
      %v2038 = vsel %vm2006, %v1658, 0.0
      %v2039 = vsel %vm2007, %v1657, 0.0
      %v2040 = vpack.c.bf16 %v2009, %v2008
      %v2041 = vpack.c.bf16 %v2011, %v2010
      %v2042 = vpack.c.bf16 %v2013, %v2012
      %v2043 = vpack.c.bf16 %v2015, %v2014
      %v2044 = vpack.c.bf16 %v2017, %v2016
      %v2045 = vpack.c.bf16 %v2019, %v2018
      %v2046 = vpack.c.bf16 %v2021, %v2020
      %v2047 = vpack.c.bf16 %v2023, %v2022
      %v2048 = vpack.c.bf16 %v2025, %v2024
      %v2049 = vpack.c.bf16 %v2027, %v2026
      %v2050 = vpack.c.bf16 %v2029, %v2028
      %v2051 = vpack.c.bf16 %v2031, %v2030
      %v2052 = vpack.c.bf16 %v2033, %v2032
      %v2053 = vpack.c.bf16 %v2035, %v2034
      %v2054 = vpack.c.bf16 %v2037, %v2036
      %v2055 = vpack.c.bf16 %v2039, %v2038
      %s2056 = scalar_lea.vmem %s1, 64
      %v2057 = vld [vmem:[%s2056] sm:$0xf]
      %v2058 = vld [vmem:[%s2056 + $0x4] sm:$0xf]
      %v2059 = vld [vmem:[%s2056 + $0x8] sm:$0xf]
      %v2060 = vld [vmem:[%s2056 + $0xc] sm:$0xf]
      %v2061 = vld [vmem:[%s2056 + $0x10] sm:$0xf]
      %v2062 = vld [vmem:[%s2056 + $0x14] sm:$0xf]
      %v2063 = vld [vmem:[%s2056 + $0x18] sm:$0xf]
      %v2064 = vld [vmem:[%s2056 + $0x1c] sm:$0xf]
      %v2073 = vunpack.c.l.b16 %v2057
      %v2074 = vunpack.c.l.b16 %v2058
      %v2075 = vunpack.c.l.b16 %v2059
      %v2076 = vunpack.c.l.b16 %v2060
      %v2077 = vunpack.c.l.b16 %v2061
      %v2078 = vunpack.c.l.b16 %v2062
      %v2079 = vunpack.c.l.b16 %v2063
      %v2080 = vunpack.c.l.b16 %v2064
      %v2081 = vpack.c.b16 %v2074, %v2073
      %v2082 = vpack.c.b16 %v2076, %v2075
      %v2083 = vpack.c.b16 %v2078, %v2077
      %v2084 = vpack.c.b16 %v2080, %v2079
      %v2090 = vsel %vm1324, %v2040, 0
      %v2093 = vsel %vm1324, %v2041, 0
      %v2096 = vsel %vm1324, %v2042, 0
      %v2099 = vsel %vm1324, %v2043, 0
      %v2102 = vsel %vm1324, %v2044, 0
      %v2105 = vsel %vm1324, %v2045, 0
      %v2108 = vsel %vm1324, %v2046, 0
      %v2111 = vsel %vm1324, %v2047, 0
      %v2114 = vsel %vm1324, %v2048, 0
      %v2117 = vsel %vm1324, %v2049, 0
      %v2120 = vsel %vm1324, %v2050, 0
      %v2123 = vsel %vm1324, %v2051, 0
      %v2126 = vsel %vm1324, %v2052, 0
      %v2129 = vsel %vm1324, %v2053, 0
      %v2132 = vsel %vm1324, %v2054, 0
      %v2135 = vsel %vm1324, %v2055, 0
      %2137 = vmatpush.bf16.msra.mxu0 0
      %2138 = vmatpush.bf16.msra.mxu0 0
      %2139 = vmatpush.bf16.msra.mxu0 0
      %2140 = vmatpush.bf16.msra.mxu0 0
      %2141 = vmatpush.bf16.msra.mxu0 %v2084
      %2142 = vmatpush.bf16.msra.mxu0 %v2083
      %2143 = vmatpush.bf16.msra.mxu0 %v2082
      %2144 = vmatpush.bf16.msra.mxu0 %v2081
      %2145 = vmatmul.bf16.gmra.mxu0 %v2090
      %v2146 = vpop.f32.mrf.mxu0
      %v2147 = vadd.f32 0.0, %v2146
      %v2148 = vpop.f32.mrf.mxu0
      %v2149 = vadd.f32 0.0, %v2148
      %2150 = vmatmul.bf16.gmra.mxu0 %v2093
      %v2151 = vpop.f32.mrf.mxu0
      %v2152 = vadd.f32 0.0, %v2151
      %v2153 = vpop.f32.mrf.mxu0
      %v2154 = vadd.f32 0.0, %v2153
      %2155 = vmatmul.bf16.gmra.mxu0 %v2096
      %v2156 = vpop.f32.mrf.mxu0
      %v2157 = vadd.f32 0.0, %v2156
      %v2158 = vpop.f32.mrf.mxu0
      %v2159 = vadd.f32 0.0, %v2158
      %2160 = vmatmul.bf16.gmra.mxu0 %v2099
      %v2161 = vpop.f32.mrf.mxu0
      %v2162 = vadd.f32 0.0, %v2161
      %v2163 = vpop.f32.mrf.mxu0
      %v2164 = vadd.f32 0.0, %v2163
      %2165 = vmatmul.bf16.gmra.mxu0 %v2102
      %v2166 = vpop.f32.mrf.mxu0
      %v2167 = vadd.f32 0.0, %v2166
      %v2168 = vpop.f32.mrf.mxu0
      %v2169 = vadd.f32 0.0, %v2168
      %2170 = vmatmul.bf16.gmra.mxu0 %v2105
      %v2171 = vpop.f32.mrf.mxu0
      %v2172 = vadd.f32 0.0, %v2171
      %v2173 = vpop.f32.mrf.mxu0
      %v2174 = vadd.f32 0.0, %v2173
      %2175 = vmatmul.bf16.gmra.mxu0 %v2108
      %v2176 = vpop.f32.mrf.mxu0
      %v2177 = vadd.f32 0.0, %v2176
      %v2178 = vpop.f32.mrf.mxu0
      %v2179 = vadd.f32 0.0, %v2178
      %2180 = vmatmul.bf16.gmra.mxu0 %v2111
      %v2181 = vpop.f32.mrf.mxu0
      %v2182 = vadd.f32 0.0, %v2181
      %v2183 = vpop.f32.mrf.mxu0
      %v2184 = vadd.f32 0.0, %v2183
      %2185 = vmatmul.bf16.gmra.mxu0 %v2114
      %v2186 = vpop.f32.mrf.mxu0
      %v2187 = vadd.f32 0.0, %v2186
      %v2188 = vpop.f32.mrf.mxu0
      %v2189 = vadd.f32 0.0, %v2188
      %2190 = vmatmul.bf16.gmra.mxu0 %v2117
      %v2191 = vpop.f32.mrf.mxu0
      %v2192 = vadd.f32 0.0, %v2191
      %v2193 = vpop.f32.mrf.mxu0
      %v2194 = vadd.f32 0.0, %v2193
      %2195 = vmatmul.bf16.gmra.mxu0 %v2120
      %v2196 = vpop.f32.mrf.mxu0
      %v2197 = vadd.f32 0.0, %v2196
      %v2198 = vpop.f32.mrf.mxu0
      %v2199 = vadd.f32 0.0, %v2198
      %2200 = vmatmul.bf16.gmra.mxu0 %v2123
      %v2201 = vpop.f32.mrf.mxu0
      %v2202 = vadd.f32 0.0, %v2201
      %v2203 = vpop.f32.mrf.mxu0
      %v2204 = vadd.f32 0.0, %v2203
      %2205 = vmatmul.bf16.gmra.mxu0 %v2126
      %v2206 = vpop.f32.mrf.mxu0
      %v2207 = vadd.f32 0.0, %v2206
      %v2208 = vpop.f32.mrf.mxu0
      %v2209 = vadd.f32 0.0, %v2208
      %2210 = vmatmul.bf16.gmra.mxu0 %v2129
      %v2211 = vpop.f32.mrf.mxu0
      %v2212 = vadd.f32 0.0, %v2211
      %v2213 = vpop.f32.mrf.mxu0
      %v2214 = vadd.f32 0.0, %v2213
      %2215 = vmatmul.bf16.gmra.mxu0 %v2132
      %v2216 = vpop.f32.mrf.mxu0
      %v2217 = vadd.f32 0.0, %v2216
      %v2218 = vpop.f32.mrf.mxu0
      %v2219 = vadd.f32 0.0, %v2218
      %2220 = vmatmul.bf16.gmra.mxu0 %v2135
      %v2221 = vpop.f32.mrf.mxu0
      %v2222 = vadd.f32 0.0, %v2221
      %v2223 = vpop.f32.mrf.mxu0
      %v2224 = vadd.f32 0.0, %v2223
      %2225 = vdwg.mxu0
      %v2226 = vadd.f32 %v1544, %v2147
      %v2227 = vadd.f32 %v1546, %v2149
      %v2228 = vadd.f32 %v1549, %v2152
      %v2229 = vadd.f32 %v1551, %v2154
      %v2230 = vadd.f32 %v1554, %v2157
      %v2231 = vadd.f32 %v1556, %v2159
      %v2232 = vadd.f32 %v1559, %v2162
      %v2233 = vadd.f32 %v1561, %v2164
      %v2234 = vadd.f32 %v1564, %v2167
      %v2235 = vadd.f32 %v1566, %v2169
      %v2236 = vadd.f32 %v1569, %v2172
      %v2237 = vadd.f32 %v1571, %v2174
      %v2238 = vadd.f32 %v1574, %v2177
      %v2239 = vadd.f32 %v1576, %v2179
      %v2240 = vadd.f32 %v1579, %v2182
      %v2241 = vadd.f32 %v1581, %v2184
      %v2242 = vadd.f32 %v1584, %v2187
      %v2243 = vadd.f32 %v1586, %v2189
      %v2244 = vadd.f32 %v1589, %v2192
      %v2245 = vadd.f32 %v1591, %v2194
      %v2246 = vadd.f32 %v1594, %v2197
      %v2247 = vadd.f32 %v1596, %v2199
      %v2248 = vadd.f32 %v1599, %v2202
      %v2249 = vadd.f32 %v1601, %v2204
      %v2250 = vadd.f32 %v1604, %v2207
      %v2251 = vadd.f32 %v1606, %v2209
      %v2252 = vadd.f32 %v1609, %v2212
      %v2253 = vadd.f32 %v1611, %v2214
      %v2254 = vadd.f32 %v1614, %v2217
      %v2255 = vadd.f32 %v1616, %v2219
      %v2256 = vadd.f32 %v1619, %v2222
      %v2257 = vadd.f32 %v1621, %v2224
      %vm2258 = vcmp.ge.s32.totalorder %v320, 0
      %vm2259 = vcmp.ge.s32.totalorder %v321, 0
      %vm2260 = vcmp.ge.s32.totalorder %v322, 0
      %vm2261 = vcmp.ge.s32.totalorder %v323, 0
      %vm2262 = vcmp.ge.s32.totalorder %v324, 0
      %vm2263 = vcmp.ge.s32.totalorder %v325, 0
      %vm2264 = vcmp.ge.s32.totalorder %v326, 0
      %vm2265 = vcmp.ge.s32.totalorder %v327, 0
      %vm2266 = vcmp.ge.s32.totalorder %v328, 0
      %vm2267 = vcmp.ge.s32.totalorder %v329, 0
      %vm2268 = vcmp.ge.s32.totalorder %v330, 0
      %vm2269 = vcmp.ge.s32.totalorder %v331, 0
      %vm2270 = vcmp.ge.s32.totalorder %v332, 0
      %vm2271 = vcmp.ge.s32.totalorder %v333, 0
      %vm2272 = vcmp.ge.s32.totalorder %v334, 0
      %vm2273 = vcmp.ge.s32.totalorder %v335, 0
      %vm2274 = vcmp.ge.s32.totalorder %v336, 0
      %vm2275 = vcmp.ge.s32.totalorder %v337, 0
      %vm2276 = vcmp.ge.s32.totalorder %v338, 0
      %vm2277 = vcmp.ge.s32.totalorder %v339, 0
      %vm2278 = vcmp.ge.s32.totalorder %v340, 0
      %vm2279 = vcmp.ge.s32.totalorder %v341, 0
      %vm2280 = vcmp.ge.s32.totalorder %v342, 0
      %vm2281 = vcmp.ge.s32.totalorder %v343, 0
      %vm2282 = vcmp.ge.s32.totalorder %v344, 0
      %vm2283 = vcmp.ge.s32.totalorder %v345, 0
      %vm2284 = vcmp.ge.s32.totalorder %v346, 0
      %vm2285 = vcmp.ge.s32.totalorder %v347, 0
      %vm2286 = vcmp.ge.s32.totalorder %v348, 0
      %vm2287 = vcmp.ge.s32.totalorder %v349, 0
      %vm2288 = vcmp.ge.s32.totalorder %v350, 0
      %vm2289 = vcmp.ge.s32.totalorder %v351, 0
      %vm2290 = vcmp.lt.s32.totalorder %v320, 16
      %vm2291 = vcmp.lt.s32.totalorder %v321, 16
      %vm2292 = vcmp.lt.s32.totalorder %v322, 16
      %vm2293 = vcmp.lt.s32.totalorder %v323, 16
      %vm2294 = vcmp.lt.s32.totalorder %v324, 16
      %vm2295 = vcmp.lt.s32.totalorder %v325, 16
      %vm2296 = vcmp.lt.s32.totalorder %v326, 16
      %vm2297 = vcmp.lt.s32.totalorder %v327, 16
      %vm2298 = vcmp.lt.s32.totalorder %v328, 16
      %vm2299 = vcmp.lt.s32.totalorder %v329, 16
      %vm2300 = vcmp.lt.s32.totalorder %v330, 16
      %vm2301 = vcmp.lt.s32.totalorder %v331, 16
      %vm2302 = vcmp.lt.s32.totalorder %v332, 16
      %vm2303 = vcmp.lt.s32.totalorder %v333, 16
      %vm2304 = vcmp.lt.s32.totalorder %v334, 16
      %vm2305 = vcmp.lt.s32.totalorder %v335, 16
      %vm2306 = vcmp.lt.s32.totalorder %v336, 16
      %vm2307 = vcmp.lt.s32.totalorder %v337, 16
      %vm2308 = vcmp.lt.s32.totalorder %v338, 16
      %vm2309 = vcmp.lt.s32.totalorder %v339, 16
      %vm2310 = vcmp.lt.s32.totalorder %v340, 16
      %vm2311 = vcmp.lt.s32.totalorder %v341, 16
      %vm2312 = vcmp.lt.s32.totalorder %v342, 16
      %vm2313 = vcmp.lt.s32.totalorder %v343, 16
      %vm2314 = vcmp.lt.s32.totalorder %v344, 16
      %vm2315 = vcmp.lt.s32.totalorder %v345, 16
      %vm2316 = vcmp.lt.s32.totalorder %v346, 16
      %vm2317 = vcmp.lt.s32.totalorder %v347, 16
      %vm2318 = vcmp.lt.s32.totalorder %v348, 16
      %vm2319 = vcmp.lt.s32.totalorder %v349, 16
      %vm2320 = vcmp.lt.s32.totalorder %v350, 16
      %vm2321 = vcmp.lt.s32.totalorder %v351, 16
      %vm2322 = vmand %vm2258, %vm2290
      %vm2323 = vmand %vm2259, %vm2291
      %vm2324 = vmand %vm2260, %vm2292
      %vm2325 = vmand %vm2261, %vm2293
      %vm2326 = vmand %vm2262, %vm2294
      %vm2327 = vmand %vm2263, %vm2295
      %vm2328 = vmand %vm2264, %vm2296
      %vm2329 = vmand %vm2265, %vm2297
      %vm2330 = vmand %vm2266, %vm2298
      %vm2331 = vmand %vm2267, %vm2299
      %vm2332 = vmand %vm2268, %vm2300
      %vm2333 = vmand %vm2269, %vm2301
      %vm2334 = vmand %vm2270, %vm2302
      %vm2335 = vmand %vm2271, %vm2303
      %vm2336 = vmand %vm2272, %vm2304
      %vm2337 = vmand %vm2273, %vm2305
      %vm2338 = vmand %vm2274, %vm2306
      %vm2339 = vmand %vm2275, %vm2307
      %vm2340 = vmand %vm2276, %vm2308
      %vm2341 = vmand %vm2277, %vm2309
      %vm2342 = vmand %vm2278, %vm2310
      %vm2343 = vmand %vm2279, %vm2311
      %vm2344 = vmand %vm2280, %vm2312
      %vm2345 = vmand %vm2281, %vm2313
      %vm2346 = vmand %vm2282, %vm2314
      %vm2347 = vmand %vm2283, %vm2315
      %vm2348 = vmand %vm2284, %vm2316
      %vm2349 = vmand %vm2285, %vm2317
      %vm2350 = vmand %vm2286, %vm2318
      %vm2351 = vmand %vm2287, %vm2319
      %vm2352 = vmand %vm2288, %vm2320
      %vm2353 = vmand %vm2289, %vm2321
      %vm2354 = vmand %vm2322, %vm611
      %vm2355 = vmand %vm2323, %vm612
      %vm2356 = vmand %vm2324, %vm613
      %vm2357 = vmand %vm2325, %vm614
      %vm2358 = vmand %vm2326, %vm615
      %vm2359 = vmand %vm2327, %vm616
      %vm2360 = vmand %vm2328, %vm617
      %vm2361 = vmand %vm2329, %vm618
      %vm2362 = vmand %vm2330, %vm619
      %vm2363 = vmand %vm2331, %vm620
      %vm2364 = vmand %vm2332, %vm621
      %vm2365 = vmand %vm2333, %vm622
      %vm2366 = vmand %vm2334, %vm623
      %vm2367 = vmand %vm2335, %vm624
      %vm2368 = vmand %vm2336, %vm625
      %vm2369 = vmand %vm2337, %vm626
      %vm2370 = vmand %vm2338, %vm627
      %vm2371 = vmand %vm2339, %vm628
      %vm2372 = vmand %vm2340, %vm629
      %vm2373 = vmand %vm2341, %vm630
      %vm2374 = vmand %vm2342, %vm631
      %vm2375 = vmand %vm2343, %vm632
      %vm2376 = vmand %vm2344, %vm633
      %vm2377 = vmand %vm2345, %vm634
      %vm2378 = vmand %vm2346, %vm635
      %vm2379 = vmand %vm2347, %vm636
      %vm2380 = vmand %vm2348, %vm637
      %vm2381 = vmand %vm2349, %vm638
      %vm2382 = vmand %vm2350, %vm639
      %vm2383 = vmand %vm2351, %vm640
      %vm2384 = vmand %vm2352, %vm641
      %vm2385 = vmand %vm2353, %vm642
      %vm2386 = vmand %vm2354, %vm675
      %vm2387 = vmand %vm2355, %vm676
      %vm2388 = vmand %vm2356, %vm677
      %vm2389 = vmand %vm2357, %vm678
      %vm2390 = vmand %vm2358, %vm679
      %vm2391 = vmand %vm2359, %vm680
      %vm2392 = vmand %vm2360, %vm681
      %vm2393 = vmand %vm2361, %vm682
      %vm2394 = vmand %vm2362, %vm683
      %vm2395 = vmand %vm2363, %vm684
      %vm2396 = vmand %vm2364, %vm685
      %vm2397 = vmand %vm2365, %vm686
      %vm2398 = vmand %vm2366, %vm687
      %vm2399 = vmand %vm2367, %vm688
      %vm2400 = vmand %vm2368, %vm689
      %vm2401 = vmand %vm2369, %vm690
      %vm2402 = vmand %vm2370, %vm691
      %vm2403 = vmand %vm2371, %vm692
      %vm2404 = vmand %vm2372, %vm693
      %vm2405 = vmand %vm2373, %vm694
      %vm2406 = vmand %vm2374, %vm695
      %vm2407 = vmand %vm2375, %vm696
      %vm2408 = vmand %vm2376, %vm697
      %vm2409 = vmand %vm2377, %vm698
      %vm2410 = vmand %vm2378, %vm699
      %vm2411 = vmand %vm2379, %vm700
      %vm2412 = vmand %vm2380, %vm701
      %vm2413 = vmand %vm2381, %vm702
      %vm2414 = vmand %vm2382, %vm703
      %vm2415 = vmand %vm2383, %vm704
      %vm2416 = vmand %vm2384, %vm705
      %vm2417 = vmand %vm2385, %vm706
      %v2418 = vsel %vm2386, 1, 0
      %v2419 = vsel %vm2387, 1, 0
      %v2420 = vsel %vm2388, 1, 0
      %v2421 = vsel %vm2389, 1, 0
      %v2422 = vsel %vm2390, 1, 0
      %v2423 = vsel %vm2391, 1, 0
      %v2424 = vsel %vm2392, 1, 0
      %v2425 = vsel %vm2393, 1, 0
      %v2426 = vsel %vm2394, 1, 0
      %v2427 = vsel %vm2395, 1, 0
      %v2428 = vsel %vm2396, 1, 0
      %v2429 = vsel %vm2397, 1, 0
      %v2430 = vsel %vm2398, 1, 0
      %v2431 = vsel %vm2399, 1, 0
      %v2432 = vsel %vm2400, 1, 0
      %v2433 = vsel %vm2401, 1, 0
      %v2434 = vsel %vm2402, 1, 0
      %v2435 = vsel %vm2403, 1, 0
      %v2436 = vsel %vm2404, 1, 0
      %v2437 = vsel %vm2405, 1, 0
      %v2438 = vsel %vm2406, 1, 0
      %v2439 = vsel %vm2407, 1, 0
      %v2440 = vsel %vm2408, 1, 0
      %v2441 = vsel %vm2409, 1, 0
      %v2442 = vsel %vm2410, 1, 0
      %v2443 = vsel %vm2411, 1, 0
      %v2444 = vsel %vm2412, 1, 0
      %v2445 = vsel %vm2413, 1, 0
      %v2446 = vsel %vm2414, 1, 0
      %v2447 = vsel %vm2415, 1, 0
      %v2448 = vsel %vm2416, 1, 0
      %v2449 = vsel %vm2417, 1, 0
      %2450 = vset.pattern.permute.xlu0 0
      %2451 = vperm.xlu0 %2450, %v2418
      %v2452 = vpop.permute.xlu0 %2451
      %2453 = vset.pattern.permute.xlu0 0
      %2454 = vperm.xlu0 %2453, %v2419
      %v2455 = vpop.permute.xlu0 %2454
      %2456 = vset.pattern.permute.xlu0 0
      %2457 = vperm.xlu0 %2456, %v2420
      %v2458 = vpop.permute.xlu0 %2457
      %2459 = vset.pattern.permute.xlu0 0
      %2460 = vperm.xlu0 %2459, %v2421
      %v2461 = vpop.permute.xlu0 %2460
      %2462 = vset.pattern.permute.xlu0 0
      %2463 = vperm.xlu0 %2462, %v2422
      %v2464 = vpop.permute.xlu0 %2463
      %2465 = vset.pattern.permute.xlu0 0
      %2466 = vperm.xlu0 %2465, %v2423
      %v2467 = vpop.permute.xlu0 %2466
      %2468 = vset.pattern.permute.xlu0 0
      %2469 = vperm.xlu0 %2468, %v2424
      %v2470 = vpop.permute.xlu0 %2469
      %2471 = vset.pattern.permute.xlu0 0
      %2472 = vperm.xlu0 %2471, %v2425
      %v2473 = vpop.permute.xlu0 %2472
      %2474 = vset.pattern.permute.xlu0 0
      %2475 = vperm.xlu0 %2474, %v2426
      %v2476 = vpop.permute.xlu0 %2475
      %2477 = vset.pattern.permute.xlu0 0
      %2478 = vperm.xlu0 %2477, %v2427
      %v2479 = vpop.permute.xlu0 %2478
      %2480 = vset.pattern.permute.xlu0 0
      %2481 = vperm.xlu0 %2480, %v2428
      %v2482 = vpop.permute.xlu0 %2481
      %2483 = vset.pattern.permute.xlu0 0
      %2484 = vperm.xlu0 %2483, %v2429
      %v2485 = vpop.permute.xlu0 %2484
      %2486 = vset.pattern.permute.xlu0 0
      %2487 = vperm.xlu0 %2486, %v2430
      %v2488 = vpop.permute.xlu0 %2487
      %2489 = vset.pattern.permute.xlu0 0
      %2490 = vperm.xlu0 %2489, %v2431
      %v2491 = vpop.permute.xlu0 %2490
      %2492 = vset.pattern.permute.xlu0 0
      %2493 = vperm.xlu0 %2492, %v2432
      %v2494 = vpop.permute.xlu0 %2493
      %2495 = vset.pattern.permute.xlu0 0
      %2496 = vperm.xlu0 %2495, %v2433
      %v2497 = vpop.permute.xlu0 %2496
      %2498 = vset.pattern.permute.xlu0 0
      %2499 = vperm.xlu0 %2498, %v2434
      %v2500 = vpop.permute.xlu0 %2499
      %2501 = vset.pattern.permute.xlu0 0
      %2502 = vperm.xlu0 %2501, %v2435
      %v2503 = vpop.permute.xlu0 %2502
      %2504 = vset.pattern.permute.xlu0 0
      %2505 = vperm.xlu0 %2504, %v2436
      %v2506 = vpop.permute.xlu0 %2505
      %2507 = vset.pattern.permute.xlu0 0
      %2508 = vperm.xlu0 %2507, %v2437
      %v2509 = vpop.permute.xlu0 %2508
      %2510 = vset.pattern.permute.xlu0 0
      %2511 = vperm.xlu0 %2510, %v2438
      %v2512 = vpop.permute.xlu0 %2511
      %2513 = vset.pattern.permute.xlu0 0
      %2514 = vperm.xlu0 %2513, %v2439
      %v2515 = vpop.permute.xlu0 %2514
      %2516 = vset.pattern.permute.xlu0 0
      %2517 = vperm.xlu0 %2516, %v2440
      %v2518 = vpop.permute.xlu0 %2517
      %2519 = vset.pattern.permute.xlu0 0
      %2520 = vperm.xlu0 %2519, %v2441
      %v2521 = vpop.permute.xlu0 %2520
      %2522 = vset.pattern.permute.xlu0 0
      %2523 = vperm.xlu0 %2522, %v2442
      %v2524 = vpop.permute.xlu0 %2523
      %2525 = vset.pattern.permute.xlu0 0
      %2526 = vperm.xlu0 %2525, %v2443
      %v2527 = vpop.permute.xlu0 %2526
      %2528 = vset.pattern.permute.xlu0 0
      %2529 = vperm.xlu0 %2528, %v2444
      %v2530 = vpop.permute.xlu0 %2529
      %2531 = vset.pattern.permute.xlu0 0
      %2532 = vperm.xlu0 %2531, %v2445
      %v2533 = vpop.permute.xlu0 %2532
      %2534 = vset.pattern.permute.xlu0 0
      %2535 = vperm.xlu0 %2534, %v2446
      %v2536 = vpop.permute.xlu0 %2535
      %2537 = vset.pattern.permute.xlu0 0
      %2538 = vperm.xlu0 %2537, %v2447
      %v2539 = vpop.permute.xlu0 %2538
      %2540 = vset.pattern.permute.xlu0 0
      %2541 = vperm.xlu0 %2540, %v2448
      %v2542 = vpop.permute.xlu0 %2541
      %2543 = vset.pattern.permute.xlu0 0
      %2544 = vperm.xlu0 %2543, %v2449
      %v2545 = vpop.permute.xlu0 %2544
      %vm2546 = vcmp.eq.s32.totalorder %v2452, 1
      %vm2547 = vcmp.eq.s32.totalorder %v2455, 1
      %vm2548 = vcmp.eq.s32.totalorder %v2458, 1
      %vm2549 = vcmp.eq.s32.totalorder %v2461, 1
      %vm2550 = vcmp.eq.s32.totalorder %v2464, 1
      %vm2551 = vcmp.eq.s32.totalorder %v2467, 1
      %vm2552 = vcmp.eq.s32.totalorder %v2470, 1
      %vm2553 = vcmp.eq.s32.totalorder %v2473, 1
      %vm2554 = vcmp.eq.s32.totalorder %v2476, 1
      %vm2555 = vcmp.eq.s32.totalorder %v2479, 1
      %vm2556 = vcmp.eq.s32.totalorder %v2482, 1
      %vm2557 = vcmp.eq.s32.totalorder %v2485, 1
      %vm2558 = vcmp.eq.s32.totalorder %v2488, 1
      %vm2559 = vcmp.eq.s32.totalorder %v2491, 1
      %vm2560 = vcmp.eq.s32.totalorder %v2494, 1
      %vm2561 = vcmp.eq.s32.totalorder %v2497, 1
      %vm2562 = vcmp.eq.s32.totalorder %v2500, 1
      %vm2563 = vcmp.eq.s32.totalorder %v2503, 1
      %vm2564 = vcmp.eq.s32.totalorder %v2506, 1
      %vm2565 = vcmp.eq.s32.totalorder %v2509, 1
      %vm2566 = vcmp.eq.s32.totalorder %v2512, 1
      %vm2567 = vcmp.eq.s32.totalorder %v2515, 1
      %vm2568 = vcmp.eq.s32.totalorder %v2518, 1
      %vm2569 = vcmp.eq.s32.totalorder %v2521, 1
      %vm2570 = vcmp.eq.s32.totalorder %v2524, 1
      %vm2571 = vcmp.eq.s32.totalorder %v2527, 1
      %vm2572 = vcmp.eq.s32.totalorder %v2530, 1
      %vm2573 = vcmp.eq.s32.totalorder %v2533, 1
      %vm2574 = vcmp.eq.s32.totalorder %v2536, 1
      %vm2575 = vcmp.eq.s32.totalorder %v2539, 1
      %vm2576 = vcmp.eq.s32.totalorder %v2542, 1
      %vm2577 = vcmp.eq.s32.totalorder %v2545, 1
      %v2578 = vsel %vm2546, %v450, 0.0
      %v2579 = vsel %vm2547, %v449, 0.0
      %v2580 = vsel %vm2548, %v448, 0.0
      %v2581 = vsel %vm2549, %v447, 0.0
      %v2582 = vsel %vm2550, %v446, 0.0
      %v2583 = vsel %vm2551, %v445, 0.0
      %v2584 = vsel %vm2552, %v444, 0.0
      %v2585 = vsel %vm2553, %v443, 0.0
      %v2586 = vsel %vm2554, %v442, 0.0
      %v2587 = vsel %vm2555, %v441, 0.0
      %v2588 = vsel %vm2556, %v440, 0.0
      %v2589 = vsel %vm2557, %v439, 0.0
      %v2590 = vsel %vm2558, %v438, 0.0
      %v2591 = vsel %vm2559, %v437, 0.0
      %v2592 = vsel %vm2560, %v436, 0.0
      %v2593 = vsel %vm2561, %v435, 0.0
      %v2594 = vsel %vm2562, %v434, 0.0
      %v2595 = vsel %vm2563, %v433, 0.0
      %v2596 = vsel %vm2564, %v432, 0.0
      %v2597 = vsel %vm2565, %v431, 0.0
      %v2598 = vsel %vm2566, %v430, 0.0
      %v2599 = vsel %vm2567, %v429, 0.0
      %v2600 = vsel %vm2568, %v428, 0.0
      %v2601 = vsel %vm2569, %v427, 0.0
      %v2602 = vsel %vm2570, %v426, 0.0
      %v2603 = vsel %vm2571, %v425, 0.0
      %v2604 = vsel %vm2572, %v424, 0.0
      %v2605 = vsel %vm2573, %v423, 0.0
      %v2606 = vsel %vm2574, %v422, 0.0
      %v2607 = vsel %vm2575, %v421, 0.0
      %v2608 = vsel %vm2576, %v420, 0.0
      %v2609 = vsel %vm2577, %v419, 0.0
      %v2610 = vpack.c.bf16 %v2579, %v2578
      %v2611 = vpack.c.bf16 %v2581, %v2580
      %v2612 = vpack.c.bf16 %v2583, %v2582
      %v2613 = vpack.c.bf16 %v2585, %v2584
      %v2614 = vpack.c.bf16 %v2587, %v2586
      %v2615 = vpack.c.bf16 %v2589, %v2588
      %v2616 = vpack.c.bf16 %v2591, %v2590
      %v2617 = vpack.c.bf16 %v2593, %v2592
      %v2618 = vpack.c.bf16 %v2595, %v2594
      %v2619 = vpack.c.bf16 %v2597, %v2596
      %v2620 = vpack.c.bf16 %v2599, %v2598
      %v2621 = vpack.c.bf16 %v2601, %v2600
      %v2622 = vpack.c.bf16 %v2603, %v2602
      %v2623 = vpack.c.bf16 %v2605, %v2604
      %v2624 = vpack.c.bf16 %v2607, %v2606
      %v2625 = vpack.c.bf16 %v2609, %v2608
      %s2626 = scalar_lea.vmem %s1, 96
      %v2627 = vld [vmem:[%s2626] sm:$0xf]
      %v2628 = vld [vmem:[%s2626 + $0x4] sm:$0xf]
      %v2629 = vld [vmem:[%s2626 + $0x8] sm:$0xf]
      %v2630 = vld [vmem:[%s2626 + $0xc] sm:$0xf]
      %v2631 = vld [vmem:[%s2626 + $0x10] sm:$0xf]
      %v2632 = vld [vmem:[%s2626 + $0x14] sm:$0xf]
      %v2633 = vld [vmem:[%s2626 + $0x18] sm:$0xf]
      %v2634 = vld [vmem:[%s2626 + $0x1c] sm:$0xf]
      %v2643 = vunpack.c.l.b16 %v2627
      %v2644 = vunpack.c.l.b16 %v2628
      %v2645 = vunpack.c.l.b16 %v2629
      %v2646 = vunpack.c.l.b16 %v2630
      %v2647 = vunpack.c.l.b16 %v2631
      %v2648 = vunpack.c.l.b16 %v2632
      %v2649 = vunpack.c.l.b16 %v2633
      %v2650 = vunpack.c.l.b16 %v2634
      %v2651 = vpack.c.b16 %v2644, %v2643
      %v2652 = vpack.c.b16 %v2646, %v2645
      %v2653 = vpack.c.b16 %v2648, %v2647
      %v2654 = vpack.c.b16 %v2650, %v2649
      %v2660 = vsel %vm1324, %v2610, 0
      %v2663 = vsel %vm1324, %v2611, 0
      %v2666 = vsel %vm1324, %v2612, 0
      %v2669 = vsel %vm1324, %v2613, 0
      %v2672 = vsel %vm1324, %v2614, 0
      %v2675 = vsel %vm1324, %v2615, 0
      %v2678 = vsel %vm1324, %v2616, 0
      %v2681 = vsel %vm1324, %v2617, 0
      %v2684 = vsel %vm1324, %v2618, 0
      %v2687 = vsel %vm1324, %v2619, 0
      %v2690 = vsel %vm1324, %v2620, 0
      %v2693 = vsel %vm1324, %v2621, 0
      %v2696 = vsel %vm1324, %v2622, 0
      %v2699 = vsel %vm1324, %v2623, 0
      %v2702 = vsel %vm1324, %v2624, 0
      %v2705 = vsel %vm1324, %v2625, 0
      %2707 = vmatpush.bf16.msra.mxu0 0
      %2708 = vmatpush.bf16.msra.mxu0 0
      %2709 = vmatpush.bf16.msra.mxu0 0
      %2710 = vmatpush.bf16.msra.mxu0 0
      %2711 = vmatpush.bf16.msra.mxu0 %v2654
      %2712 = vmatpush.bf16.msra.mxu0 %v2653
      %2713 = vmatpush.bf16.msra.mxu0 %v2652
      %2714 = vmatpush.bf16.msra.mxu0 %v2651
      %2715 = vmatmul.bf16.gmra.mxu0 %v2660
      %v2716 = vpop.f32.mrf.mxu0
      %v2717 = vadd.f32 0.0, %v2716
      %v2718 = vpop.f32.mrf.mxu0
      %v2719 = vadd.f32 0.0, %v2718
      %2720 = vmatmul.bf16.gmra.mxu0 %v2663
      %v2721 = vpop.f32.mrf.mxu0
      %v2722 = vadd.f32 0.0, %v2721
      %v2723 = vpop.f32.mrf.mxu0
      %v2724 = vadd.f32 0.0, %v2723
      %2725 = vmatmul.bf16.gmra.mxu0 %v2666
      %v2726 = vpop.f32.mrf.mxu0
      %v2727 = vadd.f32 0.0, %v2726
      %v2728 = vpop.f32.mrf.mxu0
      %v2729 = vadd.f32 0.0, %v2728
      %2730 = vmatmul.bf16.gmra.mxu0 %v2669
      %v2731 = vpop.f32.mrf.mxu0
      %v2732 = vadd.f32 0.0, %v2731
      %v2733 = vpop.f32.mrf.mxu0
      %v2734 = vadd.f32 0.0, %v2733
      %2735 = vmatmul.bf16.gmra.mxu0 %v2672
      %v2736 = vpop.f32.mrf.mxu0
      %v2737 = vadd.f32 0.0, %v2736
      %v2738 = vpop.f32.mrf.mxu0
      %v2739 = vadd.f32 0.0, %v2738
      %2740 = vmatmul.bf16.gmra.mxu0 %v2675
      %v2741 = vpop.f32.mrf.mxu0
      %v2742 = vadd.f32 0.0, %v2741
      %v2743 = vpop.f32.mrf.mxu0
      %v2744 = vadd.f32 0.0, %v2743
      %2745 = vmatmul.bf16.gmra.mxu0 %v2678
      %v2746 = vpop.f32.mrf.mxu0
      %v2747 = vadd.f32 0.0, %v2746
      %v2748 = vpop.f32.mrf.mxu0
      %v2749 = vadd.f32 0.0, %v2748
      %2750 = vmatmul.bf16.gmra.mxu0 %v2681
      %v2751 = vpop.f32.mrf.mxu0
      %v2752 = vadd.f32 0.0, %v2751
      %v2753 = vpop.f32.mrf.mxu0
      %v2754 = vadd.f32 0.0, %v2753
      %2755 = vmatmul.bf16.gmra.mxu0 %v2684
      %v2756 = vpop.f32.mrf.mxu0
      %v2757 = vadd.f32 0.0, %v2756
      %v2758 = vpop.f32.mrf.mxu0
      %v2759 = vadd.f32 0.0, %v2758
      %2760 = vmatmul.bf16.gmra.mxu0 %v2687
      %v2761 = vpop.f32.mrf.mxu0
      %v2762 = vadd.f32 0.0, %v2761
      %v2763 = vpop.f32.mrf.mxu0
      %v2764 = vadd.f32 0.0, %v2763
      %2765 = vmatmul.bf16.gmra.mxu0 %v2690
      %v2766 = vpop.f32.mrf.mxu0
      %v2767 = vadd.f32 0.0, %v2766
      %v2768 = vpop.f32.mrf.mxu0
      %v2769 = vadd.f32 0.0, %v2768
      %2770 = vmatmul.bf16.gmra.mxu0 %v2693
      %v2771 = vpop.f32.mrf.mxu0
      %v2772 = vadd.f32 0.0, %v2771
      %v2773 = vpop.f32.mrf.mxu0
      %v2774 = vadd.f32 0.0, %v2773
      %2775 = vmatmul.bf16.gmra.mxu0 %v2696
      %v2776 = vpop.f32.mrf.mxu0
      %v2777 = vadd.f32 0.0, %v2776
      %v2778 = vpop.f32.mrf.mxu0
      %v2779 = vadd.f32 0.0, %v2778
      %2780 = vmatmul.bf16.gmra.mxu0 %v2699
      %v2781 = vpop.f32.mrf.mxu0
      %v2782 = vadd.f32 0.0, %v2781
      %v2783 = vpop.f32.mrf.mxu0
      %v2784 = vadd.f32 0.0, %v2783
      %2785 = vmatmul.bf16.gmra.mxu0 %v2702
      %v2786 = vpop.f32.mrf.mxu0
      %v2787 = vadd.f32 0.0, %v2786
      %v2788 = vpop.f32.mrf.mxu0
      %v2789 = vadd.f32 0.0, %v2788
      %2790 = vmatmul.bf16.gmra.mxu0 %v2705
      %v2791 = vpop.f32.mrf.mxu0
      %v2792 = vadd.f32 0.0, %v2791
      %v2793 = vpop.f32.mrf.mxu0
      %v2794 = vadd.f32 0.0, %v2793
      %2795 = vdwg.mxu0
      %v2796 = vadd.f32 %v2226, %v2717
      %v2797 = vadd.f32 %v2227, %v2719
      %v2798 = vadd.f32 %v2228, %v2722
      %v2799 = vadd.f32 %v2229, %v2724
      %v2800 = vadd.f32 %v2230, %v2727
      %v2801 = vadd.f32 %v2231, %v2729
      %v2802 = vadd.f32 %v2232, %v2732
      %v2803 = vadd.f32 %v2233, %v2734
      %v2804 = vadd.f32 %v2234, %v2737
      %v2805 = vadd.f32 %v2235, %v2739
      %v2806 = vadd.f32 %v2236, %v2742
      %v2807 = vadd.f32 %v2237, %v2744
      %v2808 = vadd.f32 %v2238, %v2747
      %v2809 = vadd.f32 %v2239, %v2749
      %v2810 = vadd.f32 %v2240, %v2752
      %v2811 = vadd.f32 %v2241, %v2754
      %v2812 = vadd.f32 %v2242, %v2757
      %v2813 = vadd.f32 %v2243, %v2759
      %v2814 = vadd.f32 %v2244, %v2762
      %v2815 = vadd.f32 %v2245, %v2764
      %v2816 = vadd.f32 %v2246, %v2767
      %v2817 = vadd.f32 %v2247, %v2769
      %v2818 = vadd.f32 %v2248, %v2772
      %v2819 = vadd.f32 %v2249, %v2774
      %v2820 = vadd.f32 %v2250, %v2777
      %v2821 = vadd.f32 %v2251, %v2779
      %v2822 = vadd.f32 %v2252, %v2782
      %v2823 = vadd.f32 %v2253, %v2784
      %v2824 = vadd.f32 %v2254, %v2787
      %v2825 = vadd.f32 %v2255, %v2789
      %v2826 = vadd.f32 %v2256, %v2792
      %v2827 = vadd.f32 %v2257, %v2794
      %s2828 = scalar_lea.vmem %s1, 128
      %v2829 = vld [vmem:[%s2828] sm:$0xf]
      %v2830 = vld [vmem:[%s2828 + $0x4] sm:$0xf]
      %v2831 = vld [vmem:[%s2828 + $0x8] sm:$0xf]
      %v2832 = vld [vmem:[%s2828 + $0xc] sm:$0xf]
      %v2833 = vld [vmem:[%s2828 + $0x10] sm:$0xf]
      %v2834 = vld [vmem:[%s2828 + $0x14] sm:$0xf]
      %v2835 = vld [vmem:[%s2828 + $0x18] sm:$0xf]
      %v2836 = vld [vmem:[%s2828 + $0x1c] sm:$0xf]
      %v2869 = vunpack.c.l.b16 %v256
      %v2870 = vunpack.c.l.b16 %v257
      %v2871 = vunpack.c.l.b16 %v258
      %v2872 = vunpack.c.l.b16 %v259
      %v2873 = vunpack.c.l.b16 %v260
      %v2874 = vunpack.c.l.b16 %v261
      %v2875 = vunpack.c.l.b16 %v262
      %v2876 = vunpack.c.l.b16 %v263
      %v2877 = vunpack.c.l.b16 %v264
      %v2878 = vunpack.c.l.b16 %v265
      %v2879 = vunpack.c.l.b16 %v266
      %v2880 = vunpack.c.l.b16 %v267
      %v2881 = vunpack.c.l.b16 %v268
      %v2882 = vunpack.c.l.b16 %v269
      %v2883 = vunpack.c.l.b16 %v270
      %v2884 = vunpack.c.l.b16 %v271
      %v2885 = vunpack.c.l.b16 %v272
      %v2886 = vunpack.c.l.b16 %v273
      %v2887 = vunpack.c.l.b16 %v274
      %v2888 = vunpack.c.l.b16 %v275
      %v2889 = vunpack.c.l.b16 %v276
      %v2890 = vunpack.c.l.b16 %v277
      %v2891 = vunpack.c.l.b16 %v278
      %v2892 = vunpack.c.l.b16 %v279
      %v2893 = vunpack.c.l.b16 %v280
      %v2894 = vunpack.c.l.b16 %v281
      %v2895 = vunpack.c.l.b16 %v282
      %v2896 = vunpack.c.l.b16 %v283
      %v2897 = vunpack.c.l.b16 %v284
      %v2898 = vunpack.c.l.b16 %v285
      %v2899 = vunpack.c.l.b16 %v286
      %v2900 = vunpack.c.l.b16 %v287
      %v2901 = vpack.c.b16 %v2870, %v2869
      %v2902 = vpack.c.b16 %v2872, %v2871
      %v2903 = vpack.c.b16 %v2874, %v2873
      %v2904 = vpack.c.b16 %v2876, %v2875
      %v2905 = vpack.c.b16 %v2878, %v2877
      %v2906 = vpack.c.b16 %v2880, %v2879
      %v2907 = vpack.c.b16 %v2882, %v2881
      %v2908 = vpack.c.b16 %v2884, %v2883
      %v2909 = vpack.c.b16 %v2886, %v2885
      %v2910 = vpack.c.b16 %v2888, %v2887
      %v2911 = vpack.c.b16 %v2890, %v2889
      %v2912 = vpack.c.b16 %v2892, %v2891
      %v2913 = vpack.c.b16 %v2894, %v2893
      %v2914 = vpack.c.b16 %v2896, %v2895
      %v2915 = vpack.c.b16 %v2898, %v2897
      %v2916 = vpack.c.b16 %v2900, %v2899
      %v2925 = vunpack.c.l.b16 %v2829
      %v2926 = vunpack.c.l.b16 %v2830
      %v2927 = vunpack.c.l.b16 %v2831
      %v2928 = vunpack.c.l.b16 %v2832
      %v2929 = vunpack.c.l.b16 %v2833
      %v2930 = vunpack.c.l.b16 %v2834
      %v2931 = vunpack.c.l.b16 %v2835
      %v2932 = vunpack.c.l.b16 %v2836
      %v2933 = vpack.c.b16 %v2926, %v2925
      %v2934 = vpack.c.b16 %v2928, %v2927
      %v2935 = vpack.c.b16 %v2930, %v2929
      %v2936 = vpack.c.b16 %v2932, %v2931
      %v2942 = vsel %vm1324, %v2901, 0
      %v2945 = vsel %vm1324, %v2902, 0
      %v2948 = vsel %vm1324, %v2903, 0
      %v2951 = vsel %vm1324, %v2904, 0
      %v2954 = vsel %vm1324, %v2905, 0
      %v2957 = vsel %vm1324, %v2906, 0
      %v2960 = vsel %vm1324, %v2907, 0
      %v2963 = vsel %vm1324, %v2908, 0
      %v2966 = vsel %vm1324, %v2909, 0
      %v2969 = vsel %vm1324, %v2910, 0
      %v2972 = vsel %vm1324, %v2911, 0
      %v2975 = vsel %vm1324, %v2912, 0
      %v2978 = vsel %vm1324, %v2913, 0
      %v2981 = vsel %vm1324, %v2914, 0
      %v2984 = vsel %vm1324, %v2915, 0
      %v2987 = vsel %vm1324, %v2916, 0
      %2989 = vmatpush.bf16.msra.mxu0 0
      %2990 = vmatpush.bf16.msra.mxu0 0
      %2991 = vmatpush.bf16.msra.mxu0 0
      %2992 = vmatpush.bf16.msra.mxu0 0
      %2993 = vmatpush.bf16.msra.mxu0 %v2936
      %2994 = vmatpush.bf16.msra.mxu0 %v2935
      %2995 = vmatpush.bf16.msra.mxu0 %v2934
      %2996 = vmatpush.bf16.msra.mxu0 %v2933
      %2997 = vmatmul.bf16.gmra.mxu0 %v2942
      %v2998 = vpop.f32.mrf.mxu0
      %v2999 = vadd.f32 0.0, %v2998
      %v3000 = vpop.f32.mrf.mxu0
      %v3001 = vadd.f32 0.0, %v3000
      %3002 = vmatmul.bf16.gmra.mxu0 %v2945
      %v3003 = vpop.f32.mrf.mxu0
      %v3004 = vadd.f32 0.0, %v3003
      %v3005 = vpop.f32.mrf.mxu0
      %v3006 = vadd.f32 0.0, %v3005
      %3007 = vmatmul.bf16.gmra.mxu0 %v2948
      %v3008 = vpop.f32.mrf.mxu0
      %v3009 = vadd.f32 0.0, %v3008
      %v3010 = vpop.f32.mrf.mxu0
      %v3011 = vadd.f32 0.0, %v3010
      %3012 = vmatmul.bf16.gmra.mxu0 %v2951
      %v3013 = vpop.f32.mrf.mxu0
      %v3014 = vadd.f32 0.0, %v3013
      %v3015 = vpop.f32.mrf.mxu0
      %v3016 = vadd.f32 0.0, %v3015
      %3017 = vmatmul.bf16.gmra.mxu0 %v2954
      %v3018 = vpop.f32.mrf.mxu0
      %v3019 = vadd.f32 0.0, %v3018
      %v3020 = vpop.f32.mrf.mxu0
      %v3021 = vadd.f32 0.0, %v3020
      %3022 = vmatmul.bf16.gmra.mxu0 %v2957
      %v3023 = vpop.f32.mrf.mxu0
      %v3024 = vadd.f32 0.0, %v3023
      %v3025 = vpop.f32.mrf.mxu0
      %v3026 = vadd.f32 0.0, %v3025
      %3027 = vmatmul.bf16.gmra.mxu0 %v2960
      %v3028 = vpop.f32.mrf.mxu0
      %v3029 = vadd.f32 0.0, %v3028
      %v3030 = vpop.f32.mrf.mxu0
      %v3031 = vadd.f32 0.0, %v3030
      %3032 = vmatmul.bf16.gmra.mxu0 %v2963
      %v3033 = vpop.f32.mrf.mxu0
      %v3034 = vadd.f32 0.0, %v3033
      %v3035 = vpop.f32.mrf.mxu0
      %v3036 = vadd.f32 0.0, %v3035
      %3037 = vmatmul.bf16.gmra.mxu0 %v2966
      %v3038 = vpop.f32.mrf.mxu0
      %v3039 = vadd.f32 0.0, %v3038
      %v3040 = vpop.f32.mrf.mxu0
      %v3041 = vadd.f32 0.0, %v3040
      %3042 = vmatmul.bf16.gmra.mxu0 %v2969
      %v3043 = vpop.f32.mrf.mxu0
      %v3044 = vadd.f32 0.0, %v3043
      %v3045 = vpop.f32.mrf.mxu0
      %v3046 = vadd.f32 0.0, %v3045
      %3047 = vmatmul.bf16.gmra.mxu0 %v2972
      %v3048 = vpop.f32.mrf.mxu0
      %v3049 = vadd.f32 0.0, %v3048
      %v3050 = vpop.f32.mrf.mxu0
      %v3051 = vadd.f32 0.0, %v3050
      %3052 = vmatmul.bf16.gmra.mxu0 %v2975
      %v3053 = vpop.f32.mrf.mxu0
      %v3054 = vadd.f32 0.0, %v3053
      %v3055 = vpop.f32.mrf.mxu0
      %v3056 = vadd.f32 0.0, %v3055
      %3057 = vmatmul.bf16.gmra.mxu0 %v2978
      %v3058 = vpop.f32.mrf.mxu0
      %v3059 = vadd.f32 0.0, %v3058
      %v3060 = vpop.f32.mrf.mxu0
      %v3061 = vadd.f32 0.0, %v3060
      %3062 = vmatmul.bf16.gmra.mxu0 %v2981
      %v3063 = vpop.f32.mrf.mxu0
      %v3064 = vadd.f32 0.0, %v3063
      %v3065 = vpop.f32.mrf.mxu0
      %v3066 = vadd.f32 0.0, %v3065
      %3067 = vmatmul.bf16.gmra.mxu0 %v2984
      %v3068 = vpop.f32.mrf.mxu0
      %v3069 = vadd.f32 0.0, %v3068
      %v3070 = vpop.f32.mrf.mxu0
      %v3071 = vadd.f32 0.0, %v3070
      %3072 = vmatmul.bf16.gmra.mxu0 %v2987
      %v3073 = vpop.f32.mrf.mxu0
      %v3074 = vadd.f32 0.0, %v3073
      %v3075 = vpop.f32.mrf.mxu0
      %v3076 = vadd.f32 0.0, %v3075
      %3077 = vdwg.mxu0
      %v3078 = vadd.f32 %v2796, %v2999
      %v3079 = vadd.f32 %v2797, %v3001
      %v3080 = vadd.f32 %v2798, %v3004
      %v3081 = vadd.f32 %v2799, %v3006
      %v3082 = vadd.f32 %v2800, %v3009
      %v3083 = vadd.f32 %v2801, %v3011
      %v3084 = vadd.f32 %v2802, %v3014
      %v3085 = vadd.f32 %v2803, %v3016
      %v3086 = vadd.f32 %v2804, %v3019
      %v3087 = vadd.f32 %v2805, %v3021
      %v3088 = vadd.f32 %v2806, %v3024
      %v3089 = vadd.f32 %v2807, %v3026
      %v3090 = vadd.f32 %v2808, %v3029
      %v3091 = vadd.f32 %v2809, %v3031
      %v3092 = vadd.f32 %v2810, %v3034
      %v3093 = vadd.f32 %v2811, %v3036
      %v3094 = vadd.f32 %v2812, %v3039
      %v3095 = vadd.f32 %v2813, %v3041
      %v3096 = vadd.f32 %v2814, %v3044
      %v3097 = vadd.f32 %v2815, %v3046
      %v3098 = vadd.f32 %v2816, %v3049
      %v3099 = vadd.f32 %v2817, %v3051
      %v3100 = vadd.f32 %v2818, %v3054
      %v3101 = vadd.f32 %v2819, %v3056
      %v3102 = vadd.f32 %v2820, %v3059
      %v3103 = vadd.f32 %v2821, %v3061
      %v3104 = vadd.f32 %v2822, %v3064
      %v3105 = vadd.f32 %v2823, %v3066
      %v3106 = vadd.f32 %v2824, %v3069
      %v3107 = vadd.f32 %v2825, %v3071
      %v3108 = vadd.f32 %v2826, %v3074
      %v3109 = vadd.f32 %v2827, %v3076
      %vm3110 = vmand %vm2322, %vm1720
      %vm3111 = vmand %vm2323, %vm1721
      %vm3112 = vmand %vm2324, %vm1722
      %vm3113 = vmand %vm2325, %vm1723
      %vm3114 = vmand %vm2326, %vm1724
      %vm3115 = vmand %vm2327, %vm1725
      %vm3116 = vmand %vm2328, %vm1726
      %vm3117 = vmand %vm2329, %vm1727
      %vm3118 = vmand %vm2330, %vm1728
      %vm3119 = vmand %vm2331, %vm1729
      %vm3120 = vmand %vm2332, %vm1730
      %vm3121 = vmand %vm2333, %vm1731
      %vm3122 = vmand %vm2334, %vm1732
      %vm3123 = vmand %vm2335, %vm1733
      %vm3124 = vmand %vm2336, %vm1734
      %vm3125 = vmand %vm2337, %vm1735
      %vm3126 = vmand %vm2338, %vm1736
      %vm3127 = vmand %vm2339, %vm1737
      %vm3128 = vmand %vm2340, %vm1738
      %vm3129 = vmand %vm2341, %vm1739
      %vm3130 = vmand %vm2342, %vm1740
      %vm3131 = vmand %vm2343, %vm1741
      %vm3132 = vmand %vm2344, %vm1742
      %vm3133 = vmand %vm2345, %vm1743
      %vm3134 = vmand %vm2346, %vm1744
      %vm3135 = vmand %vm2347, %vm1745
      %vm3136 = vmand %vm2348, %vm1746
      %vm3137 = vmand %vm2349, %vm1747
      %vm3138 = vmand %vm2350, %vm1748
      %vm3139 = vmand %vm2351, %vm1749
      %vm3140 = vmand %vm2352, %vm1750
      %vm3141 = vmand %vm2353, %vm1751
      %vm3142 = vmand %vm3110, %vm1784
      %vm3143 = vmand %vm3111, %vm1785
      %vm3144 = vmand %vm3112, %vm1786
      %vm3145 = vmand %vm3113, %vm1787
      %vm3146 = vmand %vm3114, %vm1788
      %vm3147 = vmand %vm3115, %vm1789
      %vm3148 = vmand %vm3116, %vm1790
      %vm3149 = vmand %vm3117, %vm1791
      %vm3150 = vmand %vm3118, %vm1792
      %vm3151 = vmand %vm3119, %vm1793
      %vm3152 = vmand %vm3120, %vm1794
      %vm3153 = vmand %vm3121, %vm1795
      %vm3154 = vmand %vm3122, %vm1796
      %vm3155 = vmand %vm3123, %vm1797
      %vm3156 = vmand %vm3124, %vm1798
      %vm3157 = vmand %vm3125, %vm1799
      %vm3158 = vmand %vm3126, %vm1800
      %vm3159 = vmand %vm3127, %vm1801
      %vm3160 = vmand %vm3128, %vm1802
      %vm3161 = vmand %vm3129, %vm1803
      %vm3162 = vmand %vm3130, %vm1804
      %vm3163 = vmand %vm3131, %vm1805
      %vm3164 = vmand %vm3132, %vm1806
      %vm3165 = vmand %vm3133, %vm1807
      %vm3166 = vmand %vm3134, %vm1808
      %vm3167 = vmand %vm3135, %vm1809
      %vm3168 = vmand %vm3136, %vm1810
      %vm3169 = vmand %vm3137, %vm1811
      %vm3170 = vmand %vm3138, %vm1812
      %vm3171 = vmand %vm3139, %vm1813
      %vm3172 = vmand %vm3140, %vm1814
      %vm3173 = vmand %vm3141, %vm1815
      %v3174 = vsel %vm3142, 1, 0
      %v3175 = vsel %vm3143, 1, 0
      %v3176 = vsel %vm3144, 1, 0
      %v3177 = vsel %vm3145, 1, 0
      %v3178 = vsel %vm3146, 1, 0
      %v3179 = vsel %vm3147, 1, 0
      %v3180 = vsel %vm3148, 1, 0
      %v3181 = vsel %vm3149, 1, 0
      %v3182 = vsel %vm3150, 1, 0
      %v3183 = vsel %vm3151, 1, 0
      %v3184 = vsel %vm3152, 1, 0
      %v3185 = vsel %vm3153, 1, 0
      %v3186 = vsel %vm3154, 1, 0
      %v3187 = vsel %vm3155, 1, 0
      %v3188 = vsel %vm3156, 1, 0
      %v3189 = vsel %vm3157, 1, 0
      %v3190 = vsel %vm3158, 1, 0
      %v3191 = vsel %vm3159, 1, 0
      %v3192 = vsel %vm3160, 1, 0
      %v3193 = vsel %vm3161, 1, 0
      %v3194 = vsel %vm3162, 1, 0
      %v3195 = vsel %vm3163, 1, 0
      %v3196 = vsel %vm3164, 1, 0
      %v3197 = vsel %vm3165, 1, 0
      %v3198 = vsel %vm3166, 1, 0
      %v3199 = vsel %vm3167, 1, 0
      %v3200 = vsel %vm3168, 1, 0
      %v3201 = vsel %vm3169, 1, 0
      %v3202 = vsel %vm3170, 1, 0
      %v3203 = vsel %vm3171, 1, 0
      %v3204 = vsel %vm3172, 1, 0
      %v3205 = vsel %vm3173, 1, 0
      %3206 = vset.pattern.permute.xlu0 0
      %3207 = vperm.xlu0 %3206, %v3174
      %v3208 = vpop.permute.xlu0 %3207
      %3209 = vset.pattern.permute.xlu0 0
      %3210 = vperm.xlu0 %3209, %v3175
      %v3211 = vpop.permute.xlu0 %3210
      %3212 = vset.pattern.permute.xlu0 0
      %3213 = vperm.xlu0 %3212, %v3176
      %v3214 = vpop.permute.xlu0 %3213
      %3215 = vset.pattern.permute.xlu0 0
      %3216 = vperm.xlu0 %3215, %v3177
      %v3217 = vpop.permute.xlu0 %3216
      %3218 = vset.pattern.permute.xlu0 0
      %3219 = vperm.xlu0 %3218, %v3178
      %v3220 = vpop.permute.xlu0 %3219
      %3221 = vset.pattern.permute.xlu0 0
      %3222 = vperm.xlu0 %3221, %v3179
      %v3223 = vpop.permute.xlu0 %3222
      %3224 = vset.pattern.permute.xlu0 0
      %3225 = vperm.xlu0 %3224, %v3180
      %v3226 = vpop.permute.xlu0 %3225
      %3227 = vset.pattern.permute.xlu0 0
      %3228 = vperm.xlu0 %3227, %v3181
      %v3229 = vpop.permute.xlu0 %3228
      %3230 = vset.pattern.permute.xlu0 0
      %3231 = vperm.xlu0 %3230, %v3182
      %v3232 = vpop.permute.xlu0 %3231
      %3233 = vset.pattern.permute.xlu0 0
      %3234 = vperm.xlu0 %3233, %v3183
      %v3235 = vpop.permute.xlu0 %3234
      %3236 = vset.pattern.permute.xlu0 0
      %3237 = vperm.xlu0 %3236, %v3184
      %v3238 = vpop.permute.xlu0 %3237
      %3239 = vset.pattern.permute.xlu0 0
      %3240 = vperm.xlu0 %3239, %v3185
      %v3241 = vpop.permute.xlu0 %3240
      %3242 = vset.pattern.permute.xlu0 0
      %3243 = vperm.xlu0 %3242, %v3186
      %v3244 = vpop.permute.xlu0 %3243
      %3245 = vset.pattern.permute.xlu0 0
      %3246 = vperm.xlu0 %3245, %v3187
      %v3247 = vpop.permute.xlu0 %3246
      %3248 = vset.pattern.permute.xlu0 0
      %3249 = vperm.xlu0 %3248, %v3188
      %v3250 = vpop.permute.xlu0 %3249
      %3251 = vset.pattern.permute.xlu0 0
      %3252 = vperm.xlu0 %3251, %v3189
      %v3253 = vpop.permute.xlu0 %3252
      %3254 = vset.pattern.permute.xlu0 0
      %3255 = vperm.xlu0 %3254, %v3190
      %v3256 = vpop.permute.xlu0 %3255
      %3257 = vset.pattern.permute.xlu0 0
      %3258 = vperm.xlu0 %3257, %v3191
      %v3259 = vpop.permute.xlu0 %3258
      %3260 = vset.pattern.permute.xlu0 0
      %3261 = vperm.xlu0 %3260, %v3192
      %v3262 = vpop.permute.xlu0 %3261
      %3263 = vset.pattern.permute.xlu0 0
      %3264 = vperm.xlu0 %3263, %v3193
      %v3265 = vpop.permute.xlu0 %3264
      %3266 = vset.pattern.permute.xlu0 0
      %3267 = vperm.xlu0 %3266, %v3194
      %v3268 = vpop.permute.xlu0 %3267
      %3269 = vset.pattern.permute.xlu0 0
      %3270 = vperm.xlu0 %3269, %v3195
      %v3271 = vpop.permute.xlu0 %3270
      %3272 = vset.pattern.permute.xlu0 0
      %3273 = vperm.xlu0 %3272, %v3196
      %v3274 = vpop.permute.xlu0 %3273
      %3275 = vset.pattern.permute.xlu0 0
      %3276 = vperm.xlu0 %3275, %v3197
      %v3277 = vpop.permute.xlu0 %3276
      %3278 = vset.pattern.permute.xlu0 0
      %3279 = vperm.xlu0 %3278, %v3198
      %v3280 = vpop.permute.xlu0 %3279
      %3281 = vset.pattern.permute.xlu0 0
      %3282 = vperm.xlu0 %3281, %v3199
      %v3283 = vpop.permute.xlu0 %3282
      %3284 = vset.pattern.permute.xlu0 0
      %3285 = vperm.xlu0 %3284, %v3200
      %v3286 = vpop.permute.xlu0 %3285
      %3287 = vset.pattern.permute.xlu0 0
      %3288 = vperm.xlu0 %3287, %v3201
      %v3289 = vpop.permute.xlu0 %3288
      %3290 = vset.pattern.permute.xlu0 0
      %3291 = vperm.xlu0 %3290, %v3202
      %v3292 = vpop.permute.xlu0 %3291
      %3293 = vset.pattern.permute.xlu0 0
      %3294 = vperm.xlu0 %3293, %v3203
      %v3295 = vpop.permute.xlu0 %3294
      %3296 = vset.pattern.permute.xlu0 0
      %3297 = vperm.xlu0 %3296, %v3204
      %v3298 = vpop.permute.xlu0 %3297
      %3299 = vset.pattern.permute.xlu0 0
      %3300 = vperm.xlu0 %3299, %v3205
      %v3301 = vpop.permute.xlu0 %3300
      %vm3302 = vcmp.eq.s32.totalorder %v3208, 1
      %vm3303 = vcmp.eq.s32.totalorder %v3211, 1
      %vm3304 = vcmp.eq.s32.totalorder %v3214, 1
      %vm3305 = vcmp.eq.s32.totalorder %v3217, 1
      %vm3306 = vcmp.eq.s32.totalorder %v3220, 1
      %vm3307 = vcmp.eq.s32.totalorder %v3223, 1
      %vm3308 = vcmp.eq.s32.totalorder %v3226, 1
      %vm3309 = vcmp.eq.s32.totalorder %v3229, 1
      %vm3310 = vcmp.eq.s32.totalorder %v3232, 1
      %vm3311 = vcmp.eq.s32.totalorder %v3235, 1
      %vm3312 = vcmp.eq.s32.totalorder %v3238, 1
      %vm3313 = vcmp.eq.s32.totalorder %v3241, 1
      %vm3314 = vcmp.eq.s32.totalorder %v3244, 1
      %vm3315 = vcmp.eq.s32.totalorder %v3247, 1
      %vm3316 = vcmp.eq.s32.totalorder %v3250, 1
      %vm3317 = vcmp.eq.s32.totalorder %v3253, 1
      %vm3318 = vcmp.eq.s32.totalorder %v3256, 1
      %vm3319 = vcmp.eq.s32.totalorder %v3259, 1
      %vm3320 = vcmp.eq.s32.totalorder %v3262, 1
      %vm3321 = vcmp.eq.s32.totalorder %v3265, 1
      %vm3322 = vcmp.eq.s32.totalorder %v3268, 1
      %vm3323 = vcmp.eq.s32.totalorder %v3271, 1
      %vm3324 = vcmp.eq.s32.totalorder %v3274, 1
      %vm3325 = vcmp.eq.s32.totalorder %v3277, 1
      %vm3326 = vcmp.eq.s32.totalorder %v3280, 1
      %vm3327 = vcmp.eq.s32.totalorder %v3283, 1
      %vm3328 = vcmp.eq.s32.totalorder %v3286, 1
      %vm3329 = vcmp.eq.s32.totalorder %v3289, 1
      %vm3330 = vcmp.eq.s32.totalorder %v3292, 1
      %vm3331 = vcmp.eq.s32.totalorder %v3295, 1
      %vm3332 = vcmp.eq.s32.totalorder %v3298, 1
      %vm3333 = vcmp.eq.s32.totalorder %v3301, 1
      %v3334 = vsel %vm3302, %v1686, 0.0
      %v3335 = vsel %vm3303, %v1685, 0.0
      %v3336 = vsel %vm3304, %v1684, 0.0
      %v3337 = vsel %vm3305, %v1683, 0.0
      %v3338 = vsel %vm3306, %v1682, 0.0
      %v3339 = vsel %vm3307, %v1681, 0.0
      %v3340 = vsel %vm3308, %v1680, 0.0
      %v3341 = vsel %vm3309, %v1679, 0.0
      %v3342 = vsel %vm3310, %v1678, 0.0
      %v3343 = vsel %vm3311, %v1677, 0.0
      %v3344 = vsel %vm3312, %v1676, 0.0
      %v3345 = vsel %vm3313, %v1675, 0.0
      %v3346 = vsel %vm3314, %v1674, 0.0
      %v3347 = vsel %vm3315, %v1673, 0.0
      %v3348 = vsel %vm3316, %v1672, 0.0
      %v3349 = vsel %vm3317, %v1671, 0.0
      %v3350 = vsel %vm3318, %v1670, 0.0
      %v3351 = vsel %vm3319, %v1669, 0.0
      %v3352 = vsel %vm3320, %v1668, 0.0
      %v3353 = vsel %vm3321, %v1667, 0.0
      %v3354 = vsel %vm3322, %v1666, 0.0
      %v3355 = vsel %vm3323, %v1665, 0.0
      %v3356 = vsel %vm3324, %v1664, 0.0
      %v3357 = vsel %vm3325, %v1663, 0.0
      %v3358 = vsel %vm3326, %v1662, 0.0
      %v3359 = vsel %vm3327, %v1661, 0.0
      %v3360 = vsel %vm3328, %v1660, 0.0
      %v3361 = vsel %vm3329, %v1659, 0.0
      %v3362 = vsel %vm3330, %v1658, 0.0
      %v3363 = vsel %vm3331, %v1657, 0.0
      %v3364 = vsel %vm3332, %v1656, 0.0
      %v3365 = vsel %vm3333, %v1687, 0.0
      %v3366 = vpack.c.bf16 %v3335, %v3334
      %v3367 = vpack.c.bf16 %v3337, %v3336
      %v3368 = vpack.c.bf16 %v3339, %v3338
      %v3369 = vpack.c.bf16 %v3341, %v3340
      %v3370 = vpack.c.bf16 %v3343, %v3342
      %v3371 = vpack.c.bf16 %v3345, %v3344
      %v3372 = vpack.c.bf16 %v3347, %v3346
      %v3373 = vpack.c.bf16 %v3349, %v3348
      %v3374 = vpack.c.bf16 %v3351, %v3350
      %v3375 = vpack.c.bf16 %v3353, %v3352
      %v3376 = vpack.c.bf16 %v3355, %v3354
      %v3377 = vpack.c.bf16 %v3357, %v3356
      %v3378 = vpack.c.bf16 %v3359, %v3358
      %v3379 = vpack.c.bf16 %v3361, %v3360
      %v3380 = vpack.c.bf16 %v3363, %v3362
      %v3381 = vpack.c.bf16 %v3365, %v3364
      %s3382 = scalar_lea.vmem %s1, 160
      %v3383 = vld [vmem:[%s3382] sm:$0xf]
      %v3384 = vld [vmem:[%s3382 + $0x4] sm:$0xf]
      %v3385 = vld [vmem:[%s3382 + $0x8] sm:$0xf]
      %v3386 = vld [vmem:[%s3382 + $0xc] sm:$0xf]
      %v3387 = vld [vmem:[%s3382 + $0x10] sm:$0xf]
      %v3388 = vld [vmem:[%s3382 + $0x14] sm:$0xf]
      %v3389 = vld [vmem:[%s3382 + $0x18] sm:$0xf]
      %v3390 = vld [vmem:[%s3382 + $0x1c] sm:$0xf]
      %v3399 = vunpack.c.l.b16 %v3383
      %v3400 = vunpack.c.l.b16 %v3384
      %v3401 = vunpack.c.l.b16 %v3385
      %v3402 = vunpack.c.l.b16 %v3386
      %v3403 = vunpack.c.l.b16 %v3387
      %v3404 = vunpack.c.l.b16 %v3388
      %v3405 = vunpack.c.l.b16 %v3389
      %v3406 = vunpack.c.l.b16 %v3390
      %v3407 = vpack.c.b16 %v3400, %v3399
      %v3408 = vpack.c.b16 %v3402, %v3401
      %v3409 = vpack.c.b16 %v3404, %v3403
      %v3410 = vpack.c.b16 %v3406, %v3405
      %v3416 = vsel %vm1324, %v3366, 0
      %v3419 = vsel %vm1324, %v3367, 0
      %v3422 = vsel %vm1324, %v3368, 0
      %v3425 = vsel %vm1324, %v3369, 0
      %v3428 = vsel %vm1324, %v3370, 0
      %v3431 = vsel %vm1324, %v3371, 0
      %v3434 = vsel %vm1324, %v3372, 0
      %v3437 = vsel %vm1324, %v3373, 0
      %v3440 = vsel %vm1324, %v3374, 0
      %v3443 = vsel %vm1324, %v3375, 0
      %v3446 = vsel %vm1324, %v3376, 0
      %v3449 = vsel %vm1324, %v3377, 0
      %v3452 = vsel %vm1324, %v3378, 0
      %v3455 = vsel %vm1324, %v3379, 0
      %v3458 = vsel %vm1324, %v3380, 0
      %v3461 = vsel %vm1324, %v3381, 0
      %3463 = vmatpush.bf16.msra.mxu0 0
      %3464 = vmatpush.bf16.msra.mxu0 0
      %3465 = vmatpush.bf16.msra.mxu0 0
      %3466 = vmatpush.bf16.msra.mxu0 0
      %3467 = vmatpush.bf16.msra.mxu0 %v3410
      %3468 = vmatpush.bf16.msra.mxu0 %v3409
      %3469 = vmatpush.bf16.msra.mxu0 %v3408
      %3470 = vmatpush.bf16.msra.mxu0 %v3407
      %3471 = vmatmul.bf16.gmra.mxu0 %v3416
      %v3472 = vpop.f32.mrf.mxu0
      %v3473 = vadd.f32 0.0, %v3472
      %v3474 = vpop.f32.mrf.mxu0
      %v3475 = vadd.f32 0.0, %v3474
      %3476 = vmatmul.bf16.gmra.mxu0 %v3419
      %v3477 = vpop.f32.mrf.mxu0
      %v3478 = vadd.f32 0.0, %v3477
      %v3479 = vpop.f32.mrf.mxu0
      %v3480 = vadd.f32 0.0, %v3479
      %3481 = vmatmul.bf16.gmra.mxu0 %v3422
      %v3482 = vpop.f32.mrf.mxu0
      %v3483 = vadd.f32 0.0, %v3482
      %v3484 = vpop.f32.mrf.mxu0
      %v3485 = vadd.f32 0.0, %v3484
      %3486 = vmatmul.bf16.gmra.mxu0 %v3425
      %v3487 = vpop.f32.mrf.mxu0
      %v3488 = vadd.f32 0.0, %v3487
      %v3489 = vpop.f32.mrf.mxu0
      %v3490 = vadd.f32 0.0, %v3489
      %3491 = vmatmul.bf16.gmra.mxu0 %v3428
      %v3492 = vpop.f32.mrf.mxu0
      %v3493 = vadd.f32 0.0, %v3492
      %v3494 = vpop.f32.mrf.mxu0
      %v3495 = vadd.f32 0.0, %v3494
      %3496 = vmatmul.bf16.gmra.mxu0 %v3431
      %v3497 = vpop.f32.mrf.mxu0
      %v3498 = vadd.f32 0.0, %v3497
      %v3499 = vpop.f32.mrf.mxu0
      %v3500 = vadd.f32 0.0, %v3499
      %3501 = vmatmul.bf16.gmra.mxu0 %v3434
      %v3502 = vpop.f32.mrf.mxu0
      %v3503 = vadd.f32 0.0, %v3502
      %v3504 = vpop.f32.mrf.mxu0
      %v3505 = vadd.f32 0.0, %v3504
      %3506 = vmatmul.bf16.gmra.mxu0 %v3437
      %v3507 = vpop.f32.mrf.mxu0
      %v3508 = vadd.f32 0.0, %v3507
      %v3509 = vpop.f32.mrf.mxu0
      %v3510 = vadd.f32 0.0, %v3509
      %3511 = vmatmul.bf16.gmra.mxu0 %v3440
      %v3512 = vpop.f32.mrf.mxu0
      %v3513 = vadd.f32 0.0, %v3512
      %v3514 = vpop.f32.mrf.mxu0
      %v3515 = vadd.f32 0.0, %v3514
      %3516 = vmatmul.bf16.gmra.mxu0 %v3443
      %v3517 = vpop.f32.mrf.mxu0
      %v3518 = vadd.f32 0.0, %v3517
      %v3519 = vpop.f32.mrf.mxu0
      %v3520 = vadd.f32 0.0, %v3519
      %3521 = vmatmul.bf16.gmra.mxu0 %v3446
      %v3522 = vpop.f32.mrf.mxu0
      %v3523 = vadd.f32 0.0, %v3522
      %v3524 = vpop.f32.mrf.mxu0
      %v3525 = vadd.f32 0.0, %v3524
      %3526 = vmatmul.bf16.gmra.mxu0 %v3449
      %v3527 = vpop.f32.mrf.mxu0
      %v3528 = vadd.f32 0.0, %v3527
      %v3529 = vpop.f32.mrf.mxu0
      %v3530 = vadd.f32 0.0, %v3529
      %3531 = vmatmul.bf16.gmra.mxu0 %v3452
      %v3532 = vpop.f32.mrf.mxu0
      %v3533 = vadd.f32 0.0, %v3532
      %v3534 = vpop.f32.mrf.mxu0
      %v3535 = vadd.f32 0.0, %v3534
      %3536 = vmatmul.bf16.gmra.mxu0 %v3455
      %v3537 = vpop.f32.mrf.mxu0
      %v3538 = vadd.f32 0.0, %v3537
      %v3539 = vpop.f32.mrf.mxu0
      %v3540 = vadd.f32 0.0, %v3539
      %3541 = vmatmul.bf16.gmra.mxu0 %v3458
      %v3542 = vpop.f32.mrf.mxu0
      %v3543 = vadd.f32 0.0, %v3542
      %v3544 = vpop.f32.mrf.mxu0
      %v3545 = vadd.f32 0.0, %v3544
      %3546 = vmatmul.bf16.gmra.mxu0 %v3461
      %v3547 = vpop.f32.mrf.mxu0
      %v3548 = vadd.f32 0.0, %v3547
      %v3549 = vpop.f32.mrf.mxu0
      %v3550 = vadd.f32 0.0, %v3549
      %3551 = vdwg.mxu0
      %v3552 = vadd.f32 %v3078, %v3473
      %v3553 = vadd.f32 %v3079, %v3475
      %v3554 = vadd.f32 %v3080, %v3478
      %v3555 = vadd.f32 %v3081, %v3480
      %v3556 = vadd.f32 %v3082, %v3483
      %v3557 = vadd.f32 %v3083, %v3485
      %v3558 = vadd.f32 %v3084, %v3488
      %v3559 = vadd.f32 %v3085, %v3490
      %v3560 = vadd.f32 %v3086, %v3493
      %v3561 = vadd.f32 %v3087, %v3495
      %v3562 = vadd.f32 %v3088, %v3498
      %v3563 = vadd.f32 %v3089, %v3500
      %v3564 = vadd.f32 %v3090, %v3503
      %v3565 = vadd.f32 %v3091, %v3505
      %v3566 = vadd.f32 %v3092, %v3508
      %v3567 = vadd.f32 %v3093, %v3510
      %v3568 = vadd.f32 %v3094, %v3513
      %v3569 = vadd.f32 %v3095, %v3515
      %v3570 = vadd.f32 %v3096, %v3518
      %v3571 = vadd.f32 %v3097, %v3520
      %v3572 = vadd.f32 %v3098, %v3523
      %v3573 = vadd.f32 %v3099, %v3525
      %v3574 = vadd.f32 %v3100, %v3528
      %v3575 = vadd.f32 %v3101, %v3530
      %v3576 = vadd.f32 %v3102, %v3533
      %v3577 = vadd.f32 %v3103, %v3535
      %v3578 = vadd.f32 %v3104, %v3538
      %v3579 = vadd.f32 %v3105, %v3540
      %v3580 = vadd.f32 %v3106, %v3543
      %v3581 = vadd.f32 %v3107, %v3545
      %v3582 = vadd.f32 %v3108, %v3548
      %v3583 = vadd.f32 %v3109, %v3550
      %v3584 = vadd.s32 %v320, 1
      %v3585 = vadd.s32 %v321, 1
      %v3586 = vadd.s32 %v322, 1
      %v3587 = vadd.s32 %v323, 1
      %v3588 = vadd.s32 %v324, 1
      %v3589 = vadd.s32 %v325, 1
      %v3590 = vadd.s32 %v326, 1
      %v3591 = vadd.s32 %v327, 1
      %v3592 = vadd.s32 %v328, 1
      %v3593 = vadd.s32 %v329, 1
      %v3594 = vadd.s32 %v330, 1
      %v3595 = vadd.s32 %v331, 1
      %v3596 = vadd.s32 %v332, 1
      %v3597 = vadd.s32 %v333, 1
      %v3598 = vadd.s32 %v334, 1
      %v3599 = vadd.s32 %v335, 1
      %v3600 = vadd.s32 %v336, 1
      %v3601 = vadd.s32 %v337, 1
      %v3602 = vadd.s32 %v338, 1
      %v3603 = vadd.s32 %v339, 1
      %v3604 = vadd.s32 %v340, 1
      %v3605 = vadd.s32 %v341, 1
      %v3606 = vadd.s32 %v342, 1
      %v3607 = vadd.s32 %v343, 1
      %v3608 = vadd.s32 %v344, 1
      %v3609 = vadd.s32 %v345, 1
      %v3610 = vadd.s32 %v346, 1
      %v3611 = vadd.s32 %v347, 1
      %v3612 = vadd.s32 %v348, 1
      %v3613 = vadd.s32 %v349, 1
      %v3614 = vadd.s32 %v350, 1
      %v3615 = vadd.s32 %v351, 1
      %vm3616 = vcmp.ge.s32.totalorder %v3584, 0
      %vm3617 = vcmp.ge.s32.totalorder %v3585, 0
      %vm3618 = vcmp.ge.s32.totalorder %v3586, 0
      %vm3619 = vcmp.ge.s32.totalorder %v3587, 0
      %vm3620 = vcmp.ge.s32.totalorder %v3588, 0
      %vm3621 = vcmp.ge.s32.totalorder %v3589, 0
      %vm3622 = vcmp.ge.s32.totalorder %v3590, 0
      %vm3623 = vcmp.ge.s32.totalorder %v3591, 0
      %vm3624 = vcmp.ge.s32.totalorder %v3592, 0
      %vm3625 = vcmp.ge.s32.totalorder %v3593, 0
      %vm3626 = vcmp.ge.s32.totalorder %v3594, 0
      %vm3627 = vcmp.ge.s32.totalorder %v3595, 0
      %vm3628 = vcmp.ge.s32.totalorder %v3596, 0
      %vm3629 = vcmp.ge.s32.totalorder %v3597, 0
      %vm3630 = vcmp.ge.s32.totalorder %v3598, 0
      %vm3631 = vcmp.ge.s32.totalorder %v3599, 0
      %vm3632 = vcmp.ge.s32.totalorder %v3600, 0
      %vm3633 = vcmp.ge.s32.totalorder %v3601, 0
      %vm3634 = vcmp.ge.s32.totalorder %v3602, 0
      %vm3635 = vcmp.ge.s32.totalorder %v3603, 0
      %vm3636 = vcmp.ge.s32.totalorder %v3604, 0
      %vm3637 = vcmp.ge.s32.totalorder %v3605, 0
      %vm3638 = vcmp.ge.s32.totalorder %v3606, 0
      %vm3639 = vcmp.ge.s32.totalorder %v3607, 0
      %vm3640 = vcmp.ge.s32.totalorder %v3608, 0
      %vm3641 = vcmp.ge.s32.totalorder %v3609, 0
      %vm3642 = vcmp.ge.s32.totalorder %v3610, 0
      %vm3643 = vcmp.ge.s32.totalorder %v3611, 0
      %vm3644 = vcmp.ge.s32.totalorder %v3612, 0
      %vm3645 = vcmp.ge.s32.totalorder %v3613, 0
      %vm3646 = vcmp.ge.s32.totalorder %v3614, 0
      %vm3647 = vcmp.ge.s32.totalorder %v3615, 0
      %vm3648 = vcmp.lt.s32.totalorder %v3584, 16
      %vm3649 = vcmp.lt.s32.totalorder %v3585, 16
      %vm3650 = vcmp.lt.s32.totalorder %v3586, 16
      %vm3651 = vcmp.lt.s32.totalorder %v3587, 16
      %vm3652 = vcmp.lt.s32.totalorder %v3588, 16
      %vm3653 = vcmp.lt.s32.totalorder %v3589, 16
      %vm3654 = vcmp.lt.s32.totalorder %v3590, 16
      %vm3655 = vcmp.lt.s32.totalorder %v3591, 16
      %vm3656 = vcmp.lt.s32.totalorder %v3592, 16
      %vm3657 = vcmp.lt.s32.totalorder %v3593, 16
      %vm3658 = vcmp.lt.s32.totalorder %v3594, 16
      %vm3659 = vcmp.lt.s32.totalorder %v3595, 16
      %vm3660 = vcmp.lt.s32.totalorder %v3596, 16
      %vm3661 = vcmp.lt.s32.totalorder %v3597, 16
      %vm3662 = vcmp.lt.s32.totalorder %v3598, 16
      %vm3663 = vcmp.lt.s32.totalorder %v3599, 16
      %vm3664 = vcmp.lt.s32.totalorder %v3600, 16
      %vm3665 = vcmp.lt.s32.totalorder %v3601, 16
      %vm3666 = vcmp.lt.s32.totalorder %v3602, 16
      %vm3667 = vcmp.lt.s32.totalorder %v3603, 16
      %vm3668 = vcmp.lt.s32.totalorder %v3604, 16
      %vm3669 = vcmp.lt.s32.totalorder %v3605, 16
      %vm3670 = vcmp.lt.s32.totalorder %v3606, 16
      %vm3671 = vcmp.lt.s32.totalorder %v3607, 16
      %vm3672 = vcmp.lt.s32.totalorder %v3608, 16
      %vm3673 = vcmp.lt.s32.totalorder %v3609, 16
      %vm3674 = vcmp.lt.s32.totalorder %v3610, 16
      %vm3675 = vcmp.lt.s32.totalorder %v3611, 16
      %vm3676 = vcmp.lt.s32.totalorder %v3612, 16
      %vm3677 = vcmp.lt.s32.totalorder %v3613, 16
      %vm3678 = vcmp.lt.s32.totalorder %v3614, 16
      %vm3679 = vcmp.lt.s32.totalorder %v3615, 16
      %vm3680 = vmand %vm3616, %vm3648
      %vm3681 = vmand %vm3617, %vm3649
      %vm3682 = vmand %vm3618, %vm3650
      %vm3683 = vmand %vm3619, %vm3651
      %vm3684 = vmand %vm3620, %vm3652
      %vm3685 = vmand %vm3621, %vm3653
      %vm3686 = vmand %vm3622, %vm3654
      %vm3687 = vmand %vm3623, %vm3655
      %vm3688 = vmand %vm3624, %vm3656
      %vm3689 = vmand %vm3625, %vm3657
      %vm3690 = vmand %vm3626, %vm3658
      %vm3691 = vmand %vm3627, %vm3659
      %vm3692 = vmand %vm3628, %vm3660
      %vm3693 = vmand %vm3629, %vm3661
      %vm3694 = vmand %vm3630, %vm3662
      %vm3695 = vmand %vm3631, %vm3663
      %vm3696 = vmand %vm3632, %vm3664
      %vm3697 = vmand %vm3633, %vm3665
      %vm3698 = vmand %vm3634, %vm3666
      %vm3699 = vmand %vm3635, %vm3667
      %vm3700 = vmand %vm3636, %vm3668
      %vm3701 = vmand %vm3637, %vm3669
      %vm3702 = vmand %vm3638, %vm3670
      %vm3703 = vmand %vm3639, %vm3671
      %vm3704 = vmand %vm3640, %vm3672
      %vm3705 = vmand %vm3641, %vm3673
      %vm3706 = vmand %vm3642, %vm3674
      %vm3707 = vmand %vm3643, %vm3675
      %vm3708 = vmand %vm3644, %vm3676
      %vm3709 = vmand %vm3645, %vm3677
      %vm3710 = vmand %vm3646, %vm3678
      %vm3711 = vmand %vm3647, %vm3679
      %vm3712 = vmand %vm3680, %vm611
      %vm3713 = vmand %vm3681, %vm612
      %vm3714 = vmand %vm3682, %vm613
      %vm3715 = vmand %vm3683, %vm614
      %vm3716 = vmand %vm3684, %vm615
      %vm3717 = vmand %vm3685, %vm616
      %vm3718 = vmand %vm3686, %vm617
      %vm3719 = vmand %vm3687, %vm618
      %vm3720 = vmand %vm3688, %vm619
      %vm3721 = vmand %vm3689, %vm620
      %vm3722 = vmand %vm3690, %vm621
      %vm3723 = vmand %vm3691, %vm622
      %vm3724 = vmand %vm3692, %vm623
      %vm3725 = vmand %vm3693, %vm624
      %vm3726 = vmand %vm3694, %vm625
      %vm3727 = vmand %vm3695, %vm626
      %vm3728 = vmand %vm3696, %vm627
      %vm3729 = vmand %vm3697, %vm628
      %vm3730 = vmand %vm3698, %vm629
      %vm3731 = vmand %vm3699, %vm630
      %vm3732 = vmand %vm3700, %vm631
      %vm3733 = vmand %vm3701, %vm632
      %vm3734 = vmand %vm3702, %vm633
      %vm3735 = vmand %vm3703, %vm634
      %vm3736 = vmand %vm3704, %vm635
      %vm3737 = vmand %vm3705, %vm636
      %vm3738 = vmand %vm3706, %vm637
      %vm3739 = vmand %vm3707, %vm638
      %vm3740 = vmand %vm3708, %vm639
      %vm3741 = vmand %vm3709, %vm640
      %vm3742 = vmand %vm3710, %vm641
      %vm3743 = vmand %vm3711, %vm642
      %vm3744 = vmand %vm3712, %vm675
      %vm3745 = vmand %vm3713, %vm676
      %vm3746 = vmand %vm3714, %vm677
      %vm3747 = vmand %vm3715, %vm678
      %vm3748 = vmand %vm3716, %vm679
      %vm3749 = vmand %vm3717, %vm680
      %vm3750 = vmand %vm3718, %vm681
      %vm3751 = vmand %vm3719, %vm682
      %vm3752 = vmand %vm3720, %vm683
      %vm3753 = vmand %vm3721, %vm684
      %vm3754 = vmand %vm3722, %vm685
      %vm3755 = vmand %vm3723, %vm686
      %vm3756 = vmand %vm3724, %vm687
      %vm3757 = vmand %vm3725, %vm688
      %vm3758 = vmand %vm3726, %vm689
      %vm3759 = vmand %vm3727, %vm690
      %vm3760 = vmand %vm3728, %vm691
      %vm3761 = vmand %vm3729, %vm692
      %vm3762 = vmand %vm3730, %vm693
      %vm3763 = vmand %vm3731, %vm694
      %vm3764 = vmand %vm3732, %vm695
      %vm3765 = vmand %vm3733, %vm696
      %vm3766 = vmand %vm3734, %vm697
      %vm3767 = vmand %vm3735, %vm698
      %vm3768 = vmand %vm3736, %vm699
      %vm3769 = vmand %vm3737, %vm700
      %vm3770 = vmand %vm3738, %vm701
      %vm3771 = vmand %vm3739, %vm702
      %vm3772 = vmand %vm3740, %vm703
      %vm3773 = vmand %vm3741, %vm704
      %vm3774 = vmand %vm3742, %vm705
      %vm3775 = vmand %vm3743, %vm706
      %v3776 = vsel %vm3744, 1, 0
      %v3777 = vsel %vm3745, 1, 0
      %v3778 = vsel %vm3746, 1, 0
      %v3779 = vsel %vm3747, 1, 0
      %v3780 = vsel %vm3748, 1, 0
      %v3781 = vsel %vm3749, 1, 0
      %v3782 = vsel %vm3750, 1, 0
      %v3783 = vsel %vm3751, 1, 0
      %v3784 = vsel %vm3752, 1, 0
      %v3785 = vsel %vm3753, 1, 0
      %v3786 = vsel %vm3754, 1, 0
      %v3787 = vsel %vm3755, 1, 0
      %v3788 = vsel %vm3756, 1, 0
      %v3789 = vsel %vm3757, 1, 0
      %v3790 = vsel %vm3758, 1, 0
      %v3791 = vsel %vm3759, 1, 0
      %v3792 = vsel %vm3760, 1, 0
      %v3793 = vsel %vm3761, 1, 0
      %v3794 = vsel %vm3762, 1, 0
      %v3795 = vsel %vm3763, 1, 0
      %v3796 = vsel %vm3764, 1, 0
      %v3797 = vsel %vm3765, 1, 0
      %v3798 = vsel %vm3766, 1, 0
      %v3799 = vsel %vm3767, 1, 0
      %v3800 = vsel %vm3768, 1, 0
      %v3801 = vsel %vm3769, 1, 0
      %v3802 = vsel %vm3770, 1, 0
      %v3803 = vsel %vm3771, 1, 0
      %v3804 = vsel %vm3772, 1, 0
      %v3805 = vsel %vm3773, 1, 0
      %v3806 = vsel %vm3774, 1, 0
      %v3807 = vsel %vm3775, 1, 0
      %3808 = vset.pattern.permute.xlu0 0
      %3809 = vperm.xlu0 %3808, %v3776
      %v3810 = vpop.permute.xlu0 %3809
      %3811 = vset.pattern.permute.xlu0 0
      %3812 = vperm.xlu0 %3811, %v3777
      %v3813 = vpop.permute.xlu0 %3812
      %3814 = vset.pattern.permute.xlu0 0
      %3815 = vperm.xlu0 %3814, %v3778
      %v3816 = vpop.permute.xlu0 %3815
      %3817 = vset.pattern.permute.xlu0 0
      %3818 = vperm.xlu0 %3817, %v3779
      %v3819 = vpop.permute.xlu0 %3818
      %3820 = vset.pattern.permute.xlu0 0
      %3821 = vperm.xlu0 %3820, %v3780
      %v3822 = vpop.permute.xlu0 %3821
      %3823 = vset.pattern.permute.xlu0 0
      %3824 = vperm.xlu0 %3823, %v3781
      %v3825 = vpop.permute.xlu0 %3824
      %3826 = vset.pattern.permute.xlu0 0
      %3827 = vperm.xlu0 %3826, %v3782
      %v3828 = vpop.permute.xlu0 %3827
      %3829 = vset.pattern.permute.xlu0 0
      %3830 = vperm.xlu0 %3829, %v3783
      %v3831 = vpop.permute.xlu0 %3830
      %3832 = vset.pattern.permute.xlu0 0
      %3833 = vperm.xlu0 %3832, %v3784
      %v3834 = vpop.permute.xlu0 %3833
      %3835 = vset.pattern.permute.xlu0 0
      %3836 = vperm.xlu0 %3835, %v3785
      %v3837 = vpop.permute.xlu0 %3836
      %3838 = vset.pattern.permute.xlu0 0
      %3839 = vperm.xlu0 %3838, %v3786
      %v3840 = vpop.permute.xlu0 %3839
      %3841 = vset.pattern.permute.xlu0 0
      %3842 = vperm.xlu0 %3841, %v3787
      %v3843 = vpop.permute.xlu0 %3842
      %3844 = vset.pattern.permute.xlu0 0
      %3845 = vperm.xlu0 %3844, %v3788
      %v3846 = vpop.permute.xlu0 %3845
      %3847 = vset.pattern.permute.xlu0 0
      %3848 = vperm.xlu0 %3847, %v3789
      %v3849 = vpop.permute.xlu0 %3848
      %3850 = vset.pattern.permute.xlu0 0
      %3851 = vperm.xlu0 %3850, %v3790
      %v3852 = vpop.permute.xlu0 %3851
      %3853 = vset.pattern.permute.xlu0 0
      %3854 = vperm.xlu0 %3853, %v3791
      %v3855 = vpop.permute.xlu0 %3854
      %3856 = vset.pattern.permute.xlu0 0
      %3857 = vperm.xlu0 %3856, %v3792
      %v3858 = vpop.permute.xlu0 %3857
      %3859 = vset.pattern.permute.xlu0 0
      %3860 = vperm.xlu0 %3859, %v3793
      %v3861 = vpop.permute.xlu0 %3860
      %3862 = vset.pattern.permute.xlu0 0
      %3863 = vperm.xlu0 %3862, %v3794
      %v3864 = vpop.permute.xlu0 %3863
      %3865 = vset.pattern.permute.xlu0 0
      %3866 = vperm.xlu0 %3865, %v3795
      %v3867 = vpop.permute.xlu0 %3866
      %3868 = vset.pattern.permute.xlu0 0
      %3869 = vperm.xlu0 %3868, %v3796
      %v3870 = vpop.permute.xlu0 %3869
      %3871 = vset.pattern.permute.xlu0 0
      %3872 = vperm.xlu0 %3871, %v3797
      %v3873 = vpop.permute.xlu0 %3872
      %3874 = vset.pattern.permute.xlu0 0
      %3875 = vperm.xlu0 %3874, %v3798
      %v3876 = vpop.permute.xlu0 %3875
      %3877 = vset.pattern.permute.xlu0 0
      %3878 = vperm.xlu0 %3877, %v3799
      %v3879 = vpop.permute.xlu0 %3878
      %3880 = vset.pattern.permute.xlu0 0
      %3881 = vperm.xlu0 %3880, %v3800
      %v3882 = vpop.permute.xlu0 %3881
      %3883 = vset.pattern.permute.xlu0 0
      %3884 = vperm.xlu0 %3883, %v3801
      %v3885 = vpop.permute.xlu0 %3884
      %3886 = vset.pattern.permute.xlu0 0
      %3887 = vperm.xlu0 %3886, %v3802
      %v3888 = vpop.permute.xlu0 %3887
      %3889 = vset.pattern.permute.xlu0 0
      %3890 = vperm.xlu0 %3889, %v3803
      %v3891 = vpop.permute.xlu0 %3890
      %3892 = vset.pattern.permute.xlu0 0
      %3893 = vperm.xlu0 %3892, %v3804
      %v3894 = vpop.permute.xlu0 %3893
      %3895 = vset.pattern.permute.xlu0 0
      %3896 = vperm.xlu0 %3895, %v3805
      %v3897 = vpop.permute.xlu0 %3896
      %3898 = vset.pattern.permute.xlu0 0
      %3899 = vperm.xlu0 %3898, %v3806
      %v3900 = vpop.permute.xlu0 %3899
      %3901 = vset.pattern.permute.xlu0 0
      %3902 = vperm.xlu0 %3901, %v3807
      %v3903 = vpop.permute.xlu0 %3902
      %vm3904 = vcmp.eq.s32.totalorder %v3810, 1
      %vm3905 = vcmp.eq.s32.totalorder %v3813, 1
      %vm3906 = vcmp.eq.s32.totalorder %v3816, 1
      %vm3907 = vcmp.eq.s32.totalorder %v3819, 1
      %vm3908 = vcmp.eq.s32.totalorder %v3822, 1
      %vm3909 = vcmp.eq.s32.totalorder %v3825, 1
      %vm3910 = vcmp.eq.s32.totalorder %v3828, 1
      %vm3911 = vcmp.eq.s32.totalorder %v3831, 1
      %vm3912 = vcmp.eq.s32.totalorder %v3834, 1
      %vm3913 = vcmp.eq.s32.totalorder %v3837, 1
      %vm3914 = vcmp.eq.s32.totalorder %v3840, 1
      %vm3915 = vcmp.eq.s32.totalorder %v3843, 1
      %vm3916 = vcmp.eq.s32.totalorder %v3846, 1
      %vm3917 = vcmp.eq.s32.totalorder %v3849, 1
      %vm3918 = vcmp.eq.s32.totalorder %v3852, 1
      %vm3919 = vcmp.eq.s32.totalorder %v3855, 1
      %vm3920 = vcmp.eq.s32.totalorder %v3858, 1
      %vm3921 = vcmp.eq.s32.totalorder %v3861, 1
      %vm3922 = vcmp.eq.s32.totalorder %v3864, 1
      %vm3923 = vcmp.eq.s32.totalorder %v3867, 1
      %vm3924 = vcmp.eq.s32.totalorder %v3870, 1
      %vm3925 = vcmp.eq.s32.totalorder %v3873, 1
      %vm3926 = vcmp.eq.s32.totalorder %v3876, 1
      %vm3927 = vcmp.eq.s32.totalorder %v3879, 1
      %vm3928 = vcmp.eq.s32.totalorder %v3882, 1
      %vm3929 = vcmp.eq.s32.totalorder %v3885, 1
      %vm3930 = vcmp.eq.s32.totalorder %v3888, 1
      %vm3931 = vcmp.eq.s32.totalorder %v3891, 1
      %vm3932 = vcmp.eq.s32.totalorder %v3894, 1
      %vm3933 = vcmp.eq.s32.totalorder %v3897, 1
      %vm3934 = vcmp.eq.s32.totalorder %v3900, 1
      %vm3935 = vcmp.eq.s32.totalorder %v3903, 1
      %v3936 = vsel %vm3904, %v448, 0.0
      %v3937 = vsel %vm3905, %v447, 0.0
      %v3938 = vsel %vm3906, %v446, 0.0
      %v3939 = vsel %vm3907, %v445, 0.0
      %v3940 = vsel %vm3908, %v444, 0.0
      %v3941 = vsel %vm3909, %v443, 0.0
      %v3942 = vsel %vm3910, %v442, 0.0
      %v3943 = vsel %vm3911, %v441, 0.0
      %v3944 = vsel %vm3912, %v440, 0.0
      %v3945 = vsel %vm3913, %v439, 0.0
      %v3946 = vsel %vm3914, %v438, 0.0
      %v3947 = vsel %vm3915, %v437, 0.0
      %v3948 = vsel %vm3916, %v436, 0.0
      %v3949 = vsel %vm3917, %v435, 0.0
      %v3950 = vsel %vm3918, %v434, 0.0
      %v3951 = vsel %vm3919, %v433, 0.0
      %v3952 = vsel %vm3920, %v432, 0.0
      %v3953 = vsel %vm3921, %v431, 0.0
      %v3954 = vsel %vm3922, %v430, 0.0
      %v3955 = vsel %vm3923, %v429, 0.0
      %v3956 = vsel %vm3924, %v428, 0.0
      %v3957 = vsel %vm3925, %v427, 0.0
      %v3958 = vsel %vm3926, %v426, 0.0
      %v3959 = vsel %vm3927, %v425, 0.0
      %v3960 = vsel %vm3928, %v424, 0.0
      %v3961 = vsel %vm3929, %v423, 0.0
      %v3962 = vsel %vm3930, %v422, 0.0
      %v3963 = vsel %vm3931, %v421, 0.0
      %v3964 = vsel %vm3932, %v420, 0.0
      %v3965 = vsel %vm3933, %v419, 0.0
      %v3966 = vsel %vm3934, %v450, 0.0
      %v3967 = vsel %vm3935, %v449, 0.0
      %v3968 = vpack.c.bf16 %v3937, %v3936
      %v3969 = vpack.c.bf16 %v3939, %v3938
      %v3970 = vpack.c.bf16 %v3941, %v3940
      %v3971 = vpack.c.bf16 %v3943, %v3942
      %v3972 = vpack.c.bf16 %v3945, %v3944
      %v3973 = vpack.c.bf16 %v3947, %v3946
      %v3974 = vpack.c.bf16 %v3949, %v3948
      %v3975 = vpack.c.bf16 %v3951, %v3950
      %v3976 = vpack.c.bf16 %v3953, %v3952
      %v3977 = vpack.c.bf16 %v3955, %v3954
      %v3978 = vpack.c.bf16 %v3957, %v3956
      %v3979 = vpack.c.bf16 %v3959, %v3958
      %v3980 = vpack.c.bf16 %v3961, %v3960
      %v3981 = vpack.c.bf16 %v3963, %v3962
      %v3982 = vpack.c.bf16 %v3965, %v3964
      %v3983 = vpack.c.bf16 %v3967, %v3966
      %s3984 = scalar_lea.vmem %s1, 192
      %v3985 = vld [vmem:[%s3984] sm:$0xf]
      %v3986 = vld [vmem:[%s3984 + $0x4] sm:$0xf]
      %v3987 = vld [vmem:[%s3984 + $0x8] sm:$0xf]
      %v3988 = vld [vmem:[%s3984 + $0xc] sm:$0xf]
      %v3989 = vld [vmem:[%s3984 + $0x10] sm:$0xf]
      %v3990 = vld [vmem:[%s3984 + $0x14] sm:$0xf]
      %v3991 = vld [vmem:[%s3984 + $0x18] sm:$0xf]
      %v3992 = vld [vmem:[%s3984 + $0x1c] sm:$0xf]
      %v4001 = vunpack.c.l.b16 %v3985
      %v4002 = vunpack.c.l.b16 %v3986
      %v4003 = vunpack.c.l.b16 %v3987
      %v4004 = vunpack.c.l.b16 %v3988
      %v4005 = vunpack.c.l.b16 %v3989
      %v4006 = vunpack.c.l.b16 %v3990
      %v4007 = vunpack.c.l.b16 %v3991
      %v4008 = vunpack.c.l.b16 %v3992
      %v4009 = vpack.c.b16 %v4002, %v4001
      %v4010 = vpack.c.b16 %v4004, %v4003
      %v4011 = vpack.c.b16 %v4006, %v4005
      %v4012 = vpack.c.b16 %v4008, %v4007
      %v4018 = vsel %vm1324, %v3968, 0
      %v4021 = vsel %vm1324, %v3969, 0
      %v4024 = vsel %vm1324, %v3970, 0
      %v4027 = vsel %vm1324, %v3971, 0
      %v4030 = vsel %vm1324, %v3972, 0
      %v4033 = vsel %vm1324, %v3973, 0
      %v4036 = vsel %vm1324, %v3974, 0
      %v4039 = vsel %vm1324, %v3975, 0
      %v4042 = vsel %vm1324, %v3976, 0
      %v4045 = vsel %vm1324, %v3977, 0
      %v4048 = vsel %vm1324, %v3978, 0
      %v4051 = vsel %vm1324, %v3979, 0
      %v4054 = vsel %vm1324, %v3980, 0
      %v4057 = vsel %vm1324, %v3981, 0
      %v4060 = vsel %vm1324, %v3982, 0
      %v4063 = vsel %vm1324, %v3983, 0
      %4065 = vmatpush.bf16.msra.mxu0 0
      %4066 = vmatpush.bf16.msra.mxu0 0
      %4067 = vmatpush.bf16.msra.mxu0 0
      %4068 = vmatpush.bf16.msra.mxu0 0
      %4069 = vmatpush.bf16.msra.mxu0 %v4012
      %4070 = vmatpush.bf16.msra.mxu0 %v4011
      %4071 = vmatpush.bf16.msra.mxu0 %v4010
      %4072 = vmatpush.bf16.msra.mxu0 %v4009
      %4073 = vmatmul.bf16.gmra.mxu0 %v4018
      %v4074 = vpop.f32.mrf.mxu0
      %v4075 = vadd.f32 0.0, %v4074
      %v4076 = vpop.f32.mrf.mxu0
      %v4077 = vadd.f32 0.0, %v4076
      %4078 = vmatmul.bf16.gmra.mxu0 %v4021
      %v4079 = vpop.f32.mrf.mxu0
      %v4080 = vadd.f32 0.0, %v4079
      %v4081 = vpop.f32.mrf.mxu0
      %v4082 = vadd.f32 0.0, %v4081
      %4083 = vmatmul.bf16.gmra.mxu0 %v4024
      %v4084 = vpop.f32.mrf.mxu0
      %v4085 = vadd.f32 0.0, %v4084
      %v4086 = vpop.f32.mrf.mxu0
      %v4087 = vadd.f32 0.0, %v4086
      %4088 = vmatmul.bf16.gmra.mxu0 %v4027
      %v4089 = vpop.f32.mrf.mxu0
      %v4090 = vadd.f32 0.0, %v4089
      %v4091 = vpop.f32.mrf.mxu0
      %v4092 = vadd.f32 0.0, %v4091
      %4093 = vmatmul.bf16.gmra.mxu0 %v4030
      %v4094 = vpop.f32.mrf.mxu0
      %v4095 = vadd.f32 0.0, %v4094
      %v4096 = vpop.f32.mrf.mxu0
      %v4097 = vadd.f32 0.0, %v4096
      %4098 = vmatmul.bf16.gmra.mxu0 %v4033
      %v4099 = vpop.f32.mrf.mxu0
      %v4100 = vadd.f32 0.0, %v4099
      %v4101 = vpop.f32.mrf.mxu0
      %v4102 = vadd.f32 0.0, %v4101
      %4103 = vmatmul.bf16.gmra.mxu0 %v4036
      %v4104 = vpop.f32.mrf.mxu0
      %v4105 = vadd.f32 0.0, %v4104
      %v4106 = vpop.f32.mrf.mxu0
      %v4107 = vadd.f32 0.0, %v4106
      %4108 = vmatmul.bf16.gmra.mxu0 %v4039
      %v4109 = vpop.f32.mrf.mxu0
      %v4110 = vadd.f32 0.0, %v4109
      %v4111 = vpop.f32.mrf.mxu0
      %v4112 = vadd.f32 0.0, %v4111
      %4113 = vmatmul.bf16.gmra.mxu0 %v4042
      %v4114 = vpop.f32.mrf.mxu0
      %v4115 = vadd.f32 0.0, %v4114
      %v4116 = vpop.f32.mrf.mxu0
      %v4117 = vadd.f32 0.0, %v4116
      %4118 = vmatmul.bf16.gmra.mxu0 %v4045
      %v4119 = vpop.f32.mrf.mxu0
      %v4120 = vadd.f32 0.0, %v4119
      %v4121 = vpop.f32.mrf.mxu0
      %v4122 = vadd.f32 0.0, %v4121
      %4123 = vmatmul.bf16.gmra.mxu0 %v4048
      %v4124 = vpop.f32.mrf.mxu0
      %v4125 = vadd.f32 0.0, %v4124
      %v4126 = vpop.f32.mrf.mxu0
      %v4127 = vadd.f32 0.0, %v4126
      %4128 = vmatmul.bf16.gmra.mxu0 %v4051
      %v4129 = vpop.f32.mrf.mxu0
      %v4130 = vadd.f32 0.0, %v4129
      %v4131 = vpop.f32.mrf.mxu0
      %v4132 = vadd.f32 0.0, %v4131
      %4133 = vmatmul.bf16.gmra.mxu0 %v4054
      %v4134 = vpop.f32.mrf.mxu0
      %v4135 = vadd.f32 0.0, %v4134
      %v4136 = vpop.f32.mrf.mxu0
      %v4137 = vadd.f32 0.0, %v4136
      %4138 = vmatmul.bf16.gmra.mxu0 %v4057
      %v4139 = vpop.f32.mrf.mxu0
      %v4140 = vadd.f32 0.0, %v4139
      %v4141 = vpop.f32.mrf.mxu0
      %v4142 = vadd.f32 0.0, %v4141
      %4143 = vmatmul.bf16.gmra.mxu0 %v4060
      %v4144 = vpop.f32.mrf.mxu0
      %v4145 = vadd.f32 0.0, %v4144
      %v4146 = vpop.f32.mrf.mxu0
      %v4147 = vadd.f32 0.0, %v4146
      %4148 = vmatmul.bf16.gmra.mxu0 %v4063
      %v4149 = vpop.f32.mrf.mxu0
      %v4150 = vadd.f32 0.0, %v4149
      %v4151 = vpop.f32.mrf.mxu0
      %v4152 = vadd.f32 0.0, %v4151
      %4153 = vdwg.mxu0
      %v4154 = vadd.f32 %v3552, %v4075
      %v4155 = vadd.f32 %v3553, %v4077
      %v4156 = vadd.f32 %v3554, %v4080
      %v4157 = vadd.f32 %v3555, %v4082
      %v4158 = vadd.f32 %v3556, %v4085
      %v4159 = vadd.f32 %v3557, %v4087
      %v4160 = vadd.f32 %v3558, %v4090
      %v4161 = vadd.f32 %v3559, %v4092
      %v4162 = vadd.f32 %v3560, %v4095
      %v4163 = vadd.f32 %v3561, %v4097
      %v4164 = vadd.f32 %v3562, %v4100
      %v4165 = vadd.f32 %v3563, %v4102
      %v4166 = vadd.f32 %v3564, %v4105
      %v4167 = vadd.f32 %v3565, %v4107
      %v4168 = vadd.f32 %v3566, %v4110
      %v4169 = vadd.f32 %v3567, %v4112
      %v4170 = vadd.f32 %v3568, %v4115
      %v4171 = vadd.f32 %v3569, %v4117
      %v4172 = vadd.f32 %v3570, %v4120
      %v4173 = vadd.f32 %v3571, %v4122
      %v4174 = vadd.f32 %v3572, %v4125
      %v4175 = vadd.f32 %v3573, %v4127
      %v4176 = vadd.f32 %v3574, %v4130
      %v4177 = vadd.f32 %v3575, %v4132
      %v4178 = vadd.f32 %v3576, %v4135
      %v4179 = vadd.f32 %v3577, %v4137
      %v4180 = vadd.f32 %v3578, %v4140
      %v4181 = vadd.f32 %v3579, %v4142
      %v4182 = vadd.f32 %v3580, %v4145
      %v4183 = vadd.f32 %v3581, %v4147
      %v4184 = vadd.f32 %v3582, %v4150
      %v4185 = vadd.f32 %v3583, %v4152
      %vm4186 = vmand %vm3680, %vm955
      %vm4187 = vmand %vm3681, %vm956
      %vm4188 = vmand %vm3682, %vm957
      %vm4189 = vmand %vm3683, %vm958
      %vm4190 = vmand %vm3684, %vm959
      %vm4191 = vmand %vm3685, %vm960
      %vm4192 = vmand %vm3686, %vm961
      %vm4193 = vmand %vm3687, %vm962
      %vm4194 = vmand %vm3688, %vm963
      %vm4195 = vmand %vm3689, %vm964
      %vm4196 = vmand %vm3690, %vm965
      %vm4197 = vmand %vm3691, %vm966
      %vm4198 = vmand %vm3692, %vm967
      %vm4199 = vmand %vm3693, %vm968
      %vm4200 = vmand %vm3694, %vm969
      %vm4201 = vmand %vm3695, %vm970
      %vm4202 = vmand %vm3696, %vm971
      %vm4203 = vmand %vm3697, %vm972
      %vm4204 = vmand %vm3698, %vm973
      %vm4205 = vmand %vm3699, %vm974
      %vm4206 = vmand %vm3700, %vm975
      %vm4207 = vmand %vm3701, %vm976
      %vm4208 = vmand %vm3702, %vm977
      %vm4209 = vmand %vm3703, %vm978
      %vm4210 = vmand %vm3704, %vm979
      %vm4211 = vmand %vm3705, %vm980
      %vm4212 = vmand %vm3706, %vm981
      %vm4213 = vmand %vm3707, %vm982
      %vm4214 = vmand %vm3708, %vm983
      %vm4215 = vmand %vm3709, %vm984
      %vm4216 = vmand %vm3710, %vm985
      %vm4217 = vmand %vm3711, %vm986
      %vm4218 = vmand %vm4186, %vm1019
      %vm4219 = vmand %vm4187, %vm1020
      %vm4220 = vmand %vm4188, %vm1021
      %vm4221 = vmand %vm4189, %vm1022
      %vm4222 = vmand %vm4190, %vm1023
      %vm4223 = vmand %vm4191, %vm1024
      %vm4224 = vmand %vm4192, %vm1025
      %vm4225 = vmand %vm4193, %vm1026
      %vm4226 = vmand %vm4194, %vm1027
      %vm4227 = vmand %vm4195, %vm1028
      %vm4228 = vmand %vm4196, %vm1029
      %vm4229 = vmand %vm4197, %vm1030
      %vm4230 = vmand %vm4198, %vm1031
      %vm4231 = vmand %vm4199, %vm1032
      %vm4232 = vmand %vm4200, %vm1033
      %vm4233 = vmand %vm4201, %vm1034
      %vm4234 = vmand %vm4202, %vm1035
      %vm4235 = vmand %vm4203, %vm1036
      %vm4236 = vmand %vm4204, %vm1037
      %vm4237 = vmand %vm4205, %vm1038
      %vm4238 = vmand %vm4206, %vm1039
      %vm4239 = vmand %vm4207, %vm1040
      %vm4240 = vmand %vm4208, %vm1041
      %vm4241 = vmand %vm4209, %vm1042
      %vm4242 = vmand %vm4210, %vm1043
      %vm4243 = vmand %vm4211, %vm1044
      %vm4244 = vmand %vm4212, %vm1045
      %vm4245 = vmand %vm4213, %vm1046
      %vm4246 = vmand %vm4214, %vm1047
      %vm4247 = vmand %vm4215, %vm1048
      %vm4248 = vmand %vm4216, %vm1049
      %vm4249 = vmand %vm4217, %vm1050
      %v4250 = vsel %vm4218, 1, 0
      %v4251 = vsel %vm4219, 1, 0
      %v4252 = vsel %vm4220, 1, 0
      %v4253 = vsel %vm4221, 1, 0
      %v4254 = vsel %vm4222, 1, 0
      %v4255 = vsel %vm4223, 1, 0
      %v4256 = vsel %vm4224, 1, 0
      %v4257 = vsel %vm4225, 1, 0
      %v4258 = vsel %vm4226, 1, 0
      %v4259 = vsel %vm4227, 1, 0
      %v4260 = vsel %vm4228, 1, 0
      %v4261 = vsel %vm4229, 1, 0
      %v4262 = vsel %vm4230, 1, 0
      %v4263 = vsel %vm4231, 1, 0
      %v4264 = vsel %vm4232, 1, 0
      %v4265 = vsel %vm4233, 1, 0
      %v4266 = vsel %vm4234, 1, 0
      %v4267 = vsel %vm4235, 1, 0
      %v4268 = vsel %vm4236, 1, 0
      %v4269 = vsel %vm4237, 1, 0
      %v4270 = vsel %vm4238, 1, 0
      %v4271 = vsel %vm4239, 1, 0
      %v4272 = vsel %vm4240, 1, 0
      %v4273 = vsel %vm4241, 1, 0
      %v4274 = vsel %vm4242, 1, 0
      %v4275 = vsel %vm4243, 1, 0
      %v4276 = vsel %vm4244, 1, 0
      %v4277 = vsel %vm4245, 1, 0
      %v4278 = vsel %vm4246, 1, 0
      %v4279 = vsel %vm4247, 1, 0
      %v4280 = vsel %vm4248, 1, 0
      %v4281 = vsel %vm4249, 1, 0
      %4282 = vset.pattern.permute.xlu0 0
      %4283 = vperm.xlu0 %4282, %v4250
      %v4284 = vpop.permute.xlu0 %4283
      %4285 = vset.pattern.permute.xlu0 0
      %4286 = vperm.xlu0 %4285, %v4251
      %v4287 = vpop.permute.xlu0 %4286
      %4288 = vset.pattern.permute.xlu0 0
      %4289 = vperm.xlu0 %4288, %v4252
      %v4290 = vpop.permute.xlu0 %4289
      %4291 = vset.pattern.permute.xlu0 0
      %4292 = vperm.xlu0 %4291, %v4253
      %v4293 = vpop.permute.xlu0 %4292
      %4294 = vset.pattern.permute.xlu0 0
      %4295 = vperm.xlu0 %4294, %v4254
      %v4296 = vpop.permute.xlu0 %4295
      %4297 = vset.pattern.permute.xlu0 0
      %4298 = vperm.xlu0 %4297, %v4255
      %v4299 = vpop.permute.xlu0 %4298
      %4300 = vset.pattern.permute.xlu0 0
      %4301 = vperm.xlu0 %4300, %v4256
      %v4302 = vpop.permute.xlu0 %4301
      %4303 = vset.pattern.permute.xlu0 0
      %4304 = vperm.xlu0 %4303, %v4257
      %v4305 = vpop.permute.xlu0 %4304
      %4306 = vset.pattern.permute.xlu0 0
      %4307 = vperm.xlu0 %4306, %v4258
      %v4308 = vpop.permute.xlu0 %4307
      %4309 = vset.pattern.permute.xlu0 0
      %4310 = vperm.xlu0 %4309, %v4259
      %v4311 = vpop.permute.xlu0 %4310
      %4312 = vset.pattern.permute.xlu0 0
      %4313 = vperm.xlu0 %4312, %v4260
      %v4314 = vpop.permute.xlu0 %4313
      %4315 = vset.pattern.permute.xlu0 0
      %4316 = vperm.xlu0 %4315, %v4261
      %v4317 = vpop.permute.xlu0 %4316
      %4318 = vset.pattern.permute.xlu0 0
      %4319 = vperm.xlu0 %4318, %v4262
      %v4320 = vpop.permute.xlu0 %4319
      %4321 = vset.pattern.permute.xlu0 0
      %4322 = vperm.xlu0 %4321, %v4263
      %v4323 = vpop.permute.xlu0 %4322
      %4324 = vset.pattern.permute.xlu0 0
      %4325 = vperm.xlu0 %4324, %v4264
      %v4326 = vpop.permute.xlu0 %4325
      %4327 = vset.pattern.permute.xlu0 0
      %4328 = vperm.xlu0 %4327, %v4265
      %v4329 = vpop.permute.xlu0 %4328
      %4330 = vset.pattern.permute.xlu0 0
      %4331 = vperm.xlu0 %4330, %v4266
      %v4332 = vpop.permute.xlu0 %4331
      %4333 = vset.pattern.permute.xlu0 0
      %4334 = vperm.xlu0 %4333, %v4267
      %v4335 = vpop.permute.xlu0 %4334
      %4336 = vset.pattern.permute.xlu0 0
      %4337 = vperm.xlu0 %4336, %v4268
      %v4338 = vpop.permute.xlu0 %4337
      %4339 = vset.pattern.permute.xlu0 0
      %4340 = vperm.xlu0 %4339, %v4269
      %v4341 = vpop.permute.xlu0 %4340
      %4342 = vset.pattern.permute.xlu0 0
      %4343 = vperm.xlu0 %4342, %v4270
      %v4344 = vpop.permute.xlu0 %4343
      %4345 = vset.pattern.permute.xlu0 0
      %4346 = vperm.xlu0 %4345, %v4271
      %v4347 = vpop.permute.xlu0 %4346
      %4348 = vset.pattern.permute.xlu0 0
      %4349 = vperm.xlu0 %4348, %v4272
      %v4350 = vpop.permute.xlu0 %4349
      %4351 = vset.pattern.permute.xlu0 0
      %4352 = vperm.xlu0 %4351, %v4273
      %v4353 = vpop.permute.xlu0 %4352
      %4354 = vset.pattern.permute.xlu0 0
      %4355 = vperm.xlu0 %4354, %v4274
      %v4356 = vpop.permute.xlu0 %4355
      %4357 = vset.pattern.permute.xlu0 0
      %4358 = vperm.xlu0 %4357, %v4275
      %v4359 = vpop.permute.xlu0 %4358
      %4360 = vset.pattern.permute.xlu0 0
      %4361 = vperm.xlu0 %4360, %v4276
      %v4362 = vpop.permute.xlu0 %4361
      %4363 = vset.pattern.permute.xlu0 0
      %4364 = vperm.xlu0 %4363, %v4277
      %v4365 = vpop.permute.xlu0 %4364
      %4366 = vset.pattern.permute.xlu0 0
      %4367 = vperm.xlu0 %4366, %v4278
      %v4368 = vpop.permute.xlu0 %4367
      %4369 = vset.pattern.permute.xlu0 0
      %4370 = vperm.xlu0 %4369, %v4279
      %v4371 = vpop.permute.xlu0 %4370
      %4372 = vset.pattern.permute.xlu0 0
      %4373 = vperm.xlu0 %4372, %v4280
      %v4374 = vpop.permute.xlu0 %4373
      %4375 = vset.pattern.permute.xlu0 0
      %4376 = vperm.xlu0 %4375, %v4281
      %v4377 = vpop.permute.xlu0 %4376
      %vm4378 = vcmp.eq.s32.totalorder %v4284, 1
      %vm4379 = vcmp.eq.s32.totalorder %v4287, 1
      %vm4380 = vcmp.eq.s32.totalorder %v4290, 1
      %vm4381 = vcmp.eq.s32.totalorder %v4293, 1
      %vm4382 = vcmp.eq.s32.totalorder %v4296, 1
      %vm4383 = vcmp.eq.s32.totalorder %v4299, 1
      %vm4384 = vcmp.eq.s32.totalorder %v4302, 1
      %vm4385 = vcmp.eq.s32.totalorder %v4305, 1
      %vm4386 = vcmp.eq.s32.totalorder %v4308, 1
      %vm4387 = vcmp.eq.s32.totalorder %v4311, 1
      %vm4388 = vcmp.eq.s32.totalorder %v4314, 1
      %vm4389 = vcmp.eq.s32.totalorder %v4317, 1
      %vm4390 = vcmp.eq.s32.totalorder %v4320, 1
      %vm4391 = vcmp.eq.s32.totalorder %v4323, 1
      %vm4392 = vcmp.eq.s32.totalorder %v4326, 1
      %vm4393 = vcmp.eq.s32.totalorder %v4329, 1
      %vm4394 = vcmp.eq.s32.totalorder %v4332, 1
      %vm4395 = vcmp.eq.s32.totalorder %v4335, 1
      %vm4396 = vcmp.eq.s32.totalorder %v4338, 1
      %vm4397 = vcmp.eq.s32.totalorder %v4341, 1
      %vm4398 = vcmp.eq.s32.totalorder %v4344, 1
      %vm4399 = vcmp.eq.s32.totalorder %v4347, 1
      %vm4400 = vcmp.eq.s32.totalorder %v4350, 1
      %vm4401 = vcmp.eq.s32.totalorder %v4353, 1
      %vm4402 = vcmp.eq.s32.totalorder %v4356, 1
      %vm4403 = vcmp.eq.s32.totalorder %v4359, 1
      %vm4404 = vcmp.eq.s32.totalorder %v4362, 1
      %vm4405 = vcmp.eq.s32.totalorder %v4365, 1
      %vm4406 = vcmp.eq.s32.totalorder %v4368, 1
      %vm4407 = vcmp.eq.s32.totalorder %v4371, 1
      %vm4408 = vcmp.eq.s32.totalorder %v4374, 1
      %vm4409 = vcmp.eq.s32.totalorder %v4377, 1
      %v4410 = vsel %vm4378, %v290, 0.0
      %v4411 = vsel %vm4379, %v291, 0.0
      %v4412 = vsel %vm4380, %v292, 0.0
      %v4413 = vsel %vm4381, %v293, 0.0
      %v4414 = vsel %vm4382, %v294, 0.0
      %v4415 = vsel %vm4383, %v295, 0.0
      %v4416 = vsel %vm4384, %v296, 0.0
      %v4417 = vsel %vm4385, %v297, 0.0
      %v4418 = vsel %vm4386, %v298, 0.0
      %v4419 = vsel %vm4387, %v299, 0.0
      %v4420 = vsel %vm4388, %v300, 0.0
      %v4421 = vsel %vm4389, %v301, 0.0
      %v4422 = vsel %vm4390, %v302, 0.0
      %v4423 = vsel %vm4391, %v303, 0.0
      %v4424 = vsel %vm4392, %v304, 0.0
      %v4425 = vsel %vm4393, %v305, 0.0
      %v4426 = vsel %vm4394, %v306, 0.0
      %v4427 = vsel %vm4395, %v307, 0.0
      %v4428 = vsel %vm4396, %v308, 0.0
      %v4429 = vsel %vm4397, %v309, 0.0
      %v4430 = vsel %vm4398, %v310, 0.0
      %v4431 = vsel %vm4399, %v311, 0.0
      %v4432 = vsel %vm4400, %v312, 0.0
      %v4433 = vsel %vm4401, %v313, 0.0
      %v4434 = vsel %vm4402, %v314, 0.0
      %v4435 = vsel %vm4403, %v315, 0.0
      %v4436 = vsel %vm4404, %v316, 0.0
      %v4437 = vsel %vm4405, %v317, 0.0
      %v4438 = vsel %vm4406, %v318, 0.0
      %v4439 = vsel %vm4407, %v319, 0.0
      %v4440 = vsel %vm4408, %v288, 0.0
      %v4441 = vsel %vm4409, %v289, 0.0
      %v4442 = vpack.c.bf16 %v4411, %v4410
      %v4443 = vpack.c.bf16 %v4413, %v4412
      %v4444 = vpack.c.bf16 %v4415, %v4414
      %v4445 = vpack.c.bf16 %v4417, %v4416
      %v4446 = vpack.c.bf16 %v4419, %v4418
      %v4447 = vpack.c.bf16 %v4421, %v4420
      %v4448 = vpack.c.bf16 %v4423, %v4422
      %v4449 = vpack.c.bf16 %v4425, %v4424
      %v4450 = vpack.c.bf16 %v4427, %v4426
      %v4451 = vpack.c.bf16 %v4429, %v4428
      %v4452 = vpack.c.bf16 %v4431, %v4430
      %v4453 = vpack.c.bf16 %v4433, %v4432
      %v4454 = vpack.c.bf16 %v4435, %v4434
      %v4455 = vpack.c.bf16 %v4437, %v4436
      %v4456 = vpack.c.bf16 %v4439, %v4438
      %v4457 = vpack.c.bf16 %v4441, %v4440
      %s4458 = scalar_lea.vmem %s1, 224
      %v4459 = vld [vmem:[%s4458] sm:$0xf]
      %v4460 = vld [vmem:[%s4458 + $0x4] sm:$0xf]
      %v4461 = vld [vmem:[%s4458 + $0x8] sm:$0xf]
      %v4462 = vld [vmem:[%s4458 + $0xc] sm:$0xf]
      %v4463 = vld [vmem:[%s4458 + $0x10] sm:$0xf]
      %v4464 = vld [vmem:[%s4458 + $0x14] sm:$0xf]
      %v4465 = vld [vmem:[%s4458 + $0x18] sm:$0xf]
      %v4466 = vld [vmem:[%s4458 + $0x1c] sm:$0xf]
      %v4475 = vunpack.c.l.b16 %v4459
      %v4476 = vunpack.c.l.b16 %v4460
      %v4477 = vunpack.c.l.b16 %v4461
      %v4478 = vunpack.c.l.b16 %v4462
      %v4479 = vunpack.c.l.b16 %v4463
      %v4480 = vunpack.c.l.b16 %v4464
      %v4481 = vunpack.c.l.b16 %v4465
      %v4482 = vunpack.c.l.b16 %v4466
      %v4483 = vpack.c.b16 %v4476, %v4475
      %v4484 = vpack.c.b16 %v4478, %v4477
      %v4485 = vpack.c.b16 %v4480, %v4479
      %v4486 = vpack.c.b16 %v4482, %v4481
      %v4492 = vsel %vm1324, %v4442, 0
      %v4495 = vsel %vm1324, %v4443, 0
      %v4498 = vsel %vm1324, %v4444, 0
      %v4501 = vsel %vm1324, %v4445, 0
      %v4504 = vsel %vm1324, %v4446, 0
      %v4507 = vsel %vm1324, %v4447, 0
      %v4510 = vsel %vm1324, %v4448, 0
      %v4513 = vsel %vm1324, %v4449, 0
      %v4516 = vsel %vm1324, %v4450, 0
      %v4519 = vsel %vm1324, %v4451, 0
      %v4522 = vsel %vm1324, %v4452, 0
      %v4525 = vsel %vm1324, %v4453, 0
      %v4528 = vsel %vm1324, %v4454, 0
      %v4531 = vsel %vm1324, %v4455, 0
      %v4534 = vsel %vm1324, %v4456, 0
      %v4537 = vsel %vm1324, %v4457, 0
      %4539 = vmatpush.bf16.msra.mxu0 0
      %4540 = vmatpush.bf16.msra.mxu0 0
      %4541 = vmatpush.bf16.msra.mxu0 0
      %4542 = vmatpush.bf16.msra.mxu0 0
      %4543 = vmatpush.bf16.msra.mxu0 %v4486
      %4544 = vmatpush.bf16.msra.mxu0 %v4485
      %4545 = vmatpush.bf16.msra.mxu0 %v4484
      %4546 = vmatpush.bf16.msra.mxu0 %v4483
      %4547 = vmatmul.bf16.gmra.mxu0 %v4492
      %v4548 = vpop.f32.mrf.mxu0
      %v4549 = vadd.f32 0.0, %v4548
      %v4550 = vpop.f32.mrf.mxu0
      %v4551 = vadd.f32 0.0, %v4550
      %4552 = vmatmul.bf16.gmra.mxu0 %v4495
      %v4553 = vpop.f32.mrf.mxu0
      %v4554 = vadd.f32 0.0, %v4553
      %v4555 = vpop.f32.mrf.mxu0
      %v4556 = vadd.f32 0.0, %v4555
      %4557 = vmatmul.bf16.gmra.mxu0 %v4498
      %v4558 = vpop.f32.mrf.mxu0
      %v4559 = vadd.f32 0.0, %v4558
      %v4560 = vpop.f32.mrf.mxu0
      %v4561 = vadd.f32 0.0, %v4560
      %4562 = vmatmul.bf16.gmra.mxu0 %v4501
      %v4563 = vpop.f32.mrf.mxu0
      %v4564 = vadd.f32 0.0, %v4563
      %v4565 = vpop.f32.mrf.mxu0
      %v4566 = vadd.f32 0.0, %v4565
      %4567 = vmatmul.bf16.gmra.mxu0 %v4504
      %v4568 = vpop.f32.mrf.mxu0
      %v4569 = vadd.f32 0.0, %v4568
      %v4570 = vpop.f32.mrf.mxu0
      %v4571 = vadd.f32 0.0, %v4570
      %4572 = vmatmul.bf16.gmra.mxu0 %v4507
      %v4573 = vpop.f32.mrf.mxu0
      %v4574 = vadd.f32 0.0, %v4573
      %v4575 = vpop.f32.mrf.mxu0
      %v4576 = vadd.f32 0.0, %v4575
      %4577 = vmatmul.bf16.gmra.mxu0 %v4510
      %v4578 = vpop.f32.mrf.mxu0
      %v4579 = vadd.f32 0.0, %v4578
      %v4580 = vpop.f32.mrf.mxu0
      %v4581 = vadd.f32 0.0, %v4580
      %4582 = vmatmul.bf16.gmra.mxu0 %v4513
      %v4583 = vpop.f32.mrf.mxu0
      %v4584 = vadd.f32 0.0, %v4583
      %v4585 = vpop.f32.mrf.mxu0
      %v4586 = vadd.f32 0.0, %v4585
      %4587 = vmatmul.bf16.gmra.mxu0 %v4516
      %v4588 = vpop.f32.mrf.mxu0
      %v4589 = vadd.f32 0.0, %v4588
      %v4590 = vpop.f32.mrf.mxu0
      %v4591 = vadd.f32 0.0, %v4590
      %4592 = vmatmul.bf16.gmra.mxu0 %v4519
      %v4593 = vpop.f32.mrf.mxu0
      %v4594 = vadd.f32 0.0, %v4593
      %v4595 = vpop.f32.mrf.mxu0
      %v4596 = vadd.f32 0.0, %v4595
      %4597 = vmatmul.bf16.gmra.mxu0 %v4522
      %v4598 = vpop.f32.mrf.mxu0
      %v4599 = vadd.f32 0.0, %v4598
      %v4600 = vpop.f32.mrf.mxu0
      %v4601 = vadd.f32 0.0, %v4600
      %4602 = vmatmul.bf16.gmra.mxu0 %v4525
      %v4603 = vpop.f32.mrf.mxu0
      %v4604 = vadd.f32 0.0, %v4603
      %v4605 = vpop.f32.mrf.mxu0
      %v4606 = vadd.f32 0.0, %v4605
      %4607 = vmatmul.bf16.gmra.mxu0 %v4528
      %v4608 = vpop.f32.mrf.mxu0
      %v4609 = vadd.f32 0.0, %v4608
      %v4610 = vpop.f32.mrf.mxu0
      %v4611 = vadd.f32 0.0, %v4610
      %4612 = vmatmul.bf16.gmra.mxu0 %v4531
      %v4613 = vpop.f32.mrf.mxu0
      %v4614 = vadd.f32 0.0, %v4613
      %v4615 = vpop.f32.mrf.mxu0
      %v4616 = vadd.f32 0.0, %v4615
      %4617 = vmatmul.bf16.gmra.mxu0 %v4534
      %v4618 = vpop.f32.mrf.mxu0
      %v4619 = vadd.f32 0.0, %v4618
      %v4620 = vpop.f32.mrf.mxu0
      %v4621 = vadd.f32 0.0, %v4620
      %4622 = vmatmul.bf16.gmra.mxu0 %v4537
      %v4623 = vpop.f32.mrf.mxu0
      %v4624 = vadd.f32 0.0, %v4623
      %v4625 = vpop.f32.mrf.mxu0
      %v4626 = vadd.f32 0.0, %v4625
      %4627 = vdwg.mxu0
      %v4628 = vadd.f32 %v4154, %v4549
      %v4629 = vadd.f32 %v4155, %v4551
      %v4630 = vadd.f32 %v4156, %v4554
      %v4631 = vadd.f32 %v4157, %v4556
      %v4632 = vadd.f32 %v4158, %v4559
      %v4633 = vadd.f32 %v4159, %v4561
      %v4634 = vadd.f32 %v4160, %v4564
      %v4635 = vadd.f32 %v4161, %v4566
      %v4636 = vadd.f32 %v4162, %v4569
      %v4637 = vadd.f32 %v4163, %v4571
      %v4638 = vadd.f32 %v4164, %v4574
      %v4639 = vadd.f32 %v4165, %v4576
      %v4640 = vadd.f32 %v4166, %v4579
      %v4641 = vadd.f32 %v4167, %v4581
      %v4642 = vadd.f32 %v4168, %v4584
      %v4643 = vadd.f32 %v4169, %v4586
      %v4644 = vadd.f32 %v4170, %v4589
      %v4645 = vadd.f32 %v4171, %v4591
      %v4646 = vadd.f32 %v4172, %v4594
      %v4647 = vadd.f32 %v4173, %v4596
      %v4648 = vadd.f32 %v4174, %v4599
      %v4649 = vadd.f32 %v4175, %v4601
      %v4650 = vadd.f32 %v4176, %v4604
      %v4651 = vadd.f32 %v4177, %v4606
      %v4652 = vadd.f32 %v4178, %v4609
      %v4653 = vadd.f32 %v4179, %v4611
      %v4654 = vadd.f32 %v4180, %v4614
      %v4655 = vadd.f32 %v4181, %v4616
      %v4656 = vadd.f32 %v4182, %v4619
      %v4657 = vadd.f32 %v4183, %v4621
      %v4658 = vadd.f32 %v4184, %v4624
      %v4659 = vadd.f32 %v4185, %v4626
      %vm4660 = vmand %vm3680, %vm1720
      %vm4661 = vmand %vm3681, %vm1721
      %vm4662 = vmand %vm3682, %vm1722
      %vm4663 = vmand %vm3683, %vm1723
      %vm4664 = vmand %vm3684, %vm1724
      %vm4665 = vmand %vm3685, %vm1725
      %vm4666 = vmand %vm3686, %vm1726
      %vm4667 = vmand %vm3687, %vm1727
      %vm4668 = vmand %vm3688, %vm1728
      %vm4669 = vmand %vm3689, %vm1729
      %vm4670 = vmand %vm3690, %vm1730
      %vm4671 = vmand %vm3691, %vm1731
      %vm4672 = vmand %vm3692, %vm1732
      %vm4673 = vmand %vm3693, %vm1733
      %vm4674 = vmand %vm3694, %vm1734
      %vm4675 = vmand %vm3695, %vm1735
      %vm4676 = vmand %vm3696, %vm1736
      %vm4677 = vmand %vm3697, %vm1737
      %vm4678 = vmand %vm3698, %vm1738
      %vm4679 = vmand %vm3699, %vm1739
      %vm4680 = vmand %vm3700, %vm1740
      %vm4681 = vmand %vm3701, %vm1741
      %vm4682 = vmand %vm3702, %vm1742
      %vm4683 = vmand %vm3703, %vm1743
      %vm4684 = vmand %vm3704, %vm1744
      %vm4685 = vmand %vm3705, %vm1745
      %vm4686 = vmand %vm3706, %vm1746
      %vm4687 = vmand %vm3707, %vm1747
      %vm4688 = vmand %vm3708, %vm1748
      %vm4689 = vmand %vm3709, %vm1749
      %vm4690 = vmand %vm3710, %vm1750
      %vm4691 = vmand %vm3711, %vm1751
      %vm4692 = vmand %vm4660, %vm1784
      %vm4693 = vmand %vm4661, %vm1785
      %vm4694 = vmand %vm4662, %vm1786
      %vm4695 = vmand %vm4663, %vm1787
      %vm4696 = vmand %vm4664, %vm1788
      %vm4697 = vmand %vm4665, %vm1789
      %vm4698 = vmand %vm4666, %vm1790
      %vm4699 = vmand %vm4667, %vm1791
      %vm4700 = vmand %vm4668, %vm1792
      %vm4701 = vmand %vm4669, %vm1793
      %vm4702 = vmand %vm4670, %vm1794
      %vm4703 = vmand %vm4671, %vm1795
      %vm4704 = vmand %vm4672, %vm1796
      %vm4705 = vmand %vm4673, %vm1797
      %vm4706 = vmand %vm4674, %vm1798
      %vm4707 = vmand %vm4675, %vm1799
      %vm4708 = vmand %vm4676, %vm1800
      %vm4709 = vmand %vm4677, %vm1801
      %vm4710 = vmand %vm4678, %vm1802
      %vm4711 = vmand %vm4679, %vm1803
      %vm4712 = vmand %vm4680, %vm1804
      %vm4713 = vmand %vm4681, %vm1805
      %vm4714 = vmand %vm4682, %vm1806
      %vm4715 = vmand %vm4683, %vm1807
      %vm4716 = vmand %vm4684, %vm1808
      %vm4717 = vmand %vm4685, %vm1809
      %vm4718 = vmand %vm4686, %vm1810
      %vm4719 = vmand %vm4687, %vm1811
      %vm4720 = vmand %vm4688, %vm1812
      %vm4721 = vmand %vm4689, %vm1813
      %vm4722 = vmand %vm4690, %vm1814
      %vm4723 = vmand %vm4691, %vm1815
      %v4724 = vsel %vm4692, 1, 0
      %v4725 = vsel %vm4693, 1, 0
      %v4726 = vsel %vm4694, 1, 0
      %v4727 = vsel %vm4695, 1, 0
      %v4728 = vsel %vm4696, 1, 0
      %v4729 = vsel %vm4697, 1, 0
      %v4730 = vsel %vm4698, 1, 0
      %v4731 = vsel %vm4699, 1, 0
      %v4732 = vsel %vm4700, 1, 0
      %v4733 = vsel %vm4701, 1, 0
      %v4734 = vsel %vm4702, 1, 0
      %v4735 = vsel %vm4703, 1, 0
      %v4736 = vsel %vm4704, 1, 0
      %v4737 = vsel %vm4705, 1, 0
      %v4738 = vsel %vm4706, 1, 0
      %v4739 = vsel %vm4707, 1, 0
      %v4740 = vsel %vm4708, 1, 0
      %v4741 = vsel %vm4709, 1, 0
      %v4742 = vsel %vm4710, 1, 0
      %v4743 = vsel %vm4711, 1, 0
      %v4744 = vsel %vm4712, 1, 0
      %v4745 = vsel %vm4713, 1, 0
      %v4746 = vsel %vm4714, 1, 0
      %v4747 = vsel %vm4715, 1, 0
      %v4748 = vsel %vm4716, 1, 0
      %v4749 = vsel %vm4717, 1, 0
      %v4750 = vsel %vm4718, 1, 0
      %v4751 = vsel %vm4719, 1, 0
      %v4752 = vsel %vm4720, 1, 0
      %v4753 = vsel %vm4721, 1, 0
      %v4754 = vsel %vm4722, 1, 0
      %v4755 = vsel %vm4723, 1, 0
      %4756 = vset.pattern.permute.xlu0 0
      %4757 = vperm.xlu0 %4756, %v4724
      %v4758 = vpop.permute.xlu0 %4757
      %4759 = vset.pattern.permute.xlu0 0
      %4760 = vperm.xlu0 %4759, %v4725
      %v4761 = vpop.permute.xlu0 %4760
      %4762 = vset.pattern.permute.xlu0 0
      %4763 = vperm.xlu0 %4762, %v4726
      %v4764 = vpop.permute.xlu0 %4763
      %4765 = vset.pattern.permute.xlu0 0
      %4766 = vperm.xlu0 %4765, %v4727
      %v4767 = vpop.permute.xlu0 %4766
      %4768 = vset.pattern.permute.xlu0 0
      %4769 = vperm.xlu0 %4768, %v4728
      %v4770 = vpop.permute.xlu0 %4769
      %4771 = vset.pattern.permute.xlu0 0
      %4772 = vperm.xlu0 %4771, %v4729
      %v4773 = vpop.permute.xlu0 %4772
      %4774 = vset.pattern.permute.xlu0 0
      %4775 = vperm.xlu0 %4774, %v4730
      %v4776 = vpop.permute.xlu0 %4775
      %4777 = vset.pattern.permute.xlu0 0
      %4778 = vperm.xlu0 %4777, %v4731
      %v4779 = vpop.permute.xlu0 %4778
      %4780 = vset.pattern.permute.xlu0 0
      %4781 = vperm.xlu0 %4780, %v4732
      %v4782 = vpop.permute.xlu0 %4781
      %4783 = vset.pattern.permute.xlu0 0
      %4784 = vperm.xlu0 %4783, %v4733
      %v4785 = vpop.permute.xlu0 %4784
      %4786 = vset.pattern.permute.xlu0 0
      %4787 = vperm.xlu0 %4786, %v4734
      %v4788 = vpop.permute.xlu0 %4787
      %4789 = vset.pattern.permute.xlu0 0
      %4790 = vperm.xlu0 %4789, %v4735
      %v4791 = vpop.permute.xlu0 %4790
      %4792 = vset.pattern.permute.xlu0 0
      %4793 = vperm.xlu0 %4792, %v4736
      %v4794 = vpop.permute.xlu0 %4793
      %4795 = vset.pattern.permute.xlu0 0
      %4796 = vperm.xlu0 %4795, %v4737
      %v4797 = vpop.permute.xlu0 %4796
      %4798 = vset.pattern.permute.xlu0 0
      %4799 = vperm.xlu0 %4798, %v4738
      %v4800 = vpop.permute.xlu0 %4799
      %4801 = vset.pattern.permute.xlu0 0
      %4802 = vperm.xlu0 %4801, %v4739
      %v4803 = vpop.permute.xlu0 %4802
      %4804 = vset.pattern.permute.xlu0 0
      %4805 = vperm.xlu0 %4804, %v4740
      %v4806 = vpop.permute.xlu0 %4805
      %4807 = vset.pattern.permute.xlu0 0
      %4808 = vperm.xlu0 %4807, %v4741
      %v4809 = vpop.permute.xlu0 %4808
      %4810 = vset.pattern.permute.xlu0 0
      %4811 = vperm.xlu0 %4810, %v4742
      %v4812 = vpop.permute.xlu0 %4811
      %4813 = vset.pattern.permute.xlu0 0
      %4814 = vperm.xlu0 %4813, %v4743
      %v4815 = vpop.permute.xlu0 %4814
      %4816 = vset.pattern.permute.xlu0 0
      %4817 = vperm.xlu0 %4816, %v4744
      %v4818 = vpop.permute.xlu0 %4817
      %4819 = vset.pattern.permute.xlu0 0
      %4820 = vperm.xlu0 %4819, %v4745
      %v4821 = vpop.permute.xlu0 %4820
      %4822 = vset.pattern.permute.xlu0 0
      %4823 = vperm.xlu0 %4822, %v4746
      %v4824 = vpop.permute.xlu0 %4823
      %4825 = vset.pattern.permute.xlu0 0
      %4826 = vperm.xlu0 %4825, %v4747
      %v4827 = vpop.permute.xlu0 %4826
      %4828 = vset.pattern.permute.xlu0 0
      %4829 = vperm.xlu0 %4828, %v4748
      %v4830 = vpop.permute.xlu0 %4829
      %4831 = vset.pattern.permute.xlu0 0
      %4832 = vperm.xlu0 %4831, %v4749
      %v4833 = vpop.permute.xlu0 %4832
      %4834 = vset.pattern.permute.xlu0 0
      %4835 = vperm.xlu0 %4834, %v4750
      %v4836 = vpop.permute.xlu0 %4835
      %4837 = vset.pattern.permute.xlu0 0
      %4838 = vperm.xlu0 %4837, %v4751
      %v4839 = vpop.permute.xlu0 %4838
      %4840 = vset.pattern.permute.xlu0 0
      %4841 = vperm.xlu0 %4840, %v4752
      %v4842 = vpop.permute.xlu0 %4841
      %4843 = vset.pattern.permute.xlu0 0
      %4844 = vperm.xlu0 %4843, %v4753
      %v4845 = vpop.permute.xlu0 %4844
      %4846 = vset.pattern.permute.xlu0 0
      %4847 = vperm.xlu0 %4846, %v4754
      %v4848 = vpop.permute.xlu0 %4847
      %4849 = vset.pattern.permute.xlu0 0
      %4850 = vperm.xlu0 %4849, %v4755
      %v4851 = vpop.permute.xlu0 %4850
      %vm4852 = vcmp.eq.s32.totalorder %v4758, 1
      %vm4853 = vcmp.eq.s32.totalorder %v4761, 1
      %vm4854 = vcmp.eq.s32.totalorder %v4764, 1
      %vm4855 = vcmp.eq.s32.totalorder %v4767, 1
      %vm4856 = vcmp.eq.s32.totalorder %v4770, 1
      %vm4857 = vcmp.eq.s32.totalorder %v4773, 1
      %vm4858 = vcmp.eq.s32.totalorder %v4776, 1
      %vm4859 = vcmp.eq.s32.totalorder %v4779, 1
      %vm4860 = vcmp.eq.s32.totalorder %v4782, 1
      %vm4861 = vcmp.eq.s32.totalorder %v4785, 1
      %vm4862 = vcmp.eq.s32.totalorder %v4788, 1
      %vm4863 = vcmp.eq.s32.totalorder %v4791, 1
      %vm4864 = vcmp.eq.s32.totalorder %v4794, 1
      %vm4865 = vcmp.eq.s32.totalorder %v4797, 1
      %vm4866 = vcmp.eq.s32.totalorder %v4800, 1
      %vm4867 = vcmp.eq.s32.totalorder %v4803, 1
      %vm4868 = vcmp.eq.s32.totalorder %v4806, 1
      %vm4869 = vcmp.eq.s32.totalorder %v4809, 1
      %vm4870 = vcmp.eq.s32.totalorder %v4812, 1
      %vm4871 = vcmp.eq.s32.totalorder %v4815, 1
      %vm4872 = vcmp.eq.s32.totalorder %v4818, 1
      %vm4873 = vcmp.eq.s32.totalorder %v4821, 1
      %vm4874 = vcmp.eq.s32.totalorder %v4824, 1
      %vm4875 = vcmp.eq.s32.totalorder %v4827, 1
      %vm4876 = vcmp.eq.s32.totalorder %v4830, 1
      %vm4877 = vcmp.eq.s32.totalorder %v4833, 1
      %vm4878 = vcmp.eq.s32.totalorder %v4836, 1
      %vm4879 = vcmp.eq.s32.totalorder %v4839, 1
      %vm4880 = vcmp.eq.s32.totalorder %v4842, 1
      %vm4881 = vcmp.eq.s32.totalorder %v4845, 1
      %vm4882 = vcmp.eq.s32.totalorder %v4848, 1
      %vm4883 = vcmp.eq.s32.totalorder %v4851, 1
      %v4884 = vsel %vm4852, %v1684, 0.0
      %v4885 = vsel %vm4853, %v1683, 0.0
      %v4886 = vsel %vm4854, %v1682, 0.0
      %v4887 = vsel %vm4855, %v1681, 0.0
      %v4888 = vsel %vm4856, %v1680, 0.0
      %v4889 = vsel %vm4857, %v1679, 0.0
      %v4890 = vsel %vm4858, %v1678, 0.0
      %v4891 = vsel %vm4859, %v1677, 0.0
      %v4892 = vsel %vm4860, %v1676, 0.0
      %v4893 = vsel %vm4861, %v1675, 0.0
      %v4894 = vsel %vm4862, %v1674, 0.0
      %v4895 = vsel %vm4863, %v1673, 0.0
      %v4896 = vsel %vm4864, %v1672, 0.0
      %v4897 = vsel %vm4865, %v1671, 0.0
      %v4898 = vsel %vm4866, %v1670, 0.0
      %v4899 = vsel %vm4867, %v1669, 0.0
      %v4900 = vsel %vm4868, %v1668, 0.0
      %v4901 = vsel %vm4869, %v1667, 0.0
      %v4902 = vsel %vm4870, %v1666, 0.0
      %v4903 = vsel %vm4871, %v1665, 0.0
      %v4904 = vsel %vm4872, %v1664, 0.0
      %v4905 = vsel %vm4873, %v1663, 0.0
      %v4906 = vsel %vm4874, %v1662, 0.0
      %v4907 = vsel %vm4875, %v1661, 0.0
      %v4908 = vsel %vm4876, %v1660, 0.0
      %v4909 = vsel %vm4877, %v1659, 0.0
      %v4910 = vsel %vm4878, %v1658, 0.0
      %v4911 = vsel %vm4879, %v1657, 0.0
      %v4912 = vsel %vm4880, %v1656, 0.0
      %v4913 = vsel %vm4881, %v1687, 0.0
      %v4914 = vsel %vm4882, %v1686, 0.0
      %v4915 = vsel %vm4883, %v1685, 0.0
      %v4916 = vpack.c.bf16 %v4885, %v4884
      %v4917 = vpack.c.bf16 %v4887, %v4886
      %v4918 = vpack.c.bf16 %v4889, %v4888
      %v4919 = vpack.c.bf16 %v4891, %v4890
      %v4920 = vpack.c.bf16 %v4893, %v4892
      %v4921 = vpack.c.bf16 %v4895, %v4894
      %v4922 = vpack.c.bf16 %v4897, %v4896
      %v4923 = vpack.c.bf16 %v4899, %v4898
      %v4924 = vpack.c.bf16 %v4901, %v4900
      %v4925 = vpack.c.bf16 %v4903, %v4902
      %v4926 = vpack.c.bf16 %v4905, %v4904
      %v4927 = vpack.c.bf16 %v4907, %v4906
      %v4928 = vpack.c.bf16 %v4909, %v4908
      %v4929 = vpack.c.bf16 %v4911, %v4910
      %v4930 = vpack.c.bf16 %v4913, %v4912
      %v4931 = vpack.c.bf16 %v4915, %v4914
      %s4932 = scalar_lea.vmem %s1, 256
      %v4933 = vld [vmem:[%s4932] sm:$0xf]
      %v4934 = vld [vmem:[%s4932 + $0x4] sm:$0xf]
      %v4935 = vld [vmem:[%s4932 + $0x8] sm:$0xf]
      %v4936 = vld [vmem:[%s4932 + $0xc] sm:$0xf]
      %v4937 = vld [vmem:[%s4932 + $0x10] sm:$0xf]
      %v4938 = vld [vmem:[%s4932 + $0x14] sm:$0xf]
      %v4939 = vld [vmem:[%s4932 + $0x18] sm:$0xf]
      %v4940 = vld [vmem:[%s4932 + $0x1c] sm:$0xf]
      %v4949 = vunpack.c.l.b16 %v4933
      %v4950 = vunpack.c.l.b16 %v4934
      %v4951 = vunpack.c.l.b16 %v4935
      %v4952 = vunpack.c.l.b16 %v4936
      %v4953 = vunpack.c.l.b16 %v4937
      %v4954 = vunpack.c.l.b16 %v4938
      %v4955 = vunpack.c.l.b16 %v4939
      %v4956 = vunpack.c.l.b16 %v4940
      %v4957 = vpack.c.b16 %v4950, %v4949
      %v4958 = vpack.c.b16 %v4952, %v4951
      %v4959 = vpack.c.b16 %v4954, %v4953
      %v4960 = vpack.c.b16 %v4956, %v4955
      %v4966 = vsel %vm1324, %v4916, 0
      %v4969 = vsel %vm1324, %v4917, 0
      %v4972 = vsel %vm1324, %v4918, 0
      %v4975 = vsel %vm1324, %v4919, 0
      %v4978 = vsel %vm1324, %v4920, 0
      %v4981 = vsel %vm1324, %v4921, 0
      %v4984 = vsel %vm1324, %v4922, 0
      %v4987 = vsel %vm1324, %v4923, 0
      %v4990 = vsel %vm1324, %v4924, 0
      %v4993 = vsel %vm1324, %v4925, 0
      %v4996 = vsel %vm1324, %v4926, 0
      %v4999 = vsel %vm1324, %v4927, 0
      %v5002 = vsel %vm1324, %v4928, 0
      %v5005 = vsel %vm1324, %v4929, 0
      %v5008 = vsel %vm1324, %v4930, 0
      %v5011 = vsel %vm1324, %v4931, 0
      %5013 = vmatpush.bf16.msra.mxu0 0
      %5014 = vmatpush.bf16.msra.mxu0 0
      %5015 = vmatpush.bf16.msra.mxu0 0
      %5016 = vmatpush.bf16.msra.mxu0 0
      %5017 = vmatpush.bf16.msra.mxu0 %v4960
      %5018 = vmatpush.bf16.msra.mxu0 %v4959
      %5019 = vmatpush.bf16.msra.mxu0 %v4958
      %5020 = vmatpush.bf16.msra.mxu0 %v4957
      %5021 = vmatmul.bf16.gmra.mxu0 %v4966
      %v5022 = vpop.f32.mrf.mxu0
      %v5023 = vadd.f32 0.0, %v5022
      %v5024 = vpop.f32.mrf.mxu0
      %v5025 = vadd.f32 0.0, %v5024
      %5026 = vmatmul.bf16.gmra.mxu0 %v4969
      %v5027 = vpop.f32.mrf.mxu0
      %v5028 = vadd.f32 0.0, %v5027
      %v5029 = vpop.f32.mrf.mxu0
      %v5030 = vadd.f32 0.0, %v5029
      %5031 = vmatmul.bf16.gmra.mxu0 %v4972
      %v5032 = vpop.f32.mrf.mxu0
      %v5033 = vadd.f32 0.0, %v5032
      %v5034 = vpop.f32.mrf.mxu0
      %v5035 = vadd.f32 0.0, %v5034
      %5036 = vmatmul.bf16.gmra.mxu0 %v4975
      %v5037 = vpop.f32.mrf.mxu0
      %v5038 = vadd.f32 0.0, %v5037
      %v5039 = vpop.f32.mrf.mxu0
      %v5040 = vadd.f32 0.0, %v5039
      %5041 = vmatmul.bf16.gmra.mxu0 %v4978
      %v5042 = vpop.f32.mrf.mxu0
      %v5043 = vadd.f32 0.0, %v5042
      %v5044 = vpop.f32.mrf.mxu0
      %v5045 = vadd.f32 0.0, %v5044
      %5046 = vmatmul.bf16.gmra.mxu0 %v4981
      %v5047 = vpop.f32.mrf.mxu0
      %v5048 = vadd.f32 0.0, %v5047
      %v5049 = vpop.f32.mrf.mxu0
      %v5050 = vadd.f32 0.0, %v5049
      %5051 = vmatmul.bf16.gmra.mxu0 %v4984
      %v5052 = vpop.f32.mrf.mxu0
      %v5053 = vadd.f32 0.0, %v5052
      %v5054 = vpop.f32.mrf.mxu0
      %v5055 = vadd.f32 0.0, %v5054
      %5056 = vmatmul.bf16.gmra.mxu0 %v4987
      %v5057 = vpop.f32.mrf.mxu0
      %v5058 = vadd.f32 0.0, %v5057
      %v5059 = vpop.f32.mrf.mxu0
      %v5060 = vadd.f32 0.0, %v5059
      %5061 = vmatmul.bf16.gmra.mxu0 %v4990
      %v5062 = vpop.f32.mrf.mxu0
      %v5063 = vadd.f32 0.0, %v5062
      %v5064 = vpop.f32.mrf.mxu0
      %v5065 = vadd.f32 0.0, %v5064
      %5066 = vmatmul.bf16.gmra.mxu0 %v4993
      %v5067 = vpop.f32.mrf.mxu0
      %v5068 = vadd.f32 0.0, %v5067
      %v5069 = vpop.f32.mrf.mxu0
      %v5070 = vadd.f32 0.0, %v5069
      %5071 = vmatmul.bf16.gmra.mxu0 %v4996
      %v5072 = vpop.f32.mrf.mxu0
      %v5073 = vadd.f32 0.0, %v5072
      %v5074 = vpop.f32.mrf.mxu0
      %v5075 = vadd.f32 0.0, %v5074
      %5076 = vmatmul.bf16.gmra.mxu0 %v4999
      %v5077 = vpop.f32.mrf.mxu0
      %v5078 = vadd.f32 0.0, %v5077
      %v5079 = vpop.f32.mrf.mxu0
      %v5080 = vadd.f32 0.0, %v5079
      %5081 = vmatmul.bf16.gmra.mxu0 %v5002
      %v5082 = vpop.f32.mrf.mxu0
      %v5083 = vadd.f32 0.0, %v5082
      %v5084 = vpop.f32.mrf.mxu0
      %v5085 = vadd.f32 0.0, %v5084
      %5086 = vmatmul.bf16.gmra.mxu0 %v5005
      %v5087 = vpop.f32.mrf.mxu0
      %v5088 = vadd.f32 0.0, %v5087
      %v5089 = vpop.f32.mrf.mxu0
      %v5090 = vadd.f32 0.0, %v5089
      %5091 = vmatmul.bf16.gmra.mxu0 %v5008
      %v5092 = vpop.f32.mrf.mxu0
      %v5093 = vadd.f32 0.0, %v5092
      %v5094 = vpop.f32.mrf.mxu0
      %v5095 = vadd.f32 0.0, %v5094
      %5096 = vmatmul.bf16.gmra.mxu0 %v5011
      %v5097 = vpop.f32.mrf.mxu0
      %v5098 = vadd.f32 0.0, %v5097
      %v5099 = vpop.f32.mrf.mxu0
      %v5100 = vadd.f32 0.0, %v5099
      %5101 = vdwg.mxu0
      %v5102 = vadd.f32 %v4628, %v5023
      %v5103 = vadd.f32 %v4629, %v5025
      %v5104 = vadd.f32 %v4630, %v5028
      %v5105 = vadd.f32 %v4631, %v5030
      %v5106 = vadd.f32 %v4632, %v5033
      %v5107 = vadd.f32 %v4633, %v5035
      %v5108 = vadd.f32 %v4634, %v5038
      %v5109 = vadd.f32 %v4635, %v5040
      %v5110 = vadd.f32 %v4636, %v5043
      %v5111 = vadd.f32 %v4637, %v5045
      %v5112 = vadd.f32 %v4638, %v5048
      %v5113 = vadd.f32 %v4639, %v5050
      %v5114 = vadd.f32 %v4640, %v5053
      %v5115 = vadd.f32 %v4641, %v5055
      %v5116 = vadd.f32 %v4642, %v5058
      %v5117 = vadd.f32 %v4643, %v5060
      %v5118 = vadd.f32 %v4644, %v5063
      %v5119 = vadd.f32 %v4645, %v5065
      %v5120 = vadd.f32 %v4646, %v5068
      %v5121 = vadd.f32 %v4647, %v5070
      %v5122 = vadd.f32 %v4648, %v5073
      %v5123 = vadd.f32 %v4649, %v5075
      %v5124 = vadd.f32 %v4650, %v5078
      %v5125 = vadd.f32 %v4651, %v5080
      %v5126 = vadd.f32 %v4652, %v5083
      %v5127 = vadd.f32 %v4653, %v5085
      %v5128 = vadd.f32 %v4654, %v5088
      %v5129 = vadd.f32 %v4655, %v5090
      %v5130 = vadd.f32 %v4656, %v5093
      %v5131 = vadd.f32 %v4657, %v5095
      %v5132 = vadd.f32 %v4658, %v5098
      %v5133 = vadd.f32 %v4659, %v5100
      %v5134 = vld [vmem:[%s2] sm:$0x1]
      %v5136 = vperm.slane %v5134, 0
      %v5138 = vmul.f32 %v5102, %v5136
      %v5139 = vmul.f32 %v5103, %v5136
      %v5140 = vmul.f32 %v5104, %v5136
      %v5141 = vmul.f32 %v5105, %v5136
      %v5142 = vmul.f32 %v5106, %v5136
      %v5143 = vmul.f32 %v5107, %v5136
      %v5144 = vmul.f32 %v5108, %v5136
      %v5145 = vmul.f32 %v5109, %v5136
      %v5146 = vmul.f32 %v5110, %v5136
      %v5147 = vmul.f32 %v5111, %v5136
      %v5148 = vmul.f32 %v5112, %v5136
      %v5149 = vmul.f32 %v5113, %v5136
      %v5150 = vmul.f32 %v5114, %v5136
      %v5151 = vmul.f32 %v5115, %v5136
      %v5152 = vmul.f32 %v5116, %v5136
      %v5153 = vmul.f32 %v5117, %v5136
      %v5154 = vmul.f32 %v5118, %v5136
      %v5155 = vmul.f32 %v5119, %v5136
      %v5156 = vmul.f32 %v5120, %v5136
      %v5157 = vmul.f32 %v5121, %v5136
      %v5158 = vmul.f32 %v5122, %v5136
      %v5159 = vmul.f32 %v5123, %v5136
      %v5160 = vmul.f32 %v5124, %v5136
      %v5161 = vmul.f32 %v5125, %v5136
      %v5162 = vmul.f32 %v5126, %v5136
      %v5163 = vmul.f32 %v5127, %v5136
      %v5164 = vmul.f32 %v5128, %v5136
      %v5165 = vmul.f32 %v5129, %v5136
      %v5166 = vmul.f32 %v5130, %v5136
      %v5167 = vmul.f32 %v5131, %v5136
      %v5168 = vmul.f32 %v5132, %v5136
      %v5169 = vmul.f32 %v5133, %v5136
      %v5170 = vld [vmem:[%s3] sm:$0x1]
      %v5172 = vperm.slane %v5170, 0
      %v5174 = vadd.f32 %v5138, %v5172
      %v5175 = vadd.f32 %v5139, %v5172
      %v5176 = vadd.f32 %v5140, %v5172
      %v5177 = vadd.f32 %v5141, %v5172
      %v5178 = vadd.f32 %v5142, %v5172
      %v5179 = vadd.f32 %v5143, %v5172
      %v5180 = vadd.f32 %v5144, %v5172
      %v5181 = vadd.f32 %v5145, %v5172
      %v5182 = vadd.f32 %v5146, %v5172
      %v5183 = vadd.f32 %v5147, %v5172
      %v5184 = vadd.f32 %v5148, %v5172
      %v5185 = vadd.f32 %v5149, %v5172
      %v5186 = vadd.f32 %v5150, %v5172
      %v5187 = vadd.f32 %v5151, %v5172
      %v5188 = vadd.f32 %v5152, %v5172
      %v5189 = vadd.f32 %v5153, %v5172
      %v5190 = vadd.f32 %v5154, %v5172
      %v5191 = vadd.f32 %v5155, %v5172
      %v5192 = vadd.f32 %v5156, %v5172
      %v5193 = vadd.f32 %v5157, %v5172
      %v5194 = vadd.f32 %v5158, %v5172
      %v5195 = vadd.f32 %v5159, %v5172
      %v5196 = vadd.f32 %v5160, %v5172
      %v5197 = vadd.f32 %v5161, %v5172
      %v5198 = vadd.f32 %v5162, %v5172
      %v5199 = vadd.f32 %v5163, %v5172
      %v5200 = vadd.f32 %v5164, %v5172
      %v5201 = vadd.f32 %v5165, %v5172
      %v5202 = vadd.f32 %v5166, %v5172
      %v5203 = vadd.f32 %v5167, %v5172
      %v5204 = vadd.f32 %v5168, %v5172
      %v5205 = vadd.f32 %v5169, %v5172
      %v5206 = vmax.f32 %v5174, 0.0
      %v5207 = vmax.f32 %v5175, 0.0
      %v5208 = vmax.f32 %v5176, 0.0
      %v5209 = vmax.f32 %v5177, 0.0
      %v5210 = vmax.f32 %v5178, 0.0
      %v5211 = vmax.f32 %v5179, 0.0
      %v5212 = vmax.f32 %v5180, 0.0
      %v5213 = vmax.f32 %v5181, 0.0
      %v5214 = vmax.f32 %v5182, 0.0
      %v5215 = vmax.f32 %v5183, 0.0
      %v5216 = vmax.f32 %v5184, 0.0
      %v5217 = vmax.f32 %v5185, 0.0
      %v5218 = vmax.f32 %v5186, 0.0
      %v5219 = vmax.f32 %v5187, 0.0
      %v5220 = vmax.f32 %v5188, 0.0
      %v5221 = vmax.f32 %v5189, 0.0
      %v5222 = vmax.f32 %v5190, 0.0
      %v5223 = vmax.f32 %v5191, 0.0
      %v5224 = vmax.f32 %v5192, 0.0
      %v5225 = vmax.f32 %v5193, 0.0
      %v5226 = vmax.f32 %v5194, 0.0
      %v5227 = vmax.f32 %v5195, 0.0
      %v5228 = vmax.f32 %v5196, 0.0
      %v5229 = vmax.f32 %v5197, 0.0
      %v5230 = vmax.f32 %v5198, 0.0
      %v5231 = vmax.f32 %v5199, 0.0
      %v5232 = vmax.f32 %v5200, 0.0
      %v5233 = vmax.f32 %v5201, 0.0
      %v5234 = vmax.f32 %v5202, 0.0
      %v5235 = vmax.f32 %v5203, 0.0
      %v5236 = vmax.f32 %v5204, 0.0
      %v5237 = vmax.f32 %v5205, 0.0
      %v5238 = vpack.c.bf16 %v5206, %v5206
      %v5239 = vpack.c.bf16 %v5207, %v5207
      %v5240 = vpack.c.bf16 %v5208, %v5208
      %v5241 = vpack.c.bf16 %v5209, %v5209
      %v5242 = vpack.c.bf16 %v5210, %v5210
      %v5243 = vpack.c.bf16 %v5211, %v5211
      %v5244 = vpack.c.bf16 %v5212, %v5212
      %v5245 = vpack.c.bf16 %v5213, %v5213
      %v5246 = vpack.c.bf16 %v5214, %v5214
      %v5247 = vpack.c.bf16 %v5215, %v5215
      %v5248 = vpack.c.bf16 %v5216, %v5216
      %v5249 = vpack.c.bf16 %v5217, %v5217
      %v5250 = vpack.c.bf16 %v5218, %v5218
      %v5251 = vpack.c.bf16 %v5219, %v5219
      %v5252 = vpack.c.bf16 %v5220, %v5220
      %v5253 = vpack.c.bf16 %v5221, %v5221
      %v5254 = vpack.c.bf16 %v5222, %v5222
      %v5255 = vpack.c.bf16 %v5223, %v5223
      %v5256 = vpack.c.bf16 %v5224, %v5224
      %v5257 = vpack.c.bf16 %v5225, %v5225
      %v5258 = vpack.c.bf16 %v5226, %v5226
      %v5259 = vpack.c.bf16 %v5227, %v5227
      %v5260 = vpack.c.bf16 %v5228, %v5228
      %v5261 = vpack.c.bf16 %v5229, %v5229
      %v5262 = vpack.c.bf16 %v5230, %v5230
      %v5263 = vpack.c.bf16 %v5231, %v5231
      %v5264 = vpack.c.bf16 %v5232, %v5232
      %v5265 = vpack.c.bf16 %v5233, %v5233
      %v5266 = vpack.c.bf16 %v5234, %v5234
      %v5267 = vpack.c.bf16 %v5235, %v5235
      %v5268 = vpack.c.bf16 %v5236, %v5236
      %v5269 = vpack.c.bf16 %v5237, %v5237
      %vm5270 = vcmask 519168
      %5271 = vst.msk [vmem:[%s253] sm:$0xf] %vm5270, %v5238
      %5272 = vst.msk [vmem:[%s253 + $0x4] sm:$0xf] %vm5270, %v5239
      %5273 = vst.msk [vmem:[%s253 + $0x8] sm:$0xf] %vm5270, %v5240
      %5274 = vst.msk [vmem:[%s253 + $0xc] sm:$0xf] %vm5270, %v5241
      %5275 = vst.msk [vmem:[%s253 + $0x10] sm:$0xf] %vm5270, %v5242
      %5276 = vst.msk [vmem:[%s253 + $0x14] sm:$0xf] %vm5270, %v5243
      %5277 = vst.msk [vmem:[%s253 + $0x18] sm:$0xf] %vm5270, %v5244
      %5278 = vst.msk [vmem:[%s253 + $0x1c] sm:$0xf] %vm5270, %v5245
      %5279 = vst.msk [vmem:[%s253 + $0x20] sm:$0xf] %vm5270, %v5246
      %5280 = vst.msk [vmem:[%s253 + $0x24] sm:$0xf] %vm5270, %v5247
      %5281 = vst.msk [vmem:[%s253 + $0x28] sm:$0xf] %vm5270, %v5248
      %5282 = vst.msk [vmem:[%s253 + $0x2c] sm:$0xf] %vm5270, %v5249
      %5283 = vst.msk [vmem:[%s253 + $0x30] sm:$0xf] %vm5270, %v5250
      %5284 = vst.msk [vmem:[%s253 + $0x34] sm:$0xf] %vm5270, %v5251
      %5285 = vst.msk [vmem:[%s253 + $0x38] sm:$0xf] %vm5270, %v5252
      %5286 = vst.msk [vmem:[%s253 + $0x3c] sm:$0xf] %vm5270, %v5253
      %5287 = vst.msk [vmem:[%s253 + $0x40] sm:$0xf] %vm5270, %v5254
      %5288 = vst.msk [vmem:[%s253 + $0x44] sm:$0xf] %vm5270, %v5255
      %5289 = vst.msk [vmem:[%s253 + $0x48] sm:$0xf] %vm5270, %v5256
      %5290 = vst.msk [vmem:[%s253 + $0x4c] sm:$0xf] %vm5270, %v5257
      %5291 = vst.msk [vmem:[%s253 + $0x50] sm:$0xf] %vm5270, %v5258
      %5292 = vst.msk [vmem:[%s253 + $0x54] sm:$0xf] %vm5270, %v5259
      %5293 = vst.msk [vmem:[%s253 + $0x58] sm:$0xf] %vm5270, %v5260
      %5294 = vst.msk [vmem:[%s253 + $0x5c] sm:$0xf] %vm5270, %v5261
      %5295 = vst.msk [vmem:[%s253 + $0x60] sm:$0xf] %vm5270, %v5262
      %5296 = vst.msk [vmem:[%s253 + $0x64] sm:$0xf] %vm5270, %v5263
      %5297 = vst.msk [vmem:[%s253 + $0x68] sm:$0xf] %vm5270, %v5264
      %5298 = vst.msk [vmem:[%s253 + $0x6c] sm:$0xf] %vm5270, %v5265
      %5299 = vst.msk [vmem:[%s253 + $0x70] sm:$0xf] %vm5270, %v5266
      %5300 = vst.msk [vmem:[%s253 + $0x74] sm:$0xf] %vm5270, %v5267
      %5301 = vst.msk [vmem:[%s253 + $0x78] sm:$0xf] %vm5270, %v5268
      %5302 = vst.msk [vmem:[%s253 + $0x7c] sm:$0xf] %vm5270, %v5269
      %s5303 = smul.u32 32, %s17
      %p5304 = scmp.lt.s32.totalorder %s5303, 63
      %s5305 = scalar_select %p5304, %s5303, 63
      %s5306 = smul.addr %s5305, 4
      %s5307 = scalar_lea.vmem %s6, %s5306
      // Predicated region
      $region45: #{bottleneck_forward.4} parent=43 // pred_check
        %p5308 = pneg %p166
      $region46: #{bottleneck_forward.4} parent=43 // pred_check_branch
        %5310 = sbr.rel (%p5308) target = $region48
      $region47: #{bottleneck_forward.4} parent=43 // pred_region
        %s5311 = smul.u32 32, %s17
      $region48: #{bottleneck_forward.4} parent=43 // pred_fallthru
        _
    $region44: #{bottleneck_forward.4} parent=5 // pred_fallthru
      _
    %p5312 = scmp.le.s32.totalorder 2, %s12
    // Predicated region
    $region49: #{bottleneck_forward.4} parent=5 // pred_check
      %p5313 = pneg %p5312
    $region50: #{bottleneck_forward.4} parent=5 // pred_check_branch
      %5315 = sbr.rel (%p5313) target = $region52
    $region51: #{bottleneck_forward.4} parent=5 // pred_region
      %s5316 = ssub.s32 %s12, 2
      // Predicated region
      $region53: #{bottleneck_forward.4} parent=51 // pred_check
        %p5317 = pneg %p172
      $region54: #{bottleneck_forward.4} parent=51 // pred_check_branch
        %5319 = sbr.rel (%p5317) target = $region56
      $region55: #{bottleneck_forward.4} parent=51 // pred_region
        %s5320 = smul.u32 32, %s18
        %p5321 = scmp.lt.s32.totalorder %s5320, 63
        %s5322 = scalar_select %p5321, %s5320, 63
        %s5323 = smul.addr %s5322, 4
        %s5324 = scalar_lea.vmem %s6, %s5323
      $region56: #{bottleneck_forward.4} parent=51 // pred_fallthru
        _
    $region52: #{bottleneck_forward.4} parent=5 // pred_fallthru
      _
  $region6: #{bottleneck_forward.4} parent=0 // loop_footer
    %s16 = sadd.s32 1, %s12
  $region7: #{bottleneck_forward.4} parent=0 // loop_footer_branch
    %11 = sbr.rel target = $region3
  $region8: #{bottleneck_forward.4} parent=0 // loop_exit
    _

</llo_original>
